<compile_context>
chip_gen: v7x
topology: tpu7x:2x2x1
jax: 0.10.0
libtpu: 0.0.40
codegen_flags: <defaults>
</compile_context>

<pallas_src>
import functools

import jax
import jax.numpy as jnp
from jax.experimental import pallas as pl
from jax.experimental.pallas import tpu as pltpu


# ----------------------------------------------------------------------------
# Per-generation compiler params.
# ----------------------------------------------------------------------------
_VMEM_LIMIT_CACHE = [None]


def _vmem_limit_bytes():
    if _VMEM_LIMIT_CACHE[0] is None:
        limit = 48 * 1024 * 1024                     # safe for v7x (64 MiB/core)
        try:
            cap = getattr(pltpu.get_tpu_info(), "vmem_capacity_bytes", None)
            if cap is not None and cap >= 100 * 1024 * 1024:
                limit = 96 * 1024 * 1024             # v5e / v6e: 128 MiB physical
        except Exception:
            pass
        _VMEM_LIMIT_CACHE[0] = limit
    return _VMEM_LIMIT_CACHE[0]


def _compiler_params(semantics):
    return pltpu.CompilerParams(dimension_semantics=semantics,
                                vmem_limit_bytes=_vmem_limit_bytes())


# ----------------------------------------------------------------------------
# Tile pickers (divisor based; prefer an EVEN number of grid steps >= 4 so both
# v7x TensorCores stay balanced, multiples of 8 for sublane alignment, and
# multiples of 256 for MXU-friendly M tiles when divisors allow).
# ----------------------------------------------------------------------------
def _pick_rows_tile(total, cap=4096):
    divs = [d for d in range(1, total + 1)
            if total % d == 0 and (d % 8 == 0 or d == total) and d <= cap]
    if not divs:
        divs = [total]

    def best(pred):
        c = [d for d in divs if pred(d)]
        return max(c) if c else None

    b4 = best(lambda d: total // d >= 4 and (total // d) % 2 == 0)
    if b4 is not None:
        b4_256 = best(lambda d: total // d >= 4 and (total // d) % 2 == 0
                      and d % 256 == 0)
        if b4_256 is not None and b4_256 * 2 >= b4:
            return b4_256
        return b4
    b2 = best(lambda d: total // d >= 2)
    return b2 if b2 is not None else max(divs)


def _pick_batch_tile(total, cap):
    cap = max(1, cap)
    divs = [d for d in range(1, total + 1) if total % d == 0 and d <= cap]
    if not divs:
        return 1
    four = [d for d in divs if total // d >= 4 and (total // d) % 2 == 0]
    if four:
        return max(four)
    two = [d for d in divs if total // d >= 2]
    return max(two) if two else max(divs)


def _pick_hw_tile(hw, other_steps, cap):
    divs = [d for d in range(8, min(hw, cap) + 1, 8) if hw % d == 0]
    if hw <= cap:
        divs.append(hw)
    if not divs:
        return hw
    other_steps = max(1, other_steps)
    four = [d for d in divs if other_steps * (hw // d) >= 4]
    if four:
        return max(four)
    two = [d for d in divs if other_steps * (hw // d) >= 2]
    return max(two) if two else max(divs)


# ----------------------------------------------------------------------------
# Kernel 1: fused pointwise (1x1x1) conv + BN + ReLU with SPLIT outputs.
#   x:(M,480) bf16, w:(480,304) bf16, s/b:(1,304) f32 -> (M,192)|(M,96)|(M,16)
# ----------------------------------------------------------------------------
def _pointwise_split_kernel(x_ref, w_ref, s_ref, b_ref, o0_ref, o1_ref, o2_ref):
    acc = jnp.dot(x_ref[...], w_ref[...], preferred_element_type=jnp.float32)
    y = jnp.maximum(acc * s_ref[...] + b_ref[...], 0.0)
    c0 = o0_ref.shape[-1]
    c1 = o1_ref.shape[-1]
    o0_ref[...] = y[:, :c0].astype(o0_ref.dtype)
    o1_ref[...] = y[:, c0:c0 + c1].astype(o1_ref.dtype)
    o2_ref[...] = y[:, c0 + c1:].astype(o2_ref.dtype)


def pointwise_conv_bn_relu_split(x2d, unit, splits, *, row_cap=4096):
    M, Cin = x2d.shape
    c0, c1, c2 = splits
    assert c0 + c1 + c2 == unit["w"].shape[-1]
    tm = _pick_rows_tile(M, row_cap)
    return pl.pallas_call(
        _pointwise_split_kernel,
        out_shape=(jax.ShapeDtypeStruct((M, c0), jnp.bfloat16),
                   jax.ShapeDtypeStruct((M, c1), jnp.bfloat16),
                   jax.ShapeDtypeStruct((M, c2), jnp.bfloat16)),
        grid_spec=pltpu.PrefetchScalarGridSpec(
            num_scalar_prefetch=0,
            grid=(M // tm,),
            in_specs=[
                pl.BlockSpec((tm, Cin), lambda i: (i, 0)),
                pl.BlockSpec((Cin, c0 + c1 + c2), lambda i: (0, 0)),  # resident
                pl.BlockSpec((1, c0 + c1 + c2), lambda i: (0, 0)),
                pl.BlockSpec((1, c0 + c1 + c2), lambda i: (0, 0)),
            ],
            out_specs=[
                pl.BlockSpec((tm, c0), lambda i: (i, 0)),
                pl.BlockSpec((tm, c1), lambda i: (i, 0)),
                pl.BlockSpec((tm, c2), lambda i: (i, 0)),
            ],
        ),
        compiler_params=_compiler_params(("parallel",)),
    )(x2d, unit["w"], unit["s"], unit["b"])


# ----------------------------------------------------------------------------
# Kernel 2: 1x3x3 spatial conv + BN + ReLU (branch1, Cin=96) from a zero-padded
# halo tile.  x:(NT,H+2,W+2,Cin) bf16, w:(9,Cin,Cout) bf16 -> (NT,H,W,Cout).
# ----------------------------------------------------------------------------
def _spatial3x3_kernel(x_ref, w_ref, s_ref, b_ref, o_ref):
    tb, Hp, Wp, Cin = x_ref.shape
    H, W = Hp - 2, Wp - 2
    Cout = o_ref.shape[-1]
    x = x_ref[...]
    acc = None
    for dy in range(3):
        for dx in range(3):
            tap = x[:, dy:dy + H, dx:dx + W, :].reshape(tb * H * W, Cin)
            d = jnp.dot(tap, w_ref[dy * 3 + dx],
                        preferred_element_type=jnp.float32)
            acc = d if acc is None else acc + d
    y = jnp.maximum(acc * s_ref[...] + b_ref[...], 0.0)
    o_ref[...] = y.reshape(tb, H, W, Cout).astype(o_ref.dtype)


def spatial_conv3x3_bn_relu(x, unit, *, row_cap=8192):
    NT, H, W, Cin = x.shape
    Cout = unit["w"].shape[-1]
    xp = jnp.pad(x, ((0, 0), (1, 1), (1, 1), (0, 0)))          # zero pad H, W
    tb = _pick_batch_tile(NT, max(1, row_cap // (H * W)))
    return pl.pallas_call(
        _spatial3x3_kernel,
        out_shape=jax.ShapeDtypeStruct((NT, H, W, Cout), jnp.bfloat16),
        grid_spec=pltpu.PrefetchScalarGridSpec(
            num_scalar_prefetch=0,
            grid=(NT // tb,),
            in_specs=[
                pl.BlockSpec((tb, H + 2, W + 2, Cin), lambda i: (i, 0, 0, 0)),
                pl.BlockSpec((9, Cin, Cout), lambda i: (0, 0, 0)),
                pl.BlockSpec((1, Cout), lambda i: (0, 0)),
                pl.BlockSpec((1, Cout), lambda i: (0, 0)),
            ],
            out_specs=pl.BlockSpec((tb, H, W, Cout), lambda i: (i, 0, 0, 0)),
        ),
        compiler_params=_compiler_params(("parallel",)),
    )(xp, unit["w"], unit["s"], unit["b"])


# ----------------------------------------------------------------------------
# Kernel 3: 3x1x1 temporal conv + BN + ReLU from a T-padded halo tile.
#   x:(N,T+2,HW,Cin) bf16, w:(3,Cin,Cout) bf16 -> (N,T,HW,Cout) bf16
# ----------------------------------------------------------------------------
def _temporal3_kernel(x_ref, w_ref, s_ref, b_ref, o_ref):
    _, Tp, hw, Cin = x_ref.shape
    T = Tp - 2
    Cout = o_ref.shape[-1]
    x = x_ref[0]
    acc = jnp.dot(x[0:T].reshape(T * hw, Cin), w_ref[0],
                  preferred_element_type=jnp.float32)
    acc = acc + jnp.dot(x[1:T + 1].reshape(T * hw, Cin), w_ref[1],
                        preferred_element_type=jnp.float32)
    acc = acc + jnp.dot(x[2:T + 2].reshape(T * hw, Cin), w_ref[2],
                        preferred_element_type=jnp.float32)
    y = jnp.maximum(acc * s_ref[...] + b_ref[...], 0.0)
    o_ref[0] = y.reshape(T, hw, Cout).astype(o_ref.dtype)


def temporal_conv3_bn_relu(x, unit, *, row_cap=8192):
    N, T, HW, Cin = x.shape
    Cout = unit["w"].shape[-1]
    xp = jnp.pad(x, ((0, 0), (1, 1), (0, 0), (0, 0)))          # zero pad T
    cap = max(8, (row_cap // (T + 2)) // 8 * 8)
    thw = _pick_hw_tile(HW, N, cap)
    return pl.pallas_call(
        _temporal3_kernel,
        out_shape=jax.ShapeDtypeStruct((N, T, HW, Cout), jnp.bfloat16),
        grid_spec=pltpu.PrefetchScalarGridSpec(
            num_scalar_prefetch=0,
            grid=(N, HW // thw),
            in_specs=[
                pl.BlockSpec((1, T + 2, thw, Cin), lambda n, j: (n, 0, j, 0)),
                pl.BlockSpec((3, Cin, Cout), lambda n, j: (0, 0, 0)),
                pl.BlockSpec((1, Cout), lambda n, j: (0, 0)),
                pl.BlockSpec((1, Cout), lambda n, j: (0, 0)),
            ],
            out_specs=pl.BlockSpec((1, T, thw, Cout), lambda n, j: (n, 0, j, 0)),
        ),
        compiler_params=_compiler_params(("parallel", "parallel")),
    )(xp, unit["w"], unit["s"], unit["b"])


# ----------------------------------------------------------------------------
# Kernel 4 (branch2, fused STConv): 1x3x3 conv (im2col, K=9*Cin) + BN + ReLU
# followed by 3x1x1 conv + BN + ReLU, with the Cmid intermediate kept in VMEM.
#   x:(N,T,H+2,W+2,Cin) bf16, w1:(9*Cin,Cmid), w2:(3,Cmid,Cout)
# ----------------------------------------------------------------------------
def _stconv_fused_kernel(x_ref, w1_ref, s1_ref, b1_ref, w2_ref, s2_ref, b2_ref,
                         o_ref):
    _, T, Hp, Wp, Cin = x_ref.shape
    H, W = Hp - 2, Wp - 2
    Cmid = w1_ref.shape[-1]
    Cout = o_ref.shape[-1]
    x = x_ref[0]                                      # (T, H+2, W+2, Cin)

    # 1x3x3 conv as one im2col matmul (K = 9*Cin); much better MXU depth than
    # nine K=Cin dots for small Cin.
    taps = [x[:, dy:dy + H, dx:dx + W, :].reshape(T * H * W, Cin)
            for dy in range(3) for dx in range(3)]
    col = jnp.concatenate(taps, axis=-1)              # (T*H*W, 9*Cin)
    a1 = jnp.dot(col, w1_ref[...], preferred_element_type=jnp.float32)
    h = jnp.maximum(a1 * s1_ref[...] + b1_ref[...], 0.0).astype(jnp.bfloat16)
    h = h.reshape(T, H * W, Cmid)

    # 3x1x1 conv on the VMEM-resident intermediate (zero T-halo built in VMEM).
    zpad = jnp.zeros((1, H * W, Cmid), jnp.bfloat16)
    hp = jnp.concatenate([zpad, h, zpad], axis=0)     # (T+2, HW, Cmid)
    acc = jnp.dot(hp[0:T].reshape(T * H * W, Cmid), w2_ref[0],
                  preferred_element_type=jnp.float32)
    acc = acc + jnp.dot(hp[1:T + 1].reshape(T * H * W, Cmid), w2_ref[1],
                        preferred_element_type=jnp.float32)
    acc = acc + jnp.dot(hp[2:T + 2].reshape(T * H * W, Cmid), w2_ref[2],
                        preferred_element_type=jnp.float32)
    y = jnp.maximum(acc * s2_ref[...] + b2_ref[...], 0.0)
    o_ref[0] = y.reshape(T, H, W, Cout).astype(o_ref.dtype)


def stconv3_fused_bn_relu(x, unit_s, unit_t):
    # TODO(synk): whole-T per grid step; for very long clips T should be tiled
    # (requires recomputing 2 halo frames of the intermediate per tile).
    N, T, H, W, Cin = x.shape
    Cmid = unit_s["w"].shape[-1]
    Cout = unit_t["w"].shape[-1]
    w1 = unit_s["w"].reshape(9 * Cin, Cmid)
    xp = jnp.pad(x, ((0, 0), (0, 0), (1, 1), (1, 1), (0, 0)))  # zero pad H, W
    return pl.pallas_call(
        _stconv_fused_kernel,
        out_shape=jax.ShapeDtypeStruct((N, T, H, W, Cout), jnp.bfloat16),
        grid_spec=pltpu.PrefetchScalarGridSpec(
            num_scalar_prefetch=0,
            grid=(N,),
            in_specs=[
                pl.BlockSpec((1, T, H + 2, W + 2, Cin),
                             lambda n: (n, 0, 0, 0, 0)),
                pl.BlockSpec((9 * Cin, Cmid), lambda n: (0, 0)),
                pl.BlockSpec((1, Cmid), lambda n: (0, 0)),
                pl.BlockSpec((1, Cmid), lambda n: (0, 0)),
                pl.BlockSpec((3, Cmid, Cout), lambda n: (0, 0, 0)),
                pl.BlockSpec((1, Cout), lambda n: (0, 0)),
                pl.BlockSpec((1, Cout), lambda n: (0, 0)),
            ],
            out_specs=pl.BlockSpec((1, T, H, W, Cout),
                                   lambda n: (n, 0, 0, 0, 0)),
        ),
        compiler_params=_compiler_params(("parallel",)),
    )(xp, w1, unit_s["s"], unit_s["b"], unit_t["w"], unit_t["s"], unit_t["b"])


# ----------------------------------------------------------------------------
# Kernel 5 (branch3): 3x3x3 max-pool (stride 1, pad 1) + 1x1 conv + BN + ReLU.
# Frame-streaming: each grid step loads ONE (-inf padded) frame, computes its
# 3x3 spatial max into a 3-slot VMEM ring, and once 3 frames are banked emits
# one pooled output frame through the 1x1 conv.  Each input frame is read from
# HBM exactly once; per-step VMEM is one frame, not the whole volume.
# ----------------------------------------------------------------------------
def _maxpool3_pointwise_kernel(x_ref, w_ref, s_ref, b_ref, o_ref, ring_ref):
    j = pl.program_id(1)                              # padded frame index
    _, _, Hp, Wp, Cin = x_ref.shape
    H, W = Hp - 2, Wp - 2
    Cout = o_ref.shape[-1]
    x = x_ref[0, 0]                                   # (H+2, W+2, Cin)
    # Separable spatial max (W then H); -inf padding never wins.
    xw = jnp.maximum(jnp.maximum(x[:, 0:W], x[:, 1:W + 1]), x[:, 2:W + 2])
    xs = jnp.maximum(jnp.maximum(xw[0:H], xw[1:H + 1]), xw[2:H + 2])
    ring_ref[j % 3] = xs                              # bank this frame's max

    @pl.when(j >= 2)
    def _():
        pooled = jnp.maximum(jnp.maximum(ring_ref[0], ring_ref[1]), ring_ref[2])
        acc = jnp.dot(pooled.reshape(H * W, Cin), w_ref[...],
                      preferred_element_type=jnp.float32)
        y = jnp.maximum(acc * s_ref[...] + b_ref[...], 0.0)
        o_ref[0, 0] = y.reshape(H, W, Cout).astype(o_ref.dtype)


def maxpool3_pointwise_bn_relu(x, unit):
    N, T, H, W, Cin = x.shape
    Cout = unit["w"].shape[-1]
    xp = jnp.pad(x, ((0, 0), (1, 1), (1, 1), (1, 1), (0, 0)),
                 constant_values=-jnp.inf)            # -inf never wins the max
    return pl.pallas_call(
        _maxpool3_pointwise_kernel,
        out_shape=jax.ShapeDtypeStruct((N, T, H, W, Cout), jnp.bfloat16),
        grid_spec=pltpu.PrefetchScalarGridSpec(
            num_scalar_prefetch=0,
            grid=(N, T + 2),
            in_specs=[
                pl.BlockSpec((1, 1, H + 2, W + 2, Cin),
                             lambda n, j: (n, j, 0, 0, 0)),
                pl.BlockSpec((Cin, Cout), lambda n, j: (0, 0)),
                pl.BlockSpec((1, Cout), lambda n, j: (0, 0)),
                pl.BlockSpec((1, Cout), lambda n, j: (0, 0)),
            ],
            out_specs=pl.BlockSpec(
                (1, 1, H, W, Cout),
                lambda n, j: (n, jnp.maximum(j - 2, 0), 0, 0, 0)),
            scratch_shapes=[pltpu.VMEM((3, H, W, Cin), jnp.bfloat16)],
        ),
        compiler_params=_compiler_params(("parallel", "arbitrary")),
    )(xp, unit["w"], unit["s"], unit["b"])


# ----------------------------------------------------------------------------
# Deterministic parameter construction (synthetic, no checkpoint loading).
# ----------------------------------------------------------------------------
def _bn_fold(key, cout, conv_bias=None, eps=1e-3):
    kg, kb, km, kv = jax.random.split(key, 4)
    gamma = 1.0 + 0.1 * jax.random.normal(kg, (cout,), jnp.float32)
    beta = 0.1 * jax.random.normal(kb, (cout,), jnp.float32)
    mean = 0.05 * jax.random.normal(km, (cout,), jnp.float32)
    var = 1.0 + 0.1 * jax.random.uniform(kv, (cout,), jnp.float32)
    s = gamma * jax.lax.rsqrt(var + eps)
    b = beta - mean * s
    if conv_bias is not None:
        b = b + conv_bias * s              # fold the conv bias through the BN
    return s.reshape(1, cout), b.reshape(1, cout)


def _make_unit(key, k_taps, cin, cout, has_bias):
    kw, kb, kbn = jax.random.split(key, 3)
    w = (jax.random.normal(kw, (k_taps, cin, cout), jnp.float32)
         * (1.0 / jnp.sqrt(float(k_taps * cin))))
    cbias = (0.05 * jax.random.normal(kb, (cout,), jnp.float32)
             if has_bias else None)
    s, b = _bn_fold(kbn, cout, conv_bias=cbias)
    w = w.astype(jnp.bfloat16)
    if k_taps == 1:
        w = w[0]                                        # pointwise: (Cin, Cout)
    return {"w": w, "s": s, "b": b}


def init_mixed_4b_params(key):
    ks = jax.random.split(key, 8)
    b0 = _make_unit(ks[0], 1, 480, 192, has_bias=False)
    b1a = _make_unit(ks[1], 1, 480, 96, has_bias=False)
    b2a = _make_unit(ks[4], 1, 480, 16, has_bias=False)
    # Fuse the three 1x1x1 convs that read the same 480-channel input.
    pw = {"w": jnp.concatenate([b0["w"], b1a["w"], b2a["w"]], axis=-1),
          "s": jnp.concatenate([b0["s"], b1a["s"], b2a["s"]], axis=-1),
          "b": jnp.concatenate([b0["b"], b1a["b"], b2a["b"]], axis=-1)}
    return {
        "pw": pw,                                                   # 480 -> 304
        "b1b": _make_unit(ks[2], 9, 96, 208, has_bias=True),        # 1x3x3
        "b1c": _make_unit(ks[3], 3, 208, 208, has_bias=True),       # 3x1x1
        "b2b": _make_unit(ks[5], 9, 16, 48, has_bias=True),         # 1x3x3
        "b2c": _make_unit(ks[6], 3, 48, 48, has_bias=True),         # 3x1x1
        "b3": _make_unit(ks[7], 1, 480, 64, has_bias=False),        # after pool
    }


# ----------------------------------------------------------------------------
# Mixed_4b forward
# ----------------------------------------------------------------------------
def mixed_4b_forward(params, x_ncdhw):
    N, C, T, H, W = x_ncdhw.shape
    assert C == 480, C
    x = jnp.transpose(x_ncdhw, (0, 2, 3, 4, 1)).astype(jnp.bfloat16)  # NDHWC
    M = N * T * H * W

    # Fused 1x1x1 convs (branch0 | branch1a | branch2a): one read of the
    # 480-channel input, three separate kernel outputs (no XLA slicing pass).
    y0, y1f, y2f = pointwise_conv_bn_relu_split(
        x.reshape(M, 480), params["pw"], (192, 96, 16))

    # branch1: STConv3d = 1x3x3 conv then 3x1x1 conv (each with BN+ReLU).
    y1 = spatial_conv3x3_bn_relu(y1f.reshape(N * T, H, W, 96), params["b1b"])
    y1 = temporal_conv3_bn_relu(y1.reshape(N, T, H * W, 208), params["b1c"])

    # branch2: STConv3d 16 -> 48 -> 48, fully fused (intermediate stays in VMEM).
    y2 = stconv3_fused_bn_relu(y2f.reshape(N, T, H, W, 16),
                               params["b2b"], params["b2c"])

    # branch3: 3x3x3 max-pool fused with the following 1x1 conv (frame stream).
    y3 = maxpool3_pointwise_bn_relu(x, params["b3"])                  # (N,T,H,W,64)

    out = jnp.concatenate([
        y0.reshape(N, T, H, W, 192),
        y1.reshape(N, T, H, W, 208),
        y2,
        y3,
    ], axis=-1)                                                       # bf16, 512 ch
    # TODO(synk): consumer-side layout; kept NCDHW for parity with PyTorch.
    return jnp.transpose(out, (0, 4, 1, 2, 3))                        # NCDHW


# ----------------------------------------------------------------------------
# Pure-JAX f32 reference (eval-mode BN folded the same way) for validation.
# ----------------------------------------------------------------------------
def _ref_forward(params, x_ncdhw):
    x = jnp.transpose(x_ncdhw, (0, 2, 3, 4, 1)).astype(jnp.float32)
    N, T, H, W, _ = x.shape

    def pw(y, u):
        out = jnp.einsum("nthwc,cd->nthwd", y, u["w"].astype(jnp.float32))
        return jax.nn.relu(out * u["s"][0] + u["b"][0])

    def spatial(y, u):
        yp = jnp.pad(y, ((0, 0), (0, 0), (1, 1), (1, 1), (0, 0)))
        out = 0.0
        for dy in range(3):
            for dx in range(3):
                out = out + jnp.einsum(
                    "nthwc,cd->nthwd", yp[:, :, dy:dy + H, dx:dx + W, :],
                    u["w"][dy * 3 + dx].astype(jnp.float32))
        return jax.nn.relu(out * u["s"][0] + u["b"][0])

    def temporal(y, u):
        yp = jnp.pad(y, ((0, 0), (1, 1), (0, 0), (0, 0), (0, 0)))
        out = 0.0
        for dt in range(3):
            out = out + jnp.einsum("nthwc,cd->nthwd", yp[:, dt:dt + T],
                                   u["w"][dt].astype(jnp.float32))
        return jax.nn.relu(out * u["s"][0] + u["b"][0])

    def maxpool(y):
        yp = jnp.pad(y, ((0, 0), (1, 1), (1, 1), (1, 1), (0, 0)),
                     constant_values=-jnp.inf)
        out = jnp.full_like(y, -jnp.inf)
        for dt in range(3):
            for dy in range(3):
                for dx in range(3):
                    out = jnp.maximum(
                        out, yp[:, dt:dt + T, dy:dy + H, dx:dx + W, :])
        return out

    y = pw(x, params["pw"])
    y0, y1, y2 = y[..., :192], y[..., 192:288], y[..., 288:]
    y1 = temporal(spatial(y1, params["b1b"]), params["b1c"])
    y2 = temporal(spatial(y2, params["b2b"]), params["b2c"])
    y3 = pw(maxpool(x), params["b3"])
    out = jnp.concatenate([y0, y1, y2, y3], axis=-1)
    return jnp.transpose(out, (0, 4, 1, 2, 3))


# ----------------------------------------------------------------------------
if __name__ == "__main__":
    key = jax.random.PRNGKey(0)
    kp, kx = jax.random.split(key)

    params = init_mixed_4b_params(kp)

    # Mixed_4b requires 480 input channels; small spatial/temporal extents.
    N, C, T, H, W = 2, 480, 2, 8, 8
    x = jax.random.normal(kx, (N, C, T, H, W), dtype=jnp.float32)

    fwd = jax.jit(functools.partial(mixed_4b_forward, params))
    out = jax.block_until_ready(fwd(x))

    assert out.shape == (N, 192 + 208 + 48 + 64, T, H, W), out.shape
    outf = out.astype(jnp.float32)
    assert bool(jnp.all(jnp.isfinite(outf)))
    assert bool(jnp.all(outf >= 0.0))  # every branch ends in ReLU

    # Validate against a pure-JAX f32 reference (bf16 activations -> loose tol).
    ref = _ref_forward(params, x)
    max_err = float(jnp.max(jnp.abs(outf - ref)))
    scale = float(jnp.max(jnp.abs(ref))) + 1e-3
    assert max_err <= 0.05 * scale + 0.05, (max_err, scale)

    print("KERNEL_OK")
</pallas_src>

<mosaic_0001>
module attributes {stable_mosaic.version = 11 : i64} {
  func.func @_maxpool3_pointwise_kernel(%arg0: i32, %arg1: i32, %arg2: memref<1x1x10x10x480xbf16, #tpu.memory_space<vmem>>, %arg3: memref<480x64xbf16, #tpu.memory_space<vmem>>, %arg4: memref<1x64xf32, #tpu.memory_space<vmem>>, %arg5: memref<1x64xf32, #tpu.memory_space<vmem>>, %arg6: memref<1x1x8x8x64xbf16, #tpu.memory_space<vmem>>, %arg7: memref<3x8x8x480xbf16, #tpu.memory_space<vmem>>) attributes {dimension_semantics = [#tpu.dimension_semantics<parallel>, #tpu.dimension_semantics<arbitrary>], iteration_bounds = array<i64: 2, 4>, scalar_prefetch = 0 : i64, scratch_operands = 1 : i64, tpu.core_type = #tpu.core_type<tc>, window_params = [{transform_indices = @transform_0, window_bounds = array<i64: 1, 1, 10, 10, 480>}, {pipeline_mode = #tpu.pipeline_mode<synchronous>, transform_indices = @transform_1, window_bounds = array<i64: 480, 64>}, {pipeline_mode = #tpu.pipeline_mode<synchronous>, transform_indices = @transform_2, window_bounds = array<i64: 1, 64>}, {pipeline_mode = #tpu.pipeline_mode<synchronous>, transform_indices = @transform_3, window_bounds = array<i64: 1, 64>}, {transform_indices = @transform_4, window_bounds = array<i64: 1, 1, 8, 8, 64>}]} {
    %c0 = arith.constant 0 : index
    %c0_0 = arith.constant 0 : index
    %c0_1 = arith.constant 0 : index
    %c0_2 = arith.constant 0 : index
    %c0_3 = arith.constant 0 : index
    %0 = vector.load %arg2[%c0, %c0_0, %c0_1, %c0_2, %c0_3] : memref<1x1x10x10x480xbf16, #tpu.memory_space<vmem>>, vector<1x1x10x10x480xbf16>
    %1 = vector.shape_cast %0 : vector<1x1x10x10x480xbf16> to vector<10x10x480xbf16>
    %2 = vector.extract_strided_slice %1 {offsets = [0, 0, 0], sizes = [10, 8, 480], strides = [1, 1, 1]} : vector<10x10x480xbf16> to vector<10x8x480xbf16>
    %3 = vector.extract_strided_slice %1 {offsets = [0, 1, 0], sizes = [10, 8, 480], strides = [1, 1, 1]} : vector<10x10x480xbf16> to vector<10x8x480xbf16>
    %4 = arith.maximumf %2, %3 : vector<10x8x480xbf16>
    %5 = vector.extract_strided_slice %1 {offsets = [0, 2, 0], sizes = [10, 8, 480], strides = [1, 1, 1]} : vector<10x10x480xbf16> to vector<10x8x480xbf16>
    %6 = arith.maximumf %4, %5 : vector<10x8x480xbf16>
    %7 = vector.extract_strided_slice %6 {offsets = [0, 0, 0], sizes = [8, 8, 480], strides = [1, 1, 1]} : vector<10x8x480xbf16> to vector<8x8x480xbf16>
    %8 = vector.extract_strided_slice %6 {offsets = [1, 0, 0], sizes = [8, 8, 480], strides = [1, 1, 1]} : vector<10x8x480xbf16> to vector<8x8x480xbf16>
    %9 = arith.maximumf %7, %8 : vector<8x8x480xbf16>
    %10 = vector.extract_strided_slice %6 {offsets = [2, 0, 0], sizes = [8, 8, 480], strides = [1, 1, 1]} : vector<10x8x480xbf16> to vector<8x8x480xbf16>
    %11 = arith.maximumf %9, %10 : vector<8x8x480xbf16>
    %c3_i32 = arith.constant 3 : i32
    %c0_i32 = arith.constant 0 : i32
    %12 = arith.cmpi eq, %c3_i32, %c0_i32 : i32
    %c1_i32 = arith.constant 1 : i32
    %13 = arith.select %12, %c1_i32, %c3_i32 : i32
    %14 = arith.remsi %arg1, %13 : i32
    %c0_i32_4 = arith.constant 0 : i32
    %15 = arith.cmpi ne, %14, %c0_i32_4 : i32
    %c0_i32_5 = arith.constant 0 : i32
    %16 = arith.cmpi slt, %14, %c0_i32_5 : i32
    %c0_i32_6 = arith.constant 0 : i32
    %17 = arith.cmpi slt, %13, %c0_i32_6 : i32
    %18 = arith.xori %16, %17 : i1
    %19 = arith.andi %18, %15 : i1
    %20 = arith.addi %14, %13 : i32
    %21 = arith.select %19, %20, %14 : i32
    %22 = arith.index_cast %21 : i32 to index
    %c0_7 = arith.constant 0 : index
    %c0_8 = arith.constant 0 : index
    %c0_9 = arith.constant 0 : index
    %23 = vector.load %arg7[%22, %c0_7, %c0_8, %c0_9] : memref<3x8x8x480xbf16, #tpu.memory_space<vmem>>, vector<1x8x8x480xbf16>
    %24 = vector.shape_cast %23 : vector<1x8x8x480xbf16> to vector<8x8x480xbf16>
    %25 = vector.shape_cast %11 : vector<8x8x480xbf16> to vector<1x8x8x480xbf16>
    tpu.vector_store %arg7[%22, %c0_7, %c0_8, %c0_9], %25 {strides = array<i32>} : memref<3x8x8x480xbf16, #tpu.memory_space<vmem>>, vector<1x8x8x480xbf16>,
    %c2_i32 = arith.constant 2 : i32
    %26 = arith.cmpi sge, %arg1, %c2_i32 : i32
    %27 = arith.extui %26 : i1 to i32
    %c0_i32_10 = arith.constant 0 : i32
    %28 = arith.cmpi ne, %27, %c0_i32_10 : i32
    scf.if %28 {
      %c0_11 = arith.constant 0 : index
      %c0_12 = arith.constant 0 : index
      %c0_13 = arith.constant 0 : index
      %c0_14 = arith.constant 0 : index
      %29 = vector.load %arg7[%c0_11, %c0_12, %c0_13, %c0_14] : memref<3x8x8x480xbf16, #tpu.memory_space<vmem>>, vector<1x8x8x480xbf16>
      %30 = vector.shape_cast %29 : vector<1x8x8x480xbf16> to vector<8x8x480xbf16>
      %c1 = arith.constant 1 : index
      %c0_15 = arith.constant 0 : index
      %c0_16 = arith.constant 0 : index
      %c0_17 = arith.constant 0 : index
      %31 = vector.load %arg7[%c1, %c0_15, %c0_16, %c0_17] : memref<3x8x8x480xbf16, #tpu.memory_space<vmem>>, vector<1x8x8x480xbf16>
      %32 = vector.shape_cast %31 : vector<1x8x8x480xbf16> to vector<8x8x480xbf16>
      %33 = arith.maximumf %30, %32 : vector<8x8x480xbf16>
      %c2 = arith.constant 2 : index
      %c0_18 = arith.constant 0 : index
      %c0_19 = arith.constant 0 : index
      %c0_20 = arith.constant 0 : index
      %34 = vector.load %arg7[%c2, %c0_18, %c0_19, %c0_20] : memref<3x8x8x480xbf16, #tpu.memory_space<vmem>>, vector<1x8x8x480xbf16>
      %35 = vector.shape_cast %34 : vector<1x8x8x480xbf16> to vector<8x8x480xbf16>
      %36 = arith.maximumf %33, %35 : vector<8x8x480xbf16>
      %37 = vector.shape_cast %36 : vector<8x8x480xbf16> to vector<64x480xbf16>
      %c0_21 = arith.constant 0 : index
      %c0_22 = arith.constant 0 : index
      %38 = vector.load %arg3[%c0_21, %c0_22] : memref<480x64xbf16, #tpu.memory_space<vmem>>, vector<480x64xbf16>
      %cst = arith.constant dense<0.000000e+00> : vector<64x64xf32>
      %39 = tpu.matmul %37, %38, %cst {dimension_numbers = #tpu.dot_dimension_numbers<[1], [0], [0], [1], [0, 0, 1, 1], [], []>} : vector<64x480xbf16>, vector<480x64xbf16>, vector<64x64xf32> -> vector<64x64xf32>
      %c0_23 = arith.constant 0 : index
      %c0_24 = arith.constant 0 : index
      %40 = vector.load %arg4[%c0_23, %c0_24] : memref<1x64xf32, #tpu.memory_space<vmem>>, vector<1x64xf32>
      %41 = vector.broadcast %40 : vector<1x64xf32> to vector<64x64xf32>
      %42 = arith.mulf %39, %41 : vector<64x64xf32>
      %c0_25 = arith.constant 0 : index
      %c0_26 = arith.constant 0 : index
      %43 = vector.load %arg5[%c0_25, %c0_26] : memref<1x64xf32, #tpu.memory_space<vmem>>, vector<1x64xf32>
      %44 = vector.broadcast %43 : vector<1x64xf32> to vector<64x64xf32>
      %45 = arith.addf %42, %44 : vector<64x64xf32>
      %cst_27 = arith.constant 0.000000e+00 : f32
      %46 = vector.broadcast %cst_27 : f32 to vector<64x64xf32>
      %47 = arith.maximumf %45, %46 : vector<64x64xf32>
      %48 = vector.shape_cast %47 : vector<64x64xf32> to vector<8x8x64xf32>
      %49 = arith.truncf %48 : vector<8x8x64xf32> to vector<8x8x64xbf16>
      %c0_28 = arith.constant 0 : index
      %c0_29 = arith.constant 0 : index
      %c0_30 = arith.constant 0 : index
      %c0_31 = arith.constant 0 : index
      %c0_32 = arith.constant 0 : index
      %50 = vector.load %arg6[%c0_28, %c0_29, %c0_30, %c0_31, %c0_32] : memref<1x1x8x8x64xbf16, #tpu.memory_space<vmem>>, vector<1x1x8x8x64xbf16>
      %51 = vector.shape_cast %50 : vector<1x1x8x8x64xbf16> to vector<8x8x64xbf16>
      %52 = vector.shape_cast %49 : vector<8x8x64xbf16> to vector<1x1x8x8x64xbf16>
      tpu.vector_store %arg6[%c0_28, %c0_29, %c0_30, %c0_31, %c0_32], %52 {strides = array<i32>} : memref<1x1x8x8x64xbf16, #tpu.memory_space<vmem>>, vector<1x1x8x8x64xbf16>,
    } else {
    }
    return
  }
  func.func @transform_0(%arg0: i32, %arg1: i32) -> (i32, i32, i32, i32, i32) {
    %c0_i32 = arith.constant 0 : i32
    %c0_i32_0 = arith.constant 0 : i32
    %c0_i32_1 = arith.constant 0 : i32
    %c0_i32_2 = arith.constant 0 : i32
    return %arg0, %arg1, %c0_i32, %c0_i32_0, %c0_i32_1 : i32, i32, i32, i32, i32
  }
  func.func @transform_1(%arg0: i32, %arg1: i32) -> (i32, i32) {
    %c0_i32 = arith.constant 0 : i32
    %c0_i32_0 = arith.constant 0 : i32
    %c0_i32_1 = arith.constant 0 : i32
    return %c0_i32, %c0_i32_0 : i32, i32
  }
  func.func @transform_2(%arg0: i32, %arg1: i32) -> (i32, i32) {
    %c0_i32 = arith.constant 0 : i32
    %c0_i32_0 = arith.constant 0 : i32
    %c0_i32_1 = arith.constant 0 : i32
    return %c0_i32, %c0_i32_0 : i32, i32
  }
  func.func @transform_3(%arg0: i32, %arg1: i32) -> (i32, i32) {
    %c0_i32 = arith.constant 0 : i32
    %c0_i32_0 = arith.constant 0 : i32
    %c0_i32_1 = arith.constant 0 : i32
    return %c0_i32, %c0_i32_0 : i32, i32
  }
  func.func @transform_4(%arg0: i32, %arg1: i32) -> (i32, i32, i32, i32, i32) {
    %c2_i32 = arith.constant 2 : i32
    %0 = arith.subi %arg1, %c2_i32 : i32
    %c0_i32 = arith.constant 0 : i32
    %1 = arith.maxsi %0, %c0_i32 : i32
    %c0_i32_0 = arith.constant 0 : i32
    %c0_i32_1 = arith.constant 0 : i32
    %c0_i32_2 = arith.constant 0 : i32
    %c0_i32_3 = arith.constant 0 : i32
    return %arg0, %1, %c0_i32_0, %c0_i32_1, %c0_i32_2 : i32, i32, i32, i32, i32
  }
}

module attributes {stable_mosaic.version = 11 : i64} {
  func.func @_pointwise_split_kernel(%arg0: i32, %arg1: memref<64x480xbf16, #tpu.memory_space<vmem>>, %arg2: memref<480x304xbf16, #tpu.memory_space<vmem>>, %arg3: memref<1x304xf32, #tpu.memory_space<vmem>>, %arg4: memref<1x304xf32, #tpu.memory_space<vmem>>, %arg5: memref<64x192xbf16, #tpu.memory_space<vmem>>, %arg6: memref<64x96xbf16, #tpu.memory_space<vmem>>, %arg7: memref<64x16xbf16, #tpu.memory_space<vmem>>) attributes {dimension_semantics = [#tpu.dimension_semantics<parallel>], iteration_bounds = array<i64: 4>, scalar_prefetch = 0 : i64, scratch_operands = 0 : i64, tpu.core_type = #tpu.core_type<tc>, window_params = [{transform_indices = @transform_0, window_bounds = array<i64: 64, 480>}, {pipeline_mode = #tpu.pipeline_mode<synchronous>, transform_indices = @transform_1, window_bounds = array<i64: 480, 304>}, {pipeline_mode = #tpu.pipeline_mode<synchronous>, transform_indices = @transform_2, window_bounds = array<i64: 1, 304>}, {pipeline_mode = #tpu.pipeline_mode<synchronous>, transform_indices = @transform_3, window_bounds = array<i64: 1, 304>}, {transform_indices = @transform_4, window_bounds = array<i64: 64, 192>}, {transform_indices = @transform_5, window_bounds = array<i64: 64, 96>}, {transform_indices = @transform_6, window_bounds = array<i64: 64, 16>}]} {
    %c0 = arith.constant 0 : index
    %c0_0 = arith.constant 0 : index
    %0 = vector.load %arg1[%c0, %c0_0] : memref<64x480xbf16, #tpu.memory_space<vmem>>, vector<64x480xbf16>
    %c0_1 = arith.constant 0 : index
    %c0_2 = arith.constant 0 : index
    %1 = vector.load %arg2[%c0_1, %c0_2] : memref<480x304xbf16, #tpu.memory_space<vmem>>, vector<480x304xbf16>
    %cst = arith.constant dense<0.000000e+00> : vector<64x304xf32>
    %2 = tpu.matmul %0, %1, %cst {dimension_numbers = #tpu.dot_dimension_numbers<[1], [0], [0], [1], [0, 0, 1, 1], [], []>} : vector<64x480xbf16>, vector<480x304xbf16>, vector<64x304xf32> -> vector<64x304xf32>
    %c0_3 = arith.constant 0 : index
    %c0_4 = arith.constant 0 : index
    %3 = vector.load %arg3[%c0_3, %c0_4] : memref<1x304xf32, #tpu.memory_space<vmem>>, vector<1x304xf32>
    %4 = vector.broadcast %3 : vector<1x304xf32> to vector<64x304xf32>
    %5 = arith.mulf %2, %4 : vector<64x304xf32>
    %c0_5 = arith.constant 0 : index
    %c0_6 = arith.constant 0 : index
    %6 = vector.load %arg4[%c0_5, %c0_6] : memref<1x304xf32, #tpu.memory_space<vmem>>, vector<1x304xf32>
    %7 = vector.broadcast %6 : vector<1x304xf32> to vector<64x304xf32>
    %8 = arith.addf %5, %7 : vector<64x304xf32>
    %cst_7 = arith.constant 0.000000e+00 : f32
    %9 = vector.broadcast %cst_7 : f32 to vector<64x304xf32>
    %10 = arith.maximumf %8, %9 : vector<64x304xf32>
    %11 = vector.extract_strided_slice %10 {offsets = [0, 0], sizes = [64, 192], strides = [1, 1]} : vector<64x304xf32> to vector<64x192xf32>
    %12 = arith.truncf %11 : vector<64x192xf32> to vector<64x192xbf16>
    %c0_8 = arith.constant 0 : index
    %c0_9 = arith.constant 0 : index
    %13 = vector.load %arg5[%c0_8, %c0_9] : memref<64x192xbf16, #tpu.memory_space<vmem>>, vector<64x192xbf16>
    tpu.vector_store %arg5[%c0_8, %c0_9], %12 {strides = array<i32>} : memref<64x192xbf16, #tpu.memory_space<vmem>>, vector<64x192xbf16>,
    %14 = vector.extract_strided_slice %10 {offsets = [0, 192], sizes = [64, 96], strides = [1, 1]} : vector<64x304xf32> to vector<64x96xf32>
    %15 = arith.truncf %14 : vector<64x96xf32> to vector<64x96xbf16>
    %c0_10 = arith.constant 0 : index
    %c0_11 = arith.constant 0 : index
    %16 = vector.load %arg6[%c0_10, %c0_11] : memref<64x96xbf16, #tpu.memory_space<vmem>>, vector<64x96xbf16>
    tpu.vector_store %arg6[%c0_10, %c0_11], %15 {strides = array<i32>} : memref<64x96xbf16, #tpu.memory_space<vmem>>, vector<64x96xbf16>,
    %17 = vector.extract_strided_slice %10 {offsets = [0, 288], sizes = [64, 16], strides = [1, 1]} : vector<64x304xf32> to vector<64x16xf32>
    %18 = arith.truncf %17 : vector<64x16xf32> to vector<64x16xbf16>
    %c0_12 = arith.constant 0 : index
    %c0_13 = arith.constant 0 : index
    %19 = vector.load %arg7[%c0_12, %c0_13] : memref<64x16xbf16, #tpu.memory_space<vmem>>, vector<64x16xbf16>
    tpu.vector_store %arg7[%c0_12, %c0_13], %18 {strides = array<i32>} : memref<64x16xbf16, #tpu.memory_space<vmem>>, vector<64x16xbf16>,
    return
  }
  func.func @transform_0(%arg0: i32) -> (i32, i32) {
    %c0_i32 = arith.constant 0 : i32
    %c0_i32_0 = arith.constant 0 : i32
    return %arg0, %c0_i32 : i32, i32
  }
  func.func @transform_1(%arg0: i32) -> (i32, i32) {
    %c0_i32 = arith.constant 0 : i32
    %c0_i32_0 = arith.constant 0 : i32
    %c0_i32_1 = arith.constant 0 : i32
    return %c0_i32, %c0_i32_0 : i32, i32
  }
  func.func @transform_2(%arg0: i32) -> (i32, i32) {
    %c0_i32 = arith.constant 0 : i32
    %c0_i32_0 = arith.constant 0 : i32
    %c0_i32_1 = arith.constant 0 : i32
    return %c0_i32, %c0_i32_0 : i32, i32
  }
  func.func @transform_3(%arg0: i32) -> (i32, i32) {
    %c0_i32 = arith.constant 0 : i32
    %c0_i32_0 = arith.constant 0 : i32
    %c0_i32_1 = arith.constant 0 : i32
    return %c0_i32, %c0_i32_0 : i32, i32
  }
  func.func @transform_4(%arg0: i32) -> (i32, i32) {
    %c0_i32 = arith.constant 0 : i32
    %c0_i32_0 = arith.constant 0 : i32
    return %arg0, %c0_i32 : i32, i32
  }
  func.func @transform_5(%arg0: i32) -> (i32, i32) {
    %c0_i32 = arith.constant 0 : i32
    %c0_i32_0 = arith.constant 0 : i32
    return %arg0, %c0_i32 : i32, i32
  }
  func.func @transform_6(%arg0: i32) -> (i32, i32) {
    %c0_i32 = arith.constant 0 : i32
    %c0_i32_0 = arith.constant 0 : i32
    return %arg0, %c0_i32 : i32, i32
  }
}

module attributes {stable_mosaic.version = 11 : i64} {
  func.func @_stconv_fused_kernel(%arg0: i32, %arg1: memref<1x2x10x10x16xbf16, #tpu.memory_space<vmem>>, %arg2: memref<144x48xbf16, #tpu.memory_space<vmem>>, %arg3: memref<1x48xf32, #tpu.memory_space<vmem>>, %arg4: memref<1x48xf32, #tpu.memory_space<vmem>>, %arg5: memref<3x48x48xbf16, #tpu.memory_space<vmem>>, %arg6: memref<1x48xf32, #tpu.memory_space<vmem>>, %arg7: memref<1x48xf32, #tpu.memory_space<vmem>>, %arg8: memref<1x2x8x8x48xbf16, #tpu.memory_space<vmem>>) attributes {dimension_semantics = [#tpu.dimension_semantics<parallel>], iteration_bounds = array<i64: 2>, scalar_prefetch = 0 : i64, scratch_operands = 0 : i64, tpu.core_type = #tpu.core_type<tc>, window_params = [{transform_indices = @transform_0, window_bounds = array<i64: 1, 2, 10, 10, 16>}, {pipeline_mode = #tpu.pipeline_mode<synchronous>, transform_indices = @transform_1, window_bounds = array<i64: 144, 48>}, {pipeline_mode = #tpu.pipeline_mode<synchronous>, transform_indices = @transform_2, window_bounds = array<i64: 1, 48>}, {pipeline_mode = #tpu.pipeline_mode<synchronous>, transform_indices = @transform_3, window_bounds = array<i64: 1, 48>}, {pipeline_mode = #tpu.pipeline_mode<synchronous>, transform_indices = @transform_4, window_bounds = array<i64: 3, 48, 48>}, {pipeline_mode = #tpu.pipeline_mode<synchronous>, transform_indices = @transform_5, window_bounds = array<i64: 1, 48>}, {pipeline_mode = #tpu.pipeline_mode<synchronous>, transform_indices = @transform_6, window_bounds = array<i64: 1, 48>}, {transform_indices = @transform_7, window_bounds = array<i64: 1, 2, 8, 8, 48>}]} {
    %c0 = arith.constant 0 : index
    %c0_0 = arith.constant 0 : index
    %c0_1 = arith.constant 0 : index
    %c0_2 = arith.constant 0 : index
    %c0_3 = arith.constant 0 : index
    %0 = vector.load %arg1[%c0, %c0_0, %c0_1, %c0_2, %c0_3] : memref<1x2x10x10x16xbf16, #tpu.memory_space<vmem>>, vector<1x2x10x10x16xbf16>
    %1 = vector.shape_cast %0 : vector<1x2x10x10x16xbf16> to vector<2x10x10x16xbf16>
    %2 = vector.extract_strided_slice %1 {offsets = [0, 0, 0, 0], sizes = [2, 8, 8, 16], strides = [1, 1, 1, 1]} : vector<2x10x10x16xbf16> to vector<2x8x8x16xbf16>
    %3 = vector.shape_cast %2 : vector<2x8x8x16xbf16> to vector<128x16xbf16>
    %4 = vector.extract_strided_slice %1 {offsets = [0, 0, 1, 0], sizes = [2, 8, 8, 16], strides = [1, 1, 1, 1]} : vector<2x10x10x16xbf16> to vector<2x8x8x16xbf16>
    %5 = vector.shape_cast %4 : vector<2x8x8x16xbf16> to vector<128x16xbf16>
    %6 = vector.extract_strided_slice %1 {offsets = [0, 0, 2, 0], sizes = [2, 8, 8, 16], strides = [1, 1, 1, 1]} : vector<2x10x10x16xbf16> to vector<2x8x8x16xbf16>
    %7 = vector.shape_cast %6 : vector<2x8x8x16xbf16> to vector<128x16xbf16>
    %8 = vector.extract_strided_slice %1 {offsets = [0, 1, 0, 0], sizes = [2, 8, 8, 16], strides = [1, 1, 1, 1]} : vector<2x10x10x16xbf16> to vector<2x8x8x16xbf16>
    %9 = vector.shape_cast %8 : vector<2x8x8x16xbf16> to vector<128x16xbf16>
    %10 = vector.extract_strided_slice %1 {offsets = [0, 1, 1, 0], sizes = [2, 8, 8, 16], strides = [1, 1, 1, 1]} : vector<2x10x10x16xbf16> to vector<2x8x8x16xbf16>
    %11 = vector.shape_cast %10 : vector<2x8x8x16xbf16> to vector<128x16xbf16>
    %12 = vector.extract_strided_slice %1 {offsets = [0, 1, 2, 0], sizes = [2, 8, 8, 16], strides = [1, 1, 1, 1]} : vector<2x10x10x16xbf16> to vector<2x8x8x16xbf16>
    %13 = vector.shape_cast %12 : vector<2x8x8x16xbf16> to vector<128x16xbf16>
    %14 = vector.extract_strided_slice %1 {offsets = [0, 2, 0, 0], sizes = [2, 8, 8, 16], strides = [1, 1, 1, 1]} : vector<2x10x10x16xbf16> to vector<2x8x8x16xbf16>
    %15 = vector.shape_cast %14 : vector<2x8x8x16xbf16> to vector<128x16xbf16>
    %16 = vector.extract_strided_slice %1 {offsets = [0, 2, 1, 0], sizes = [2, 8, 8, 16], strides = [1, 1, 1, 1]} : vector<2x10x10x16xbf16> to vector<2x8x8x16xbf16>
    %17 = vector.shape_cast %16 : vector<2x8x8x16xbf16> to vector<128x16xbf16>
    %18 = vector.extract_strided_slice %1 {offsets = [0, 2, 2, 0], sizes = [2, 8, 8, 16], strides = [1, 1, 1, 1]} : vector<2x10x10x16xbf16> to vector<2x8x8x16xbf16>
    %19 = vector.shape_cast %18 : vector<2x8x8x16xbf16> to vector<128x16xbf16>
    %20 = tpu.concatenate %3, %5, %7, %9, %11, %13, %15, %17, %19 in 1 : vector<128x16xbf16>, vector<128x16xbf16>, vector<128x16xbf16>, vector<128x16xbf16>, vector<128x16xbf16>, vector<128x16xbf16>, vector<128x16xbf16>, vector<128x16xbf16>, vector<128x16xbf16> -> vector<128x144xbf16>
    %c0_4 = arith.constant 0 : index
    %c0_5 = arith.constant 0 : index
    %21 = vector.load %arg2[%c0_4, %c0_5] : memref<144x48xbf16, #tpu.memory_space<vmem>>, vector<144x48xbf16>
    %cst = arith.constant dense<0.000000e+00> : vector<128x48xf32>
    %22 = tpu.matmul %20, %21, %cst {dimension_numbers = #tpu.dot_dimension_numbers<[1], [0], [0], [1], [0, 0, 1, 1], [], []>} : vector<128x144xbf16>, vector<144x48xbf16>, vector<128x48xf32> -> vector<128x48xf32>
    %c0_6 = arith.constant 0 : index
    %c0_7 = arith.constant 0 : index
    %23 = vector.load %arg3[%c0_6, %c0_7] : memref<1x48xf32, #tpu.memory_space<vmem>>, vector<1x48xf32>
    %24 = vector.broadcast %23 : vector<1x48xf32> to vector<128x48xf32>
    %25 = arith.mulf %22, %24 : vector<128x48xf32>
    %c0_8 = arith.constant 0 : index
    %c0_9 = arith.constant 0 : index
    %26 = vector.load %arg4[%c0_8, %c0_9] : memref<1x48xf32, #tpu.memory_space<vmem>>, vector<1x48xf32>
    %27 = vector.broadcast %26 : vector<1x48xf32> to vector<128x48xf32>
    %28 = arith.addf %25, %27 : vector<128x48xf32>
    %cst_10 = arith.constant 0.000000e+00 : f32
    %29 = vector.broadcast %cst_10 : f32 to vector<128x48xf32>
    %30 = arith.maximumf %28, %29 : vector<128x48xf32>
    %31 = arith.truncf %30 : vector<128x48xf32> to vector<128x48xbf16>
    %32 = vector.shape_cast %31 : vector<128x48xbf16> to vector<2x64x48xbf16>
    %cst_11 = arith.constant 0.000000e+00 : bf16
    %33 = vector.broadcast %cst_11 : bf16 to vector<1x64x48xbf16>
    %34 = tpu.concatenate %33, %32, %33 in 0 : vector<1x64x48xbf16>, vector<2x64x48xbf16>, vector<1x64x48xbf16> -> vector<4x64x48xbf16>
    %35 = vector.extract_strided_slice %34 {offsets = [0, 0, 0], sizes = [2, 64, 48], strides = [1, 1, 1]} : vector<4x64x48xbf16> to vector<2x64x48xbf16>
    %36 = vector.shape_cast %35 : vector<2x64x48xbf16> to vector<128x48xbf16>
    %c0_12 = arith.constant 0 : index
    %c0_13 = arith.constant 0 : index
    %c0_14 = arith.constant 0 : index
    %37 = vector.load %arg5[%c0_12, %c0_13, %c0_14] : memref<3x48x48xbf16, #tpu.memory_space<vmem>>, vector<1x48x48xbf16>
    %38 = vector.shape_cast %37 : vector<1x48x48xbf16> to vector<48x48xbf16>
    %cst_15 = arith.constant dense<0.000000e+00> : vector<128x48xf32>
    %39 = tpu.matmul %36, %38, %cst_15 {dimension_numbers = #tpu.dot_dimension_numbers<[1], [0], [0], [1], [0, 0, 1, 1], [], []>} : vector<128x48xbf16>, vector<48x48xbf16>, vector<128x48xf32> -> vector<128x48xf32>
    %40 = vector.extract_strided_slice %34 {offsets = [1, 0, 0], sizes = [2, 64, 48], strides = [1, 1, 1]} : vector<4x64x48xbf16> to vector<2x64x48xbf16>
    %41 = vector.shape_cast %40 : vector<2x64x48xbf16> to vector<128x48xbf16>
    %c1 = arith.constant 1 : index
    %c0_16 = arith.constant 0 : index
    %c0_17 = arith.constant 0 : index
    %42 = vector.load %arg5[%c1, %c0_16, %c0_17] : memref<3x48x48xbf16, #tpu.memory_space<vmem>>, vector<1x48x48xbf16>
    %43 = vector.shape_cast %42 : vector<1x48x48xbf16> to vector<48x48xbf16>
    %cst_18 = arith.constant dense<0.000000e+00> : vector<128x48xf32>
    %44 = tpu.matmul %41, %43, %cst_18 {dimension_numbers = #tpu.dot_dimension_numbers<[1], [0], [0], [1], [0, 0, 1, 1], [], []>} : vector<128x48xbf16>, vector<48x48xbf16>, vector<128x48xf32> -> vector<128x48xf32>
    %45 = arith.addf %39, %44 : vector<128x48xf32>
    %46 = vector.extract_strided_slice %34 {offsets = [2, 0, 0], sizes = [2, 64, 48], strides = [1, 1, 1]} : vector<4x64x48xbf16> to vector<2x64x48xbf16>
    %47 = vector.shape_cast %46 : vector<2x64x48xbf16> to vector<128x48xbf16>
    %c2 = arith.constant 2 : index
    %c0_19 = arith.constant 0 : index
    %c0_20 = arith.constant 0 : index
    %48 = vector.load %arg5[%c2, %c0_19, %c0_20] : memref<3x48x48xbf16, #tpu.memory_space<vmem>>, vector<1x48x48xbf16>
    %49 = vector.shape_cast %48 : vector<1x48x48xbf16> to vector<48x48xbf16>
    %cst_21 = arith.constant dense<0.000000e+00> : vector<128x48xf32>
    %50 = tpu.matmul %47, %49, %cst_21 {dimension_numbers = #tpu.dot_dimension_numbers<[1], [0], [0], [1], [0, 0, 1, 1], [], []>} : vector<128x48xbf16>, vector<48x48xbf16>, vector<128x48xf32> -> vector<128x48xf32>
    %51 = arith.addf %45, %50 : vector<128x48xf32>
    %c0_22 = arith.constant 0 : index
    %c0_23 = arith.constant 0 : index
    %52 = vector.load %arg6[%c0_22, %c0_23] : memref<1x48xf32, #tpu.memory_space<vmem>>, vector<1x48xf32>
    %53 = vector.broadcast %52 : vector<1x48xf32> to vector<128x48xf32>
    %54 = arith.mulf %51, %53 : vector<128x48xf32>
    %c0_24 = arith.constant 0 : index
    %c0_25 = arith.constant 0 : index
    %55 = vector.load %arg7[%c0_24, %c0_25] : memref<1x48xf32, #tpu.memory_space<vmem>>, vector<1x48xf32>
    %56 = vector.broadcast %55 : vector<1x48xf32> to vector<128x48xf32>
    %57 = arith.addf %54, %56 : vector<128x48xf32>
    %cst_26 = arith.constant 0.000000e+00 : f32
    %58 = vector.broadcast %cst_26 : f32 to vector<128x48xf32>
    %59 = arith.maximumf %57, %58 : vector<128x48xf32>
    %60 = vector.shape_cast %59 : vector<128x48xf32> to vector<2x8x8x48xf32>
    %61 = arith.truncf %60 : vector<2x8x8x48xf32> to vector<2x8x8x48xbf16>
    %c0_27 = arith.constant 0 : index
    %c0_28 = arith.constant 0 : index
    %c0_29 = arith.constant 0 : index
    %c0_30 = arith.constant 0 : index
    %c0_31 = arith.constant 0 : index
    %62 = vector.load %arg8[%c0_27, %c0_28, %c0_29, %c0_30, %c0_31] : memref<1x2x8x8x48xbf16, #tpu.memory_space<vmem>>, vector<1x2x8x8x48xbf16>
    %63 = vector.shape_cast %62 : vector<1x2x8x8x48xbf16> to vector<2x8x8x48xbf16>
    %64 = vector.shape_cast %61 : vector<2x8x8x48xbf16> to vector<1x2x8x8x48xbf16>
    tpu.vector_store %arg8[%c0_27, %c0_28, %c0_29, %c0_30, %c0_31], %64 {strides = array<i32>} : memref<1x2x8x8x48xbf16, #tpu.memory_space<vmem>>, vector<1x2x8x8x48xbf16>,
    return
  }
  func.func @transform_0(%arg0: i32) -> (i32, i32, i32, i32, i32) {
    %c0_i32 = arith.constant 0 : i32
    %c0_i32_0 = arith.constant 0 : i32
    %c0_i32_1 = arith.constant 0 : i32
    %c0_i32_2 = arith.constant 0 : i32
    %c0_i32_3 = arith.constant 0 : i32
    return %arg0, %c0_i32, %c0_i32_0, %c0_i32_1, %c0_i32_2 : i32, i32, i32, i32, i32
  }
  func.func @transform_1(%arg0: i32) -> (i32, i32) {
    %c0_i32 = arith.constant 0 : i32
    %c0_i32_0 = arith.constant 0 : i32
    %c0_i32_1 = arith.constant 0 : i32
    return %c0_i32, %c0_i32_0 : i32, i32
  }
  func.func @transform_2(%arg0: i32) -> (i32, i32) {
    %c0_i32 = arith.constant 0 : i32
    %c0_i32_0 = arith.constant 0 : i32
    %c0_i32_1 = arith.constant 0 : i32
    return %c0_i32, %c0_i32_0 : i32, i32
  }
  func.func @transform_3(%arg0: i32) -> (i32, i32) {
    %c0_i32 = arith.constant 0 : i32
    %c0_i32_0 = arith.constant 0 : i32
    %c0_i32_1 = arith.constant 0 : i32
    return %c0_i32, %c0_i32_0 : i32, i32
  }
  func.func @transform_4(%arg0: i32) -> (i32, i32, i32) {
    %c0_i32 = arith.constant 0 : i32
    %c0_i32_0 = arith.constant 0 : i32
    %c0_i32_1 = arith.constant 0 : i32
    %c0_i32_2 = arith.constant 0 : i32
    return %c0_i32, %c0_i32_0, %c0_i32_1 : i32, i32, i32
  }
  func.func @transform_5(%arg0: i32) -> (i32, i32) {
    %c0_i32 = arith.constant 0 : i32
    %c0_i32_0 = arith.constant 0 : i32
    %c0_i32_1 = arith.constant 0 : i32
    return %c0_i32, %c0_i32_0 : i32, i32
  }
  func.func @transform_6(%arg0: i32) -> (i32, i32) {
    %c0_i32 = arith.constant 0 : i32
    %c0_i32_0 = arith.constant 0 : i32
    %c0_i32_1 = arith.constant 0 : i32
    return %c0_i32, %c0_i32_0 : i32, i32
  }
  func.func @transform_7(%arg0: i32) -> (i32, i32, i32, i32, i32) {
    %c0_i32 = arith.constant 0 : i32
    %c0_i32_0 = arith.constant 0 : i32
    %c0_i32_1 = arith.constant 0 : i32
    %c0_i32_2 = arith.constant 0 : i32
    %c0_i32_3 = arith.constant 0 : i32
    return %arg0, %c0_i32, %c0_i32_0, %c0_i32_1, %c0_i32_2 : i32, i32, i32, i32, i32
  }
}

module attributes {stable_mosaic.version = 11 : i64} {
  func.func @_spatial3x3_kernel(%arg0: i32, %arg1: memref<1x10x10x96xbf16, #tpu.memory_space<vmem>>, %arg2: memref<9x96x208xbf16, #tpu.memory_space<vmem>>, %arg3: memref<1x208xf32, #tpu.memory_space<vmem>>, %arg4: memref<1x208xf32, #tpu.memory_space<vmem>>, %arg5: memref<1x8x8x208xbf16, #tpu.memory_space<vmem>>) attributes {dimension_semantics = [#tpu.dimension_semantics<parallel>], iteration_bounds = array<i64: 4>, scalar_prefetch = 0 : i64, scratch_operands = 0 : i64, tpu.core_type = #tpu.core_type<tc>, window_params = [{transform_indices = @transform_0, window_bounds = array<i64: 1, 10, 10, 96>}, {pipeline_mode = #tpu.pipeline_mode<synchronous>, transform_indices = @transform_1, window_bounds = array<i64: 9, 96, 208>}, {pipeline_mode = #tpu.pipeline_mode<synchronous>, transform_indices = @transform_2, window_bounds = array<i64: 1, 208>}, {pipeline_mode = #tpu.pipeline_mode<synchronous>, transform_indices = @transform_3, window_bounds = array<i64: 1, 208>}, {transform_indices = @transform_4, window_bounds = array<i64: 1, 8, 8, 208>}]} {
    %c0 = arith.constant 0 : index
    %c0_0 = arith.constant 0 : index
    %c0_1 = arith.constant 0 : index
    %c0_2 = arith.constant 0 : index
    %0 = vector.load %arg1[%c0, %c0_0, %c0_1, %c0_2] : memref<1x10x10x96xbf16, #tpu.memory_space<vmem>>, vector<1x10x10x96xbf16>
    %1 = vector.extract_strided_slice %0 {offsets = [0, 0, 0, 0], sizes = [1, 8, 8, 96], strides = [1, 1, 1, 1]} : vector<1x10x10x96xbf16> to vector<1x8x8x96xbf16>
    %2 = vector.shape_cast %1 : vector<1x8x8x96xbf16> to vector<64x96xbf16>
    %c0_3 = arith.constant 0 : index
    %c0_4 = arith.constant 0 : index
    %c0_5 = arith.constant 0 : index
    %3 = vector.load %arg2[%c0_3, %c0_4, %c0_5] : memref<9x96x208xbf16, #tpu.memory_space<vmem>>, vector<1x96x208xbf16>
    %4 = vector.shape_cast %3 : vector<1x96x208xbf16> to vector<96x208xbf16>
    %cst = arith.constant dense<0.000000e+00> : vector<64x208xf32>
    %5 = tpu.matmul %2, %4, %cst {dimension_numbers = #tpu.dot_dimension_numbers<[1], [0], [0], [1], [0, 0, 1, 1], [], []>} : vector<64x96xbf16>, vector<96x208xbf16>, vector<64x208xf32> -> vector<64x208xf32>
    %6 = vector.extract_strided_slice %0 {offsets = [0, 0, 1, 0], sizes = [1, 8, 8, 96], strides = [1, 1, 1, 1]} : vector<1x10x10x96xbf16> to vector<1x8x8x96xbf16>
    %7 = vector.shape_cast %6 : vector<1x8x8x96xbf16> to vector<64x96xbf16>
    %c1 = arith.constant 1 : index
    %c0_6 = arith.constant 0 : index
    %c0_7 = arith.constant 0 : index
    %8 = vector.load %arg2[%c1, %c0_6, %c0_7] : memref<9x96x208xbf16, #tpu.memory_space<vmem>>, vector<1x96x208xbf16>
    %9 = vector.shape_cast %8 : vector<1x96x208xbf16> to vector<96x208xbf16>
    %cst_8 = arith.constant dense<0.000000e+00> : vector<64x208xf32>
    %10 = tpu.matmul %7, %9, %cst_8 {dimension_numbers = #tpu.dot_dimension_numbers<[1], [0], [0], [1], [0, 0, 1, 1], [], []>} : vector<64x96xbf16>, vector<96x208xbf16>, vector<64x208xf32> -> vector<64x208xf32>
    %11 = arith.addf %5, %10 : vector<64x208xf32>
    %12 = vector.extract_strided_slice %0 {offsets = [0, 0, 2, 0], sizes = [1, 8, 8, 96], strides = [1, 1, 1, 1]} : vector<1x10x10x96xbf16> to vector<1x8x8x96xbf16>
    %13 = vector.shape_cast %12 : vector<1x8x8x96xbf16> to vector<64x96xbf16>
    %c2 = arith.constant 2 : index
    %c0_9 = arith.constant 0 : index
    %c0_10 = arith.constant 0 : index
    %14 = vector.load %arg2[%c2, %c0_9, %c0_10] : memref<9x96x208xbf16, #tpu.memory_space<vmem>>, vector<1x96x208xbf16>
    %15 = vector.shape_cast %14 : vector<1x96x208xbf16> to vector<96x208xbf16>
    %cst_11 = arith.constant dense<0.000000e+00> : vector<64x208xf32>
    %16 = tpu.matmul %13, %15, %cst_11 {dimension_numbers = #tpu.dot_dimension_numbers<[1], [0], [0], [1], [0, 0, 1, 1], [], []>} : vector<64x96xbf16>, vector<96x208xbf16>, vector<64x208xf32> -> vector<64x208xf32>
    %17 = arith.addf %11, %16 : vector<64x208xf32>
    %18 = vector.extract_strided_slice %0 {offsets = [0, 1, 0, 0], sizes = [1, 8, 8, 96], strides = [1, 1, 1, 1]} : vector<1x10x10x96xbf16> to vector<1x8x8x96xbf16>
    %19 = vector.shape_cast %18 : vector<1x8x8x96xbf16> to vector<64x96xbf16>
    %c3 = arith.constant 3 : index
    %c0_12 = arith.constant 0 : index
    %c0_13 = arith.constant 0 : index
    %20 = vector.load %arg2[%c3, %c0_12, %c0_13] : memref<9x96x208xbf16, #tpu.memory_space<vmem>>, vector<1x96x208xbf16>
    %21 = vector.shape_cast %20 : vector<1x96x208xbf16> to vector<96x208xbf16>
    %cst_14 = arith.constant dense<0.000000e+00> : vector<64x208xf32>
    %22 = tpu.matmul %19, %21, %cst_14 {dimension_numbers = #tpu.dot_dimension_numbers<[1], [0], [0], [1], [0, 0, 1, 1], [], []>} : vector<64x96xbf16>, vector<96x208xbf16>, vector<64x208xf32> -> vector<64x208xf32>
    %23 = arith.addf %17, %22 : vector<64x208xf32>
    %24 = vector.extract_strided_slice %0 {offsets = [0, 1, 1, 0], sizes = [1, 8, 8, 96], strides = [1, 1, 1, 1]} : vector<1x10x10x96xbf16> to vector<1x8x8x96xbf16>
    %25 = vector.shape_cast %24 : vector<1x8x8x96xbf16> to vector<64x96xbf16>
    %c4 = arith.constant 4 : index
    %c0_15 = arith.constant 0 : index
    %c0_16 = arith.constant 0 : index
    %26 = vector.load %arg2[%c4, %c0_15, %c0_16] : memref<9x96x208xbf16, #tpu.memory_space<vmem>>, vector<1x96x208xbf16>
    %27 = vector.shape_cast %26 : vector<1x96x208xbf16> to vector<96x208xbf16>
    %cst_17 = arith.constant dense<0.000000e+00> : vector<64x208xf32>
    %28 = tpu.matmul %25, %27, %cst_17 {dimension_numbers = #tpu.dot_dimension_numbers<[1], [0], [0], [1], [0, 0, 1, 1], [], []>} : vector<64x96xbf16>, vector<96x208xbf16>, vector<64x208xf32> -> vector<64x208xf32>
    %29 = arith.addf %23, %28 : vector<64x208xf32>
    %30 = vector.extract_strided_slice %0 {offsets = [0, 1, 2, 0], sizes = [1, 8, 8, 96], strides = [1, 1, 1, 1]} : vector<1x10x10x96xbf16> to vector<1x8x8x96xbf16>
    %31 = vector.shape_cast %30 : vector<1x8x8x96xbf16> to vector<64x96xbf16>
    %c5 = arith.constant 5 : index
    %c0_18 = arith.constant 0 : index
    %c0_19 = arith.constant 0 : index
    %32 = vector.load %arg2[%c5, %c0_18, %c0_19] : memref<9x96x208xbf16, #tpu.memory_space<vmem>>, vector<1x96x208xbf16>
    %33 = vector.shape_cast %32 : vector<1x96x208xbf16> to vector<96x208xbf16>
    %cst_20 = arith.constant dense<0.000000e+00> : vector<64x208xf32>
    %34 = tpu.matmul %31, %33, %cst_20 {dimension_numbers = #tpu.dot_dimension_numbers<[1], [0], [0], [1], [0, 0, 1, 1], [], []>} : vector<64x96xbf16>, vector<96x208xbf16>, vector<64x208xf32> -> vector<64x208xf32>
    %35 = arith.addf %29, %34 : vector<64x208xf32>
    %36 = vector.extract_strided_slice %0 {offsets = [0, 2, 0, 0], sizes = [1, 8, 8, 96], strides = [1, 1, 1, 1]} : vector<1x10x10x96xbf16> to vector<1x8x8x96xbf16>
    %37 = vector.shape_cast %36 : vector<1x8x8x96xbf16> to vector<64x96xbf16>
    %c6 = arith.constant 6 : index
    %c0_21 = arith.constant 0 : index
    %c0_22 = arith.constant 0 : index
    %38 = vector.load %arg2[%c6, %c0_21, %c0_22] : memref<9x96x208xbf16, #tpu.memory_space<vmem>>, vector<1x96x208xbf16>
    %39 = vector.shape_cast %38 : vector<1x96x208xbf16> to vector<96x208xbf16>
    %cst_23 = arith.constant dense<0.000000e+00> : vector<64x208xf32>
    %40 = tpu.matmul %37, %39, %cst_23 {dimension_numbers = #tpu.dot_dimension_numbers<[1], [0], [0], [1], [0, 0, 1, 1], [], []>} : vector<64x96xbf16>, vector<96x208xbf16>, vector<64x208xf32> -> vector<64x208xf32>
    %41 = arith.addf %35, %40 : vector<64x208xf32>
    %42 = vector.extract_strided_slice %0 {offsets = [0, 2, 1, 0], sizes = [1, 8, 8, 96], strides = [1, 1, 1, 1]} : vector<1x10x10x96xbf16> to vector<1x8x8x96xbf16>
    %43 = vector.shape_cast %42 : vector<1x8x8x96xbf16> to vector<64x96xbf16>
    %c7 = arith.constant 7 : index
    %c0_24 = arith.constant 0 : index
    %c0_25 = arith.constant 0 : index
    %44 = vector.load %arg2[%c7, %c0_24, %c0_25] : memref<9x96x208xbf16, #tpu.memory_space<vmem>>, vector<1x96x208xbf16>
    %45 = vector.shape_cast %44 : vector<1x96x208xbf16> to vector<96x208xbf16>
    %cst_26 = arith.constant dense<0.000000e+00> : vector<64x208xf32>
    %46 = tpu.matmul %43, %45, %cst_26 {dimension_numbers = #tpu.dot_dimension_numbers<[1], [0], [0], [1], [0, 0, 1, 1], [], []>} : vector<64x96xbf16>, vector<96x208xbf16>, vector<64x208xf32> -> vector<64x208xf32>
    %47 = arith.addf %41, %46 : vector<64x208xf32>
    %48 = vector.extract_strided_slice %0 {offsets = [0, 2, 2, 0], sizes = [1, 8, 8, 96], strides = [1, 1, 1, 1]} : vector<1x10x10x96xbf16> to vector<1x8x8x96xbf16>
    %49 = vector.shape_cast %48 : vector<1x8x8x96xbf16> to vector<64x96xbf16>
    %c8 = arith.constant 8 : index
    %c0_27 = arith.constant 0 : index
    %c0_28 = arith.constant 0 : index
    %50 = vector.load %arg2[%c8, %c0_27, %c0_28] : memref<9x96x208xbf16, #tpu.memory_space<vmem>>, vector<1x96x208xbf16>
    %51 = vector.shape_cast %50 : vector<1x96x208xbf16> to vector<96x208xbf16>
    %cst_29 = arith.constant dense<0.000000e+00> : vector<64x208xf32>
    %52 = tpu.matmul %49, %51, %cst_29 {dimension_numbers = #tpu.dot_dimension_numbers<[1], [0], [0], [1], [0, 0, 1, 1], [], []>} : vector<64x96xbf16>, vector<96x208xbf16>, vector<64x208xf32> -> vector<64x208xf32>
    %53 = arith.addf %47, %52 : vector<64x208xf32>
    %c0_30 = arith.constant 0 : index
    %c0_31 = arith.constant 0 : index
    %54 = vector.load %arg3[%c0_30, %c0_31] : memref<1x208xf32, #tpu.memory_space<vmem>>, vector<1x208xf32>
    %55 = vector.broadcast %54 : vector<1x208xf32> to vector<64x208xf32>
    %56 = arith.mulf %53, %55 : vector<64x208xf32>
    %c0_32 = arith.constant 0 : index
    %c0_33 = arith.constant 0 : index
    %57 = vector.load %arg4[%c0_32, %c0_33] : memref<1x208xf32, #tpu.memory_space<vmem>>, vector<1x208xf32>
    %58 = vector.broadcast %57 : vector<1x208xf32> to vector<64x208xf32>
    %59 = arith.addf %56, %58 : vector<64x208xf32>
    %cst_34 = arith.constant 0.000000e+00 : f32
    %60 = vector.broadcast %cst_34 : f32 to vector<64x208xf32>
    %61 = arith.maximumf %59, %60 : vector<64x208xf32>
    %62 = vector.shape_cast %61 : vector<64x208xf32> to vector<1x8x8x208xf32>
    %63 = arith.truncf %62 : vector<1x8x8x208xf32> to vector<1x8x8x208xbf16>
    %c0_35 = arith.constant 0 : index
    %c0_36 = arith.constant 0 : index
    %c0_37 = arith.constant 0 : index
    %c0_38 = arith.constant 0 : index
    %64 = vector.load %arg5[%c0_35, %c0_36, %c0_37, %c0_38] : memref<1x8x8x208xbf16, #tpu.memory_space<vmem>>, vector<1x8x8x208xbf16>
    tpu.vector_store %arg5[%c0_35, %c0_36, %c0_37, %c0_38], %63 {strides = array<i32>} : memref<1x8x8x208xbf16, #tpu.memory_space<vmem>>, vector<1x8x8x208xbf16>,
    return
  }
  func.func @transform_0(%arg0: i32) -> (i32, i32, i32, i32) {
    %c0_i32 = arith.constant 0 : i32
    %c0_i32_0 = arith.constant 0 : i32
    %c0_i32_1 = arith.constant 0 : i32
    %c0_i32_2 = arith.constant 0 : i32
    return %arg0, %c0_i32, %c0_i32_0, %c0_i32_1 : i32, i32, i32, i32
  }
  func.func @transform_1(%arg0: i32) -> (i32, i32, i32) {
    %c0_i32 = arith.constant 0 : i32
    %c0_i32_0 = arith.constant 0 : i32
    %c0_i32_1 = arith.constant 0 : i32
    %c0_i32_2 = arith.constant 0 : i32
    return %c0_i32, %c0_i32_0, %c0_i32_1 : i32, i32, i32
  }
  func.func @transform_2(%arg0: i32) -> (i32, i32) {
    %c0_i32 = arith.constant 0 : i32
    %c0_i32_0 = arith.constant 0 : i32
    %c0_i32_1 = arith.constant 0 : i32
    return %c0_i32, %c0_i32_0 : i32, i32
  }
  func.func @transform_3(%arg0: i32) -> (i32, i32) {
    %c0_i32 = arith.constant 0 : i32
    %c0_i32_0 = arith.constant 0 : i32
    %c0_i32_1 = arith.constant 0 : i32
    return %c0_i32, %c0_i32_0 : i32, i32
  }
  func.func @transform_4(%arg0: i32) -> (i32, i32, i32, i32) {
    %c0_i32 = arith.constant 0 : i32
    %c0_i32_0 = arith.constant 0 : i32
    %c0_i32_1 = arith.constant 0 : i32
    %c0_i32_2 = arith.constant 0 : i32
    return %arg0, %c0_i32, %c0_i32_0, %c0_i32_1 : i32, i32, i32, i32
  }
}

module attributes {stable_mosaic.version = 11 : i64} {
  func.func @_temporal3_kernel(%arg0: i32, %arg1: i32, %arg2: memref<1x4x32x208xbf16, #tpu.memory_space<vmem>>, %arg3: memref<3x208x208xbf16, #tpu.memory_space<vmem>>, %arg4: memref<1x208xf32, #tpu.memory_space<vmem>>, %arg5: memref<1x208xf32, #tpu.memory_space<vmem>>, %arg6: memref<1x2x32x208xbf16, #tpu.memory_space<vmem>>) attributes {dimension_semantics = [#tpu.dimension_semantics<parallel>, #tpu.dimension_semantics<parallel>], iteration_bounds = array<i64: 2, 2>, scalar_prefetch = 0 : i64, scratch_operands = 0 : i64, tpu.core_type = #tpu.core_type<tc>, window_params = [{transform_indices = @transform_0, window_bounds = array<i64: 1, 4, 32, 208>}, {pipeline_mode = #tpu.pipeline_mode<synchronous>, transform_indices = @transform_1, window_bounds = array<i64: 3, 208, 208>}, {pipeline_mode = #tpu.pipeline_mode<synchronous>, transform_indices = @transform_2, window_bounds = array<i64: 1, 208>}, {pipeline_mode = #tpu.pipeline_mode<synchronous>, transform_indices = @transform_3, window_bounds = array<i64: 1, 208>}, {transform_indices = @transform_4, window_bounds = array<i64: 1, 2, 32, 208>}]} {
    %c0 = arith.constant 0 : index
    %c0_0 = arith.constant 0 : index
    %c0_1 = arith.constant 0 : index
    %c0_2 = arith.constant 0 : index
    %0 = vector.load %arg2[%c0, %c0_0, %c0_1, %c0_2] : memref<1x4x32x208xbf16, #tpu.memory_space<vmem>>, vector<1x4x32x208xbf16>
    %1 = vector.shape_cast %0 : vector<1x4x32x208xbf16> to vector<4x32x208xbf16>
    %2 = vector.extract_strided_slice %1 {offsets = [0, 0, 0], sizes = [2, 32, 208], strides = [1, 1, 1]} : vector<4x32x208xbf16> to vector<2x32x208xbf16>
    %3 = vector.shape_cast %2 : vector<2x32x208xbf16> to vector<64x208xbf16>
    %c0_3 = arith.constant 0 : index
    %c0_4 = arith.constant 0 : index
    %c0_5 = arith.constant 0 : index
    %4 = vector.load %arg3[%c0_3, %c0_4, %c0_5] : memref<3x208x208xbf16, #tpu.memory_space<vmem>>, vector<1x208x208xbf16>
    %5 = vector.shape_cast %4 : vector<1x208x208xbf16> to vector<208x208xbf16>
    %cst = arith.constant dense<0.000000e+00> : vector<64x208xf32>
    %6 = tpu.matmul %3, %5, %cst {dimension_numbers = #tpu.dot_dimension_numbers<[1], [0], [0], [1], [0, 0, 1, 1], [], []>} : vector<64x208xbf16>, vector<208x208xbf16>, vector<64x208xf32> -> vector<64x208xf32>
    %7 = vector.extract_strided_slice %1 {offsets = [1, 0, 0], sizes = [2, 32, 208], strides = [1, 1, 1]} : vector<4x32x208xbf16> to vector<2x32x208xbf16>
    %8 = vector.shape_cast %7 : vector<2x32x208xbf16> to vector<64x208xbf16>
    %c1 = arith.constant 1 : index
    %c0_6 = arith.constant 0 : index
    %c0_7 = arith.constant 0 : index
    %9 = vector.load %arg3[%c1, %c0_6, %c0_7] : memref<3x208x208xbf16, #tpu.memory_space<vmem>>, vector<1x208x208xbf16>
    %10 = vector.shape_cast %9 : vector<1x208x208xbf16> to vector<208x208xbf16>
    %cst_8 = arith.constant dense<0.000000e+00> : vector<64x208xf32>
    %11 = tpu.matmul %8, %10, %cst_8 {dimension_numbers = #tpu.dot_dimension_numbers<[1], [0], [0], [1], [0, 0, 1, 1], [], []>} : vector<64x208xbf16>, vector<208x208xbf16>, vector<64x208xf32> -> vector<64x208xf32>
    %12 = arith.addf %6, %11 : vector<64x208xf32>
    %13 = vector.extract_strided_slice %1 {offsets = [2, 0, 0], sizes = [2, 32, 208], strides = [1, 1, 1]} : vector<4x32x208xbf16> to vector<2x32x208xbf16>
    %14 = vector.shape_cast %13 : vector<2x32x208xbf16> to vector<64x208xbf16>
    %c2 = arith.constant 2 : index
    %c0_9 = arith.constant 0 : index
    %c0_10 = arith.constant 0 : index
    %15 = vector.load %arg3[%c2, %c0_9, %c0_10] : memref<3x208x208xbf16, #tpu.memory_space<vmem>>, vector<1x208x208xbf16>
    %16 = vector.shape_cast %15 : vector<1x208x208xbf16> to vector<208x208xbf16>
    %cst_11 = arith.constant dense<0.000000e+00> : vector<64x208xf32>
    %17 = tpu.matmul %14, %16, %cst_11 {dimension_numbers = #tpu.dot_dimension_numbers<[1], [0], [0], [1], [0, 0, 1, 1], [], []>} : vector<64x208xbf16>, vector<208x208xbf16>, vector<64x208xf32> -> vector<64x208xf32>
    %18 = arith.addf %12, %17 : vector<64x208xf32>
    %c0_12 = arith.constant 0 : index
    %c0_13 = arith.constant 0 : index
    %19 = vector.load %arg4[%c0_12, %c0_13] : memref<1x208xf32, #tpu.memory_space<vmem>>, vector<1x208xf32>
    %20 = vector.broadcast %19 : vector<1x208xf32> to vector<64x208xf32>
    %21 = arith.mulf %18, %20 : vector<64x208xf32>
    %c0_14 = arith.constant 0 : index
    %c0_15 = arith.constant 0 : index
    %22 = vector.load %arg5[%c0_14, %c0_15] : memref<1x208xf32, #tpu.memory_space<vmem>>, vector<1x208xf32>
    %23 = vector.broadcast %22 : vector<1x208xf32> to vector<64x208xf32>
    %24 = arith.addf %21, %23 : vector<64x208xf32>
    %cst_16 = arith.constant 0.000000e+00 : f32
    %25 = vector.broadcast %cst_16 : f32 to vector<64x208xf32>
    %26 = arith.maximumf %24, %25 : vector<64x208xf32>
    %27 = vector.shape_cast %26 : vector<64x208xf32> to vector<2x32x208xf32>
    %28 = arith.truncf %27 : vector<2x32x208xf32> to vector<2x32x208xbf16>
    %c0_17 = arith.constant 0 : index
    %c0_18 = arith.constant 0 : index
    %c0_19 = arith.constant 0 : index
    %c0_20 = arith.constant 0 : index
    %29 = vector.load %arg6[%c0_17, %c0_18, %c0_19, %c0_20] : memref<1x2x32x208xbf16, #tpu.memory_space<vmem>>, vector<1x2x32x208xbf16>
    %30 = vector.shape_cast %29 : vector<1x2x32x208xbf16> to vector<2x32x208xbf16>
    %31 = vector.shape_cast %28 : vector<2x32x208xbf16> to vector<1x2x32x208xbf16>
    tpu.vector_store %arg6[%c0_17, %c0_18, %c0_19, %c0_20], %31 {strides = array<i32>} : memref<1x2x32x208xbf16, #tpu.memory_space<vmem>>, vector<1x2x32x208xbf16>,
    return
  }
  func.func @transform_0(%arg0: i32, %arg1: i32) -> (i32, i32, i32, i32) {
    %c0_i32 = arith.constant 0 : i32
    %c0_i32_0 = arith.constant 0 : i32
    %c0_i32_1 = arith.constant 0 : i32
    return %arg0, %c0_i32, %arg1, %c0_i32_0 : i32, i32, i32, i32
  }
  func.func @transform_1(%arg0: i32, %arg1: i32) -> (i32, i32, i32) {
    %c0_i32 = arith.constant 0 : i32
    %c0_i32_0 = arith.constant 0 : i32
    %c0_i32_1 = arith.constant 0 : i32
    %c0_i32_2 = arith.constant 0 : i32
    return %c0_i32, %c0_i32_0, %c0_i32_1 : i32, i32, i32
  }
  func.func @transform_2(%arg0: i32, %arg1: i32) -> (i32, i32) {
    %c0_i32 = arith.constant 0 : i32
    %c0_i32_0 = arith.constant 0 : i32
    %c0_i32_1 = arith.constant 0 : i32
    return %c0_i32, %c0_i32_0 : i32, i32
  }
  func.func @transform_3(%arg0: i32, %arg1: i32) -> (i32, i32) {
    %c0_i32 = arith.constant 0 : i32
    %c0_i32_0 = arith.constant 0 : i32
    %c0_i32_1 = arith.constant 0 : i32
    return %c0_i32, %c0_i32_0 : i32, i32
  }
  func.func @transform_4(%arg0: i32, %arg1: i32) -> (i32, i32, i32, i32) {
    %c0_i32 = arith.constant 0 : i32
    %c0_i32_0 = arith.constant 0 : i32
    %c0_i32_1 = arith.constant 0 : i32
    return %arg0, %c0_i32, %arg1, %c0_i32_0 : i32, i32, i32, i32
  }
}

</mosaic_0001>

<llo_original>
// kernel: mixed_4b_forward.9
$region0: #{mixed_4b_forward.9}
  #allocation0 [shape = 'u32[]', space=smem, size = 0x4, offset = 0x4, fixed_abs, tag = 'smem constant byte address 0x4 - core index']
  #allocation1 [shape = 'u32[144,128]{1,0:T(1,128)}', space=vmem, size = 0x12000, scoped, tag = 'internal scratch']
  #allocation2 [shape = 'bf16[3,8,8,480]{3,2,1,0:T(8,128)(2,1)}', space=vmem, size = 0x30000, scoped, tag = 'scratch operand']
  %s0 = inlined_call_operand.vmem [shape: bf16[2,4,10,10,480], index: 0, kind: input, shape index: {}]
  %s1 = inlined_call_operand.vmem [shape: bf16[480,64], index: 1, kind: input, shape index: {}]
  %s2 = inlined_call_operand.vmem [shape: f32[1,64], index: 2, kind: input, shape index: {}]
  %s3 = inlined_call_operand.vmem [shape: f32[1,64], index: 3, kind: input, shape index: {}]
  %s4 = inlined_call_operand.vmem [shape: bf16[2,2,8,8,64], index: 4, kind: output, shape index: {}]
  %s5 = sld [smem:[#allocation0]]
  $region53: #{mixed_4b_forward.9} parent=0
    _
  %s7 = ssub.s32 1, %s5
  %s8 = scalar_select 0, %s7, %s5
  loop: start=0, step=1, limit=10
  $region2: #{mixed_4b_forward.9} parent=0 // loop_pre_header
    _
  $region3: #{mixed_4b_forward.9} parent=0 // loop_header
    %s10 = sphi 0, %s14
    %p11 = scmp.ge.s32.totalorder %s10, 10
    %s17 = sphi 0, %s29
    %s18 = sphi 0, %s25
    %s19 = sphi 0, %s17
    %s20 = sphi 0, %s18
    %s21 = sphi 0, %s19
    %s22 = sphi 0, %s20
    %s34 = sphi 0, %s36
    %s37 = sphi 0, %s34
    %s38 = sphi 0, %s37
    %s54 = sphi 0, %s38
    %s58 = sphi 0, %s58
    %s60 = sphi 0, %s58
    %s61 = sphi 0, %s60
    %s75 = sphi 0, %s61
    %s79 = sphi 0, %s79
    %s81 = sphi 0, %s79
    %s82 = sphi 0, %s81
    %s96 = sphi 0, %s82
    %s100 = sphi 0, %s100
    %s102 = sphi 0, %s100
    %s103 = sphi 0, %s102
    %s117 = sphi 0, %s103
    %s131 = sphi 0, %s133
    %s134 = sphi 0, %s131
    %s135 = sphi 0, %s134
    %s151 = sphi 0, %s135
  $region4: #{mixed_4b_forward.9} parent=0 // loop_header_branch
    %13 = sbr.rel (%p11) target = $region8
  $region5: #{mixed_4b_forward.9} parent=0 // loop_body
    %s15 = ssub.s32 %s10, 1
    %s16 = ssub.s32 %s10, 2
    %s23 = sadd.s32 1, %s18
    %p24 = scmp.ge.s32.totalorder %s23, 4
    %s25 = scalar_select %p24, 0, %s23
    %s26 = sadd.s32 1, %s17
    %s27 = scalar_select %p24, %s26, %s17
    %p28 = scmp.ge.s32.totalorder %s27, 2
    %s29 = scalar_select %p28, 0, %s27
    %s30 = ssub.s32 %s17, %s29
    %s31 = ssub.s32 %s18, %s25
    %s32 = sor.u32 %s30, %s31
    %p33 = scmp.eq.s32.totalorder %s32, 0
    %s35 = sadd.s32 %s34, 1
    %s36 = scalar_select %p33, %s34, %s35
    %p39 = pneg %p33
    %p40 = scmp.eq.s32.totalorder %s10, 7
    %p41 = por %p39, %p40
    %p42 = scmp.ne.s32.totalorder %s34, %s37
    %p43 = scmp.eq.s32.totalorder %s10, 0
    %p44 = por %p42, %p43
    %p45 = scmp.ne.s32.totalorder %s34, %s37
    %p46 = scmp.eq.s32.totalorder %s15, 7
    %p47 = por %p45, %p46
    %p48 = scmp.ne.s32.totalorder %s37, %s38
    %p49 = scmp.eq.s32.totalorder %s15, 0
    %p50 = por %p48, %p49
    %p51 = scmp.ne.s32.totalorder %s37, %s38
    %p52 = scmp.eq.s32.totalorder %s16, 7
    %p53 = por %p51, %p52
    %p55 = scmp.ne.s32.totalorder %s38, %s54
    %p56 = scmp.eq.s32.totalorder %s16, 0
    %p57 = por %p55, %p56
    %s59 = sadd.s32 %s58, 1
    %p62 = scmp.eq.s32.totalorder %s10, 7
    %p63 = scmp.ne.s32.totalorder %s58, %s60
    %p64 = scmp.eq.s32.totalorder %s10, 0
    %p65 = por %p63, %p64
    %p66 = scmp.ne.s32.totalorder %s58, %s60
    %p67 = scmp.eq.s32.totalorder %s15, 7
    %p68 = por %p66, %p67
    %p69 = scmp.ne.s32.totalorder %s60, %s61
    %p70 = scmp.eq.s32.totalorder %s15, 0
    %p71 = por %p69, %p70
    %p72 = scmp.ne.s32.totalorder %s60, %s61
    %p73 = scmp.eq.s32.totalorder %s16, 7
    %p74 = por %p72, %p73
    %p76 = scmp.ne.s32.totalorder %s61, %s75
    %p77 = scmp.eq.s32.totalorder %s16, 0
    %p78 = por %p76, %p77
    %s80 = sadd.s32 %s79, 1
    %p83 = scmp.eq.s32.totalorder %s10, 7
    %p84 = scmp.ne.s32.totalorder %s79, %s81
    %p85 = scmp.eq.s32.totalorder %s10, 0
    %p86 = por %p84, %p85
    %p87 = scmp.ne.s32.totalorder %s79, %s81
    %p88 = scmp.eq.s32.totalorder %s15, 7
    %p89 = por %p87, %p88
    %p90 = scmp.ne.s32.totalorder %s81, %s82
    %p91 = scmp.eq.s32.totalorder %s15, 0
    %p92 = por %p90, %p91
    %p93 = scmp.ne.s32.totalorder %s81, %s82
    %p94 = scmp.eq.s32.totalorder %s16, 7
    %p95 = por %p93, %p94
    %p97 = scmp.ne.s32.totalorder %s82, %s96
    %p98 = scmp.eq.s32.totalorder %s16, 0
    %p99 = por %p97, %p98
    %s101 = sadd.s32 %s100, 1
    %p104 = scmp.eq.s32.totalorder %s10, 7
    %p105 = scmp.ne.s32.totalorder %s100, %s102
    %p106 = scmp.eq.s32.totalorder %s10, 0
    %p107 = por %p105, %p106
    %p108 = scmp.ne.s32.totalorder %s100, %s102
    %p109 = scmp.eq.s32.totalorder %s15, 7
    %p110 = por %p108, %p109
    %p111 = scmp.ne.s32.totalorder %s102, %s103
    %p112 = scmp.eq.s32.totalorder %s15, 0
    %p113 = por %p111, %p112
    %p114 = scmp.ne.s32.totalorder %s102, %s103
    %p115 = scmp.eq.s32.totalorder %s16, 7
    %p116 = por %p114, %p115
    %p118 = scmp.ne.s32.totalorder %s103, %s117
    %p119 = scmp.eq.s32.totalorder %s16, 0
    %p120 = por %p118, %p119
    %s121 = ssub.s32 %s18, 2
    %p122 = scmp.gt.s32.totalorder %s121, 0
    %s123 = scalar_select %p122, %s121, 0
    %s124 = ssub.s32 %s25, 2
    %p125 = scmp.gt.s32.totalorder %s124, 0
    %s126 = scalar_select %p125, %s124, 0
    %s127 = ssub.s32 %s17, %s29
    %s128 = ssub.s32 %s123, %s126
    %s129 = sor.u32 %s127, %s128
    %p130 = scmp.eq.s32.totalorder %s129, 0
    %s132 = sadd.s32 %s131, 1
    %s133 = scalar_select %p130, %s131, %s132
    %p136 = pneg %p130
    %p137 = scmp.eq.s32.totalorder %s10, 7
    %p138 = por %p136, %p137
    %p139 = scmp.ne.s32.totalorder %s131, %s134
    %p140 = scmp.eq.s32.totalorder %s10, 0
    %p141 = por %p139, %p140
    %p142 = scmp.ne.s32.totalorder %s131, %s134
    %p143 = scmp.eq.s32.totalorder %s15, 7
    %p144 = por %p142, %p143
    %p145 = scmp.ne.s32.totalorder %s134, %s135
    %p146 = scmp.eq.s32.totalorder %s15, 0
    %p147 = por %p145, %p146
    %p148 = scmp.ne.s32.totalorder %s134, %s135
    %p149 = scmp.eq.s32.totalorder %s16, 7
    %p150 = por %p148, %p149
    %p152 = scmp.ne.s32.totalorder %s135, %s151
    %p153 = scmp.eq.s32.totalorder %s16, 0
    %p154 = por %p152, %p153
    %p155 = scmp.le.s32.totalorder 1, %s10
    %p156 = scmp.lt.s32.totalorder %s10, 9
    %p157 = pnand %p155, %p156
    %p158 = pneg %p157
    // Predicated region
    $region9: #{mixed_4b_forward.9} parent=5 // pred_check
      _
    $region10: #{mixed_4b_forward.9} parent=5 // pred_check_branch
      %160 = sbr.rel (%p157) target = $region12
    $region11: #{mixed_4b_forward.9} parent=5 // pred_region
      %s161 = ssub.s32 %s10, 1
      // Predicated region
      $region13: #{mixed_4b_forward.9} parent=11 // pred_check
        %p162 = pneg %p71
      $region14: #{mixed_4b_forward.9} parent=11 // pred_check_branch
        %164 = sbr.rel (%p162) target = $region16
      $region15: #{mixed_4b_forward.9} parent=11 // pred_region
        _
      $region16: #{mixed_4b_forward.9} parent=11 // pred_fallthru
        _
      // Predicated region
      $region17: #{mixed_4b_forward.9} parent=11 // pred_check
        %p165 = pneg %p92
      $region18: #{mixed_4b_forward.9} parent=11 // pred_check_branch
        %167 = sbr.rel (%p165) target = $region20
      $region19: #{mixed_4b_forward.9} parent=11 // pred_region
        _
      $region20: #{mixed_4b_forward.9} parent=11 // pred_fallthru
        _
      // Predicated region
      $region21: #{mixed_4b_forward.9} parent=11 // pred_check
        %p168 = pneg %p113
      $region22: #{mixed_4b_forward.9} parent=11 // pred_check_branch
        %170 = sbr.rel (%p168) target = $region24
      $region23: #{mixed_4b_forward.9} parent=11 // pred_region
        _
      $region24: #{mixed_4b_forward.9} parent=11 // pred_fallthru
        _
    $region12: #{mixed_4b_forward.9} parent=5 // pred_fallthru
      _
    %p171 = scmp.lt.s32.totalorder %s10, 8
    // Predicated region
    $region25: #{mixed_4b_forward.9} parent=5 // pred_check
      %p172 = pneg %p171
    $region26: #{mixed_4b_forward.9} parent=5 // pred_check_branch
      %174 = sbr.rel (%p172) target = $region28
    $region27: #{mixed_4b_forward.9} parent=5 // pred_region
      // Predicated region
      $region29: #{mixed_4b_forward.9} parent=27 // pred_check
        %p175 = pneg %p44
      $region30: #{mixed_4b_forward.9} parent=27 // pred_check_branch
        %177 = sbr.rel (%p175) target = $region32
      $region31: #{mixed_4b_forward.9} parent=27 // pred_region
        %p178 = scmp.lt.s32.totalorder %s17, 1
        %s179 = scalar_select %p178, %s17, 1
        %p180 = scmp.lt.s32.totalorder %s18, 3
        %s181 = scalar_select %p180, %s18, 3
        %s182 = smul.addr %s181, 80
        %s183 = smul.addr %s179, 320
        %s184 = sadd.s32 %s182, %s183
        %s185 = smul.addr %s184, 4
        %s186 = scalar_lea.vmem %s0, %s185
      $region32: #{mixed_4b_forward.9} parent=27 // pred_fallthru
        _
    $region28: #{mixed_4b_forward.9} parent=5 // pred_fallthru
      _
    %p187 = scmp.le.s32.totalorder 1, %s10
    %p188 = scmp.lt.s32.totalorder %s10, 9
    %p189 = pnand %p187, %p188
    %p190 = pneg %p189
    // Predicated region
    $region33: #{mixed_4b_forward.9} parent=5 // pred_check
      _
    $region34: #{mixed_4b_forward.9} parent=5 // pred_check_branch
      %192 = sbr.rel (%p189) target = $region36
    $region35: #{mixed_4b_forward.9} parent=5 // pred_region
      %s193 = ssub.s32 %s10, 1
      %p194 = scmp.lt.s32.totalorder %s19, 1
      %s195 = scalar_select %p194, %s19, 1
      %p196 = scmp.lt.s32.totalorder %s20, 3
      %s197 = scalar_select %p196, %s20, 3
      %s198 = smul.addr %s197, 80
      %s199 = smul.addr %s195, 320
      %s200 = sadd.s32 %s198, %s199
      %s201 = smul.addr %s200, 4
      %s202 = scalar_lea.vmem %s0, %s201
      %p203 = pneg %p50
      %p204 = pneg %p47
      %p205 = pneg %p71
      %p206 = pneg %p68
      %p207 = pneg %p92
      %p208 = pneg %p89
      %p209 = pneg %p113
      %p210 = pneg %p110
      %p211 = pneg %p147
      %p212 = pneg %p144
      %s213 = ssub.s32 %s20, 2
      %p214 = scmp.gt.s32.totalorder %s213, 0
      %s215 = scalar_select %p214, %s213, 0
      %p216 = scmp.lt.s32.totalorder %s19, 1
      %s217 = scalar_select %p216, %s19, 1
      %p218 = scmp.lt.s32.totalorder %s215, 1
      %s219 = scalar_select %p218, %s215, 1
      %s220 = smul.addr %s219, 8
      %s221 = smul.addr %s217, 16
      %s222 = sadd.s32 %s220, %s221
      %s223 = smul.addr %s222, 4
      %s224 = scalar_lea.vmem %s4, %s223
      %p225 = scmp.lt.s32.totalorder %s19, 1
      %s226 = scalar_select %p225, %s19, 1
      %p227 = scmp.lt.s32.totalorder %s20, 3
      %s228 = scalar_select %p227, %s20, 3
      %s229 = smul.addr %s228, 80
      %s230 = smul.addr %s226, 320
      %s231 = sadd.s32 %s229, %s230
      %s232 = smul.addr %s231, 4
      %s233 = scalar_lea.vmem %s0, %s232
      %s234 = ssub.s32 %s20, 2
      %p235 = scmp.gt.s32.totalorder %s234, 0
      %s236 = scalar_select %p235, %s234, 0
      %p237 = scmp.lt.s32.totalorder %s19, 1
      %s238 = scalar_select %p237, %s19, 1
      %p239 = scmp.lt.s32.totalorder %s236, 1
      %s240 = scalar_select %p239, %s236, 1
      %s241 = smul.addr %s240, 8
      %s242 = smul.addr %s238, 16
      %s243 = sadd.s32 %s241, %s242
      %s244 = smul.addr %s243, 4
      %s245 = scalar_lea.vmem %s4, %s244
      %s246 = ssub.s32 %s20, 2
      %p247 = scmp.gt.s32.totalorder %s246, 0
      %s248 = scalar_select %p247, %s246, 0
      %v250 = vld [vmem:[%s233] sm:$0xff]
      %v251 = vld [vmem:[%s233 + $0x8] sm:$0xff]
      %v252 = vld [vmem:[%s233 + $0x10] sm:$0x11]
      %v253 = vld [vmem:[%s233 + $0x18] sm:$0x11]
      %v254 = vld [vmem:[%s233 + $0x20] sm:$0xff]
      %v255 = vld [vmem:[%s233 + $0x28] sm:$0xff]
      %v256 = vld [vmem:[%s233 + $0x30] sm:$0x11]
      %v257 = vld [vmem:[%s233 + $0x38] sm:$0x11]
      %v258 = vld [vmem:[%s233 + $0x40] sm:$0xff]
      %v259 = vld [vmem:[%s233 + $0x48] sm:$0xff]
      %v260 = vld [vmem:[%s233 + $0x50] sm:$0x11]
      %v261 = vld [vmem:[%s233 + $0x58] sm:$0x11]
      %v262 = vld [vmem:[%s233 + $0x60] sm:$0xff]
      %v263 = vld [vmem:[%s233 + $0x68] sm:$0xff]
      %v264 = vld [vmem:[%s233 + $0x70] sm:$0x11]
      %v265 = vld [vmem:[%s233 + $0x78] sm:$0x11]
      %v266 = vld [vmem:[%s233 + $0x80] sm:$0xff]
      %v267 = vld [vmem:[%s233 + $0x88] sm:$0xff]
      %v268 = vld [vmem:[%s233 + $0x90] sm:$0x11]
      %v269 = vld [vmem:[%s233 + $0x98] sm:$0x11]
      %v270 = vld [vmem:[%s233 + $0xa0] sm:$0xff]
      %v271 = vld [vmem:[%s233 + $0xa8] sm:$0xff]
      %v272 = vld [vmem:[%s233 + $0xb0] sm:$0x11]
      %v273 = vld [vmem:[%s233 + $0xb8] sm:$0x11]
      %v274 = vld [vmem:[%s233 + $0xc0] sm:$0xff]
      %v275 = vld [vmem:[%s233 + $0xc8] sm:$0xff]
      %v276 = vld [vmem:[%s233 + $0xd0] sm:$0x11]
      %v277 = vld [vmem:[%s233 + $0xd8] sm:$0x11]
      %v278 = vld [vmem:[%s233 + $0xe0] sm:$0xff]
      %v279 = vld [vmem:[%s233 + $0xe8] sm:$0xff]
      %v280 = vld [vmem:[%s233 + $0xf0] sm:$0x11]
      %v281 = vld [vmem:[%s233 + $0xf8] sm:$0x11]
      %v282 = vld [vmem:[%s233 + $0x100] sm:$0xff]
      %v283 = vld [vmem:[%s233 + $0x108] sm:$0xff]
      %v284 = vld [vmem:[%s233 + $0x110] sm:$0x11]
      %v285 = vld [vmem:[%s233 + $0x118] sm:$0x11]
      %v286 = vld [vmem:[%s233 + $0x120] sm:$0xff]
      %v287 = vld [vmem:[%s233 + $0x128] sm:$0xff]
      %v288 = vld [vmem:[%s233 + $0x130] sm:$0x11]
      %v289 = vld [vmem:[%s233 + $0x138] sm:$0x11]
      %vm290 = vsmask.f32 3328
      %vm291 = vsmask.f32 7440
      %vm292 = vmor %vm290, %vm291
      %v294 = vshrl.u32 %v250, 16
      %v296 = vrot.slane %v294, 4
      %v297 = vshll.u32 %v250, 16
      %v299 = vrot.slane %v297, 5
      %v300 = vor.u32 %v296, %v299
      %v301 = vrot.slane %v300, 4
      %v303 = vshll.u32 %v252, 16
      %v305 = vrot.slane %v303, 5
      %v306 = vsel %vm292, %v301, %v305
      %v308 = vshrl.u32 %v251, 16
      %v310 = vrot.slane %v308, 4
      %v311 = vshll.u32 %v251, 16
      %v313 = vrot.slane %v311, 5
      %v314 = vor.u32 %v310, %v313
      %v315 = vrot.slane %v314, 4
      %v317 = vshll.u32 %v253, 16
      %v319 = vrot.slane %v317, 5
      %v320 = vsel %vm292, %v315, %v319
      %v322 = vshrl.u32 %v254, 16
      %v324 = vrot.slane %v322, 4
      %v325 = vshll.u32 %v254, 16
      %v327 = vrot.slane %v325, 5
      %v328 = vor.u32 %v324, %v327
      %v329 = vrot.slane %v328, 4
      %v331 = vshll.u32 %v256, 16
      %v333 = vrot.slane %v331, 5
      %v334 = vsel %vm292, %v329, %v333
      %v336 = vshrl.u32 %v255, 16
      %v338 = vrot.slane %v336, 4
      %v339 = vshll.u32 %v255, 16
      %v341 = vrot.slane %v339, 5
      %v342 = vor.u32 %v338, %v341
      %v343 = vrot.slane %v342, 4
      %v345 = vshll.u32 %v257, 16
      %v347 = vrot.slane %v345, 5
      %v348 = vsel %vm292, %v343, %v347
      %v350 = vshrl.u32 %v258, 16
      %v352 = vrot.slane %v350, 4
      %v353 = vshll.u32 %v258, 16
      %v355 = vrot.slane %v353, 5
      %v356 = vor.u32 %v352, %v355
      %v357 = vrot.slane %v356, 4
      %v359 = vshll.u32 %v260, 16
      %v361 = vrot.slane %v359, 5
      %v362 = vsel %vm292, %v357, %v361
      %v364 = vshrl.u32 %v259, 16
      %v366 = vrot.slane %v364, 4
      %v367 = vshll.u32 %v259, 16
      %v369 = vrot.slane %v367, 5
      %v370 = vor.u32 %v366, %v369
      %v371 = vrot.slane %v370, 4
      %v373 = vshll.u32 %v261, 16
      %v375 = vrot.slane %v373, 5
      %v376 = vsel %vm292, %v371, %v375
      %v378 = vshrl.u32 %v262, 16
      %v380 = vrot.slane %v378, 4
      %v381 = vshll.u32 %v262, 16
      %v383 = vrot.slane %v381, 5
      %v384 = vor.u32 %v380, %v383
      %v385 = vrot.slane %v384, 4
      %v387 = vshll.u32 %v264, 16
      %v389 = vrot.slane %v387, 5
      %v390 = vsel %vm292, %v385, %v389
      %v392 = vshrl.u32 %v263, 16
      %v394 = vrot.slane %v392, 4
      %v395 = vshll.u32 %v263, 16
      %v397 = vrot.slane %v395, 5
      %v398 = vor.u32 %v394, %v397
      %v399 = vrot.slane %v398, 4
      %v401 = vshll.u32 %v265, 16
      %v403 = vrot.slane %v401, 5
      %v404 = vsel %vm292, %v399, %v403
      %v406 = vshrl.u32 %v266, 16
      %v408 = vrot.slane %v406, 4
      %v409 = vshll.u32 %v266, 16
      %v411 = vrot.slane %v409, 5
      %v412 = vor.u32 %v408, %v411
      %v413 = vrot.slane %v412, 4
      %v415 = vshll.u32 %v268, 16
      %v417 = vrot.slane %v415, 5
      %v418 = vsel %vm292, %v413, %v417
      %v420 = vshrl.u32 %v267, 16
      %v422 = vrot.slane %v420, 4
      %v423 = vshll.u32 %v267, 16
      %v425 = vrot.slane %v423, 5
      %v426 = vor.u32 %v422, %v425
      %v427 = vrot.slane %v426, 4
      %v429 = vshll.u32 %v269, 16
      %v431 = vrot.slane %v429, 5
      %v432 = vsel %vm292, %v427, %v431
      %v434 = vshrl.u32 %v270, 16
      %v436 = vrot.slane %v434, 4
      %v437 = vshll.u32 %v270, 16
      %v439 = vrot.slane %v437, 5
      %v440 = vor.u32 %v436, %v439
      %v441 = vrot.slane %v440, 4
      %v443 = vshll.u32 %v272, 16
      %v445 = vrot.slane %v443, 5
      %v446 = vsel %vm292, %v441, %v445
      %v448 = vshrl.u32 %v271, 16
      %v450 = vrot.slane %v448, 4
      %v451 = vshll.u32 %v271, 16
      %v453 = vrot.slane %v451, 5
      %v454 = vor.u32 %v450, %v453
      %v455 = vrot.slane %v454, 4
      %v457 = vshll.u32 %v273, 16
      %v459 = vrot.slane %v457, 5
      %v460 = vsel %vm292, %v455, %v459
      %v462 = vshrl.u32 %v274, 16
      %v464 = vrot.slane %v462, 4
      %v465 = vshll.u32 %v274, 16
      %v467 = vrot.slane %v465, 5
      %v468 = vor.u32 %v464, %v467
      %v469 = vrot.slane %v468, 4
      %v471 = vshll.u32 %v276, 16
      %v473 = vrot.slane %v471, 5
      %v474 = vsel %vm292, %v469, %v473
      %v476 = vshrl.u32 %v275, 16
      %v478 = vrot.slane %v476, 4
      %v479 = vshll.u32 %v275, 16
      %v481 = vrot.slane %v479, 5
      %v482 = vor.u32 %v478, %v481
      %v483 = vrot.slane %v482, 4
      %v485 = vshll.u32 %v277, 16
      %v487 = vrot.slane %v485, 5
      %v488 = vsel %vm292, %v483, %v487
      %v490 = vshrl.u32 %v278, 16
      %v492 = vrot.slane %v490, 4
      %v493 = vshll.u32 %v278, 16
      %v495 = vrot.slane %v493, 5
      %v496 = vor.u32 %v492, %v495
      %v497 = vrot.slane %v496, 4
      %v499 = vshll.u32 %v280, 16
      %v501 = vrot.slane %v499, 5
      %v502 = vsel %vm292, %v497, %v501
      %v504 = vshrl.u32 %v279, 16
      %v506 = vrot.slane %v504, 4
      %v507 = vshll.u32 %v279, 16
      %v509 = vrot.slane %v507, 5
      %v510 = vor.u32 %v506, %v509
      %v511 = vrot.slane %v510, 4
      %v513 = vshll.u32 %v281, 16
      %v515 = vrot.slane %v513, 5
      %v516 = vsel %vm292, %v511, %v515
      %v518 = vshrl.u32 %v282, 16
      %v520 = vrot.slane %v518, 4
      %v521 = vshll.u32 %v282, 16
      %v523 = vrot.slane %v521, 5
      %v524 = vor.u32 %v520, %v523
      %v525 = vrot.slane %v524, 4
      %v527 = vshll.u32 %v284, 16
      %v529 = vrot.slane %v527, 5
      %v530 = vsel %vm292, %v525, %v529
      %v532 = vshrl.u32 %v283, 16
      %v534 = vrot.slane %v532, 4
      %v535 = vshll.u32 %v283, 16
      %v537 = vrot.slane %v535, 5
      %v538 = vor.u32 %v534, %v537
      %v539 = vrot.slane %v538, 4
      %v541 = vshll.u32 %v285, 16
      %v543 = vrot.slane %v541, 5
      %v544 = vsel %vm292, %v539, %v543
      %v546 = vshrl.u32 %v286, 16
      %v548 = vrot.slane %v546, 4
      %v549 = vshll.u32 %v286, 16
      %v551 = vrot.slane %v549, 5
      %v552 = vor.u32 %v548, %v551
      %v553 = vrot.slane %v552, 4
      %v555 = vshll.u32 %v288, 16
      %v557 = vrot.slane %v555, 5
      %v558 = vsel %vm292, %v553, %v557
      %v560 = vshrl.u32 %v287, 16
      %v562 = vrot.slane %v560, 4
      %v563 = vshll.u32 %v287, 16
      %v565 = vrot.slane %v563, 5
      %v566 = vor.u32 %v562, %v565
      %v567 = vrot.slane %v566, 4
      %v569 = vshll.u32 %v289, 16
      %v571 = vrot.slane %v569, 5
      %v572 = vsel %vm292, %v567, %v571
      %v593 = vmax.bf16 %v250, %v306
      %v594 = vmax.bf16 %v251, %v320
      %v595 = vmax.bf16 %v254, %v334
      %v596 = vmax.bf16 %v255, %v348
      %v597 = vmax.bf16 %v258, %v362
      %v598 = vmax.bf16 %v259, %v376
      %v599 = vmax.bf16 %v262, %v390
      %v600 = vmax.bf16 %v263, %v404
      %v601 = vmax.bf16 %v266, %v418
      %v602 = vmax.bf16 %v267, %v432
      %v603 = vmax.bf16 %v270, %v446
      %v604 = vmax.bf16 %v271, %v460
      %v605 = vmax.bf16 %v274, %v474
      %v606 = vmax.bf16 %v275, %v488
      %v607 = vmax.bf16 %v278, %v502
      %v608 = vmax.bf16 %v279, %v516
      %v609 = vmax.bf16 %v282, %v530
      %v610 = vmax.bf16 %v283, %v544
      %v611 = vmax.bf16 %v286, %v558
      %v612 = vmax.bf16 %v287, %v572
      %vm653 = vcmask 1042432
      %vm654 = vcmask 1046532
      %vm655 = vmor %vm653, %vm654
      %v656 = vrot.slane %v250, 5
      %v657 = vrot.slane %v656, 4
      %v658 = vrot.slane %v252, 5
      %v659 = vsel %vm655, %v657, %v658
      %v660 = vrot.slane %v251, 5
      %v661 = vrot.slane %v660, 4
      %v662 = vrot.slane %v253, 5
      %v663 = vsel %vm655, %v661, %v662
      %v664 = vrot.slane %v254, 5
      %v665 = vrot.slane %v664, 4
      %v666 = vrot.slane %v256, 5
      %v667 = vsel %vm655, %v665, %v666
      %v668 = vrot.slane %v255, 5
      %v669 = vrot.slane %v668, 4
      %v670 = vrot.slane %v257, 5
      %v671 = vsel %vm655, %v669, %v670
      %v672 = vrot.slane %v258, 5
      %v673 = vrot.slane %v672, 4
      %v674 = vrot.slane %v260, 5
      %v675 = vsel %vm655, %v673, %v674
      %v676 = vrot.slane %v259, 5
      %v677 = vrot.slane %v676, 4
      %v678 = vrot.slane %v261, 5
      %v679 = vsel %vm655, %v677, %v678
      %v680 = vrot.slane %v262, 5
      %v681 = vrot.slane %v680, 4
      %v682 = vrot.slane %v264, 5
      %v683 = vsel %vm655, %v681, %v682
      %v684 = vrot.slane %v263, 5
      %v685 = vrot.slane %v684, 4
      %v686 = vrot.slane %v265, 5
      %v687 = vsel %vm655, %v685, %v686
      %v688 = vrot.slane %v266, 5
      %v689 = vrot.slane %v688, 4
      %v690 = vrot.slane %v268, 5
      %v691 = vsel %vm655, %v689, %v690
      %v692 = vrot.slane %v267, 5
      %v693 = vrot.slane %v692, 4
      %v694 = vrot.slane %v269, 5
      %v695 = vsel %vm655, %v693, %v694
      %v696 = vrot.slane %v270, 5
      %v697 = vrot.slane %v696, 4
      %v698 = vrot.slane %v272, 5
      %v699 = vsel %vm655, %v697, %v698
      %v700 = vrot.slane %v271, 5
      %v701 = vrot.slane %v700, 4
      %v702 = vrot.slane %v273, 5
      %v703 = vsel %vm655, %v701, %v702
      %v704 = vrot.slane %v274, 5
      %v705 = vrot.slane %v704, 4
      %v706 = vrot.slane %v276, 5
      %v707 = vsel %vm655, %v705, %v706
      %v708 = vrot.slane %v275, 5
      %v709 = vrot.slane %v708, 4
      %v710 = vrot.slane %v277, 5
      %v711 = vsel %vm655, %v709, %v710
      %v712 = vrot.slane %v278, 5
      %v713 = vrot.slane %v712, 4
      %v714 = vrot.slane %v280, 5
      %v715 = vsel %vm655, %v713, %v714
      %v716 = vrot.slane %v279, 5
      %v717 = vrot.slane %v716, 4
      %v718 = vrot.slane %v281, 5
      %v719 = vsel %vm655, %v717, %v718
      %v720 = vrot.slane %v282, 5
      %v721 = vrot.slane %v720, 4
      %v722 = vrot.slane %v284, 5
      %v723 = vsel %vm655, %v721, %v722
      %v724 = vrot.slane %v283, 5
      %v725 = vrot.slane %v724, 4
      %v726 = vrot.slane %v285, 5
      %v727 = vsel %vm655, %v725, %v726
      %v728 = vrot.slane %v286, 5
      %v729 = vrot.slane %v728, 4
      %v730 = vrot.slane %v288, 5
      %v731 = vsel %vm655, %v729, %v730
      %v732 = vrot.slane %v287, 5
      %v733 = vrot.slane %v732, 4
      %v734 = vrot.slane %v289, 5
      %v735 = vsel %vm655, %v733, %v734
      %v756 = vmax.bf16 %v593, %v659
      %v757 = vmax.bf16 %v594, %v663
      %v758 = vmax.bf16 %v595, %v667
      %v759 = vmax.bf16 %v596, %v671
      %v760 = vmax.bf16 %v597, %v675
      %v761 = vmax.bf16 %v598, %v679
      %v762 = vmax.bf16 %v599, %v683
      %v763 = vmax.bf16 %v600, %v687
      %v764 = vmax.bf16 %v601, %v691
      %v765 = vmax.bf16 %v602, %v695
      %v766 = vmax.bf16 %v603, %v699
      %v767 = vmax.bf16 %v604, %v703
      %v768 = vmax.bf16 %v605, %v707
      %v769 = vmax.bf16 %v606, %v711
      %v770 = vmax.bf16 %v607, %v715
      %v771 = vmax.bf16 %v608, %v719
      %v772 = vmax.bf16 %v609, %v723
      %v773 = vmax.bf16 %v610, %v727
      %v774 = vmax.bf16 %v611, %v731
      %v775 = vmax.bf16 %v612, %v735
      %v776 = vmax.bf16 %v756, %v758
      %v777 = vmax.bf16 %v757, %v759
      %v778 = vmax.bf16 %v758, %v760
      %v779 = vmax.bf16 %v759, %v761
      %v780 = vmax.bf16 %v760, %v762
      %v781 = vmax.bf16 %v761, %v763
      %v782 = vmax.bf16 %v762, %v764
      %v783 = vmax.bf16 %v763, %v765
      %v784 = vmax.bf16 %v764, %v766
      %v785 = vmax.bf16 %v765, %v767
      %v786 = vmax.bf16 %v766, %v768
      %v787 = vmax.bf16 %v767, %v769
      %v788 = vmax.bf16 %v768, %v770
      %v789 = vmax.bf16 %v769, %v771
      %v790 = vmax.bf16 %v770, %v772
      %v791 = vmax.bf16 %v771, %v773
      %v792 = vmax.bf16 %v776, %v760
      %v793 = vmax.bf16 %v777, %v761
      %v794 = vmax.bf16 %v778, %v762
      %v795 = vmax.bf16 %v779, %v763
      %v796 = vmax.bf16 %v780, %v764
      %v797 = vmax.bf16 %v781, %v765
      %v798 = vmax.bf16 %v782, %v766
      %v799 = vmax.bf16 %v783, %v767
      %v800 = vmax.bf16 %v784, %v768
      %v801 = vmax.bf16 %v785, %v769
      %v802 = vmax.bf16 %v786, %v770
      %v803 = vmax.bf16 %v787, %v771
      %v804 = vmax.bf16 %v788, %v772
      %v805 = vmax.bf16 %v789, %v773
      %v806 = vmax.bf16 %v790, %v774
      %v807 = vmax.bf16 %v791, %v775
      %p808 = scmp.lt.s32.totalorder %s20, 0
      %s809 = ssub.s32 0, %s20
      %s810 = scalar_select %p808, %s809, %s20
      %s811 = sdiv.u32.pop %s810, 3
      %s812 = srem.u32.pop %s810, 3
      %s813 = ssub.s32 0, %s812
      %s814 = scalar_select %p808, %s813, %s812
      %p815 = scmp.ne.s32.totalorder %s814, 0
      %p816 = scmp.lt.s32.totalorder %s814, 0
      %p817 = pnand %p816, %p815
      %p818 = pneg %p817
      %s819 = sadd.s32 %s814, 3
      %s820 = scalar_select %p818, %s819, %s814
      %s821 = smul.u32 %s820, 32
      %s822 = smul.addr %s821, 4
      %s823 = scalar_lea.vmem [#allocation2], %s822
      %824 = vst [vmem:[%s823] sm:$0xff] %v792
      %vm825 = vcmask 1043456
      %vm826 = vcmask 785412
      %vm827 = vmor %vm826, %vm825
      %828 = vst.msk [vmem:[%s823 + $0x8] sm:$0xff] %vm827, %v793
      %829 = vst [vmem:[%s823 + $0x10] sm:$0xff] %v794
      %830 = vst.msk [vmem:[%s823 + $0x18] sm:$0xff] %vm827, %v795
      %831 = vst [vmem:[%s823 + $0x20] sm:$0xff] %v796
      %832 = vst.msk [vmem:[%s823 + $0x28] sm:$0xff] %vm827, %v797
      %833 = vst [vmem:[%s823 + $0x30] sm:$0xff] %v798
      %834 = vst.msk [vmem:[%s823 + $0x38] sm:$0xff] %vm827, %v799
      %835 = vst [vmem:[%s823 + $0x40] sm:$0xff] %v800
      %836 = vst.msk [vmem:[%s823 + $0x48] sm:$0xff] %vm827, %v801
      %837 = vst [vmem:[%s823 + $0x50] sm:$0xff] %v802
      %838 = vst.msk [vmem:[%s823 + $0x58] sm:$0xff] %vm827, %v803
      %839 = vst [vmem:[%s823 + $0x60] sm:$0xff] %v804
      %840 = vst.msk [vmem:[%s823 + $0x68] sm:$0xff] %vm827, %v805
      %841 = vst [vmem:[%s823 + $0x70] sm:$0xff] %v806
      %842 = vst.msk [vmem:[%s823 + $0x78] sm:$0xff] %vm827, %v807
      %p843 = scmp.ge.s32.totalorder %s20, 2
      // Predicated region
      $region37: #{mixed_4b_forward.9} parent=35 // pred_check
        %p844 = pneg %p843
      $region38: #{mixed_4b_forward.9} parent=35 // pred_check_branch
        %846 = sbr.rel (%p844) target = $region40
      $region39: #{mixed_4b_forward.9} parent=35 // pred_region
        %v847 = vld [vmem:[#allocation2] sm:$0xff]
        %v848 = vld [vmem:[#allocation2 + $0x8] sm:$0xff]
        %v849 = vld [vmem:[#allocation2 + $0x10] sm:$0xff]
        %v850 = vld [vmem:[#allocation2 + $0x18] sm:$0xff]
        %v851 = vld [vmem:[#allocation2 + $0x20] sm:$0xff]
        %v852 = vld [vmem:[#allocation2 + $0x28] sm:$0xff]
        %v853 = vld [vmem:[#allocation2 + $0x30] sm:$0xff]
        %v854 = vld [vmem:[#allocation2 + $0x38] sm:$0xff]
        %v855 = vld [vmem:[#allocation2 + $0x40] sm:$0xff]
        %v856 = vld [vmem:[#allocation2 + $0x48] sm:$0xff]
        %v857 = vld [vmem:[#allocation2 + $0x50] sm:$0xff]
        %v858 = vld [vmem:[#allocation2 + $0x58] sm:$0xff]
        %v859 = vld [vmem:[#allocation2 + $0x60] sm:$0xff]
        %v860 = vld [vmem:[#allocation2 + $0x68] sm:$0xff]
        %v861 = vld [vmem:[#allocation2 + $0x70] sm:$0xff]
        %v862 = vld [vmem:[#allocation2 + $0x78] sm:$0xff]
        %s863 = scalar_lea.vmem [#allocation2], 128
        %v864 = vld [vmem:[%s863] sm:$0xff]
        %v865 = vld [vmem:[%s863 + $0x8] sm:$0xff]
        %v866 = vld [vmem:[%s863 + $0x10] sm:$0xff]
        %v867 = vld [vmem:[%s863 + $0x18] sm:$0xff]
        %v868 = vld [vmem:[%s863 + $0x20] sm:$0xff]
        %v869 = vld [vmem:[%s863 + $0x28] sm:$0xff]
        %v870 = vld [vmem:[%s863 + $0x30] sm:$0xff]
        %v871 = vld [vmem:[%s863 + $0x38] sm:$0xff]
        %v872 = vld [vmem:[%s863 + $0x40] sm:$0xff]
        %v873 = vld [vmem:[%s863 + $0x48] sm:$0xff]
        %v874 = vld [vmem:[%s863 + $0x50] sm:$0xff]
        %v875 = vld [vmem:[%s863 + $0x58] sm:$0xff]
        %v876 = vld [vmem:[%s863 + $0x60] sm:$0xff]
        %v877 = vld [vmem:[%s863 + $0x68] sm:$0xff]
        %v878 = vld [vmem:[%s863 + $0x70] sm:$0xff]
        %v879 = vld [vmem:[%s863 + $0x78] sm:$0xff]
        %v880 = vmax.bf16 %v847, %v864
        %v881 = vmax.bf16 %v848, %v865
        %v882 = vmax.bf16 %v849, %v866
        %v883 = vmax.bf16 %v850, %v867
        %v884 = vmax.bf16 %v851, %v868
        %v885 = vmax.bf16 %v852, %v869
        %v886 = vmax.bf16 %v853, %v870
        %v887 = vmax.bf16 %v854, %v871
        %v888 = vmax.bf16 %v855, %v872
        %v889 = vmax.bf16 %v856, %v873
        %v890 = vmax.bf16 %v857, %v874
        %v891 = vmax.bf16 %v858, %v875
        %v892 = vmax.bf16 %v859, %v876
        %v893 = vmax.bf16 %v860, %v877
        %v894 = vmax.bf16 %v861, %v878
        %v895 = vmax.bf16 %v862, %v879
        %s896 = scalar_lea.vmem [#allocation2], 256
        %v897 = vld [vmem:[%s896] sm:$0xff]
        %v898 = vld [vmem:[%s896 + $0x8] sm:$0xff]
        %v899 = vld [vmem:[%s896 + $0x10] sm:$0xff]
        %v900 = vld [vmem:[%s896 + $0x18] sm:$0xff]
        %v901 = vld [vmem:[%s896 + $0x20] sm:$0xff]
        %v902 = vld [vmem:[%s896 + $0x28] sm:$0xff]
        %v903 = vld [vmem:[%s896 + $0x30] sm:$0xff]
        %v904 = vld [vmem:[%s896 + $0x38] sm:$0xff]
        %v905 = vld [vmem:[%s896 + $0x40] sm:$0xff]
        %v906 = vld [vmem:[%s896 + $0x48] sm:$0xff]
        %v907 = vld [vmem:[%s896 + $0x50] sm:$0xff]
        %v908 = vld [vmem:[%s896 + $0x58] sm:$0xff]
        %v909 = vld [vmem:[%s896 + $0x60] sm:$0xff]
        %v910 = vld [vmem:[%s896 + $0x68] sm:$0xff]
        %v911 = vld [vmem:[%s896 + $0x70] sm:$0xff]
        %v912 = vld [vmem:[%s896 + $0x78] sm:$0xff]
        %v913 = vmax.bf16 %v880, %v897
        %v914 = vmax.bf16 %v881, %v898
        %v915 = vmax.bf16 %v882, %v899
        %v916 = vmax.bf16 %v883, %v900
        %v917 = vmax.bf16 %v884, %v901
        %v918 = vmax.bf16 %v885, %v902
        %v919 = vmax.bf16 %v886, %v903
        %v920 = vmax.bf16 %v887, %v904
        %v921 = vmax.bf16 %v888, %v905
        %v922 = vmax.bf16 %v889, %v906
        %v923 = vmax.bf16 %v890, %v907
        %v924 = vmax.bf16 %v891, %v908
        %v925 = vmax.bf16 %v892, %v909
        %v926 = vmax.bf16 %v893, %v910
        %v927 = vmax.bf16 %v894, %v911
        %v928 = vmax.bf16 %v895, %v912
        %v929 = vld [vmem:[%s1] sm:$0xf]
        %v930 = vld [vmem:[%s1 + $0x4] sm:$0xf]
        %v931 = vld [vmem:[%s1 + $0x8] sm:$0xf]
        %v932 = vld [vmem:[%s1 + $0xc] sm:$0xf]
        %v933 = vld [vmem:[%s1 + $0x10] sm:$0xf]
        %v934 = vld [vmem:[%s1 + $0x14] sm:$0xf]
        %v935 = vld [vmem:[%s1 + $0x18] sm:$0xf]
        %v936 = vld [vmem:[%s1 + $0x1c] sm:$0xf]
        %v937 = vld [vmem:[%s1 + $0x20] sm:$0xf]
        %v938 = vld [vmem:[%s1 + $0x24] sm:$0xf]
        %v939 = vld [vmem:[%s1 + $0x28] sm:$0xf]
        %v940 = vld [vmem:[%s1 + $0x2c] sm:$0xf]
        %v941 = vld [vmem:[%s1 + $0x30] sm:$0xf]
        %v942 = vld [vmem:[%s1 + $0x34] sm:$0xf]
        %v943 = vld [vmem:[%s1 + $0x38] sm:$0xf]
        %v944 = vld [vmem:[%s1 + $0x3c] sm:$0xf]
        %v945 = vld [vmem:[%s1 + $0x40] sm:$0xf]
        %v946 = vld [vmem:[%s1 + $0x44] sm:$0xf]
        %v947 = vld [vmem:[%s1 + $0x48] sm:$0xf]
        %v948 = vld [vmem:[%s1 + $0x4c] sm:$0xf]
        %v949 = vld [vmem:[%s1 + $0x50] sm:$0xf]
        %v950 = vld [vmem:[%s1 + $0x54] sm:$0xf]
        %v951 = vld [vmem:[%s1 + $0x58] sm:$0xf]
        %v952 = vld [vmem:[%s1 + $0x5c] sm:$0xf]
        %v953 = vld [vmem:[%s1 + $0x60] sm:$0xf]
        %v954 = vld [vmem:[%s1 + $0x64] sm:$0xf]
        %v955 = vld [vmem:[%s1 + $0x68] sm:$0xf]
        %v956 = vld [vmem:[%s1 + $0x6c] sm:$0xf]
        %v957 = vld [vmem:[%s1 + $0x70] sm:$0xf]
        %v958 = vld [vmem:[%s1 + $0x74] sm:$0xf]
        %v959 = vld [vmem:[%s1 + $0x78] sm:$0xf]
        %v960 = vld [vmem:[%s1 + $0x7c] sm:$0xf]
        %v961 = vld [vmem:[%s1 + $0x80] sm:$0xf]
        %v962 = vld [vmem:[%s1 + $0x84] sm:$0xf]
        %v963 = vld [vmem:[%s1 + $0x88] sm:$0xf]
        %v964 = vld [vmem:[%s1 + $0x8c] sm:$0xf]
        %v965 = vld [vmem:[%s1 + $0x90] sm:$0xf]
        %v966 = vld [vmem:[%s1 + $0x94] sm:$0xf]
        %v967 = vld [vmem:[%s1 + $0x98] sm:$0xf]
        %v968 = vld [vmem:[%s1 + $0x9c] sm:$0xf]
        %v969 = vld [vmem:[%s1 + $0xa0] sm:$0xf]
        %v970 = vld [vmem:[%s1 + $0xa4] sm:$0xf]
        %v971 = vld [vmem:[%s1 + $0xa8] sm:$0xf]
        %v972 = vld [vmem:[%s1 + $0xac] sm:$0xf]
        %v973 = vld [vmem:[%s1 + $0xb0] sm:$0xf]
        %v974 = vld [vmem:[%s1 + $0xb4] sm:$0xf]
        %v975 = vld [vmem:[%s1 + $0xb8] sm:$0xf]
        %v976 = vld [vmem:[%s1 + $0xbc] sm:$0xf]
        %v977 = vld [vmem:[%s1 + $0xc0] sm:$0xf]
        %v978 = vld [vmem:[%s1 + $0xc4] sm:$0xf]
        %v979 = vld [vmem:[%s1 + $0xc8] sm:$0xf]
        %v980 = vld [vmem:[%s1 + $0xcc] sm:$0xf]
        %v981 = vld [vmem:[%s1 + $0xd0] sm:$0xf]
        %v982 = vld [vmem:[%s1 + $0xd4] sm:$0xf]
        %v983 = vld [vmem:[%s1 + $0xd8] sm:$0xf]
        %v984 = vld [vmem:[%s1 + $0xdc] sm:$0xf]
        %v985 = vld [vmem:[%s1 + $0xe0] sm:$0xf]
        %v986 = vld [vmem:[%s1 + $0xe4] sm:$0xf]
        %v987 = vld [vmem:[%s1 + $0xe8] sm:$0xf]
        %v988 = vld [vmem:[%s1 + $0xec] sm:$0xf]
        %v1005 = vunpack.c.l.b16 %v913
        %v1006 = vunpack.c.h.b16 %v913
        %v1007 = vunpack.c.l.b16 %v914
        %v1008 = vunpack.c.h.b16 %v914
        %v1009 = vunpack.c.l.b16 %v915
        %v1010 = vunpack.c.h.b16 %v915
        %v1011 = vunpack.c.l.b16 %v916
        %v1012 = vunpack.c.h.b16 %v916
        %v1013 = vunpack.c.l.b16 %v917
        %v1014 = vunpack.c.h.b16 %v917
        %v1015 = vunpack.c.l.b16 %v918
        %v1016 = vunpack.c.h.b16 %v918
        %v1017 = vunpack.c.l.b16 %v919
        %v1018 = vunpack.c.h.b16 %v919
        %v1019 = vunpack.c.l.b16 %v920
        %v1020 = vunpack.c.h.b16 %v920
        %v1021 = vunpack.c.l.b16 %v921
        %v1022 = vunpack.c.h.b16 %v921
        %v1023 = vunpack.c.l.b16 %v922
        %v1024 = vunpack.c.h.b16 %v922
        %v1025 = vunpack.c.l.b16 %v923
        %v1026 = vunpack.c.h.b16 %v923
        %v1027 = vunpack.c.l.b16 %v924
        %v1028 = vunpack.c.h.b16 %v924
        %v1029 = vunpack.c.l.b16 %v925
        %v1030 = vunpack.c.h.b16 %v925
        %v1031 = vunpack.c.l.b16 %v926
        %v1032 = vunpack.c.h.b16 %v926
        %v1033 = vunpack.c.l.b16 %v927
        %v1034 = vunpack.c.h.b16 %v927
        %v1035 = vunpack.c.l.b16 %v928
        %v1036 = vunpack.c.h.b16 %v928
        %v1037 = vpack.c.b16 %v1009, %v1005
        %v1038 = vpack.c.b16 %v1010, %v1006
        %v1039 = vpack.c.b16 %v1011, %v1007
        %v1040 = vpack.c.b16 %v1012, %v1008
        %v1041 = vpack.c.b16 %v1017, %v1013
        %v1042 = vpack.c.b16 %v1018, %v1014
        %v1043 = vpack.c.b16 %v1019, %v1015
        %v1044 = vpack.c.b16 %v1020, %v1016
        %v1045 = vpack.c.b16 %v1025, %v1021
        %v1046 = vpack.c.b16 %v1026, %v1022
        %v1047 = vpack.c.b16 %v1027, %v1023
        %v1048 = vpack.c.b16 %v1028, %v1024
        %v1049 = vpack.c.b16 %v1033, %v1029
        %v1050 = vpack.c.b16 %v1034, %v1030
        %v1051 = vpack.c.b16 %v1035, %v1031
        %v1052 = vpack.c.b16 %v1036, %v1032
        %v1125 = vunpack.c.l.b16 %v929
        %v1126 = vunpack.c.l.b16 %v930
        %v1127 = vunpack.c.l.b16 %v931
        %v1128 = vunpack.c.l.b16 %v932
        %v1129 = vunpack.c.l.b16 %v933
        %v1130 = vunpack.c.l.b16 %v934
        %v1131 = vunpack.c.l.b16 %v935
        %v1132 = vunpack.c.l.b16 %v936
        %v1133 = vunpack.c.l.b16 %v937
        %v1134 = vunpack.c.l.b16 %v938
        %v1135 = vunpack.c.l.b16 %v939
        %v1136 = vunpack.c.l.b16 %v940
        %v1137 = vunpack.c.l.b16 %v941
        %v1138 = vunpack.c.l.b16 %v942
        %v1139 = vunpack.c.l.b16 %v943
        %v1140 = vunpack.c.l.b16 %v944
        %v1141 = vunpack.c.l.b16 %v945
        %v1142 = vunpack.c.l.b16 %v946
        %v1143 = vunpack.c.l.b16 %v947
        %v1144 = vunpack.c.l.b16 %v948
        %v1145 = vunpack.c.l.b16 %v949
        %v1146 = vunpack.c.l.b16 %v950
        %v1147 = vunpack.c.l.b16 %v951
        %v1148 = vunpack.c.l.b16 %v952
        %v1149 = vunpack.c.l.b16 %v953
        %v1150 = vunpack.c.l.b16 %v954
        %v1151 = vunpack.c.l.b16 %v955
        %v1152 = vunpack.c.l.b16 %v956
        %v1153 = vunpack.c.l.b16 %v957
        %v1154 = vunpack.c.l.b16 %v958
        %v1155 = vunpack.c.l.b16 %v959
        %v1156 = vunpack.c.l.b16 %v960
        %v1157 = vunpack.c.l.b16 %v961
        %v1158 = vunpack.c.l.b16 %v962
        %v1159 = vunpack.c.l.b16 %v963
        %v1160 = vunpack.c.l.b16 %v964
        %v1161 = vunpack.c.l.b16 %v965
        %v1162 = vunpack.c.l.b16 %v966
        %v1163 = vunpack.c.l.b16 %v967
        %v1164 = vunpack.c.l.b16 %v968
        %v1165 = vunpack.c.l.b16 %v969
        %v1166 = vunpack.c.l.b16 %v970
        %v1167 = vunpack.c.l.b16 %v971
        %v1168 = vunpack.c.l.b16 %v972
        %v1169 = vunpack.c.l.b16 %v973
        %v1170 = vunpack.c.l.b16 %v974
        %v1171 = vunpack.c.l.b16 %v975
        %v1172 = vunpack.c.l.b16 %v976
        %v1173 = vunpack.c.l.b16 %v977
        %v1174 = vunpack.c.l.b16 %v978
        %v1175 = vunpack.c.l.b16 %v979
        %v1176 = vunpack.c.l.b16 %v980
        %v1177 = vunpack.c.l.b16 %v981
        %v1178 = vunpack.c.l.b16 %v982
        %v1179 = vunpack.c.l.b16 %v983
        %v1180 = vunpack.c.l.b16 %v984
        %v1181 = vunpack.c.l.b16 %v985
        %v1182 = vunpack.c.l.b16 %v986
        %v1183 = vunpack.c.l.b16 %v987
        %v1184 = vunpack.c.l.b16 %v988
        %v1185 = vpack.c.b16 %v1126, %v1125
        %v1186 = vpack.c.b16 %v1128, %v1127
        %v1187 = vpack.c.b16 %v1130, %v1129
        %v1188 = vpack.c.b16 %v1132, %v1131
        %v1189 = vpack.c.b16 %v1134, %v1133
        %v1190 = vpack.c.b16 %v1136, %v1135
        %v1191 = vpack.c.b16 %v1138, %v1137
        %v1192 = vpack.c.b16 %v1140, %v1139
        %v1193 = vpack.c.b16 %v1142, %v1141
        %v1194 = vpack.c.b16 %v1144, %v1143
        %v1195 = vpack.c.b16 %v1146, %v1145
        %v1196 = vpack.c.b16 %v1148, %v1147
        %v1197 = vpack.c.b16 %v1150, %v1149
        %v1198 = vpack.c.b16 %v1152, %v1151
        %v1199 = vpack.c.b16 %v1154, %v1153
        %v1200 = vpack.c.b16 %v1156, %v1155
        %v1201 = vpack.c.b16 %v1158, %v1157
        %v1202 = vpack.c.b16 %v1160, %v1159
        %v1203 = vpack.c.b16 %v1162, %v1161
        %v1204 = vpack.c.b16 %v1164, %v1163
        %v1205 = vpack.c.b16 %v1166, %v1165
        %v1206 = vpack.c.b16 %v1168, %v1167
        %v1207 = vpack.c.b16 %v1170, %v1169
        %v1208 = vpack.c.b16 %v1172, %v1171
        %v1209 = vpack.c.b16 %v1174, %v1173
        %v1210 = vpack.c.b16 %v1176, %v1175
        %v1211 = vpack.c.b16 %v1178, %v1177
        %v1212 = vpack.c.b16 %v1180, %v1179
        %v1213 = vpack.c.b16 %v1182, %v1181
        %v1214 = vpack.c.b16 %v1184, %v1183
        %vm1245 = vcmask 785408
        %v1247 = vsel %vm1245, %v1040, 0
        %v1250 = vsel %vm1245, %v1044, 0
        %v1253 = vsel %vm1245, %v1048, 0
        %v1256 = vsel %vm1245, %v1052, 0
        %1258 = vmatprep.subr.bf16.mxu0 0
        %1259 = vmatpush1.bf16.msra.mxu0 %v1185
        %1260 = vmatprep.subr.bf16.mxu0 0
        %1261 = vmatpush1.bf16.msra.mxu0 %v1186
        %1262 = vmatprep.subr.bf16.mxu0 0
        %1263 = vmatpush1.bf16.msra.mxu0 %v1187
        %1264 = vmatprep.subr.bf16.mxu0 0
        %1265 = vmatpush1.bf16.msra.mxu0 %v1188
        %1266 = vmatprep.subr.bf16.mxu0 0
        %1267 = vmatpush1.bf16.msra.mxu0 %v1189
        %1268 = vmatprep.subr.bf16.mxu0 0
        %1269 = vmatpush1.bf16.msra.mxu0 %v1190
        %1270 = vmatprep.subr.bf16.mxu0 0
        %1271 = vmatpush1.bf16.msra.mxu0 %v1191
        %1272 = vmatprep.subr.bf16.mxu0 0
        %1273 = vmatpush1.bf16.msra.mxu0 %v1192
        %1274 = vmatprep.subr.bf16.mxu0 0
        %1275 = vmatpush1.bf16.msra.mxu0 %v1193
        %1276 = vmatprep.subr.bf16.mxu0 0
        %1277 = vmatpush1.bf16.msra.mxu0 %v1194
        %1278 = vmatprep.subr.bf16.mxu0 0
        %1279 = vmatpush1.bf16.msra.mxu0 %v1195
        %1280 = vmatprep.subr.bf16.mxu0 0
        %1281 = vmatpush1.bf16.msra.mxu0 %v1196
        %1282 = vmatprep.subr.bf16.mxu0 0
        %1283 = vmatpush1.bf16.msra.mxu0 %v1197
        %1284 = vmatprep.subr.bf16.mxu0 0
        %1285 = vmatpush1.bf16.msra.mxu0 %v1198
        %1286 = vmatprep.subr.bf16.mxu0 0
        %1287 = vmatpush1.bf16.msra.mxu0 %v1199
        %1288 = vmatprep.subr.bf16.mxu0 0
        %1289 = vmatpush1.bf16.msra.mxu0 %v1200
        %1290 = vmatprep.mubr.bf16.mxu0 %v1038
        %1291 = vmatmul.mubr.bf16.gmra.mrb[0].mxu0 %v1037
        %v1292 = vpop.f32.mrb[0].mxu0
        %v1293 = vadd.f32 0.0, %v1292
        %v1294 = vpop.f32.mrb[0].mxu0
        %v1295 = vpop.f32.mrb[0].mxu0
        %v1296 = vadd.f32 0.0, %v1295
        %v1297 = vpop.f32.mrb[0].mxu0
        %1298 = vmatprep.mubr.bf16.mxu0 %v1042
        %1299 = vmatmul.mubr.bf16.gmra.mrb[0].mxu0 %v1041
        %v1300 = vpop.f32.mrb[0].mxu0
        %v1301 = vadd.f32 0.0, %v1300
        %v1302 = vpop.f32.mrb[0].mxu0
        %v1303 = vpop.f32.mrb[0].mxu0
        %v1304 = vadd.f32 0.0, %v1303
        %v1305 = vpop.f32.mrb[0].mxu0
        %1306 = vmatprep.mubr.bf16.mxu0 %v1046
        %1307 = vmatmul.mubr.bf16.gmra.mrb[0].mxu0 %v1045
        %v1308 = vpop.f32.mrb[0].mxu0
        %v1309 = vadd.f32 0.0, %v1308
        %v1310 = vpop.f32.mrb[0].mxu0
        %v1311 = vpop.f32.mrb[0].mxu0
        %v1312 = vadd.f32 0.0, %v1311
        %v1313 = vpop.f32.mrb[0].mxu0
        %1314 = vmatprep.mubr.bf16.mxu0 %v1050
        %1315 = vmatmul.mubr.bf16.gmra.mrb[0].mxu0 %v1049
        %v1316 = vpop.f32.mrb[0].mxu0
        %v1317 = vadd.f32 0.0, %v1316
        %v1318 = vpop.f32.mrb[0].mxu0
        %v1319 = vpop.f32.mrb[0].mxu0
        %v1320 = vadd.f32 0.0, %v1319
        %v1321 = vpop.f32.mrb[0].mxu0
        %1322 = vdwg.mxu0
        %1323 = vmatprep.subr.bf16.mxu0 0
        %1324 = vmatpush1.bf16.msra.mxu0 %v1201
        %1325 = vmatprep.subr.bf16.mxu0 0
        %1326 = vmatpush1.bf16.msra.mxu0 %v1202
        %1327 = vmatprep.subr.bf16.mxu0 0
        %1328 = vmatpush1.bf16.msra.mxu0 %v1203
        %1329 = vmatprep.subr.bf16.mxu0 0
        %1330 = vmatpush1.bf16.msra.mxu0 %v1204
        %1331 = vmatprep.subr.bf16.mxu0 0
        %1332 = vmatpush1.bf16.msra.mxu0 %v1205
        %1333 = vmatprep.subr.bf16.mxu0 0
        %1334 = vmatpush1.bf16.msra.mxu0 %v1206
        %1335 = vmatprep.subr.bf16.mxu0 0
        %1336 = vmatpush1.bf16.msra.mxu0 %v1207
        %1337 = vmatprep.subr.bf16.mxu0 0
        %1338 = vmatpush1.bf16.msra.mxu0 %v1208
        %1339 = vmatprep.subr.bf16.mxu0 0
        %1340 = vmatpush1.bf16.msra.mxu0 %v1209
        %1341 = vmatprep.subr.bf16.mxu0 0
        %1342 = vmatpush1.bf16.msra.mxu0 %v1210
        %1343 = vmatprep.subr.bf16.mxu0 0
        %1344 = vmatpush1.bf16.msra.mxu0 %v1211
        %1345 = vmatprep.subr.bf16.mxu0 0
        %1346 = vmatpush1.bf16.msra.mxu0 %v1212
        %1347 = vmatprep.subr.bf16.mxu0 0
        %1348 = vmatpush1.bf16.msra.mxu0 %v1213
        %1349 = vmatprep.subr.bf16.mxu0 0
        %1350 = vmatpush1.bf16.msra.mxu0 %v1214
        %1351 = vmatprep.subr.bf16.mxu0 0
        %1352 = vmatpush1.bf16.msra.mxu0 0
        %1353 = vmatprep.subr.bf16.mxu0 0
        %1354 = vmatpush1.bf16.msra.mxu0 0
        %1355 = vmatprep.mubr.bf16.mxu0 %v1247
        %1356 = vmatmul.mubr.bf16.gmra.mrb[0].mxu0 %v1039
        %v1357 = vpop.f32.mrb[0].mxu0
        %v1358 = vadd.f32 %v1293, %v1357
        %v1359 = vpop.f32.mrb[0].mxu0
        %v1360 = vpop.f32.mrb[0].mxu0
        %v1361 = vadd.f32 %v1296, %v1360
        %v1362 = vpop.f32.mrb[0].mxu0
        %1363 = vmatprep.mubr.bf16.mxu0 %v1250
        %1364 = vmatmul.mubr.bf16.gmra.mrb[0].mxu0 %v1043
        %v1365 = vpop.f32.mrb[0].mxu0
        %v1366 = vadd.f32 %v1301, %v1365
        %v1367 = vpop.f32.mrb[0].mxu0
        %v1368 = vpop.f32.mrb[0].mxu0
        %v1369 = vadd.f32 %v1304, %v1368
        %v1370 = vpop.f32.mrb[0].mxu0
        %1371 = vmatprep.mubr.bf16.mxu0 %v1253
        %1372 = vmatmul.mubr.bf16.gmra.mrb[0].mxu0 %v1047
        %v1373 = vpop.f32.mrb[0].mxu0
        %v1374 = vadd.f32 %v1309, %v1373
        %v1375 = vpop.f32.mrb[0].mxu0
        %v1376 = vpop.f32.mrb[0].mxu0
        %v1377 = vadd.f32 %v1312, %v1376
        %v1378 = vpop.f32.mrb[0].mxu0
        %1379 = vmatprep.mubr.bf16.mxu0 %v1256
        %1380 = vmatmul.mubr.bf16.gmra.mrb[0].mxu0 %v1051
        %v1381 = vpop.f32.mrb[0].mxu0
        %v1382 = vadd.f32 %v1317, %v1381
        %v1383 = vpop.f32.mrb[0].mxu0
        %v1384 = vpop.f32.mrb[0].mxu0
        %v1385 = vadd.f32 %v1320, %v1384
        %v1386 = vpop.f32.mrb[0].mxu0
        %1387 = vdwg.mxu0
        %v1388 = vld [vmem:[%s2] sm:$0x1]
        %v1390 = vlaneseq
        %v1391 = vshrl.u32 %v1390, 7
        %v1392 = vsub.s32 0, %v1391
        %v1393 = vrot.slane %v1388, %v1392
        %v1395 = vmul.f32 %v1358, %v1393
        %v1396 = vmul.f32 %v1361, %v1393
        %v1397 = vmul.f32 %v1366, %v1393
        %v1398 = vmul.f32 %v1369, %v1393
        %v1399 = vmul.f32 %v1374, %v1393
        %v1400 = vmul.f32 %v1377, %v1393
        %v1401 = vmul.f32 %v1382, %v1393
        %v1402 = vmul.f32 %v1385, %v1393
        %v1403 = vld [vmem:[%s3] sm:$0x1]
        %v1405 = vlaneseq
        %v1406 = vshrl.u32 %v1405, 7
        %v1407 = vsub.s32 0, %v1406
        %v1408 = vrot.slane %v1403, %v1407
        %v1410 = vadd.f32 %v1395, %v1408
        %v1411 = vadd.f32 %v1396, %v1408
        %v1412 = vadd.f32 %v1397, %v1408
        %v1413 = vadd.f32 %v1398, %v1408
        %v1414 = vadd.f32 %v1399, %v1408
        %v1415 = vadd.f32 %v1400, %v1408
        %v1416 = vadd.f32 %v1401, %v1408
        %v1417 = vadd.f32 %v1402, %v1408
        %v1418 = vmax.f32 %v1410, 0.0
        %v1419 = vmax.f32 %v1411, 0.0
        %v1420 = vmax.f32 %v1412, 0.0
        %v1421 = vmax.f32 %v1413, 0.0
        %v1422 = vmax.f32 %v1414, 0.0
        %v1423 = vmax.f32 %v1415, 0.0
        %v1424 = vmax.f32 %v1416, 0.0
        %v1425 = vmax.f32 %v1417, 0.0
        %v1426 = vpack.c.bf16 %v1418, %v1418
        %v1427 = vpack.c.bf16 %v1419, %v1419
        %v1428 = vpack.c.bf16 %v1420, %v1420
        %v1429 = vpack.c.bf16 %v1421, %v1421
        %v1430 = vpack.c.bf16 %v1422, %v1422
        %v1431 = vpack.c.bf16 %v1423, %v1423
        %v1432 = vpack.c.bf16 %v1424, %v1424
        %v1433 = vpack.c.bf16 %v1425, %v1425
        %vm1434 = vcmask 519168
        %1435 = vst.msk [vmem:[%s245] sm:$0xf] %vm1434, %v1426
        %1436 = vst.msk [vmem:[%s245 + $0x4] sm:$0xf] %vm1434, %v1427
        %1437 = vst.msk [vmem:[%s245 + $0x8] sm:$0xf] %vm1434, %v1428
        %1438 = vst.msk [vmem:[%s245 + $0xc] sm:$0xf] %vm1434, %v1429
        %1439 = vst.msk [vmem:[%s245 + $0x10] sm:$0xf] %vm1434, %v1430
        %1440 = vst.msk [vmem:[%s245 + $0x14] sm:$0xf] %vm1434, %v1431
        %1441 = vst.msk [vmem:[%s245 + $0x18] sm:$0xf] %vm1434, %v1432
        %1442 = vst.msk [vmem:[%s245 + $0x1c] sm:$0xf] %vm1434, %v1433
      $region40: #{mixed_4b_forward.9} parent=35 // pred_fallthru
        _
      %s1443 = ssub.s32 %s20, 2
      %p1444 = scmp.gt.s32.totalorder %s1443, 0
      %s1445 = scalar_select %p1444, %s1443, 0
      %p1446 = scmp.lt.s32.totalorder %s19, 1
      %s1447 = scalar_select %p1446, %s19, 1
      %p1448 = scmp.lt.s32.totalorder %s1445, 1
      %s1449 = scalar_select %p1448, %s1445, 1
      %s1450 = smul.addr %s1449, 8
      %s1451 = smul.addr %s1447, 16
      %s1452 = sadd.s32 %s1450, %s1451
      %s1453 = smul.addr %s1452, 4
      %s1454 = scalar_lea.vmem %s4, %s1453
      // Predicated region
      $region41: #{mixed_4b_forward.9} parent=35 // pred_check
        %p1455 = pneg %p144
      $region42: #{mixed_4b_forward.9} parent=35 // pred_check_branch
        %1457 = sbr.rel (%p1455) target = $region44
      $region43: #{mixed_4b_forward.9} parent=35 // pred_region
        %s1458 = ssub.s32 %s20, 2
        %p1459 = scmp.gt.s32.totalorder %s1458, 0
        %s1460 = scalar_select %p1459, %s1458, 0
      $region44: #{mixed_4b_forward.9} parent=35 // pred_fallthru
        _
    $region36: #{mixed_4b_forward.9} parent=5 // pred_fallthru
      _
    %p1461 = scmp.le.s32.totalorder 2, %s10
    // Predicated region
    $region45: #{mixed_4b_forward.9} parent=5 // pred_check
      %p1462 = pneg %p1461
    $region46: #{mixed_4b_forward.9} parent=5 // pred_check_branch
      %1464 = sbr.rel (%p1462) target = $region48
    $region47: #{mixed_4b_forward.9} parent=5 // pred_region
      %s1465 = ssub.s32 %s10, 2
      // Predicated region
      $region49: #{mixed_4b_forward.9} parent=47 // pred_check
        %p1466 = pneg %p150
      $region50: #{mixed_4b_forward.9} parent=47 // pred_check_branch
        %1468 = sbr.rel (%p1466) target = $region52
      $region51: #{mixed_4b_forward.9} parent=47 // pred_region
        %s1469 = ssub.s32 %s22, 2
        %p1470 = scmp.gt.s32.totalorder %s1469, 0
        %s1471 = scalar_select %p1470, %s1469, 0
        %p1472 = scmp.lt.s32.totalorder %s21, 1
        %s1473 = scalar_select %p1472, %s21, 1
        %p1474 = scmp.lt.s32.totalorder %s1471, 1
        %s1475 = scalar_select %p1474, %s1471, 1
        %s1476 = smul.addr %s1475, 8
        %s1477 = smul.addr %s1473, 16
        %s1478 = sadd.s32 %s1476, %s1477
        %s1479 = smul.addr %s1478, 4
        %s1480 = scalar_lea.vmem %s4, %s1479
      $region52: #{mixed_4b_forward.9} parent=47 // pred_fallthru
        _
    $region48: #{mixed_4b_forward.9} parent=5 // pred_fallthru
      _
  $region6: #{mixed_4b_forward.9} parent=0 // loop_footer
    %s14 = sadd.s32 1, %s10
  $region7: #{mixed_4b_forward.9} parent=0 // loop_footer_branch
    %9 = sbr.rel target = $region3
  $region8: #{mixed_4b_forward.9} parent=0 // loop_exit
    _

// kernel: mixed_4b_forward.5
$region0: #{mixed_4b_forward.5}
  #allocation0 [shape = 'u32[]', space=smem, size = 0x4, offset = 0x4, fixed_abs, tag = 'smem constant byte address 0x4 - core index']
  #allocation1 [shape = 'u32[144,128]{1,0:T(1,128)}', space=vmem, size = 0x12000, scoped, tag = 'internal scratch']
  %s0 = inlined_call_operand.vmem [shape: bf16[256,480], index: 0, kind: input, shape index: {}]
  %s1 = inlined_call_operand.vmem [shape: bf16[480,304], index: 1, kind: input, shape index: {}]
  %s2 = inlined_call_operand.vmem [shape: f32[1,304], index: 2, kind: input, shape index: {}]
  %s3 = inlined_call_operand.vmem [shape: f32[1,304], index: 3, kind: input, shape index: {}]
  %s4 = inlined_call_operand.vmem [shape: bf16[256,192], index: 4, kind: output, shape index: {0}]
  %s5 = inlined_call_operand.vmem [shape: bf16[256,96], index: 5, kind: output, shape index: {1}]
  %s6 = inlined_call_operand.vmem [shape: bf16[256,16], index: 6, kind: output, shape index: {2}]
  %7 = xla_tuple %s4, %s5, %s6
  %s8 = sld [smem:[#allocation0]]
  $region65: #{mixed_4b_forward.5} parent=0
    _
  %s10 = ssub.s32 1, %s8
  %s11 = scalar_select 0, %s10, %s8
  loop: start=0, step=1, limit=6
  $region2: #{mixed_4b_forward.5} parent=0 // loop_pre_header
    _
  $region3: #{mixed_4b_forward.5} parent=0 // loop_header
    %s13 = sphi 0, %s17
    %p14 = scmp.ge.s32.totalorder %s13, 6
    %s23 = sphi 0, %s25
    %s26 = sphi 0, %s23
    %s27 = sphi 0, %s26
    %s43 = sphi 0, %s27
    %s47 = sphi 0, %s47
    %s49 = sphi 0, %s47
    %s50 = sphi 0, %s49
    %s64 = sphi 0, %s50
    %s68 = sphi 0, %s68
    %s70 = sphi 0, %s68
    %s71 = sphi 0, %s70
    %s85 = sphi 0, %s71
    %s89 = sphi 0, %s89
    %s91 = sphi 0, %s89
    %s92 = sphi 0, %s91
    %s106 = sphi 0, %s92
    %s112 = sphi 0, %s114
    %s115 = sphi 0, %s112
    %s116 = sphi 0, %s115
    %s132 = sphi 0, %s116
    %s138 = sphi 0, %s140
    %s141 = sphi 0, %s138
    %s142 = sphi 0, %s141
    %s158 = sphi 0, %s142
    %s164 = sphi 0, %s166
    %s167 = sphi 0, %s164
    %s168 = sphi 0, %s167
    %s184 = sphi 0, %s168
  $region4: #{mixed_4b_forward.5} parent=0 // loop_header_branch
    %16 = sbr.rel (%p14) target = $region8
  $region5: #{mixed_4b_forward.5} parent=0 // loop_body
    %s18 = ssub.s32 %s13, 1
    %s19 = ssub.s32 %s13, 2
    %s20 = sadd.s32 %s13, 1
    %s21 = ssub.s32 %s13, %s20
    %p22 = scmp.eq.s32.totalorder %s21, 0
    %s24 = sadd.s32 %s23, 1
    %s25 = scalar_select %p22, %s23, %s24
    %p28 = pneg %p22
    %p29 = scmp.eq.s32.totalorder %s13, 3
    %p30 = por %p28, %p29
    %p31 = scmp.ne.s32.totalorder %s23, %s26
    %p32 = scmp.eq.s32.totalorder %s13, 0
    %p33 = por %p31, %p32
    %p34 = scmp.ne.s32.totalorder %s23, %s26
    %p35 = scmp.eq.s32.totalorder %s18, 3
    %p36 = por %p34, %p35
    %p37 = scmp.ne.s32.totalorder %s26, %s27
    %p38 = scmp.eq.s32.totalorder %s18, 0
    %p39 = por %p37, %p38
    %p40 = scmp.ne.s32.totalorder %s26, %s27
    %p41 = scmp.eq.s32.totalorder %s19, 3
    %p42 = por %p40, %p41
    %p44 = scmp.ne.s32.totalorder %s27, %s43
    %p45 = scmp.eq.s32.totalorder %s19, 0
    %p46 = por %p44, %p45
    %s48 = sadd.s32 %s47, 1
    %p51 = scmp.eq.s32.totalorder %s13, 3
    %p52 = scmp.ne.s32.totalorder %s47, %s49
    %p53 = scmp.eq.s32.totalorder %s13, 0
    %p54 = por %p52, %p53
    %p55 = scmp.ne.s32.totalorder %s47, %s49
    %p56 = scmp.eq.s32.totalorder %s18, 3
    %p57 = por %p55, %p56
    %p58 = scmp.ne.s32.totalorder %s49, %s50
    %p59 = scmp.eq.s32.totalorder %s18, 0
    %p60 = por %p58, %p59
    %p61 = scmp.ne.s32.totalorder %s49, %s50
    %p62 = scmp.eq.s32.totalorder %s19, 3
    %p63 = por %p61, %p62
    %p65 = scmp.ne.s32.totalorder %s50, %s64
    %p66 = scmp.eq.s32.totalorder %s19, 0
    %p67 = por %p65, %p66
    %s69 = sadd.s32 %s68, 1
    %p72 = scmp.eq.s32.totalorder %s13, 3
    %p73 = scmp.ne.s32.totalorder %s68, %s70
    %p74 = scmp.eq.s32.totalorder %s13, 0
    %p75 = por %p73, %p74
    %p76 = scmp.ne.s32.totalorder %s68, %s70
    %p77 = scmp.eq.s32.totalorder %s18, 3
    %p78 = por %p76, %p77
    %p79 = scmp.ne.s32.totalorder %s70, %s71
    %p80 = scmp.eq.s32.totalorder %s18, 0
    %p81 = por %p79, %p80
    %p82 = scmp.ne.s32.totalorder %s70, %s71
    %p83 = scmp.eq.s32.totalorder %s19, 3
    %p84 = por %p82, %p83
    %p86 = scmp.ne.s32.totalorder %s71, %s85
    %p87 = scmp.eq.s32.totalorder %s19, 0
    %p88 = por %p86, %p87
    %s90 = sadd.s32 %s89, 1
    %p93 = scmp.eq.s32.totalorder %s13, 3
    %p94 = scmp.ne.s32.totalorder %s89, %s91
    %p95 = scmp.eq.s32.totalorder %s13, 0
    %p96 = por %p94, %p95
    %p97 = scmp.ne.s32.totalorder %s89, %s91
    %p98 = scmp.eq.s32.totalorder %s18, 3
    %p99 = por %p97, %p98
    %p100 = scmp.ne.s32.totalorder %s91, %s92
    %p101 = scmp.eq.s32.totalorder %s18, 0
    %p102 = por %p100, %p101
    %p103 = scmp.ne.s32.totalorder %s91, %s92
    %p104 = scmp.eq.s32.totalorder %s19, 3
    %p105 = por %p103, %p104
    %p107 = scmp.ne.s32.totalorder %s92, %s106
    %p108 = scmp.eq.s32.totalorder %s19, 0
    %p109 = por %p107, %p108
    %s110 = ssub.s32 %s13, %s20
    %p111 = scmp.eq.s32.totalorder %s110, 0
    %s113 = sadd.s32 %s112, 1
    %s114 = scalar_select %p111, %s112, %s113
    %p117 = pneg %p111
    %p118 = scmp.eq.s32.totalorder %s13, 3
    %p119 = por %p117, %p118
    %p120 = scmp.ne.s32.totalorder %s112, %s115
    %p121 = scmp.eq.s32.totalorder %s13, 0
    %p122 = por %p120, %p121
    %p123 = scmp.ne.s32.totalorder %s112, %s115
    %p124 = scmp.eq.s32.totalorder %s18, 3
    %p125 = por %p123, %p124
    %p126 = scmp.ne.s32.totalorder %s115, %s116
    %p127 = scmp.eq.s32.totalorder %s18, 0
    %p128 = por %p126, %p127
    %p129 = scmp.ne.s32.totalorder %s115, %s116
    %p130 = scmp.eq.s32.totalorder %s19, 3
    %p131 = por %p129, %p130
    %p133 = scmp.ne.s32.totalorder %s116, %s132
    %p134 = scmp.eq.s32.totalorder %s19, 0
    %p135 = por %p133, %p134
    %s136 = ssub.s32 %s13, %s20
    %p137 = scmp.eq.s32.totalorder %s136, 0
    %s139 = sadd.s32 %s138, 1
    %s140 = scalar_select %p137, %s138, %s139
    %p143 = pneg %p137
    %p144 = scmp.eq.s32.totalorder %s13, 3
    %p145 = por %p143, %p144
    %p146 = scmp.ne.s32.totalorder %s138, %s141
    %p147 = scmp.eq.s32.totalorder %s13, 0
    %p148 = por %p146, %p147
    %p149 = scmp.ne.s32.totalorder %s138, %s141
    %p150 = scmp.eq.s32.totalorder %s18, 3
    %p151 = por %p149, %p150
    %p152 = scmp.ne.s32.totalorder %s141, %s142
    %p153 = scmp.eq.s32.totalorder %s18, 0
    %p154 = por %p152, %p153
    %p155 = scmp.ne.s32.totalorder %s141, %s142
    %p156 = scmp.eq.s32.totalorder %s19, 3
    %p157 = por %p155, %p156
    %p159 = scmp.ne.s32.totalorder %s142, %s158
    %p160 = scmp.eq.s32.totalorder %s19, 0
    %p161 = por %p159, %p160
    %s162 = ssub.s32 %s13, %s20
    %p163 = scmp.eq.s32.totalorder %s162, 0
    %s165 = sadd.s32 %s164, 1
    %s166 = scalar_select %p163, %s164, %s165
    %p169 = pneg %p163
    %p170 = scmp.eq.s32.totalorder %s13, 3
    %p171 = por %p169, %p170
    %p172 = scmp.ne.s32.totalorder %s164, %s167
    %p173 = scmp.eq.s32.totalorder %s13, 0
    %p174 = por %p172, %p173
    %p175 = scmp.ne.s32.totalorder %s164, %s167
    %p176 = scmp.eq.s32.totalorder %s18, 3
    %p177 = por %p175, %p176
    %p178 = scmp.ne.s32.totalorder %s167, %s168
    %p179 = scmp.eq.s32.totalorder %s18, 0
    %p180 = por %p178, %p179
    %p181 = scmp.ne.s32.totalorder %s167, %s168
    %p182 = scmp.eq.s32.totalorder %s19, 3
    %p183 = por %p181, %p182
    %p185 = scmp.ne.s32.totalorder %s168, %s184
    %p186 = scmp.eq.s32.totalorder %s19, 0
    %p187 = por %p185, %p186
    %p188 = scmp.le.s32.totalorder 1, %s13
    %p189 = scmp.lt.s32.totalorder %s13, 5
    %p190 = pnand %p188, %p189
    %p191 = pneg %p190
    // Predicated region
    $region9: #{mixed_4b_forward.5} parent=5 // pred_check
      _
    $region10: #{mixed_4b_forward.5} parent=5 // pred_check_branch
      %193 = sbr.rel (%p190) target = $region12
    $region11: #{mixed_4b_forward.5} parent=5 // pred_region
      %s194 = ssub.s32 %s13, 1
      // Predicated region
      $region13: #{mixed_4b_forward.5} parent=11 // pred_check
        %p195 = pneg %p60
      $region14: #{mixed_4b_forward.5} parent=11 // pred_check_branch
        %197 = sbr.rel (%p195) target = $region16
      $region15: #{mixed_4b_forward.5} parent=11 // pred_region
        _
      $region16: #{mixed_4b_forward.5} parent=11 // pred_fallthru
        _
      // Predicated region
      $region17: #{mixed_4b_forward.5} parent=11 // pred_check
        %p198 = pneg %p81
      $region18: #{mixed_4b_forward.5} parent=11 // pred_check_branch
        %200 = sbr.rel (%p198) target = $region20
      $region19: #{mixed_4b_forward.5} parent=11 // pred_region
        _
      $region20: #{mixed_4b_forward.5} parent=11 // pred_fallthru
        _
      // Predicated region
      $region21: #{mixed_4b_forward.5} parent=11 // pred_check
        %p201 = pneg %p102
      $region22: #{mixed_4b_forward.5} parent=11 // pred_check_branch
        %203 = sbr.rel (%p201) target = $region24
      $region23: #{mixed_4b_forward.5} parent=11 // pred_region
        _
      $region24: #{mixed_4b_forward.5} parent=11 // pred_fallthru
        _
    $region12: #{mixed_4b_forward.5} parent=5 // pred_fallthru
      _
    %p204 = scmp.lt.s32.totalorder %s13, 4
    // Predicated region
    $region25: #{mixed_4b_forward.5} parent=5 // pred_check
      %p205 = pneg %p204
    $region26: #{mixed_4b_forward.5} parent=5 // pred_check_branch
      %207 = sbr.rel (%p205) target = $region28
    $region27: #{mixed_4b_forward.5} parent=5 // pred_region
      // Predicated region
      $region29: #{mixed_4b_forward.5} parent=27 // pred_check
        %p208 = pneg %p33
      $region30: #{mixed_4b_forward.5} parent=27 // pred_check_branch
        %210 = sbr.rel (%p208) target = $region32
      $region31: #{mixed_4b_forward.5} parent=27 // pred_region
        %s211 = smul.u32 8, %s13
        %p212 = scmp.lt.s32.totalorder %s211, 31
        %s213 = scalar_select %p212, %s211, 31
        %s214 = smul.addr %s213, 4
        %s215 = smul.addr %s214, 4
        %s216 = scalar_lea.vmem %s0, %s215
        %s217 = smul.u32 8, %s13
      $region32: #{mixed_4b_forward.5} parent=27 // pred_fallthru
        _
    $region28: #{mixed_4b_forward.5} parent=5 // pred_fallthru
      _
    %p218 = scmp.le.s32.totalorder 1, %s13
    %p219 = scmp.lt.s32.totalorder %s13, 5
    %p220 = pnand %p218, %p219
    %p221 = pneg %p220
    // Predicated region
    $region33: #{mixed_4b_forward.5} parent=5 // pred_check
      _
    $region34: #{mixed_4b_forward.5} parent=5 // pred_check_branch
      %223 = sbr.rel (%p220) target = $region36
    $region35: #{mixed_4b_forward.5} parent=5 // pred_region
      %s224 = ssub.s32 %s13, 1
      %s225 = smul.u32 8, %s18
      %p226 = scmp.lt.s32.totalorder %s225, 31
      %s227 = scalar_select %p226, %s225, 31
      %s228 = smul.addr %s227, 4
      %s229 = smul.addr %s228, 4
      %s230 = scalar_lea.vmem %s0, %s229
      %p231 = pneg %p39
      %p232 = pneg %p36
      %p233 = pneg %p60
      %p234 = pneg %p57
      %p235 = pneg %p81
      %p236 = pneg %p78
      %p237 = pneg %p102
      %p238 = pneg %p99
      %p239 = pneg %p128
      %p240 = pneg %p125
      %s241 = smul.u32 8, %s18
      %p242 = scmp.lt.s32.totalorder %s241, 31
      %s243 = scalar_select %p242, %s241, 31
      %s244 = smul.addr %s243, 2
      %s245 = smul.addr %s244, 4
      %s246 = scalar_lea.vmem %s4, %s245
      %p247 = pneg %p154
      %p248 = pneg %p151
      %s249 = smul.u32 8, %s18
      %p250 = scmp.lt.s32.totalorder %s249, 31
      %s251 = scalar_select %p250, %s249, 31
      %s252 = smul.addr %s251, 4
      %s253 = scalar_lea.vmem %s5, %s252
      %p254 = pneg %p180
      %p255 = pneg %p177
      %s256 = smul.u32 8, %s18
      %p257 = scmp.lt.s32.totalorder %s256, 31
      %s258 = scalar_select %p257, %s256, 31
      %s259 = smul.addr %s258, 4
      %s260 = scalar_lea.vmem %s6, %s259
      %s261 = smul.u32 8, %s18
      %p262 = scmp.lt.s32.totalorder %s261, 31
      %s263 = scalar_select %p262, %s261, 31
      %s264 = smul.addr %s263, 4
      %s265 = smul.addr %s264, 4
      %s266 = scalar_lea.vmem %s0, %s265
      %s267 = smul.u32 8, %s18
      %s268 = smul.u32 8, %s18
      %p269 = scmp.lt.s32.totalorder %s268, 31
      %s270 = scalar_select %p269, %s268, 31
      %s271 = smul.addr %s270, 2
      %s272 = smul.addr %s271, 4
      %s273 = scalar_lea.vmem %s4, %s272
      %s274 = smul.u32 8, %s18
      %s275 = smul.u32 8, %s18
      %p276 = scmp.lt.s32.totalorder %s275, 31
      %s277 = scalar_select %p276, %s275, 31
      %s278 = smul.addr %s277, 4
      %s279 = scalar_lea.vmem %s5, %s278
      %s280 = smul.u32 8, %s18
      %s281 = smul.u32 8, %s18
      %p282 = scmp.lt.s32.totalorder %s281, 31
      %s283 = scalar_select %p282, %s281, 31
      %s284 = smul.addr %s283, 4
      %s285 = scalar_lea.vmem %s6, %s284
      %s286 = smul.u32 8, %s18
      %v288 = vld [vmem:[%s266] sm:$0xff]
      %v289 = vld [vmem:[%s266 + $0x8] sm:$0xff]
      %v290 = vld [vmem:[%s266 + $0x10] sm:$0xff]
      %v291 = vld [vmem:[%s266 + $0x18] sm:$0xff]
      %v292 = vld [vmem:[%s266 + $0x20] sm:$0xff]
      %v293 = vld [vmem:[%s266 + $0x28] sm:$0xff]
      %v294 = vld [vmem:[%s266 + $0x30] sm:$0xff]
      %v295 = vld [vmem:[%s266 + $0x38] sm:$0xff]
      %v296 = vld [vmem:[%s266 + $0x40] sm:$0xff]
      %v297 = vld [vmem:[%s266 + $0x48] sm:$0xff]
      %v298 = vld [vmem:[%s266 + $0x50] sm:$0xff]
      %v299 = vld [vmem:[%s266 + $0x58] sm:$0xff]
      %v300 = vld [vmem:[%s266 + $0x60] sm:$0xff]
      %v301 = vld [vmem:[%s266 + $0x68] sm:$0xff]
      %v302 = vld [vmem:[%s266 + $0x70] sm:$0xff]
      %v303 = vld [vmem:[%s266 + $0x78] sm:$0xff]
      %v304 = vld [vmem:[%s1] sm:$0xff]
      %v305 = vld [vmem:[%s1 + $0x8] sm:$0xf]
      %v306 = vld [vmem:[%s1 + $0xc] sm:$0xff]
      %v307 = vld [vmem:[%s1 + $0x14] sm:$0xf]
      %v308 = vld [vmem:[%s1 + $0x18] sm:$0xff]
      %v309 = vld [vmem:[%s1 + $0x20] sm:$0xf]
      %v310 = vld [vmem:[%s1 + $0x24] sm:$0xff]
      %v311 = vld [vmem:[%s1 + $0x2c] sm:$0xf]
      %v312 = vld [vmem:[%s1 + $0x30] sm:$0xff]
      %v313 = vld [vmem:[%s1 + $0x38] sm:$0xf]
      %v314 = vld [vmem:[%s1 + $0x3c] sm:$0xff]
      %v315 = vld [vmem:[%s1 + $0x44] sm:$0xf]
      %v316 = vld [vmem:[%s1 + $0x48] sm:$0xff]
      %v317 = vld [vmem:[%s1 + $0x50] sm:$0xf]
      %v318 = vld [vmem:[%s1 + $0x54] sm:$0xff]
      %v319 = vld [vmem:[%s1 + $0x5c] sm:$0xf]
      %v320 = vld [vmem:[%s1 + $0x60] sm:$0xff]
      %v321 = vld [vmem:[%s1 + $0x68] sm:$0xf]
      %v322 = vld [vmem:[%s1 + $0x6c] sm:$0xff]
      %v323 = vld [vmem:[%s1 + $0x74] sm:$0xf]
      %v324 = vld [vmem:[%s1 + $0x78] sm:$0xff]
      %v325 = vld [vmem:[%s1 + $0x80] sm:$0xf]
      %v326 = vld [vmem:[%s1 + $0x84] sm:$0xff]
      %v327 = vld [vmem:[%s1 + $0x8c] sm:$0xf]
      %v328 = vld [vmem:[%s1 + $0x90] sm:$0xff]
      %v329 = vld [vmem:[%s1 + $0x98] sm:$0xf]
      %v330 = vld [vmem:[%s1 + $0x9c] sm:$0xff]
      %v331 = vld [vmem:[%s1 + $0xa4] sm:$0xf]
      %v332 = vld [vmem:[%s1 + $0xa8] sm:$0xff]
      %v333 = vld [vmem:[%s1 + $0xb0] sm:$0xf]
      %v334 = vld [vmem:[%s1 + $0xb4] sm:$0xff]
      %v335 = vld [vmem:[%s1 + $0xbc] sm:$0xf]
      %v336 = vld [vmem:[%s1 + $0xc0] sm:$0xff]
      %v337 = vld [vmem:[%s1 + $0xc8] sm:$0xf]
      %v338 = vld [vmem:[%s1 + $0xcc] sm:$0xff]
      %v339 = vld [vmem:[%s1 + $0xd4] sm:$0xf]
      %v340 = vld [vmem:[%s1 + $0xd8] sm:$0xff]
      %v341 = vld [vmem:[%s1 + $0xe0] sm:$0xf]
      %v342 = vld [vmem:[%s1 + $0xe4] sm:$0xff]
      %v343 = vld [vmem:[%s1 + $0xec] sm:$0xf]
      %v344 = vld [vmem:[%s1 + $0xf0] sm:$0xff]
      %v345 = vld [vmem:[%s1 + $0xf8] sm:$0xf]
      %v346 = vld [vmem:[%s1 + $0xfc] sm:$0xff]
      %v347 = vld [vmem:[%s1 + $0x104] sm:$0xf]
      %v348 = vld [vmem:[%s1 + $0x108] sm:$0xff]
      %v349 = vld [vmem:[%s1 + $0x110] sm:$0xf]
      %v350 = vld [vmem:[%s1 + $0x114] sm:$0xff]
      %v351 = vld [vmem:[%s1 + $0x11c] sm:$0xf]
      %v352 = vld [vmem:[%s1 + $0x120] sm:$0xff]
      %v353 = vld [vmem:[%s1 + $0x128] sm:$0xf]
      %v354 = vld [vmem:[%s1 + $0x12c] sm:$0xff]
      %v355 = vld [vmem:[%s1 + $0x134] sm:$0xf]
      %v356 = vld [vmem:[%s1 + $0x138] sm:$0xff]
      %v357 = vld [vmem:[%s1 + $0x140] sm:$0xf]
      %v358 = vld [vmem:[%s1 + $0x144] sm:$0xff]
      %v359 = vld [vmem:[%s1 + $0x14c] sm:$0xf]
      %v360 = vld [vmem:[%s1 + $0x150] sm:$0xff]
      %v361 = vld [vmem:[%s1 + $0x158] sm:$0xf]
      %v362 = vld [vmem:[%s1 + $0x15c] sm:$0xff]
      %v363 = vld [vmem:[%s1 + $0x164] sm:$0xf]
      %v364 = vld [vmem:[%s1 + $0x168] sm:$0xff]
      %v365 = vld [vmem:[%s1 + $0x170] sm:$0xf]
      %v366 = vld [vmem:[%s1 + $0x174] sm:$0xff]
      %v367 = vld [vmem:[%s1 + $0x17c] sm:$0xf]
      %v368 = vld [vmem:[%s1 + $0x180] sm:$0xff]
      %v369 = vld [vmem:[%s1 + $0x188] sm:$0xf]
      %v370 = vld [vmem:[%s1 + $0x18c] sm:$0xff]
      %v371 = vld [vmem:[%s1 + $0x194] sm:$0xf]
      %v372 = vld [vmem:[%s1 + $0x198] sm:$0xff]
      %v373 = vld [vmem:[%s1 + $0x1a0] sm:$0xf]
      %v374 = vld [vmem:[%s1 + $0x1a4] sm:$0xff]
      %v375 = vld [vmem:[%s1 + $0x1ac] sm:$0xf]
      %v376 = vld [vmem:[%s1 + $0x1b0] sm:$0xff]
      %v377 = vld [vmem:[%s1 + $0x1b8] sm:$0xf]
      %v378 = vld [vmem:[%s1 + $0x1bc] sm:$0xff]
      %v379 = vld [vmem:[%s1 + $0x1c4] sm:$0xf]
      %v380 = vld [vmem:[%s1 + $0x1c8] sm:$0xff]
      %v381 = vld [vmem:[%s1 + $0x1d0] sm:$0xf]
      %v382 = vld [vmem:[%s1 + $0x1d4] sm:$0xff]
      %v383 = vld [vmem:[%s1 + $0x1dc] sm:$0xf]
      %v384 = vld [vmem:[%s1 + $0x1e0] sm:$0xff]
      %v385 = vld [vmem:[%s1 + $0x1e8] sm:$0xf]
      %v386 = vld [vmem:[%s1 + $0x1ec] sm:$0xff]
      %v387 = vld [vmem:[%s1 + $0x1f4] sm:$0xf]
      %v388 = vld [vmem:[%s1 + $0x1f8] sm:$0xff]
      %v389 = vld [vmem:[%s1 + $0x200] sm:$0xf]
      %v390 = vld [vmem:[%s1 + $0x204] sm:$0xff]
      %v391 = vld [vmem:[%s1 + $0x20c] sm:$0xf]
      %v392 = vld [vmem:[%s1 + $0x210] sm:$0xff]
      %v393 = vld [vmem:[%s1 + $0x218] sm:$0xf]
      %v394 = vld [vmem:[%s1 + $0x21c] sm:$0xff]
      %v395 = vld [vmem:[%s1 + $0x224] sm:$0xf]
      %v396 = vld [vmem:[%s1 + $0x228] sm:$0xff]
      %v397 = vld [vmem:[%s1 + $0x230] sm:$0xf]
      %v398 = vld [vmem:[%s1 + $0x234] sm:$0xff]
      %v399 = vld [vmem:[%s1 + $0x23c] sm:$0xf]
      %v400 = vld [vmem:[%s1 + $0x240] sm:$0xff]
      %v401 = vld [vmem:[%s1 + $0x248] sm:$0xf]
      %v402 = vld [vmem:[%s1 + $0x24c] sm:$0xff]
      %v403 = vld [vmem:[%s1 + $0x254] sm:$0xf]
      %v404 = vld [vmem:[%s1 + $0x258] sm:$0xff]
      %v405 = vld [vmem:[%s1 + $0x260] sm:$0xf]
      %v406 = vld [vmem:[%s1 + $0x264] sm:$0xff]
      %v407 = vld [vmem:[%s1 + $0x26c] sm:$0xf]
      %v408 = vld [vmem:[%s1 + $0x270] sm:$0xff]
      %v409 = vld [vmem:[%s1 + $0x278] sm:$0xf]
      %v410 = vld [vmem:[%s1 + $0x27c] sm:$0xff]
      %v411 = vld [vmem:[%s1 + $0x284] sm:$0xf]
      %v412 = vld [vmem:[%s1 + $0x288] sm:$0xff]
      %v413 = vld [vmem:[%s1 + $0x290] sm:$0xf]
      %v414 = vld [vmem:[%s1 + $0x294] sm:$0xff]
      %v415 = vld [vmem:[%s1 + $0x29c] sm:$0xf]
      %v416 = vld [vmem:[%s1 + $0x2a0] sm:$0xff]
      %v417 = vld [vmem:[%s1 + $0x2a8] sm:$0xf]
      %v418 = vld [vmem:[%s1 + $0x2ac] sm:$0xff]
      %v419 = vld [vmem:[%s1 + $0x2b4] sm:$0xf]
      %v420 = vld [vmem:[%s1 + $0x2b8] sm:$0xff]
      %v421 = vld [vmem:[%s1 + $0x2c0] sm:$0xf]
      %v422 = vld [vmem:[%s1 + $0x2c4] sm:$0xff]
      %v423 = vld [vmem:[%s1 + $0x2cc] sm:$0xf]
      %v440 = vunpack.c.l.b16 %v288
      %v441 = vunpack.c.h.b16 %v288
      %v442 = vunpack.c.l.b16 %v289
      %v443 = vunpack.c.h.b16 %v289
      %v444 = vunpack.c.l.b16 %v290
      %v445 = vunpack.c.h.b16 %v290
      %v446 = vunpack.c.l.b16 %v291
      %v447 = vunpack.c.h.b16 %v291
      %v448 = vunpack.c.l.b16 %v292
      %v449 = vunpack.c.h.b16 %v292
      %v450 = vunpack.c.l.b16 %v293
      %v451 = vunpack.c.h.b16 %v293
      %v452 = vunpack.c.l.b16 %v294
      %v453 = vunpack.c.h.b16 %v294
      %v454 = vunpack.c.l.b16 %v295
      %v455 = vunpack.c.h.b16 %v295
      %v456 = vunpack.c.l.b16 %v296
      %v457 = vunpack.c.h.b16 %v296
      %v458 = vunpack.c.l.b16 %v297
      %v459 = vunpack.c.h.b16 %v297
      %v460 = vunpack.c.l.b16 %v298
      %v461 = vunpack.c.h.b16 %v298
      %v462 = vunpack.c.l.b16 %v299
      %v463 = vunpack.c.h.b16 %v299
      %v464 = vunpack.c.l.b16 %v300
      %v465 = vunpack.c.h.b16 %v300
      %v466 = vunpack.c.l.b16 %v301
      %v467 = vunpack.c.h.b16 %v301
      %v468 = vunpack.c.l.b16 %v302
      %v469 = vunpack.c.h.b16 %v302
      %v470 = vunpack.c.l.b16 %v303
      %v471 = vunpack.c.h.b16 %v303
      %v472 = vpack.c.b16 %v444, %v440
      %v473 = vpack.c.b16 %v445, %v441
      %v474 = vpack.c.b16 %v446, %v442
      %v475 = vpack.c.b16 %v447, %v443
      %v476 = vpack.c.b16 %v452, %v448
      %v477 = vpack.c.b16 %v453, %v449
      %v478 = vpack.c.b16 %v454, %v450
      %v479 = vpack.c.b16 %v455, %v451
      %v480 = vpack.c.b16 %v460, %v456
      %v481 = vpack.c.b16 %v461, %v457
      %v482 = vpack.c.b16 %v462, %v458
      %v483 = vpack.c.b16 %v463, %v459
      %v484 = vpack.c.b16 %v468, %v464
      %v485 = vpack.c.b16 %v469, %v465
      %v486 = vpack.c.b16 %v470, %v466
      %v487 = vpack.c.b16 %v471, %v467
      %v620 = vunpack.c.l.b16 %v304
      %v621 = vunpack.c.h.b16 %v304
      %v622 = vunpack.c.l.b16 %v305
      %v623 = vunpack.c.l.b16 %v306
      %v624 = vunpack.c.h.b16 %v306
      %v625 = vunpack.c.l.b16 %v307
      %v626 = vunpack.c.l.b16 %v308
      %v627 = vunpack.c.h.b16 %v308
      %v628 = vunpack.c.l.b16 %v309
      %v629 = vunpack.c.l.b16 %v310
      %v630 = vunpack.c.h.b16 %v310
      %v631 = vunpack.c.l.b16 %v311
      %v632 = vunpack.c.l.b16 %v312
      %v633 = vunpack.c.h.b16 %v312
      %v634 = vunpack.c.l.b16 %v313
      %v635 = vunpack.c.l.b16 %v314
      %v636 = vunpack.c.h.b16 %v314
      %v637 = vunpack.c.l.b16 %v315
      %v638 = vunpack.c.l.b16 %v316
      %v639 = vunpack.c.h.b16 %v316
      %v640 = vunpack.c.l.b16 %v317
      %v641 = vunpack.c.l.b16 %v318
      %v642 = vunpack.c.h.b16 %v318
      %v643 = vunpack.c.l.b16 %v319
      %v644 = vunpack.c.l.b16 %v320
      %v645 = vunpack.c.h.b16 %v320
      %v646 = vunpack.c.l.b16 %v321
      %v647 = vunpack.c.l.b16 %v322
      %v648 = vunpack.c.h.b16 %v322
      %v649 = vunpack.c.l.b16 %v323
      %v650 = vunpack.c.l.b16 %v324
      %v651 = vunpack.c.h.b16 %v324
      %v652 = vunpack.c.l.b16 %v325
      %v653 = vunpack.c.l.b16 %v326
      %v654 = vunpack.c.h.b16 %v326
      %v655 = vunpack.c.l.b16 %v327
      %v656 = vunpack.c.l.b16 %v328
      %v657 = vunpack.c.h.b16 %v328
      %v658 = vunpack.c.l.b16 %v329
      %v659 = vunpack.c.l.b16 %v330
      %v660 = vunpack.c.h.b16 %v330
      %v661 = vunpack.c.l.b16 %v331
      %v662 = vunpack.c.l.b16 %v332
      %v663 = vunpack.c.h.b16 %v332
      %v664 = vunpack.c.l.b16 %v333
      %v665 = vunpack.c.l.b16 %v334
      %v666 = vunpack.c.h.b16 %v334
      %v667 = vunpack.c.l.b16 %v335
      %v668 = vunpack.c.l.b16 %v336
      %v669 = vunpack.c.h.b16 %v336
      %v670 = vunpack.c.l.b16 %v337
      %v671 = vunpack.c.l.b16 %v338
      %v672 = vunpack.c.h.b16 %v338
      %v673 = vunpack.c.l.b16 %v339
      %v674 = vunpack.c.l.b16 %v340
      %v675 = vunpack.c.h.b16 %v340
      %v676 = vunpack.c.l.b16 %v341
      %v677 = vunpack.c.l.b16 %v342
      %v678 = vunpack.c.h.b16 %v342
      %v679 = vunpack.c.l.b16 %v343
      %v680 = vunpack.c.l.b16 %v344
      %v681 = vunpack.c.h.b16 %v344
      %v682 = vunpack.c.l.b16 %v345
      %v683 = vunpack.c.l.b16 %v346
      %v684 = vunpack.c.h.b16 %v346
      %v685 = vunpack.c.l.b16 %v347
      %v686 = vunpack.c.l.b16 %v348
      %v687 = vunpack.c.h.b16 %v348
      %v688 = vunpack.c.l.b16 %v349
      %v689 = vunpack.c.l.b16 %v350
      %v690 = vunpack.c.h.b16 %v350
      %v691 = vunpack.c.l.b16 %v351
      %v692 = vunpack.c.l.b16 %v352
      %v693 = vunpack.c.h.b16 %v352
      %v694 = vunpack.c.l.b16 %v353
      %v695 = vunpack.c.l.b16 %v354
      %v696 = vunpack.c.h.b16 %v354
      %v697 = vunpack.c.l.b16 %v355
      %v698 = vunpack.c.l.b16 %v356
      %v699 = vunpack.c.h.b16 %v356
      %v700 = vunpack.c.l.b16 %v357
      %v701 = vunpack.c.l.b16 %v358
      %v702 = vunpack.c.h.b16 %v358
      %v703 = vunpack.c.l.b16 %v359
      %v704 = vunpack.c.l.b16 %v360
      %v705 = vunpack.c.h.b16 %v360
      %v706 = vunpack.c.l.b16 %v361
      %v707 = vunpack.c.l.b16 %v362
      %v708 = vunpack.c.h.b16 %v362
      %v709 = vunpack.c.l.b16 %v363
      %v710 = vunpack.c.l.b16 %v364
      %v711 = vunpack.c.h.b16 %v364
      %v712 = vunpack.c.l.b16 %v365
      %v713 = vunpack.c.l.b16 %v366
      %v714 = vunpack.c.h.b16 %v366
      %v715 = vunpack.c.l.b16 %v367
      %v716 = vunpack.c.l.b16 %v368
      %v717 = vunpack.c.h.b16 %v368
      %v718 = vunpack.c.l.b16 %v369
      %v719 = vunpack.c.l.b16 %v370
      %v720 = vunpack.c.h.b16 %v370
      %v721 = vunpack.c.l.b16 %v371
      %v722 = vunpack.c.l.b16 %v372
      %v723 = vunpack.c.h.b16 %v372
      %v724 = vunpack.c.l.b16 %v373
      %v725 = vunpack.c.l.b16 %v374
      %v726 = vunpack.c.h.b16 %v374
      %v727 = vunpack.c.l.b16 %v375
      %v728 = vunpack.c.l.b16 %v376
      %v729 = vunpack.c.h.b16 %v376
      %v730 = vunpack.c.l.b16 %v377
      %v731 = vunpack.c.l.b16 %v378
      %v732 = vunpack.c.h.b16 %v378
      %v733 = vunpack.c.l.b16 %v379
      %v734 = vunpack.c.l.b16 %v380
      %v735 = vunpack.c.h.b16 %v380
      %v736 = vunpack.c.l.b16 %v381
      %v737 = vunpack.c.l.b16 %v382
      %v738 = vunpack.c.h.b16 %v382
      %v739 = vunpack.c.l.b16 %v383
      %v740 = vunpack.c.l.b16 %v384
      %v741 = vunpack.c.h.b16 %v384
      %v742 = vunpack.c.l.b16 %v385
      %v743 = vunpack.c.l.b16 %v386
      %v744 = vunpack.c.h.b16 %v386
      %v745 = vunpack.c.l.b16 %v387
      %v746 = vunpack.c.l.b16 %v388
      %v747 = vunpack.c.h.b16 %v388
      %v748 = vunpack.c.l.b16 %v389
      %v749 = vunpack.c.l.b16 %v390
      %v750 = vunpack.c.h.b16 %v390
      %v751 = vunpack.c.l.b16 %v391
      %v752 = vunpack.c.l.b16 %v392
      %v753 = vunpack.c.h.b16 %v392
      %v754 = vunpack.c.l.b16 %v393
      %v755 = vunpack.c.l.b16 %v394
      %v756 = vunpack.c.h.b16 %v394
      %v757 = vunpack.c.l.b16 %v395
      %v758 = vunpack.c.l.b16 %v396
      %v759 = vunpack.c.h.b16 %v396
      %v760 = vunpack.c.l.b16 %v397
      %v761 = vunpack.c.l.b16 %v398
      %v762 = vunpack.c.h.b16 %v398
      %v763 = vunpack.c.l.b16 %v399
      %v764 = vunpack.c.l.b16 %v400
      %v765 = vunpack.c.h.b16 %v400
      %v766 = vunpack.c.l.b16 %v401
      %v767 = vunpack.c.l.b16 %v402
      %v768 = vunpack.c.h.b16 %v402
      %v769 = vunpack.c.l.b16 %v403
      %v770 = vunpack.c.l.b16 %v404
      %v771 = vunpack.c.h.b16 %v404
      %v772 = vunpack.c.l.b16 %v405
      %v773 = vunpack.c.l.b16 %v406
      %v774 = vunpack.c.h.b16 %v406
      %v775 = vunpack.c.l.b16 %v407
      %v776 = vunpack.c.l.b16 %v408
      %v777 = vunpack.c.h.b16 %v408
      %v778 = vunpack.c.l.b16 %v409
      %v779 = vunpack.c.l.b16 %v410
      %v780 = vunpack.c.h.b16 %v410
      %v781 = vunpack.c.l.b16 %v411
      %v782 = vunpack.c.l.b16 %v412
      %v783 = vunpack.c.h.b16 %v412
      %v784 = vunpack.c.l.b16 %v413
      %v785 = vunpack.c.l.b16 %v414
      %v786 = vunpack.c.h.b16 %v414
      %v787 = vunpack.c.l.b16 %v415
      %v788 = vunpack.c.l.b16 %v416
      %v789 = vunpack.c.h.b16 %v416
      %v790 = vunpack.c.l.b16 %v417
      %v791 = vunpack.c.l.b16 %v418
      %v792 = vunpack.c.h.b16 %v418
      %v793 = vunpack.c.l.b16 %v419
      %v794 = vunpack.c.l.b16 %v420
      %v795 = vunpack.c.h.b16 %v420
      %v796 = vunpack.c.l.b16 %v421
      %v797 = vunpack.c.l.b16 %v422
      %v798 = vunpack.c.h.b16 %v422
      %v799 = vunpack.c.l.b16 %v423
      %v800 = vpack.c.b16 %v623, %v620
      %v801 = vpack.c.b16 %v624, %v621
      %v802 = vpack.c.b16 %v625, %v622
      %v803 = vpack.c.b16 %v629, %v626
      %v804 = vpack.c.b16 %v630, %v627
      %v805 = vpack.c.b16 %v631, %v628
      %v806 = vpack.c.b16 %v635, %v632
      %v807 = vpack.c.b16 %v636, %v633
      %v808 = vpack.c.b16 %v637, %v634
      %v809 = vpack.c.b16 %v641, %v638
      %v810 = vpack.c.b16 %v642, %v639
      %v811 = vpack.c.b16 %v643, %v640
      %v812 = vpack.c.b16 %v647, %v644
      %v813 = vpack.c.b16 %v648, %v645
      %v814 = vpack.c.b16 %v649, %v646
      %v815 = vpack.c.b16 %v653, %v650
      %v816 = vpack.c.b16 %v654, %v651
      %v817 = vpack.c.b16 %v655, %v652
      %v818 = vpack.c.b16 %v659, %v656
      %v819 = vpack.c.b16 %v660, %v657
      %v820 = vpack.c.b16 %v661, %v658
      %v821 = vpack.c.b16 %v665, %v662
      %v822 = vpack.c.b16 %v666, %v663
      %v823 = vpack.c.b16 %v667, %v664
      %v824 = vpack.c.b16 %v671, %v668
      %v825 = vpack.c.b16 %v672, %v669
      %v826 = vpack.c.b16 %v673, %v670
      %v827 = vpack.c.b16 %v677, %v674
      %v828 = vpack.c.b16 %v678, %v675
      %v829 = vpack.c.b16 %v679, %v676
      %v830 = vpack.c.b16 %v683, %v680
      %v831 = vpack.c.b16 %v684, %v681
      %v832 = vpack.c.b16 %v685, %v682
      %v833 = vpack.c.b16 %v689, %v686
      %v834 = vpack.c.b16 %v690, %v687
      %v835 = vpack.c.b16 %v691, %v688
      %v836 = vpack.c.b16 %v695, %v692
      %v837 = vpack.c.b16 %v696, %v693
      %v838 = vpack.c.b16 %v697, %v694
      %v839 = vpack.c.b16 %v701, %v698
      %v840 = vpack.c.b16 %v702, %v699
      %v841 = vpack.c.b16 %v703, %v700
      %v842 = vpack.c.b16 %v707, %v704
      %v843 = vpack.c.b16 %v708, %v705
      %v844 = vpack.c.b16 %v709, %v706
      %v845 = vpack.c.b16 %v713, %v710
      %v846 = vpack.c.b16 %v714, %v711
      %v847 = vpack.c.b16 %v715, %v712
      %v848 = vpack.c.b16 %v719, %v716
      %v849 = vpack.c.b16 %v720, %v717
      %v850 = vpack.c.b16 %v721, %v718
      %v851 = vpack.c.b16 %v725, %v722
      %v852 = vpack.c.b16 %v726, %v723
      %v853 = vpack.c.b16 %v727, %v724
      %v854 = vpack.c.b16 %v731, %v728
      %v855 = vpack.c.b16 %v732, %v729
      %v856 = vpack.c.b16 %v733, %v730
      %v857 = vpack.c.b16 %v737, %v734
      %v858 = vpack.c.b16 %v738, %v735
      %v859 = vpack.c.b16 %v739, %v736
      %v860 = vpack.c.b16 %v743, %v740
      %v861 = vpack.c.b16 %v744, %v741
      %v862 = vpack.c.b16 %v745, %v742
      %v863 = vpack.c.b16 %v749, %v746
      %v864 = vpack.c.b16 %v750, %v747
      %v865 = vpack.c.b16 %v751, %v748
      %v866 = vpack.c.b16 %v755, %v752
      %v867 = vpack.c.b16 %v756, %v753
      %v868 = vpack.c.b16 %v757, %v754
      %v869 = vpack.c.b16 %v761, %v758
      %v870 = vpack.c.b16 %v762, %v759
      %v871 = vpack.c.b16 %v763, %v760
      %v872 = vpack.c.b16 %v767, %v764
      %v873 = vpack.c.b16 %v768, %v765
      %v874 = vpack.c.b16 %v769, %v766
      %v875 = vpack.c.b16 %v773, %v770
      %v876 = vpack.c.b16 %v774, %v771
      %v877 = vpack.c.b16 %v775, %v772
      %v878 = vpack.c.b16 %v779, %v776
      %v879 = vpack.c.b16 %v780, %v777
      %v880 = vpack.c.b16 %v781, %v778
      %v881 = vpack.c.b16 %v785, %v782
      %v882 = vpack.c.b16 %v786, %v783
      %v883 = vpack.c.b16 %v787, %v784
      %v884 = vpack.c.b16 %v791, %v788
      %v885 = vpack.c.b16 %v792, %v789
      %v886 = vpack.c.b16 %v793, %v790
      %v887 = vpack.c.b16 %v797, %v794
      %v888 = vpack.c.b16 %v798, %v795
      %v889 = vpack.c.b16 %v799, %v796
      %vm980 = vcmask 785408
      %v982 = vsel %vm980, %v475, 0
      %v985 = vsel %vm980, %v479, 0
      %v988 = vsel %vm980, %v483, 0
      %v991 = vsel %vm980, %v487, 0
      %993 = vmatprep.subr.bf16.mxu0 %v801
      %994 = vmatpush1.bf16.msra.mxu0 %v800
      %995 = vmatprep.subr.bf16.mxu0 %v804
      %996 = vmatpush1.bf16.msra.mxu0 %v803
      %997 = vmatprep.subr.bf16.mxu0 %v807
      %998 = vmatpush1.bf16.msra.mxu0 %v806
      %999 = vmatprep.subr.bf16.mxu0 %v810
      %1000 = vmatpush1.bf16.msra.mxu0 %v809
      %1001 = vmatprep.subr.bf16.mxu0 %v813
      %1002 = vmatpush1.bf16.msra.mxu0 %v812
      %1003 = vmatprep.subr.bf16.mxu0 %v816
      %1004 = vmatpush1.bf16.msra.mxu0 %v815
      %1005 = vmatprep.subr.bf16.mxu0 %v819
      %1006 = vmatpush1.bf16.msra.mxu0 %v818
      %1007 = vmatprep.subr.bf16.mxu0 %v822
      %1008 = vmatpush1.bf16.msra.mxu0 %v821
      %1009 = vmatprep.subr.bf16.mxu0 %v825
      %1010 = vmatpush1.bf16.msra.mxu0 %v824
      %1011 = vmatprep.subr.bf16.mxu0 %v828
      %1012 = vmatpush1.bf16.msra.mxu0 %v827
      %1013 = vmatprep.subr.bf16.mxu0 %v831
      %1014 = vmatpush1.bf16.msra.mxu0 %v830
      %1015 = vmatprep.subr.bf16.mxu0 %v834
      %1016 = vmatpush1.bf16.msra.mxu0 %v833
      %1017 = vmatprep.subr.bf16.mxu0 %v837
      %1018 = vmatpush1.bf16.msra.mxu0 %v836
      %1019 = vmatprep.subr.bf16.mxu0 %v840
      %1020 = vmatpush1.bf16.msra.mxu0 %v839
      %1021 = vmatprep.subr.bf16.mxu0 %v843
      %1022 = vmatpush1.bf16.msra.mxu0 %v842
      %1023 = vmatprep.subr.bf16.mxu0 %v846
      %1024 = vmatpush1.bf16.msra.mxu0 %v845
      %1025 = vmatprep.mubr.bf16.mxu0 %v473
      %1026 = vmatmul.mubr.bf16.gmra.mrb[0].mxu0 %v472
      %v1027 = vpop.f32.mrb[0].mxu0
      %v1028 = vadd.f32 0.0, %v1027
      %v1029 = vpop.f32.mrb[0].mxu0
      %v1030 = vadd.f32 0.0, %v1029
      %v1031 = vpop.f32.mrb[0].mxu0
      %v1032 = vadd.f32 0.0, %v1031
      %v1033 = vpop.f32.mrb[0].mxu0
      %v1034 = vadd.f32 0.0, %v1033
      %1035 = vmatprep.mubr.bf16.mxu0 %v477
      %1036 = vmatmul.mubr.bf16.gmra.mrb[0].mxu0 %v476
      %v1037 = vpop.f32.mrb[0].mxu0
      %v1038 = vadd.f32 0.0, %v1037
      %v1039 = vpop.f32.mrb[0].mxu0
      %v1040 = vadd.f32 0.0, %v1039
      %v1041 = vpop.f32.mrb[0].mxu0
      %v1042 = vadd.f32 0.0, %v1041
      %v1043 = vpop.f32.mrb[0].mxu0
      %v1044 = vadd.f32 0.0, %v1043
      %1045 = vmatprep.mubr.bf16.mxu0 %v481
      %1046 = vmatmul.mubr.bf16.gmra.mrb[0].mxu0 %v480
      %v1047 = vpop.f32.mrb[0].mxu0
      %v1048 = vadd.f32 0.0, %v1047
      %v1049 = vpop.f32.mrb[0].mxu0
      %v1050 = vadd.f32 0.0, %v1049
      %v1051 = vpop.f32.mrb[0].mxu0
      %v1052 = vadd.f32 0.0, %v1051
      %v1053 = vpop.f32.mrb[0].mxu0
      %v1054 = vadd.f32 0.0, %v1053
      %1055 = vmatprep.mubr.bf16.mxu0 %v485
      %1056 = vmatmul.mubr.bf16.gmra.mrb[0].mxu0 %v484
      %v1057 = vpop.f32.mrb[0].mxu0
      %v1058 = vadd.f32 0.0, %v1057
      %v1059 = vpop.f32.mrb[0].mxu0
      %v1060 = vadd.f32 0.0, %v1059
      %v1061 = vpop.f32.mrb[0].mxu0
      %v1062 = vadd.f32 0.0, %v1061
      %v1063 = vpop.f32.mrb[0].mxu0
      %v1064 = vadd.f32 0.0, %v1063
      %1065 = vdwg.mxu0
      %1066 = vmatprep.subr.bf16.mxu0 %v849
      %1067 = vmatpush1.bf16.msra.mxu0 %v848
      %1068 = vmatprep.subr.bf16.mxu0 %v852
      %1069 = vmatpush1.bf16.msra.mxu0 %v851
      %1070 = vmatprep.subr.bf16.mxu0 %v855
      %1071 = vmatpush1.bf16.msra.mxu0 %v854
      %1072 = vmatprep.subr.bf16.mxu0 %v858
      %1073 = vmatpush1.bf16.msra.mxu0 %v857
      %1074 = vmatprep.subr.bf16.mxu0 %v861
      %1075 = vmatpush1.bf16.msra.mxu0 %v860
      %1076 = vmatprep.subr.bf16.mxu0 %v864
      %1077 = vmatpush1.bf16.msra.mxu0 %v863
      %1078 = vmatprep.subr.bf16.mxu0 %v867
      %1079 = vmatpush1.bf16.msra.mxu0 %v866
      %1080 = vmatprep.subr.bf16.mxu0 %v870
      %1081 = vmatpush1.bf16.msra.mxu0 %v869
      %1082 = vmatprep.subr.bf16.mxu0 %v873
      %1083 = vmatpush1.bf16.msra.mxu0 %v872
      %1084 = vmatprep.subr.bf16.mxu0 %v876
      %1085 = vmatpush1.bf16.msra.mxu0 %v875
      %1086 = vmatprep.subr.bf16.mxu0 %v879
      %1087 = vmatpush1.bf16.msra.mxu0 %v878
      %1088 = vmatprep.subr.bf16.mxu0 %v882
      %1089 = vmatpush1.bf16.msra.mxu0 %v881
      %1090 = vmatprep.subr.bf16.mxu0 %v885
      %1091 = vmatpush1.bf16.msra.mxu0 %v884
      %1092 = vmatprep.subr.bf16.mxu0 %v888
      %1093 = vmatpush1.bf16.msra.mxu0 %v887
      %1094 = vmatprep.subr.bf16.mxu0 0
      %1095 = vmatpush1.bf16.msra.mxu0 0
      %1096 = vmatprep.subr.bf16.mxu0 0
      %1097 = vmatpush1.bf16.msra.mxu0 0
      %1098 = vmatprep.mubr.bf16.mxu0 %v982
      %1099 = vmatmul.mubr.bf16.gmra.mrb[0].mxu0 %v474
      %v1100 = vpop.f32.mrb[0].mxu0
      %v1101 = vadd.f32 %v1028, %v1100
      %v1102 = vpop.f32.mrb[0].mxu0
      %v1103 = vadd.f32 %v1030, %v1102
      %v1104 = vpop.f32.mrb[0].mxu0
      %v1105 = vadd.f32 %v1032, %v1104
      %v1106 = vpop.f32.mrb[0].mxu0
      %v1107 = vadd.f32 %v1034, %v1106
      %1108 = vmatprep.mubr.bf16.mxu0 %v985
      %1109 = vmatmul.mubr.bf16.gmra.mrb[0].mxu0 %v478
      %v1110 = vpop.f32.mrb[0].mxu0
      %v1111 = vadd.f32 %v1038, %v1110
      %v1112 = vpop.f32.mrb[0].mxu0
      %v1113 = vadd.f32 %v1040, %v1112
      %v1114 = vpop.f32.mrb[0].mxu0
      %v1115 = vadd.f32 %v1042, %v1114
      %v1116 = vpop.f32.mrb[0].mxu0
      %v1117 = vadd.f32 %v1044, %v1116
      %1118 = vmatprep.mubr.bf16.mxu0 %v988
      %1119 = vmatmul.mubr.bf16.gmra.mrb[0].mxu0 %v482
      %v1120 = vpop.f32.mrb[0].mxu0
      %v1121 = vadd.f32 %v1048, %v1120
      %v1122 = vpop.f32.mrb[0].mxu0
      %v1123 = vadd.f32 %v1050, %v1122
      %v1124 = vpop.f32.mrb[0].mxu0
      %v1125 = vadd.f32 %v1052, %v1124
      %v1126 = vpop.f32.mrb[0].mxu0
      %v1127 = vadd.f32 %v1054, %v1126
      %1128 = vmatprep.mubr.bf16.mxu0 %v991
      %1129 = vmatmul.mubr.bf16.gmra.mrb[0].mxu0 %v486
      %v1130 = vpop.f32.mrb[0].mxu0
      %v1131 = vadd.f32 %v1058, %v1130
      %v1132 = vpop.f32.mrb[0].mxu0
      %v1133 = vadd.f32 %v1060, %v1132
      %v1134 = vpop.f32.mrb[0].mxu0
      %v1135 = vadd.f32 %v1062, %v1134
      %v1136 = vpop.f32.mrb[0].mxu0
      %v1137 = vadd.f32 %v1064, %v1136
      %1138 = vdwg.mxu0
      %1139 = vmatprep.subr.bf16.mxu0 0
      %1140 = vmatpush1.bf16.msra.mxu0 %v802
      %1141 = vmatprep.subr.bf16.mxu0 0
      %1142 = vmatpush1.bf16.msra.mxu0 %v805
      %1143 = vmatprep.subr.bf16.mxu0 0
      %1144 = vmatpush1.bf16.msra.mxu0 %v808
      %1145 = vmatprep.subr.bf16.mxu0 0
      %1146 = vmatpush1.bf16.msra.mxu0 %v811
      %1147 = vmatprep.subr.bf16.mxu0 0
      %1148 = vmatpush1.bf16.msra.mxu0 %v814
      %1149 = vmatprep.subr.bf16.mxu0 0
      %1150 = vmatpush1.bf16.msra.mxu0 %v817
      %1151 = vmatprep.subr.bf16.mxu0 0
      %1152 = vmatpush1.bf16.msra.mxu0 %v820
      %1153 = vmatprep.subr.bf16.mxu0 0
      %1154 = vmatpush1.bf16.msra.mxu0 %v823
      %1155 = vmatprep.subr.bf16.mxu0 0
      %1156 = vmatpush1.bf16.msra.mxu0 %v826
      %1157 = vmatprep.subr.bf16.mxu0 0
      %1158 = vmatpush1.bf16.msra.mxu0 %v829
      %1159 = vmatprep.subr.bf16.mxu0 0
      %1160 = vmatpush1.bf16.msra.mxu0 %v832
      %1161 = vmatprep.subr.bf16.mxu0 0
      %1162 = vmatpush1.bf16.msra.mxu0 %v835
      %1163 = vmatprep.subr.bf16.mxu0 0
      %1164 = vmatpush1.bf16.msra.mxu0 %v838
      %1165 = vmatprep.subr.bf16.mxu0 0
      %1166 = vmatpush1.bf16.msra.mxu0 %v841
      %1167 = vmatprep.subr.bf16.mxu0 0
      %1168 = vmatpush1.bf16.msra.mxu0 %v844
      %1169 = vmatprep.subr.bf16.mxu0 0
      %1170 = vmatpush1.bf16.msra.mxu0 %v847
      %1171 = vmatprep.mubr.bf16.mxu0 %v473
      %1172 = vmatmul.mubr.bf16.gmra.mrb[0].mxu0 %v472
      %v1173 = vpop.f32.mrb[0].mxu0
      %v1174 = vadd.f32 0.0, %v1173
      %v1175 = vpop.f32.mrb[0].mxu0
      %v1176 = vpop.f32.mrb[0].mxu0
      %v1177 = vadd.f32 0.0, %v1176
      %v1178 = vpop.f32.mrb[0].mxu0
      %1179 = vmatprep.mubr.bf16.mxu0 %v477
      %1180 = vmatmul.mubr.bf16.gmra.mrb[0].mxu0 %v476
      %v1181 = vpop.f32.mrb[0].mxu0
      %v1182 = vadd.f32 0.0, %v1181
      %v1183 = vpop.f32.mrb[0].mxu0
      %v1184 = vpop.f32.mrb[0].mxu0
      %v1185 = vadd.f32 0.0, %v1184
      %v1186 = vpop.f32.mrb[0].mxu0
      %1187 = vmatprep.mubr.bf16.mxu0 %v481
      %1188 = vmatmul.mubr.bf16.gmra.mrb[0].mxu0 %v480
      %v1189 = vpop.f32.mrb[0].mxu0
      %v1190 = vadd.f32 0.0, %v1189
      %v1191 = vpop.f32.mrb[0].mxu0
      %v1192 = vpop.f32.mrb[0].mxu0
      %v1193 = vadd.f32 0.0, %v1192
      %v1194 = vpop.f32.mrb[0].mxu0
      %1195 = vmatprep.mubr.bf16.mxu0 %v485
      %1196 = vmatmul.mubr.bf16.gmra.mrb[0].mxu0 %v484
      %v1197 = vpop.f32.mrb[0].mxu0
      %v1198 = vadd.f32 0.0, %v1197
      %v1199 = vpop.f32.mrb[0].mxu0
      %v1200 = vpop.f32.mrb[0].mxu0
      %v1201 = vadd.f32 0.0, %v1200
      %v1202 = vpop.f32.mrb[0].mxu0
      %1203 = vdwg.mxu0
      %1204 = vmatprep.subr.bf16.mxu0 0
      %1205 = vmatpush1.bf16.msra.mxu0 %v850
      %1206 = vmatprep.subr.bf16.mxu0 0
      %1207 = vmatpush1.bf16.msra.mxu0 %v853
      %1208 = vmatprep.subr.bf16.mxu0 0
      %1209 = vmatpush1.bf16.msra.mxu0 %v856
      %1210 = vmatprep.subr.bf16.mxu0 0
      %1211 = vmatpush1.bf16.msra.mxu0 %v859
      %1212 = vmatprep.subr.bf16.mxu0 0
      %1213 = vmatpush1.bf16.msra.mxu0 %v862
      %1214 = vmatprep.subr.bf16.mxu0 0
      %1215 = vmatpush1.bf16.msra.mxu0 %v865
      %1216 = vmatprep.subr.bf16.mxu0 0
      %1217 = vmatpush1.bf16.msra.mxu0 %v868
      %1218 = vmatprep.subr.bf16.mxu0 0
      %1219 = vmatpush1.bf16.msra.mxu0 %v871
      %1220 = vmatprep.subr.bf16.mxu0 0
      %1221 = vmatpush1.bf16.msra.mxu0 %v874
      %1222 = vmatprep.subr.bf16.mxu0 0
      %1223 = vmatpush1.bf16.msra.mxu0 %v877
      %1224 = vmatprep.subr.bf16.mxu0 0
      %1225 = vmatpush1.bf16.msra.mxu0 %v880
      %1226 = vmatprep.subr.bf16.mxu0 0
      %1227 = vmatpush1.bf16.msra.mxu0 %v883
      %1228 = vmatprep.subr.bf16.mxu0 0
      %1229 = vmatpush1.bf16.msra.mxu0 %v886
      %1230 = vmatprep.subr.bf16.mxu0 0
      %1231 = vmatpush1.bf16.msra.mxu0 %v889
      %1232 = vmatprep.subr.bf16.mxu0 0
      %1233 = vmatpush1.bf16.msra.mxu0 0
      %1234 = vmatprep.subr.bf16.mxu0 0
      %1235 = vmatpush1.bf16.msra.mxu0 0
      %1236 = vmatprep.mubr.bf16.mxu0 %v982
      %1237 = vmatmul.mubr.bf16.gmra.mrb[0].mxu0 %v474
      %v1238 = vpop.f32.mrb[0].mxu0
      %v1239 = vadd.f32 %v1174, %v1238
      %v1240 = vpop.f32.mrb[0].mxu0
      %v1241 = vpop.f32.mrb[0].mxu0
      %v1242 = vadd.f32 %v1177, %v1241
      %v1243 = vpop.f32.mrb[0].mxu0
      %1244 = vmatprep.mubr.bf16.mxu0 %v985
      %1245 = vmatmul.mubr.bf16.gmra.mrb[0].mxu0 %v478
      %v1246 = vpop.f32.mrb[0].mxu0
      %v1247 = vadd.f32 %v1182, %v1246
      %v1248 = vpop.f32.mrb[0].mxu0
      %v1249 = vpop.f32.mrb[0].mxu0
      %v1250 = vadd.f32 %v1185, %v1249
      %v1251 = vpop.f32.mrb[0].mxu0
      %1252 = vmatprep.mubr.bf16.mxu0 %v988
      %1253 = vmatmul.mubr.bf16.gmra.mrb[0].mxu0 %v482
      %v1254 = vpop.f32.mrb[0].mxu0
      %v1255 = vadd.f32 %v1190, %v1254
      %v1256 = vpop.f32.mrb[0].mxu0
      %v1257 = vpop.f32.mrb[0].mxu0
      %v1258 = vadd.f32 %v1193, %v1257
      %v1259 = vpop.f32.mrb[0].mxu0
      %1260 = vmatprep.mubr.bf16.mxu0 %v991
      %1261 = vmatmul.mubr.bf16.gmra.mrb[0].mxu0 %v486
      %v1262 = vpop.f32.mrb[0].mxu0
      %v1263 = vadd.f32 %v1198, %v1262
      %v1264 = vpop.f32.mrb[0].mxu0
      %v1265 = vpop.f32.mrb[0].mxu0
      %v1266 = vadd.f32 %v1201, %v1265
      %v1267 = vpop.f32.mrb[0].mxu0
      %1268 = vdwg.mxu0
      %v1269 = vld [vmem:[%s2] sm:$0x7]
      %v1271 = vlaneseq
      %v1272 = vshrl.u32 %v1271, 7
      %v1273 = vsub.s32 0, %v1272
      %v1274 = vrot.slane %v1269, %v1273
      %v1275 = vlaneseq
      %v1276 = vshrl.u32 %v1275, 7
      %v1277 = vsub.s32 1, %v1276
      %v1278 = vrot.slane %v1269, %v1277
      %v1279 = vlaneseq
      %v1280 = vshrl.u32 %v1279, 7
      %v1281 = vsub.s32 2, %v1280
      %v1282 = vrot.slane %v1269, %v1281
      %v1286 = vmul.f32 %v1101, %v1274
      %v1287 = vmul.f32 %v1103, %v1278
      %v1288 = vmul.f32 %v1239, %v1282
      %v1289 = vmul.f32 %v1105, %v1274
      %v1290 = vmul.f32 %v1107, %v1278
      %v1291 = vmul.f32 %v1242, %v1282
      %v1292 = vmul.f32 %v1111, %v1274
      %v1293 = vmul.f32 %v1113, %v1278
      %v1294 = vmul.f32 %v1247, %v1282
      %v1295 = vmul.f32 %v1115, %v1274
      %v1296 = vmul.f32 %v1117, %v1278
      %v1297 = vmul.f32 %v1250, %v1282
      %v1298 = vmul.f32 %v1121, %v1274
      %v1299 = vmul.f32 %v1123, %v1278
      %v1300 = vmul.f32 %v1255, %v1282
      %v1301 = vmul.f32 %v1125, %v1274
      %v1302 = vmul.f32 %v1127, %v1278
      %v1303 = vmul.f32 %v1258, %v1282
      %v1304 = vmul.f32 %v1131, %v1274
      %v1305 = vmul.f32 %v1133, %v1278
      %v1306 = vmul.f32 %v1263, %v1282
      %v1307 = vmul.f32 %v1135, %v1274
      %v1308 = vmul.f32 %v1137, %v1278
      %v1309 = vmul.f32 %v1266, %v1282
      %v1310 = vld [vmem:[%s3] sm:$0x7]
      %v1312 = vlaneseq
      %v1313 = vshrl.u32 %v1312, 7
      %v1314 = vsub.s32 0, %v1313
      %v1315 = vrot.slane %v1310, %v1314
      %v1316 = vlaneseq
      %v1317 = vshrl.u32 %v1316, 7
      %v1318 = vsub.s32 1, %v1317
      %v1319 = vrot.slane %v1310, %v1318
      %v1320 = vlaneseq
      %v1321 = vshrl.u32 %v1320, 7
      %v1322 = vsub.s32 2, %v1321
      %v1323 = vrot.slane %v1310, %v1322
      %v1327 = vadd.f32 %v1286, %v1315
      %v1328 = vadd.f32 %v1287, %v1319
      %v1329 = vadd.f32 %v1288, %v1323
      %v1330 = vadd.f32 %v1289, %v1315
      %v1331 = vadd.f32 %v1290, %v1319
      %v1332 = vadd.f32 %v1291, %v1323
      %v1333 = vadd.f32 %v1292, %v1315
      %v1334 = vadd.f32 %v1293, %v1319
      %v1335 = vadd.f32 %v1294, %v1323
      %v1336 = vadd.f32 %v1295, %v1315
      %v1337 = vadd.f32 %v1296, %v1319
      %v1338 = vadd.f32 %v1297, %v1323
      %v1339 = vadd.f32 %v1298, %v1315
      %v1340 = vadd.f32 %v1299, %v1319
      %v1341 = vadd.f32 %v1300, %v1323
      %v1342 = vadd.f32 %v1301, %v1315
      %v1343 = vadd.f32 %v1302, %v1319
      %v1344 = vadd.f32 %v1303, %v1323
      %v1345 = vadd.f32 %v1304, %v1315
      %v1346 = vadd.f32 %v1305, %v1319
      %v1347 = vadd.f32 %v1306, %v1323
      %v1348 = vadd.f32 %v1307, %v1315
      %v1349 = vadd.f32 %v1308, %v1319
      %v1350 = vadd.f32 %v1309, %v1323
      %v1351 = vmax.f32 %v1327, 0.0
      %v1352 = vmax.f32 %v1328, 0.0
      %v1353 = vmax.f32 %v1329, 0.0
      %v1354 = vmax.f32 %v1330, 0.0
      %v1355 = vmax.f32 %v1331, 0.0
      %v1356 = vmax.f32 %v1332, 0.0
      %v1357 = vmax.f32 %v1333, 0.0
      %v1358 = vmax.f32 %v1334, 0.0
      %v1359 = vmax.f32 %v1335, 0.0
      %v1360 = vmax.f32 %v1336, 0.0
      %v1361 = vmax.f32 %v1337, 0.0
      %v1362 = vmax.f32 %v1338, 0.0
      %v1363 = vmax.f32 %v1339, 0.0
      %v1364 = vmax.f32 %v1340, 0.0
      %v1365 = vmax.f32 %v1341, 0.0
      %v1366 = vmax.f32 %v1342, 0.0
      %v1367 = vmax.f32 %v1343, 0.0
      %v1368 = vmax.f32 %v1344, 0.0
      %v1369 = vmax.f32 %v1345, 0.0
      %v1370 = vmax.f32 %v1346, 0.0
      %v1371 = vmax.f32 %v1347, 0.0
      %v1372 = vmax.f32 %v1348, 0.0
      %v1373 = vmax.f32 %v1349, 0.0
      %v1374 = vmax.f32 %v1350, 0.0
      %v1375 = vpack.c.bf16 %v1354, %v1351
      %v1376 = vpack.c.bf16 %v1355, %v1352
      %v1377 = vpack.c.bf16 %v1360, %v1357
      %v1378 = vpack.c.bf16 %v1361, %v1358
      %v1379 = vpack.c.bf16 %v1366, %v1363
      %v1380 = vpack.c.bf16 %v1367, %v1364
      %v1381 = vpack.c.bf16 %v1372, %v1369
      %v1382 = vpack.c.bf16 %v1373, %v1370
      %v1391 = vunpack.c.l.b16 %v1375
      %v1392 = vunpack.c.l.b16 %v1376
      %v1393 = vunpack.c.h.b16 %v1375
      %v1394 = vunpack.c.h.b16 %v1376
      %v1395 = vunpack.c.l.b16 %v1377
      %v1396 = vunpack.c.l.b16 %v1378
      %v1397 = vunpack.c.h.b16 %v1377
      %v1398 = vunpack.c.h.b16 %v1378
      %v1399 = vunpack.c.l.b16 %v1379
      %v1400 = vunpack.c.l.b16 %v1380
      %v1401 = vunpack.c.h.b16 %v1379
      %v1402 = vunpack.c.h.b16 %v1380
      %v1403 = vunpack.c.l.b16 %v1381
      %v1404 = vunpack.c.l.b16 %v1382
      %v1405 = vunpack.c.h.b16 %v1381
      %v1406 = vunpack.c.h.b16 %v1382
      %v1407 = vpack.c.b16 %v1392, %v1391
      %v1408 = vpack.c.b16 %v1394, %v1393
      %v1409 = vpack.c.b16 %v1396, %v1395
      %v1410 = vpack.c.b16 %v1398, %v1397
      %v1411 = vpack.c.b16 %v1400, %v1399
      %v1412 = vpack.c.b16 %v1402, %v1401
      %v1413 = vpack.c.b16 %v1404, %v1403
      %v1414 = vpack.c.b16 %v1406, %v1405
      %vm1423 = vcmask 1043456
      %vm1424 = vcmask 523268
      %vm1425 = vmor %vm1424, %vm1423
      %1426 = vst.msk [vmem:[%s273] sm:$0xff] %vm1425, %v1407
      %1427 = vst.msk [vmem:[%s273 + $0x8] sm:$0xff] %vm1425, %v1408
      %1428 = vst.msk [vmem:[%s273 + $0x10] sm:$0xff] %vm1425, %v1409
      %1429 = vst.msk [vmem:[%s273 + $0x18] sm:$0xff] %vm1425, %v1410
      %1430 = vst.msk [vmem:[%s273 + $0x20] sm:$0xff] %vm1425, %v1411
      %1431 = vst.msk [vmem:[%s273 + $0x28] sm:$0xff] %vm1425, %v1412
      %1432 = vst.msk [vmem:[%s273 + $0x30] sm:$0xff] %vm1425, %v1413
      %1433 = vst.msk [vmem:[%s273 + $0x38] sm:$0xff] %vm1425, %v1414
      %v1434 = vpack.c.bf16 %v1356, %v1353
      %v1435 = vpack.c.bf16 %v1362, %v1359
      %v1436 = vpack.c.bf16 %v1368, %v1365
      %v1437 = vpack.c.bf16 %v1374, %v1371
      %v1442 = vunpack.c.l.b16 %v1434
      %v1443 = vunpack.c.h.b16 %v1434
      %v1444 = vunpack.c.l.b16 %v1435
      %v1445 = vunpack.c.h.b16 %v1435
      %v1446 = vunpack.c.l.b16 %v1436
      %v1447 = vunpack.c.h.b16 %v1436
      %v1448 = vunpack.c.l.b16 %v1437
      %v1449 = vunpack.c.h.b16 %v1437
      %v1450 = vpack.c.b16 %v1442, %v1392
      %v1451 = vpack.c.b16 %v1443, %v1394
      %v1452 = vpack.c.b16 %v1444, %v1396
      %v1453 = vpack.c.b16 %v1445, %v1398
      %v1454 = vpack.c.b16 %v1446, %v1400
      %v1455 = vpack.c.b16 %v1447, %v1402
      %v1456 = vpack.c.b16 %v1448, %v1404
      %v1457 = vpack.c.b16 %v1449, %v1406
      %1458 = vrot.lane.b32.xlu0 %v1450, 64
      %v1459 = vpop.permute.xlu0 %1458
      %1460 = vrot.lane.b32.xlu0 %v1451, 64
      %v1461 = vpop.permute.xlu0 %1460
      %1462 = vrot.lane.b32.xlu0 %v1452, 64
      %v1463 = vpop.permute.xlu0 %1462
      %1464 = vrot.lane.b32.xlu0 %v1453, 64
      %v1465 = vpop.permute.xlu0 %1464
      %1466 = vrot.lane.b32.xlu0 %v1454, 64
      %v1467 = vpop.permute.xlu0 %1466
      %1468 = vrot.lane.b32.xlu0 %v1455, 64
      %v1469 = vpop.permute.xlu0 %1468
      %1470 = vrot.lane.b32.xlu0 %v1456, 64
      %v1471 = vpop.permute.xlu0 %1470
      %1472 = vrot.lane.b32.xlu0 %v1457, 64
      %v1473 = vpop.permute.xlu0 %1472
      %v1474 = vrot.slane %v1459, 4
      %v1475 = vrot.slane %v1461, 4
      %v1476 = vrot.slane %v1463, 4
      %v1477 = vrot.slane %v1465, 4
      %v1478 = vrot.slane %v1467, 4
      %v1479 = vrot.slane %v1469, 4
      %v1480 = vrot.slane %v1471, 4
      %v1481 = vrot.slane %v1473, 4
      %vm1482 = vcmask 523264
      %v1483 = vsel %vm1482, %v1459, %v1474
      %v1484 = vsel %vm1482, %v1461, %v1475
      %v1485 = vsel %vm1482, %v1463, %v1476
      %v1486 = vsel %vm1482, %v1465, %v1477
      %v1487 = vsel %vm1482, %v1467, %v1478
      %v1488 = vsel %vm1482, %v1469, %v1479
      %v1489 = vsel %vm1482, %v1471, %v1480
      %v1490 = vsel %vm1482, %v1473, %v1481
      %vm1499 = vcmask 781312
      %1500 = vst.msk [vmem:[%s279] sm:$0xf] %vm1499, %v1483
      %1501 = vst.msk [vmem:[%s279 + $0x4] sm:$0xf] %vm1499, %v1484
      %1502 = vst.msk [vmem:[%s279 + $0x8] sm:$0xf] %vm1499, %v1485
      %1503 = vst.msk [vmem:[%s279 + $0xc] sm:$0xf] %vm1499, %v1486
      %1504 = vst.msk [vmem:[%s279 + $0x10] sm:$0xf] %vm1499, %v1487
      %1505 = vst.msk [vmem:[%s279 + $0x14] sm:$0xf] %vm1499, %v1488
      %1506 = vst.msk [vmem:[%s279 + $0x18] sm:$0xf] %vm1499, %v1489
      %1507 = vst.msk [vmem:[%s279 + $0x1c] sm:$0xf] %vm1499, %v1490
      %v1508 = vpack.c.b16 %v1442, %v1442
      %v1509 = vpack.c.b16 %v1443, %v1443
      %v1510 = vpack.c.b16 %v1444, %v1444
      %v1511 = vpack.c.b16 %v1445, %v1445
      %v1512 = vpack.c.b16 %v1446, %v1446
      %v1513 = vpack.c.b16 %v1447, %v1447
      %v1514 = vpack.c.b16 %v1448, %v1448
      %v1515 = vpack.c.b16 %v1449, %v1449
      %1516 = vrot.lane.b32.xlu0 %v1508, 96
      %v1517 = vpop.permute.xlu0 %1516
      %1518 = vrot.lane.b32.xlu0 %v1509, 96
      %v1519 = vpop.permute.xlu0 %1518
      %1520 = vrot.lane.b32.xlu0 %v1510, 96
      %v1521 = vpop.permute.xlu0 %1520
      %1522 = vrot.lane.b32.xlu0 %v1511, 96
      %v1523 = vpop.permute.xlu0 %1522
      %1524 = vrot.lane.b32.xlu0 %v1512, 96
      %v1525 = vpop.permute.xlu0 %1524
      %1526 = vrot.lane.b32.xlu0 %v1513, 96
      %v1527 = vpop.permute.xlu0 %1526
      %1528 = vrot.lane.b32.xlu0 %v1514, 96
      %v1529 = vpop.permute.xlu0 %1528
      %1530 = vrot.lane.b32.xlu0 %v1515, 96
      %v1531 = vpop.permute.xlu0 %1530
      %vm1540 = vcmask 125952
      %1541 = vst.msk [vmem:[%s285] sm:$0xf] %vm1540, %v1517
      %1542 = vst.msk [vmem:[%s285 + $0x4] sm:$0xf] %vm1540, %v1519
      %1543 = vst.msk [vmem:[%s285 + $0x8] sm:$0xf] %vm1540, %v1521
      %1544 = vst.msk [vmem:[%s285 + $0xc] sm:$0xf] %vm1540, %v1523
      %1545 = vst.msk [vmem:[%s285 + $0x10] sm:$0xf] %vm1540, %v1525
      %1546 = vst.msk [vmem:[%s285 + $0x14] sm:$0xf] %vm1540, %v1527
      %1547 = vst.msk [vmem:[%s285 + $0x18] sm:$0xf] %vm1540, %v1529
      %1548 = vst.msk [vmem:[%s285 + $0x1c] sm:$0xf] %vm1540, %v1531
      %s1549 = smul.u32 8, %s18
      %p1550 = scmp.lt.s32.totalorder %s1549, 31
      %s1551 = scalar_select %p1550, %s1549, 31
      %s1552 = smul.addr %s1551, 2
      %s1553 = smul.addr %s1552, 4
      %s1554 = scalar_lea.vmem %s4, %s1553
      %s1555 = smul.u32 8, %s18
      %p1556 = scmp.lt.s32.totalorder %s1555, 31
      %s1557 = scalar_select %p1556, %s1555, 31
      %s1558 = smul.addr %s1557, 4
      %s1559 = scalar_lea.vmem %s5, %s1558
      %s1560 = smul.u32 8, %s18
      %p1561 = scmp.lt.s32.totalorder %s1560, 31
      %s1562 = scalar_select %p1561, %s1560, 31
      %s1563 = smul.addr %s1562, 4
      %s1564 = scalar_lea.vmem %s6, %s1563
      // Predicated region
      $region37: #{mixed_4b_forward.5} parent=35 // pred_check
        %p1565 = pneg %p125
      $region38: #{mixed_4b_forward.5} parent=35 // pred_check_branch
        %1567 = sbr.rel (%p1565) target = $region40
      $region39: #{mixed_4b_forward.5} parent=35 // pred_region
        %s1568 = smul.u32 8, %s18
      $region40: #{mixed_4b_forward.5} parent=35 // pred_fallthru
        _
      // Predicated region
      $region41: #{mixed_4b_forward.5} parent=35 // pred_check
        %p1569 = pneg %p151
      $region42: #{mixed_4b_forward.5} parent=35 // pred_check_branch
        %1571 = sbr.rel (%p1569) target = $region44
      $region43: #{mixed_4b_forward.5} parent=35 // pred_region
        %s1572 = smul.u32 8, %s18
      $region44: #{mixed_4b_forward.5} parent=35 // pred_fallthru
        _
      // Predicated region
      $region45: #{mixed_4b_forward.5} parent=35 // pred_check
        %p1573 = pneg %p177
      $region46: #{mixed_4b_forward.5} parent=35 // pred_check_branch
        %1575 = sbr.rel (%p1573) target = $region48
      $region47: #{mixed_4b_forward.5} parent=35 // pred_region
        %s1576 = smul.u32 8, %s18
      $region48: #{mixed_4b_forward.5} parent=35 // pred_fallthru
        _
    $region36: #{mixed_4b_forward.5} parent=5 // pred_fallthru
      _
    %p1577 = scmp.le.s32.totalorder 2, %s13
    // Predicated region
    $region49: #{mixed_4b_forward.5} parent=5 // pred_check
      %p1578 = pneg %p1577
    $region50: #{mixed_4b_forward.5} parent=5 // pred_check_branch
      %1580 = sbr.rel (%p1578) target = $region52
    $region51: #{mixed_4b_forward.5} parent=5 // pred_region
      %s1581 = ssub.s32 %s13, 2
      // Predicated region
      $region53: #{mixed_4b_forward.5} parent=51 // pred_check
        %p1582 = pneg %p131
      $region54: #{mixed_4b_forward.5} parent=51 // pred_check_branch
        %1584 = sbr.rel (%p1582) target = $region56
      $region55: #{mixed_4b_forward.5} parent=51 // pred_region
        %s1585 = smul.u32 8, %s19
        %p1586 = scmp.lt.s32.totalorder %s1585, 31
        %s1587 = scalar_select %p1586, %s1585, 31
        %s1588 = smul.addr %s1587, 2
        %s1589 = smul.addr %s1588, 4
        %s1590 = scalar_lea.vmem %s4, %s1589
      $region56: #{mixed_4b_forward.5} parent=51 // pred_fallthru
        _
      // Predicated region
      $region57: #{mixed_4b_forward.5} parent=51 // pred_check
        %p1591 = pneg %p157
      $region58: #{mixed_4b_forward.5} parent=51 // pred_check_branch
        %1593 = sbr.rel (%p1591) target = $region60
      $region59: #{mixed_4b_forward.5} parent=51 // pred_region
        %s1594 = smul.u32 8, %s19
        %p1595 = scmp.lt.s32.totalorder %s1594, 31
        %s1596 = scalar_select %p1595, %s1594, 31
        %s1597 = smul.addr %s1596, 4
        %s1598 = scalar_lea.vmem %s5, %s1597
      $region60: #{mixed_4b_forward.5} parent=51 // pred_fallthru
        _
      // Predicated region
      $region61: #{mixed_4b_forward.5} parent=51 // pred_check
        %p1599 = pneg %p183
      $region62: #{mixed_4b_forward.5} parent=51 // pred_check_branch
        %1601 = sbr.rel (%p1599) target = $region64
      $region63: #{mixed_4b_forward.5} parent=51 // pred_region
        %s1602 = smul.u32 8, %s19
        %p1603 = scmp.lt.s32.totalorder %s1602, 31
        %s1604 = scalar_select %p1603, %s1602, 31
        %s1605 = smul.addr %s1604, 4
        %s1606 = scalar_lea.vmem %s6, %s1605
      $region64: #{mixed_4b_forward.5} parent=51 // pred_fallthru
        _
    $region52: #{mixed_4b_forward.5} parent=5 // pred_fallthru
      _
  $region6: #{mixed_4b_forward.5} parent=0 // loop_footer
    %s17 = sadd.s32 1, %s13
  $region7: #{mixed_4b_forward.5} parent=0 // loop_footer_branch
    %12 = sbr.rel target = $region3
  $region8: #{mixed_4b_forward.5} parent=0 // loop_exit
    _

// kernel: mixed_4b_forward.8
$region0: #{mixed_4b_forward.8}
  #allocation0 [shape = 'u32[]', space=smem, size = 0x4, offset = 0x4, fixed_abs, tag = 'smem constant byte address 0x4 - core index']
  #allocation1 [shape = 'u32[144,128]{1,0:T(1,128)}', space=vmem, size = 0x12000, scoped, tag = 'internal scratch']
  %s0 = inlined_call_operand.vmem [shape: bf16[2,2,10,10,16], index: 0, kind: input, shape index: {}]
  %s1 = inlined_call_operand.vmem [shape: bf16[144,48], index: 1, kind: input, shape index: {}]
  %s2 = inlined_call_operand.vmem [shape: f32[1,48], index: 2, kind: input, shape index: {}]
  %s3 = inlined_call_operand.vmem [shape: f32[1,48], index: 3, kind: input, shape index: {}]
  %s4 = inlined_call_operand.vmem [shape: bf16[3,48,48], index: 4, kind: input, shape index: {}]
  %s5 = inlined_call_operand.vmem [shape: f32[1,48], index: 5, kind: input, shape index: {}]
  %s6 = inlined_call_operand.vmem [shape: f32[1,48], index: 6, kind: input, shape index: {}]
  %s7 = inlined_call_operand.vmem [shape: bf16[2,2,8,8,48], index: 7, kind: output, shape index: {}]
  %s8 = sld [smem:[#allocation0]]
  $region61: #{mixed_4b_forward.8} parent=0
    _
  %s10 = ssub.s32 1, %s8
  %s11 = scalar_select 0, %s10, %s8
  loop: start=0, step=1, limit=4
  $region2: #{mixed_4b_forward.8} parent=0 // loop_pre_header
    _
  $region3: #{mixed_4b_forward.8} parent=0 // loop_header
    %s13 = sphi 0, %s17
    %p14 = scmp.ge.s32.totalorder %s13, 4
    %s23 = sphi 0, %s25
    %s26 = sphi 0, %s23
    %s27 = sphi 0, %s26
    %s43 = sphi 0, %s27
    %s47 = sphi 0, %s47
    %s49 = sphi 0, %s47
    %s50 = sphi 0, %s49
    %s64 = sphi 0, %s50
    %s68 = sphi 0, %s68
    %s70 = sphi 0, %s68
    %s71 = sphi 0, %s70
    %s85 = sphi 0, %s71
    %s89 = sphi 0, %s89
    %s91 = sphi 0, %s89
    %s92 = sphi 0, %s91
    %s106 = sphi 0, %s92
    %s110 = sphi 0, %s110
    %s112 = sphi 0, %s110
    %s113 = sphi 0, %s112
    %s127 = sphi 0, %s113
    %s131 = sphi 0, %s131
    %s133 = sphi 0, %s131
    %s134 = sphi 0, %s133
    %s148 = sphi 0, %s134
    %s152 = sphi 0, %s152
    %s154 = sphi 0, %s152
    %s155 = sphi 0, %s154
    %s169 = sphi 0, %s155
    %s175 = sphi 0, %s177
    %s178 = sphi 0, %s175
    %s179 = sphi 0, %s178
    %s195 = sphi 0, %s179
  $region4: #{mixed_4b_forward.8} parent=0 // loop_header_branch
    %16 = sbr.rel (%p14) target = $region8
  $region5: #{mixed_4b_forward.8} parent=0 // loop_body
    %s18 = ssub.s32 %s13, 1
    %s19 = ssub.s32 %s13, 2
    %s20 = sadd.s32 %s13, 1
    %s21 = ssub.s32 %s13, %s20
    %p22 = scmp.eq.s32.totalorder %s21, 0
    %s24 = sadd.s32 %s23, 1
    %s25 = scalar_select %p22, %s23, %s24
    %p28 = pneg %p22
    %p29 = scmp.eq.s32.totalorder %s13, 1
    %p30 = por %p28, %p29
    %p31 = scmp.ne.s32.totalorder %s23, %s26
    %p32 = scmp.eq.s32.totalorder %s13, 0
    %p33 = por %p31, %p32
    %p34 = scmp.ne.s32.totalorder %s23, %s26
    %p35 = scmp.eq.s32.totalorder %s18, 1
    %p36 = por %p34, %p35
    %p37 = scmp.ne.s32.totalorder %s26, %s27
    %p38 = scmp.eq.s32.totalorder %s18, 0
    %p39 = por %p37, %p38
    %p40 = scmp.ne.s32.totalorder %s26, %s27
    %p41 = scmp.eq.s32.totalorder %s19, 1
    %p42 = por %p40, %p41
    %p44 = scmp.ne.s32.totalorder %s27, %s43
    %p45 = scmp.eq.s32.totalorder %s19, 0
    %p46 = por %p44, %p45
    %s48 = sadd.s32 %s47, 1
    %p51 = scmp.eq.s32.totalorder %s13, 1
    %p52 = scmp.ne.s32.totalorder %s47, %s49
    %p53 = scmp.eq.s32.totalorder %s13, 0
    %p54 = por %p52, %p53
    %p55 = scmp.ne.s32.totalorder %s47, %s49
    %p56 = scmp.eq.s32.totalorder %s18, 1
    %p57 = por %p55, %p56
    %p58 = scmp.ne.s32.totalorder %s49, %s50
    %p59 = scmp.eq.s32.totalorder %s18, 0
    %p60 = por %p58, %p59
    %p61 = scmp.ne.s32.totalorder %s49, %s50
    %p62 = scmp.eq.s32.totalorder %s19, 1
    %p63 = por %p61, %p62
    %p65 = scmp.ne.s32.totalorder %s50, %s64
    %p66 = scmp.eq.s32.totalorder %s19, 0
    %p67 = por %p65, %p66
    %s69 = sadd.s32 %s68, 1
    %p72 = scmp.eq.s32.totalorder %s13, 1
    %p73 = scmp.ne.s32.totalorder %s68, %s70
    %p74 = scmp.eq.s32.totalorder %s13, 0
    %p75 = por %p73, %p74
    %p76 = scmp.ne.s32.totalorder %s68, %s70
    %p77 = scmp.eq.s32.totalorder %s18, 1
    %p78 = por %p76, %p77
    %p79 = scmp.ne.s32.totalorder %s70, %s71
    %p80 = scmp.eq.s32.totalorder %s18, 0
    %p81 = por %p79, %p80
    %p82 = scmp.ne.s32.totalorder %s70, %s71
    %p83 = scmp.eq.s32.totalorder %s19, 1
    %p84 = por %p82, %p83
    %p86 = scmp.ne.s32.totalorder %s71, %s85
    %p87 = scmp.eq.s32.totalorder %s19, 0
    %p88 = por %p86, %p87
    %s90 = sadd.s32 %s89, 1
    %p93 = scmp.eq.s32.totalorder %s13, 1
    %p94 = scmp.ne.s32.totalorder %s89, %s91
    %p95 = scmp.eq.s32.totalorder %s13, 0
    %p96 = por %p94, %p95
    %p97 = scmp.ne.s32.totalorder %s89, %s91
    %p98 = scmp.eq.s32.totalorder %s18, 1
    %p99 = por %p97, %p98
    %p100 = scmp.ne.s32.totalorder %s91, %s92
    %p101 = scmp.eq.s32.totalorder %s18, 0
    %p102 = por %p100, %p101
    %p103 = scmp.ne.s32.totalorder %s91, %s92
    %p104 = scmp.eq.s32.totalorder %s19, 1
    %p105 = por %p103, %p104
    %p107 = scmp.ne.s32.totalorder %s92, %s106
    %p108 = scmp.eq.s32.totalorder %s19, 0
    %p109 = por %p107, %p108
    %s111 = sadd.s32 %s110, 1
    %p114 = scmp.eq.s32.totalorder %s13, 1
    %p115 = scmp.ne.s32.totalorder %s110, %s112
    %p116 = scmp.eq.s32.totalorder %s13, 0
    %p117 = por %p115, %p116
    %p118 = scmp.ne.s32.totalorder %s110, %s112
    %p119 = scmp.eq.s32.totalorder %s18, 1
    %p120 = por %p118, %p119
    %p121 = scmp.ne.s32.totalorder %s112, %s113
    %p122 = scmp.eq.s32.totalorder %s18, 0
    %p123 = por %p121, %p122
    %p124 = scmp.ne.s32.totalorder %s112, %s113
    %p125 = scmp.eq.s32.totalorder %s19, 1
    %p126 = por %p124, %p125
    %p128 = scmp.ne.s32.totalorder %s113, %s127
    %p129 = scmp.eq.s32.totalorder %s19, 0
    %p130 = por %p128, %p129
    %s132 = sadd.s32 %s131, 1
    %p135 = scmp.eq.s32.totalorder %s13, 1
    %p136 = scmp.ne.s32.totalorder %s131, %s133
    %p137 = scmp.eq.s32.totalorder %s13, 0
    %p138 = por %p136, %p137
    %p139 = scmp.ne.s32.totalorder %s131, %s133
    %p140 = scmp.eq.s32.totalorder %s18, 1
    %p141 = por %p139, %p140
    %p142 = scmp.ne.s32.totalorder %s133, %s134
    %p143 = scmp.eq.s32.totalorder %s18, 0
    %p144 = por %p142, %p143
    %p145 = scmp.ne.s32.totalorder %s133, %s134
    %p146 = scmp.eq.s32.totalorder %s19, 1
    %p147 = por %p145, %p146
    %p149 = scmp.ne.s32.totalorder %s134, %s148
    %p150 = scmp.eq.s32.totalorder %s19, 0
    %p151 = por %p149, %p150
    %s153 = sadd.s32 %s152, 1
    %p156 = scmp.eq.s32.totalorder %s13, 1
    %p157 = scmp.ne.s32.totalorder %s152, %s154
    %p158 = scmp.eq.s32.totalorder %s13, 0
    %p159 = por %p157, %p158
    %p160 = scmp.ne.s32.totalorder %s152, %s154
    %p161 = scmp.eq.s32.totalorder %s18, 1
    %p162 = por %p160, %p161
    %p163 = scmp.ne.s32.totalorder %s154, %s155
    %p164 = scmp.eq.s32.totalorder %s18, 0
    %p165 = por %p163, %p164
    %p166 = scmp.ne.s32.totalorder %s154, %s155
    %p167 = scmp.eq.s32.totalorder %s19, 1
    %p168 = por %p166, %p167
    %p170 = scmp.ne.s32.totalorder %s155, %s169
    %p171 = scmp.eq.s32.totalorder %s19, 0
    %p172 = por %p170, %p171
    %s173 = ssub.s32 %s13, %s20
    %p174 = scmp.eq.s32.totalorder %s173, 0
    %s176 = sadd.s32 %s175, 1
    %s177 = scalar_select %p174, %s175, %s176
    %p180 = pneg %p174
    %p181 = scmp.eq.s32.totalorder %s13, 1
    %p182 = por %p180, %p181
    %p183 = scmp.ne.s32.totalorder %s175, %s178
    %p184 = scmp.eq.s32.totalorder %s13, 0
    %p185 = por %p183, %p184
    %p186 = scmp.ne.s32.totalorder %s175, %s178
    %p187 = scmp.eq.s32.totalorder %s18, 1
    %p188 = por %p186, %p187
    %p189 = scmp.ne.s32.totalorder %s178, %s179
    %p190 = scmp.eq.s32.totalorder %s18, 0
    %p191 = por %p189, %p190
    %p192 = scmp.ne.s32.totalorder %s178, %s179
    %p193 = scmp.eq.s32.totalorder %s19, 1
    %p194 = por %p192, %p193
    %p196 = scmp.ne.s32.totalorder %s179, %s195
    %p197 = scmp.eq.s32.totalorder %s19, 0
    %p198 = por %p196, %p197
    %p199 = scmp.le.s32.totalorder 1, %s13
    %p200 = scmp.lt.s32.totalorder %s13, 3
    %p201 = pnand %p199, %p200
    %p202 = pneg %p201
    // Predicated region
    $region9: #{mixed_4b_forward.8} parent=5 // pred_check
      _
    $region10: #{mixed_4b_forward.8} parent=5 // pred_check_branch
      %204 = sbr.rel (%p201) target = $region12
    $region11: #{mixed_4b_forward.8} parent=5 // pred_region
      %s205 = ssub.s32 %s13, 1
      // Predicated region
      $region13: #{mixed_4b_forward.8} parent=11 // pred_check
        %p206 = pneg %p60
      $region14: #{mixed_4b_forward.8} parent=11 // pred_check_branch
        %208 = sbr.rel (%p206) target = $region16
      $region15: #{mixed_4b_forward.8} parent=11 // pred_region
        _
      $region16: #{mixed_4b_forward.8} parent=11 // pred_fallthru
        _
      // Predicated region
      $region17: #{mixed_4b_forward.8} parent=11 // pred_check
        %p209 = pneg %p81
      $region18: #{mixed_4b_forward.8} parent=11 // pred_check_branch
        %211 = sbr.rel (%p209) target = $region20
      $region19: #{mixed_4b_forward.8} parent=11 // pred_region
        _
      $region20: #{mixed_4b_forward.8} parent=11 // pred_fallthru
        _
      // Predicated region
      $region21: #{mixed_4b_forward.8} parent=11 // pred_check
        %p212 = pneg %p102
      $region22: #{mixed_4b_forward.8} parent=11 // pred_check_branch
        %214 = sbr.rel (%p212) target = $region24
      $region23: #{mixed_4b_forward.8} parent=11 // pred_region
        _
      $region24: #{mixed_4b_forward.8} parent=11 // pred_fallthru
        _
      // Predicated region
      $region25: #{mixed_4b_forward.8} parent=11 // pred_check
        %p215 = pneg %p123
      $region26: #{mixed_4b_forward.8} parent=11 // pred_check_branch
        %217 = sbr.rel (%p215) target = $region28
      $region27: #{mixed_4b_forward.8} parent=11 // pred_region
        _
      $region28: #{mixed_4b_forward.8} parent=11 // pred_fallthru
        _
      // Predicated region
      $region29: #{mixed_4b_forward.8} parent=11 // pred_check
        %p218 = pneg %p144
      $region30: #{mixed_4b_forward.8} parent=11 // pred_check_branch
        %220 = sbr.rel (%p218) target = $region32
      $region31: #{mixed_4b_forward.8} parent=11 // pred_region
        _
      $region32: #{mixed_4b_forward.8} parent=11 // pred_fallthru
        _
      // Predicated region
      $region33: #{mixed_4b_forward.8} parent=11 // pred_check
        %p221 = pneg %p165
      $region34: #{mixed_4b_forward.8} parent=11 // pred_check_branch
        %223 = sbr.rel (%p221) target = $region36
      $region35: #{mixed_4b_forward.8} parent=11 // pred_region
        _
      $region36: #{mixed_4b_forward.8} parent=11 // pred_fallthru
        _
    $region12: #{mixed_4b_forward.8} parent=5 // pred_fallthru
      _
    %p224 = scmp.lt.s32.totalorder %s13, 2
    // Predicated region
    $region37: #{mixed_4b_forward.8} parent=5 // pred_check
      %p225 = pneg %p224
    $region38: #{mixed_4b_forward.8} parent=5 // pred_check_branch
      %227 = sbr.rel (%p225) target = $region40
    $region39: #{mixed_4b_forward.8} parent=5 // pred_region
      // Predicated region
      $region41: #{mixed_4b_forward.8} parent=39 // pred_check
        %p228 = pneg %p33
      $region42: #{mixed_4b_forward.8} parent=39 // pred_check_branch
        %230 = sbr.rel (%p228) target = $region44
      $region43: #{mixed_4b_forward.8} parent=39 // pred_region
        %p231 = scmp.lt.s32.totalorder %s13, 1
        %s232 = scalar_select %p231, %s13, 1
        %s233 = smul.addr %s232, 40
        %s234 = smul.addr %s233, 4
        %s235 = scalar_lea.vmem %s0, %s234
      $region44: #{mixed_4b_forward.8} parent=39 // pred_fallthru
        _
    $region40: #{mixed_4b_forward.8} parent=5 // pred_fallthru
      _
    %p236 = scmp.le.s32.totalorder 1, %s13
    %p237 = scmp.lt.s32.totalorder %s13, 3
    %p238 = pnand %p236, %p237
    %p239 = pneg %p238
    // Predicated region
    $region45: #{mixed_4b_forward.8} parent=5 // pred_check
      _
    $region46: #{mixed_4b_forward.8} parent=5 // pred_check_branch
      %241 = sbr.rel (%p238) target = $region48
    $region47: #{mixed_4b_forward.8} parent=5 // pred_region
      %s242 = ssub.s32 %s13, 1
      %p243 = scmp.lt.s32.totalorder %s18, 1
      %s244 = scalar_select %p243, %s18, 1
      %s245 = smul.addr %s244, 40
      %s246 = smul.addr %s245, 4
      %s247 = scalar_lea.vmem %s0, %s246
      %p248 = pneg %p39
      %p249 = pneg %p36
      %p250 = pneg %p60
      %p251 = pneg %p57
      %p252 = pneg %p81
      %p253 = pneg %p78
      %p254 = pneg %p102
      %p255 = pneg %p99
      %p256 = pneg %p123
      %p257 = pneg %p120
      %p258 = pneg %p144
      %p259 = pneg %p141
      %p260 = pneg %p165
      %p261 = pneg %p162
      %p262 = pneg %p191
      %p263 = pneg %p188
      %p264 = scmp.lt.s32.totalorder %s18, 1
      %s265 = scalar_select %p264, %s18, 1
      %s266 = smul.addr %s265, 16
      %s267 = smul.addr %s266, 4
      %s268 = scalar_lea.vmem %s7, %s267
      %p269 = scmp.lt.s32.totalorder %s18, 1
      %s270 = scalar_select %p269, %s18, 1
      %s271 = smul.addr %s270, 40
      %s272 = smul.addr %s271, 4
      %s273 = scalar_lea.vmem %s0, %s272
      %p274 = scmp.lt.s32.totalorder %s18, 1
      %s275 = scalar_select %p274, %s18, 1
      %s276 = smul.addr %s275, 16
      %s277 = smul.addr %s276, 4
      %s278 = scalar_lea.vmem %s7, %s277
      %v280 = vld [vmem:[%s273] sm:$0xf]
      %v281 = vld [vmem:[%s273 + $0x4] sm:$0x1]
      %v282 = vld [vmem:[%s273 + $0x8] sm:$0xf]
      %v283 = vld [vmem:[%s273 + $0xc] sm:$0x1]
      %v284 = vld [vmem:[%s273 + $0x10] sm:$0xf]
      %v285 = vld [vmem:[%s273 + $0x14] sm:$0x1]
      %v286 = vld [vmem:[%s273 + $0x18] sm:$0xf]
      %v287 = vld [vmem:[%s273 + $0x1c] sm:$0x1]
      %v288 = vld [vmem:[%s273 + $0x20] sm:$0xf]
      %v289 = vld [vmem:[%s273 + $0x24] sm:$0x1]
      %v290 = vld [vmem:[%s273 + $0x28] sm:$0xf]
      %v291 = vld [vmem:[%s273 + $0x2c] sm:$0x1]
      %v292 = vld [vmem:[%s273 + $0x30] sm:$0xf]
      %v293 = vld [vmem:[%s273 + $0x34] sm:$0x1]
      %v294 = vld [vmem:[%s273 + $0x38] sm:$0xf]
      %v295 = vld [vmem:[%s273 + $0x3c] sm:$0x1]
      %v296 = vld [vmem:[%s273 + $0x40] sm:$0xf]
      %v297 = vld [vmem:[%s273 + $0x44] sm:$0x1]
      %v298 = vld [vmem:[%s273 + $0x48] sm:$0xf]
      %v299 = vld [vmem:[%s273 + $0x4c] sm:$0x1]
      %v300 = vld [vmem:[%s273 + $0x50] sm:$0xf]
      %v301 = vld [vmem:[%s273 + $0x54] sm:$0x1]
      %v302 = vld [vmem:[%s273 + $0x58] sm:$0xf]
      %v303 = vld [vmem:[%s273 + $0x5c] sm:$0x1]
      %v304 = vld [vmem:[%s273 + $0x60] sm:$0xf]
      %v305 = vld [vmem:[%s273 + $0x64] sm:$0x1]
      %v306 = vld [vmem:[%s273 + $0x68] sm:$0xf]
      %v307 = vld [vmem:[%s273 + $0x6c] sm:$0x1]
      %v308 = vld [vmem:[%s273 + $0x70] sm:$0xf]
      %v309 = vld [vmem:[%s273 + $0x74] sm:$0x1]
      %v310 = vld [vmem:[%s273 + $0x78] sm:$0xf]
      %v311 = vld [vmem:[%s273 + $0x7c] sm:$0x1]
      %v312 = vld [vmem:[%s273 + $0x80] sm:$0xf]
      %v313 = vld [vmem:[%s273 + $0x84] sm:$0x1]
      %v314 = vld [vmem:[%s273 + $0x88] sm:$0xf]
      %v315 = vld [vmem:[%s273 + $0x8c] sm:$0x1]
      %v316 = vld [vmem:[%s273 + $0x90] sm:$0xf]
      %v317 = vld [vmem:[%s273 + $0x94] sm:$0x1]
      %v318 = vld [vmem:[%s273 + $0x98] sm:$0xf]
      %v319 = vld [vmem:[%s273 + $0x9c] sm:$0x1]
      %vm320 = vsmask.f32 3328
      %vm321 = vsmask.f32 7440
      %vm322 = vmor %vm320, %vm321
      %v324 = vshrl.u32 %v280, 16
      %v326 = vrot.slane %v324, 4
      %v327 = vshll.u32 %v280, 16
      %v329 = vrot.slane %v327, 5
      %v330 = vor.u32 %v326, %v329
      %v331 = vrot.slane %v330, 4
      %v333 = vshll.u32 %v281, 16
      %v335 = vrot.slane %v333, 5
      %v336 = vsel %vm322, %v331, %v335
      %v338 = vshrl.u32 %v282, 16
      %v340 = vrot.slane %v338, 4
      %v341 = vshll.u32 %v282, 16
      %v343 = vrot.slane %v341, 5
      %v344 = vor.u32 %v340, %v343
      %v345 = vrot.slane %v344, 4
      %v347 = vshll.u32 %v283, 16
      %v349 = vrot.slane %v347, 5
      %v350 = vsel %vm322, %v345, %v349
      %v352 = vshrl.u32 %v284, 16
      %v354 = vrot.slane %v352, 4
      %v355 = vshll.u32 %v284, 16
      %v357 = vrot.slane %v355, 5
      %v358 = vor.u32 %v354, %v357
      %v359 = vrot.slane %v358, 4
      %v361 = vshll.u32 %v285, 16
      %v363 = vrot.slane %v361, 5
      %v364 = vsel %vm322, %v359, %v363
      %v366 = vshrl.u32 %v286, 16
      %v368 = vrot.slane %v366, 4
      %v369 = vshll.u32 %v286, 16
      %v371 = vrot.slane %v369, 5
      %v372 = vor.u32 %v368, %v371
      %v373 = vrot.slane %v372, 4
      %v375 = vshll.u32 %v287, 16
      %v377 = vrot.slane %v375, 5
      %v378 = vsel %vm322, %v373, %v377
      %v380 = vshrl.u32 %v288, 16
      %v382 = vrot.slane %v380, 4
      %v383 = vshll.u32 %v288, 16
      %v385 = vrot.slane %v383, 5
      %v386 = vor.u32 %v382, %v385
      %v387 = vrot.slane %v386, 4
      %v389 = vshll.u32 %v289, 16
      %v391 = vrot.slane %v389, 5
      %v392 = vsel %vm322, %v387, %v391
      %v394 = vshrl.u32 %v290, 16
      %v396 = vrot.slane %v394, 4
      %v397 = vshll.u32 %v290, 16
      %v399 = vrot.slane %v397, 5
      %v400 = vor.u32 %v396, %v399
      %v401 = vrot.slane %v400, 4
      %v403 = vshll.u32 %v291, 16
      %v405 = vrot.slane %v403, 5
      %v406 = vsel %vm322, %v401, %v405
      %v408 = vshrl.u32 %v292, 16
      %v410 = vrot.slane %v408, 4
      %v411 = vshll.u32 %v292, 16
      %v413 = vrot.slane %v411, 5
      %v414 = vor.u32 %v410, %v413
      %v415 = vrot.slane %v414, 4
      %v417 = vshll.u32 %v293, 16
      %v419 = vrot.slane %v417, 5
      %v420 = vsel %vm322, %v415, %v419
      %v422 = vshrl.u32 %v294, 16
      %v424 = vrot.slane %v422, 4
      %v425 = vshll.u32 %v294, 16
      %v427 = vrot.slane %v425, 5
      %v428 = vor.u32 %v424, %v427
      %v429 = vrot.slane %v428, 4
      %v431 = vshll.u32 %v295, 16
      %v433 = vrot.slane %v431, 5
      %v434 = vsel %vm322, %v429, %v433
      %v436 = vshrl.u32 %v300, 16
      %v438 = vrot.slane %v436, 4
      %v439 = vshll.u32 %v300, 16
      %v441 = vrot.slane %v439, 5
      %v442 = vor.u32 %v438, %v441
      %v443 = vrot.slane %v442, 4
      %v445 = vshll.u32 %v301, 16
      %v447 = vrot.slane %v445, 5
      %v448 = vsel %vm322, %v443, %v447
      %v450 = vshrl.u32 %v302, 16
      %v452 = vrot.slane %v450, 4
      %v453 = vshll.u32 %v302, 16
      %v455 = vrot.slane %v453, 5
      %v456 = vor.u32 %v452, %v455
      %v457 = vrot.slane %v456, 4
      %v459 = vshll.u32 %v303, 16
      %v461 = vrot.slane %v459, 5
      %v462 = vsel %vm322, %v457, %v461
      %v464 = vshrl.u32 %v304, 16
      %v466 = vrot.slane %v464, 4
      %v467 = vshll.u32 %v304, 16
      %v469 = vrot.slane %v467, 5
      %v470 = vor.u32 %v466, %v469
      %v471 = vrot.slane %v470, 4
      %v473 = vshll.u32 %v305, 16
      %v475 = vrot.slane %v473, 5
      %v476 = vsel %vm322, %v471, %v475
      %v478 = vshrl.u32 %v306, 16
      %v480 = vrot.slane %v478, 4
      %v481 = vshll.u32 %v306, 16
      %v483 = vrot.slane %v481, 5
      %v484 = vor.u32 %v480, %v483
      %v485 = vrot.slane %v484, 4
      %v487 = vshll.u32 %v307, 16
      %v489 = vrot.slane %v487, 5
      %v490 = vsel %vm322, %v485, %v489
      %v492 = vshrl.u32 %v308, 16
      %v494 = vrot.slane %v492, 4
      %v495 = vshll.u32 %v308, 16
      %v497 = vrot.slane %v495, 5
      %v498 = vor.u32 %v494, %v497
      %v499 = vrot.slane %v498, 4
      %v501 = vshll.u32 %v309, 16
      %v503 = vrot.slane %v501, 5
      %v504 = vsel %vm322, %v499, %v503
      %v506 = vshrl.u32 %v310, 16
      %v508 = vrot.slane %v506, 4
      %v509 = vshll.u32 %v310, 16
      %v511 = vrot.slane %v509, 5
      %v512 = vor.u32 %v508, %v511
      %v513 = vrot.slane %v512, 4
      %v515 = vshll.u32 %v311, 16
      %v517 = vrot.slane %v515, 5
      %v518 = vsel %vm322, %v513, %v517
      %v520 = vshrl.u32 %v312, 16
      %v522 = vrot.slane %v520, 4
      %v523 = vshll.u32 %v312, 16
      %v525 = vrot.slane %v523, 5
      %v526 = vor.u32 %v522, %v525
      %v527 = vrot.slane %v526, 4
      %v529 = vshll.u32 %v313, 16
      %v531 = vrot.slane %v529, 5
      %v532 = vsel %vm322, %v527, %v531
      %v534 = vshrl.u32 %v314, 16
      %v536 = vrot.slane %v534, 4
      %v537 = vshll.u32 %v314, 16
      %v539 = vrot.slane %v537, 5
      %v540 = vor.u32 %v536, %v539
      %v541 = vrot.slane %v540, 4
      %v543 = vshll.u32 %v315, 16
      %v545 = vrot.slane %v543, 5
      %v546 = vsel %vm322, %v541, %v545
      %vm579 = vcmask 1042432
      %vm580 = vcmask 1046532
      %vm581 = vmor %vm579, %vm580
      %v582 = vrot.slane %v280, 5
      %v583 = vrot.slane %v582, 4
      %v584 = vrot.slane %v281, 5
      %v585 = vsel %vm581, %v583, %v584
      %v586 = vrot.slane %v282, 5
      %v587 = vrot.slane %v586, 4
      %v588 = vrot.slane %v283, 5
      %v589 = vsel %vm581, %v587, %v588
      %v590 = vrot.slane %v284, 5
      %v591 = vrot.slane %v590, 4
      %v592 = vrot.slane %v285, 5
      %v593 = vsel %vm581, %v591, %v592
      %v594 = vrot.slane %v286, 5
      %v595 = vrot.slane %v594, 4
      %v596 = vrot.slane %v287, 5
      %v597 = vsel %vm581, %v595, %v596
      %v598 = vrot.slane %v288, 5
      %v599 = vrot.slane %v598, 4
      %v600 = vrot.slane %v289, 5
      %v601 = vsel %vm581, %v599, %v600
      %v602 = vrot.slane %v290, 5
      %v603 = vrot.slane %v602, 4
      %v604 = vrot.slane %v291, 5
      %v605 = vsel %vm581, %v603, %v604
      %v606 = vrot.slane %v292, 5
      %v607 = vrot.slane %v606, 4
      %v608 = vrot.slane %v293, 5
      %v609 = vsel %vm581, %v607, %v608
      %v610 = vrot.slane %v294, 5
      %v611 = vrot.slane %v610, 4
      %v612 = vrot.slane %v295, 5
      %v613 = vsel %vm581, %v611, %v612
      %v614 = vrot.slane %v300, 5
      %v615 = vrot.slane %v614, 4
      %v616 = vrot.slane %v301, 5
      %v617 = vsel %vm581, %v615, %v616
      %v618 = vrot.slane %v302, 5
      %v619 = vrot.slane %v618, 4
      %v620 = vrot.slane %v303, 5
      %v621 = vsel %vm581, %v619, %v620
      %v622 = vrot.slane %v304, 5
      %v623 = vrot.slane %v622, 4
      %v624 = vrot.slane %v305, 5
      %v625 = vsel %vm581, %v623, %v624
      %v626 = vrot.slane %v306, 5
      %v627 = vrot.slane %v626, 4
      %v628 = vrot.slane %v307, 5
      %v629 = vsel %vm581, %v627, %v628
      %v630 = vrot.slane %v308, 5
      %v631 = vrot.slane %v630, 4
      %v632 = vrot.slane %v309, 5
      %v633 = vsel %vm581, %v631, %v632
      %v634 = vrot.slane %v310, 5
      %v635 = vrot.slane %v634, 4
      %v636 = vrot.slane %v311, 5
      %v637 = vsel %vm581, %v635, %v636
      %v638 = vrot.slane %v312, 5
      %v639 = vrot.slane %v638, 4
      %v640 = vrot.slane %v313, 5
      %v641 = vsel %vm581, %v639, %v640
      %v642 = vrot.slane %v314, 5
      %v643 = vrot.slane %v642, 4
      %v644 = vrot.slane %v315, 5
      %v645 = vsel %vm581, %v643, %v644
      %v647 = vshrl.u32 %v296, 16
      %v649 = vrot.slane %v647, 4
      %v650 = vshll.u32 %v296, 16
      %v652 = vrot.slane %v650, 5
      %v653 = vor.u32 %v649, %v652
      %v654 = vrot.slane %v653, 4
      %v656 = vshll.u32 %v297, 16
      %v658 = vrot.slane %v656, 5
      %v659 = vsel %vm322, %v654, %v658
      %v661 = vshrl.u32 %v316, 16
      %v663 = vrot.slane %v661, 4
      %v664 = vshll.u32 %v316, 16
      %v666 = vrot.slane %v664, 5
      %v667 = vor.u32 %v663, %v666
      %v668 = vrot.slane %v667, 4
      %v670 = vshll.u32 %v317, 16
      %v672 = vrot.slane %v670, 5
      %v673 = vsel %vm322, %v668, %v672
      %v678 = vrot.slane %v296, 5
      %v679 = vrot.slane %v678, 4
      %v680 = vrot.slane %v297, 5
      %v681 = vsel %vm581, %v679, %v680
      %v682 = vrot.slane %v316, 5
      %v683 = vrot.slane %v682, 4
      %v684 = vrot.slane %v317, 5
      %v685 = vsel %vm581, %v683, %v684
      %v687 = vshrl.u32 %v298, 16
      %v689 = vrot.slane %v687, 4
      %v690 = vshll.u32 %v298, 16
      %v692 = vrot.slane %v690, 5
      %v693 = vor.u32 %v689, %v692
      %v694 = vrot.slane %v693, 4
      %v696 = vshll.u32 %v299, 16
      %v698 = vrot.slane %v696, 5
      %v699 = vsel %vm322, %v694, %v698
      %v701 = vshrl.u32 %v318, 16
      %v703 = vrot.slane %v701, 4
      %v704 = vshll.u32 %v318, 16
      %v706 = vrot.slane %v704, 5
      %v707 = vor.u32 %v703, %v706
      %v708 = vrot.slane %v707, 4
      %v710 = vshll.u32 %v319, 16
      %v712 = vrot.slane %v710, 5
      %v713 = vsel %vm322, %v708, %v712
      %v718 = vrot.slane %v298, 5
      %v719 = vrot.slane %v718, 4
      %v720 = vrot.slane %v299, 5
      %v721 = vsel %vm581, %v719, %v720
      %v722 = vrot.slane %v318, 5
      %v723 = vrot.slane %v722, 4
      %v724 = vrot.slane %v319, 5
      %v725 = vsel %vm581, %v723, %v724
      %v726 = vunpack.c.l.b16 %v280
      %v727 = vunpack.c.l.b16 %v282
      %v728 = vunpack.c.l.b16 %v284
      %v729 = vunpack.c.l.b16 %v286
      %v730 = vunpack.c.l.b16 %v288
      %v731 = vunpack.c.l.b16 %v290
      %v732 = vunpack.c.l.b16 %v292
      %v733 = vunpack.c.l.b16 %v294
      %v734 = vunpack.c.l.b16 %v300
      %v735 = vunpack.c.l.b16 %v302
      %v736 = vunpack.c.l.b16 %v304
      %v737 = vunpack.c.l.b16 %v306
      %v738 = vunpack.c.l.b16 %v308
      %v739 = vunpack.c.l.b16 %v310
      %v740 = vunpack.c.l.b16 %v312
      %v741 = vunpack.c.l.b16 %v314
      %v742 = vpack.c.b16 %v727, %v726
      %v743 = vpack.c.b16 %v729, %v728
      %v744 = vpack.c.b16 %v731, %v730
      %v745 = vpack.c.b16 %v733, %v732
      %v746 = vpack.c.b16 %v735, %v734
      %v747 = vpack.c.b16 %v737, %v736
      %v748 = vpack.c.b16 %v739, %v738
      %v749 = vpack.c.b16 %v741, %v740
      %v750 = vunpack.c.l.b16 %v336
      %v751 = vunpack.c.l.b16 %v350
      %v752 = vunpack.c.l.b16 %v364
      %v753 = vunpack.c.l.b16 %v378
      %v754 = vunpack.c.l.b16 %v392
      %v755 = vunpack.c.l.b16 %v406
      %v756 = vunpack.c.l.b16 %v420
      %v757 = vunpack.c.l.b16 %v434
      %v758 = vunpack.c.l.b16 %v448
      %v759 = vunpack.c.l.b16 %v462
      %v760 = vunpack.c.l.b16 %v476
      %v761 = vunpack.c.l.b16 %v490
      %v762 = vunpack.c.l.b16 %v504
      %v763 = vunpack.c.l.b16 %v518
      %v764 = vunpack.c.l.b16 %v532
      %v765 = vunpack.c.l.b16 %v546
      %v766 = vpack.c.b16 %v751, %v750
      %v767 = vpack.c.b16 %v753, %v752
      %v768 = vpack.c.b16 %v755, %v754
      %v769 = vpack.c.b16 %v757, %v756
      %v770 = vpack.c.b16 %v759, %v758
      %v771 = vpack.c.b16 %v761, %v760
      %v772 = vpack.c.b16 %v763, %v762
      %v773 = vpack.c.b16 %v765, %v764
      %774 = vrot.lane.b32.xlu0 %v766, 16
      %v775 = vpop.permute.xlu0 %774
      %776 = vrot.lane.b32.xlu0 %v767, 16
      %v777 = vpop.permute.xlu0 %776
      %778 = vrot.lane.b32.xlu0 %v768, 16
      %v779 = vpop.permute.xlu0 %778
      %780 = vrot.lane.b32.xlu0 %v769, 16
      %v781 = vpop.permute.xlu0 %780
      %782 = vrot.lane.b32.xlu0 %v770, 16
      %v783 = vpop.permute.xlu0 %782
      %784 = vrot.lane.b32.xlu0 %v771, 16
      %v785 = vpop.permute.xlu0 %784
      %786 = vrot.lane.b32.xlu0 %v772, 16
      %v787 = vpop.permute.xlu0 %786
      %788 = vrot.lane.b32.xlu0 %v773, 16
      %v789 = vpop.permute.xlu0 %788
      %v790 = vunpack.c.l.b16 %v585
      %v791 = vunpack.c.l.b16 %v589
      %v792 = vunpack.c.l.b16 %v593
      %v793 = vunpack.c.l.b16 %v597
      %v794 = vunpack.c.l.b16 %v601
      %v795 = vunpack.c.l.b16 %v605
      %v796 = vunpack.c.l.b16 %v609
      %v797 = vunpack.c.l.b16 %v613
      %v798 = vunpack.c.l.b16 %v617
      %v799 = vunpack.c.l.b16 %v621
      %v800 = vunpack.c.l.b16 %v625
      %v801 = vunpack.c.l.b16 %v629
      %v802 = vunpack.c.l.b16 %v633
      %v803 = vunpack.c.l.b16 %v637
      %v804 = vunpack.c.l.b16 %v641
      %v805 = vunpack.c.l.b16 %v645
      %v806 = vpack.c.b16 %v791, %v790
      %v807 = vpack.c.b16 %v793, %v792
      %v808 = vpack.c.b16 %v795, %v794
      %v809 = vpack.c.b16 %v797, %v796
      %v810 = vpack.c.b16 %v799, %v798
      %v811 = vpack.c.b16 %v801, %v800
      %v812 = vpack.c.b16 %v803, %v802
      %v813 = vpack.c.b16 %v805, %v804
      %814 = vrot.lane.b32.xlu0 %v806, 32
      %v815 = vpop.permute.xlu0 %814
      %816 = vrot.lane.b32.xlu0 %v807, 32
      %v817 = vpop.permute.xlu0 %816
      %818 = vrot.lane.b32.xlu0 %v808, 32
      %v819 = vpop.permute.xlu0 %818
      %820 = vrot.lane.b32.xlu0 %v809, 32
      %v821 = vpop.permute.xlu0 %820
      %822 = vrot.lane.b32.xlu0 %v810, 32
      %v823 = vpop.permute.xlu0 %822
      %824 = vrot.lane.b32.xlu0 %v811, 32
      %v825 = vpop.permute.xlu0 %824
      %826 = vrot.lane.b32.xlu0 %v812, 32
      %v827 = vpop.permute.xlu0 %826
      %828 = vrot.lane.b32.xlu0 %v813, 32
      %v829 = vpop.permute.xlu0 %828
      %v830 = vunpack.c.l.b16 %v296
      %v831 = vunpack.c.l.b16 %v316
      %v832 = vpack.c.b16 %v728, %v727
      %v833 = vpack.c.b16 %v730, %v729
      %v834 = vpack.c.b16 %v732, %v731
      %v835 = vpack.c.b16 %v830, %v733
      %v836 = vpack.c.b16 %v736, %v735
      %v837 = vpack.c.b16 %v738, %v737
      %v838 = vpack.c.b16 %v740, %v739
      %v839 = vpack.c.b16 %v831, %v741
      %840 = vrot.lane.b32.xlu0 %v832, 48
      %v841 = vpop.permute.xlu0 %840
      %842 = vrot.lane.b32.xlu0 %v833, 48
      %v843 = vpop.permute.xlu0 %842
      %844 = vrot.lane.b32.xlu0 %v834, 48
      %v845 = vpop.permute.xlu0 %844
      %846 = vrot.lane.b32.xlu0 %v835, 48
      %v847 = vpop.permute.xlu0 %846
      %848 = vrot.lane.b32.xlu0 %v836, 48
      %v849 = vpop.permute.xlu0 %848
      %850 = vrot.lane.b32.xlu0 %v837, 48
      %v851 = vpop.permute.xlu0 %850
      %852 = vrot.lane.b32.xlu0 %v838, 48
      %v853 = vpop.permute.xlu0 %852
      %854 = vrot.lane.b32.xlu0 %v839, 48
      %v855 = vpop.permute.xlu0 %854
      %v856 = vunpack.c.l.b16 %v659
      %v857 = vunpack.c.l.b16 %v673
      %v858 = vpack.c.b16 %v752, %v751
      %v859 = vpack.c.b16 %v754, %v753
      %v860 = vpack.c.b16 %v756, %v755
      %v861 = vpack.c.b16 %v856, %v757
      %v862 = vpack.c.b16 %v760, %v759
      %v863 = vpack.c.b16 %v762, %v761
      %v864 = vpack.c.b16 %v764, %v763
      %v865 = vpack.c.b16 %v857, %v765
      %866 = vrot.lane.b32.xlu0 %v858, 64
      %v867 = vpop.permute.xlu0 %866
      %868 = vrot.lane.b32.xlu0 %v859, 64
      %v869 = vpop.permute.xlu0 %868
      %870 = vrot.lane.b32.xlu0 %v860, 64
      %v871 = vpop.permute.xlu0 %870
      %872 = vrot.lane.b32.xlu0 %v861, 64
      %v873 = vpop.permute.xlu0 %872
      %874 = vrot.lane.b32.xlu0 %v862, 64
      %v875 = vpop.permute.xlu0 %874
      %876 = vrot.lane.b32.xlu0 %v863, 64
      %v877 = vpop.permute.xlu0 %876
      %878 = vrot.lane.b32.xlu0 %v864, 64
      %v879 = vpop.permute.xlu0 %878
      %880 = vrot.lane.b32.xlu0 %v865, 64
      %v881 = vpop.permute.xlu0 %880
      %v882 = vunpack.c.l.b16 %v681
      %v883 = vunpack.c.l.b16 %v685
      %v884 = vpack.c.b16 %v792, %v791
      %v885 = vpack.c.b16 %v794, %v793
      %v886 = vpack.c.b16 %v796, %v795
      %v887 = vpack.c.b16 %v882, %v797
      %v888 = vpack.c.b16 %v800, %v799
      %v889 = vpack.c.b16 %v802, %v801
      %v890 = vpack.c.b16 %v804, %v803
      %v891 = vpack.c.b16 %v883, %v805
      %892 = vrot.lane.b32.xlu0 %v884, 80
      %v893 = vpop.permute.xlu0 %892
      %894 = vrot.lane.b32.xlu0 %v885, 80
      %v895 = vpop.permute.xlu0 %894
      %896 = vrot.lane.b32.xlu0 %v886, 80
      %v897 = vpop.permute.xlu0 %896
      %898 = vrot.lane.b32.xlu0 %v887, 80
      %v899 = vpop.permute.xlu0 %898
      %900 = vrot.lane.b32.xlu0 %v888, 80
      %v901 = vpop.permute.xlu0 %900
      %902 = vrot.lane.b32.xlu0 %v889, 80
      %v903 = vpop.permute.xlu0 %902
      %904 = vrot.lane.b32.xlu0 %v890, 80
      %v905 = vpop.permute.xlu0 %904
      %906 = vrot.lane.b32.xlu0 %v891, 80
      %v907 = vpop.permute.xlu0 %906
      %v908 = vunpack.c.l.b16 %v298
      %v909 = vunpack.c.l.b16 %v318
      %v910 = vpack.c.b16 %v908, %v830
      %v911 = vpack.c.b16 %v909, %v831
      %912 = vrot.lane.b32.xlu0 %v743, 96
      %v913 = vpop.permute.xlu0 %912
      %914 = vrot.lane.b32.xlu0 %v744, 96
      %v915 = vpop.permute.xlu0 %914
      %916 = vrot.lane.b32.xlu0 %v745, 96
      %v917 = vpop.permute.xlu0 %916
      %918 = vrot.lane.b32.xlu0 %v910, 96
      %v919 = vpop.permute.xlu0 %918
      %920 = vrot.lane.b32.xlu0 %v747, 96
      %v921 = vpop.permute.xlu0 %920
      %922 = vrot.lane.b32.xlu0 %v748, 96
      %v923 = vpop.permute.xlu0 %922
      %924 = vrot.lane.b32.xlu0 %v749, 96
      %v925 = vpop.permute.xlu0 %924
      %926 = vrot.lane.b32.xlu0 %v911, 96
      %v927 = vpop.permute.xlu0 %926
      %v928 = vunpack.c.l.b16 %v699
      %v929 = vunpack.c.l.b16 %v713
      %v930 = vpack.c.b16 %v928, %v856
      %v931 = vpack.c.b16 %v929, %v857
      %932 = vrot.lane.b32.xlu0 %v767, 112
      %v933 = vpop.permute.xlu0 %932
      %934 = vrot.lane.b32.xlu0 %v768, 112
      %v935 = vpop.permute.xlu0 %934
      %936 = vrot.lane.b32.xlu0 %v769, 112
      %v937 = vpop.permute.xlu0 %936
      %938 = vrot.lane.b32.xlu0 %v930, 112
      %v939 = vpop.permute.xlu0 %938
      %940 = vrot.lane.b32.xlu0 %v771, 112
      %v941 = vpop.permute.xlu0 %940
      %942 = vrot.lane.b32.xlu0 %v772, 112
      %v943 = vpop.permute.xlu0 %942
      %944 = vrot.lane.b32.xlu0 %v773, 112
      %v945 = vpop.permute.xlu0 %944
      %946 = vrot.lane.b32.xlu0 %v931, 112
      %v947 = vpop.permute.xlu0 %946
      %v948 = vunpack.c.l.b16 %v721
      %v949 = vunpack.c.l.b16 %v725
      %v950 = vpack.c.b16 %v948, %v882
      %v951 = vpack.c.b16 %v949, %v883
      %vm952 = vcmask 130048
      %v955 = vsel %vm952, %v742, %v775
      %v958 = vsel %vm952, %v743, %v777
      %v961 = vsel %vm952, %v744, %v779
      %v964 = vsel %vm952, %v745, %v781
      %v967 = vsel %vm952, %v746, %v783
      %v970 = vsel %vm952, %v747, %v785
      %v973 = vsel %vm952, %v748, %v787
      %v976 = vsel %vm952, %v749, %v789
      %vm977 = vcmask 261120
      %v979 = vsel %vm977, %v955, %v815
      %v981 = vsel %vm977, %v958, %v817
      %v983 = vsel %vm977, %v961, %v819
      %v985 = vsel %vm977, %v964, %v821
      %v987 = vsel %vm977, %v967, %v823
      %v989 = vsel %vm977, %v970, %v825
      %v991 = vsel %vm977, %v973, %v827
      %v993 = vsel %vm977, %v976, %v829
      %vm994 = vcmask 392192
      %v996 = vsel %vm994, %v979, %v841
      %v998 = vsel %vm994, %v981, %v843
      %v1000 = vsel %vm994, %v983, %v845
      %v1002 = vsel %vm994, %v985, %v847
      %v1004 = vsel %vm994, %v987, %v849
      %v1006 = vsel %vm994, %v989, %v851
      %v1008 = vsel %vm994, %v991, %v853
      %v1010 = vsel %vm994, %v993, %v855
      %vm1011 = vcmask 523264
      %v1013 = vsel %vm1011, %v996, %v867
      %v1015 = vsel %vm1011, %v998, %v869
      %v1017 = vsel %vm1011, %v1000, %v871
      %v1019 = vsel %vm1011, %v1002, %v873
      %v1021 = vsel %vm1011, %v1004, %v875
      %v1023 = vsel %vm1011, %v1006, %v877
      %v1025 = vsel %vm1011, %v1008, %v879
      %v1027 = vsel %vm1011, %v1010, %v881
      %vm1028 = vcmask 654336
      %v1030 = vsel %vm1028, %v1013, %v893
      %v1032 = vsel %vm1028, %v1015, %v895
      %v1034 = vsel %vm1028, %v1017, %v897
      %v1036 = vsel %vm1028, %v1019, %v899
      %v1038 = vsel %vm1028, %v1021, %v901
      %v1040 = vsel %vm1028, %v1023, %v903
      %v1042 = vsel %vm1028, %v1025, %v905
      %v1044 = vsel %vm1028, %v1027, %v907
      %vm1045 = vcmask 785408
      %v1047 = vsel %vm1045, %v1030, %v913
      %v1049 = vsel %vm1045, %v1032, %v915
      %v1051 = vsel %vm1045, %v1034, %v917
      %v1053 = vsel %vm1045, %v1036, %v919
      %v1055 = vsel %vm1045, %v1038, %v921
      %v1057 = vsel %vm1045, %v1040, %v923
      %v1059 = vsel %vm1045, %v1042, %v925
      %v1061 = vsel %vm1045, %v1044, %v927
      %vm1062 = vcmask 916480
      %v1064 = vsel %vm1062, %v1047, %v933
      %v1067 = vsel %vm1062, %v1049, %v935
      %v1070 = vsel %vm1062, %v1051, %v937
      %v1073 = vsel %vm1062, %v1053, %v939
      %v1076 = vsel %vm1062, %v1055, %v941
      %v1079 = vsel %vm1062, %v1057, %v943
      %v1082 = vsel %vm1062, %v1059, %v945
      %v1085 = vsel %vm1062, %v1061, %v947
      %v1087 = vld [vmem:[%s1] sm:$0xf]
      %v1088 = vld [vmem:[%s1 + $0x4] sm:$0xf]
      %v1089 = vld [vmem:[%s1 + $0x8] sm:$0xf]
      %v1090 = vld [vmem:[%s1 + $0xc] sm:$0xf]
      %v1091 = vld [vmem:[%s1 + $0x10] sm:$0xf]
      %v1092 = vld [vmem:[%s1 + $0x14] sm:$0xf]
      %v1093 = vld [vmem:[%s1 + $0x18] sm:$0xf]
      %v1094 = vld [vmem:[%s1 + $0x1c] sm:$0xf]
      %v1095 = vld [vmem:[%s1 + $0x20] sm:$0xf]
      %v1096 = vld [vmem:[%s1 + $0x24] sm:$0xf]
      %v1097 = vld [vmem:[%s1 + $0x28] sm:$0xf]
      %v1098 = vld [vmem:[%s1 + $0x2c] sm:$0xf]
      %v1099 = vld [vmem:[%s1 + $0x30] sm:$0xf]
      %v1100 = vld [vmem:[%s1 + $0x34] sm:$0xf]
      %v1101 = vld [vmem:[%s1 + $0x38] sm:$0xf]
      %v1102 = vld [vmem:[%s1 + $0x3c] sm:$0xf]
      %v1103 = vld [vmem:[%s1 + $0x40] sm:$0xf]
      %v1104 = vld [vmem:[%s1 + $0x44] sm:$0xf]
      %v1123 = vunpack.c.l.b16 %v1087
      %v1124 = vunpack.c.l.b16 %v1088
      %v1125 = vunpack.c.l.b16 %v1089
      %v1126 = vunpack.c.l.b16 %v1090
      %v1127 = vunpack.c.l.b16 %v1091
      %v1128 = vunpack.c.l.b16 %v1092
      %v1129 = vunpack.c.l.b16 %v1093
      %v1130 = vunpack.c.l.b16 %v1094
      %v1131 = vunpack.c.l.b16 %v1095
      %v1132 = vunpack.c.l.b16 %v1096
      %v1133 = vunpack.c.l.b16 %v1097
      %v1134 = vunpack.c.l.b16 %v1098
      %v1135 = vunpack.c.l.b16 %v1099
      %v1136 = vunpack.c.l.b16 %v1100
      %v1137 = vunpack.c.l.b16 %v1101
      %v1138 = vunpack.c.l.b16 %v1102
      %v1139 = vunpack.c.l.b16 %v1103
      %v1140 = vunpack.c.l.b16 %v1104
      %v1141 = vpack.c.b16 %v1124, %v1123
      %v1142 = vpack.c.b16 %v1126, %v1125
      %v1143 = vpack.c.b16 %v1128, %v1127
      %v1144 = vpack.c.b16 %v1130, %v1129
      %v1145 = vpack.c.b16 %v1132, %v1131
      %v1146 = vpack.c.b16 %v1134, %v1133
      %v1147 = vpack.c.b16 %v1136, %v1135
      %v1148 = vpack.c.b16 %v1138, %v1137
      %v1149 = vpack.c.b16 %v1140, %v1139
      %v1160 = vsel %vm952, %v807, 0
      %v1163 = vsel %vm952, %v808, 0
      %v1166 = vsel %vm952, %v809, 0
      %v1169 = vsel %vm952, %v950, 0
      %v1172 = vsel %vm952, %v811, 0
      %v1175 = vsel %vm952, %v812, 0
      %v1178 = vsel %vm952, %v813, 0
      %v1181 = vsel %vm952, %v951, 0
      %1183 = vmatprep.subr.bf16.mxu0 0
      %1184 = vmatpush1.bf16.msra.mxu0 %v1141
      %1185 = vmatprep.subr.bf16.mxu0 0
      %1186 = vmatpush1.bf16.msra.mxu0 %v1142
      %1187 = vmatprep.subr.bf16.mxu0 0
      %1188 = vmatpush1.bf16.msra.mxu0 %v1143
      %1189 = vmatprep.subr.bf16.mxu0 0
      %1190 = vmatpush1.bf16.msra.mxu0 %v1144
      %1191 = vmatprep.subr.bf16.mxu0 0
      %1192 = vmatpush1.bf16.msra.mxu0 %v1145
      %1193 = vmatprep.subr.bf16.mxu0 0
      %1194 = vmatpush1.bf16.msra.mxu0 %v1146
      %1195 = vmatprep.subr.bf16.mxu0 0
      %1196 = vmatpush1.bf16.msra.mxu0 %v1147
      %1197 = vmatprep.subr.bf16.mxu0 0
      %1198 = vmatpush1.bf16.msra.mxu0 %v1148
      %1199 = vmatprep.subr.bf16.mxu0 0
      %1200 = vmatpush1.bf16.msra.mxu0 %v1149
      %1201 = vmatprep.subr.bf16.mxu0 0
      %1202 = vmatpush1.bf16.msra.mxu0 0
      %1203 = vmatprep.subr.bf16.mxu0 0
      %1204 = vmatpush1.bf16.msra.mxu0 0
      %1205 = vmatprep.subr.bf16.mxu0 0
      %1206 = vmatpush1.bf16.msra.mxu0 0
      %1207 = vmatprep.subr.bf16.mxu0 0
      %1208 = vmatpush1.bf16.msra.mxu0 0
      %1209 = vmatprep.subr.bf16.mxu0 0
      %1210 = vmatpush1.bf16.msra.mxu0 0
      %1211 = vmatprep.subr.bf16.mxu0 0
      %1212 = vmatpush1.bf16.msra.mxu0 0
      %1213 = vmatprep.subr.bf16.mxu0 0
      %1214 = vmatpush1.bf16.msra.mxu0 0
      %1215 = vmatprep.mubr.bf16.mxu0 %v1160
      %1216 = vmatmul.mubr.bf16.gmra.mrb[0].mxu0 %v1064
      %v1217 = vpop.f32.mrb[0].mxu0
      %v1218 = vadd.f32 0.0, %v1217
      %v1219 = vpop.f32.mrb[0].mxu0
      %v1220 = vpop.f32.mrb[0].mxu0
      %v1221 = vadd.f32 0.0, %v1220
      %v1222 = vpop.f32.mrb[0].mxu0
      %1223 = vmatprep.mubr.bf16.mxu0 %v1163
      %1224 = vmatmul.mubr.bf16.gmra.mrb[0].mxu0 %v1067
      %v1225 = vpop.f32.mrb[0].mxu0
      %v1226 = vadd.f32 0.0, %v1225
      %v1227 = vpop.f32.mrb[0].mxu0
      %v1228 = vpop.f32.mrb[0].mxu0
      %v1229 = vadd.f32 0.0, %v1228
      %v1230 = vpop.f32.mrb[0].mxu0
      %1231 = vmatprep.mubr.bf16.mxu0 %v1166
      %1232 = vmatmul.mubr.bf16.gmra.mrb[0].mxu0 %v1070
      %v1233 = vpop.f32.mrb[0].mxu0
      %v1234 = vadd.f32 0.0, %v1233
      %v1235 = vpop.f32.mrb[0].mxu0
      %v1236 = vpop.f32.mrb[0].mxu0
      %v1237 = vadd.f32 0.0, %v1236
      %v1238 = vpop.f32.mrb[0].mxu0
      %1239 = vmatprep.mubr.bf16.mxu0 %v1169
      %1240 = vmatmul.mubr.bf16.gmra.mrb[0].mxu0 %v1073
      %v1241 = vpop.f32.mrb[0].mxu0
      %v1242 = vadd.f32 0.0, %v1241
      %v1243 = vpop.f32.mrb[0].mxu0
      %v1244 = vpop.f32.mrb[0].mxu0
      %v1245 = vadd.f32 0.0, %v1244
      %v1246 = vpop.f32.mrb[0].mxu0
      %1247 = vmatprep.mubr.bf16.mxu0 %v1172
      %1248 = vmatmul.mubr.bf16.gmra.mrb[0].mxu0 %v1076
      %v1249 = vpop.f32.mrb[0].mxu0
      %v1250 = vadd.f32 0.0, %v1249
      %v1251 = vpop.f32.mrb[0].mxu0
      %v1252 = vpop.f32.mrb[0].mxu0
      %v1253 = vadd.f32 0.0, %v1252
      %v1254 = vpop.f32.mrb[0].mxu0
      %1255 = vmatprep.mubr.bf16.mxu0 %v1175
      %1256 = vmatmul.mubr.bf16.gmra.mrb[0].mxu0 %v1079
      %v1257 = vpop.f32.mrb[0].mxu0
      %v1258 = vadd.f32 0.0, %v1257
      %v1259 = vpop.f32.mrb[0].mxu0
      %v1260 = vpop.f32.mrb[0].mxu0
      %v1261 = vadd.f32 0.0, %v1260
      %v1262 = vpop.f32.mrb[0].mxu0
      %1263 = vmatprep.mubr.bf16.mxu0 %v1178
      %1264 = vmatmul.mubr.bf16.gmra.mrb[0].mxu0 %v1082
      %v1265 = vpop.f32.mrb[0].mxu0
      %v1266 = vadd.f32 0.0, %v1265
      %v1267 = vpop.f32.mrb[0].mxu0
      %v1268 = vpop.f32.mrb[0].mxu0
      %v1269 = vadd.f32 0.0, %v1268
      %v1270 = vpop.f32.mrb[0].mxu0
      %1271 = vmatprep.mubr.bf16.mxu0 %v1181
      %1272 = vmatmul.mubr.bf16.gmra.mrb[0].mxu0 %v1085
      %v1273 = vpop.f32.mrb[0].mxu0
      %v1274 = vadd.f32 0.0, %v1273
      %v1275 = vpop.f32.mrb[0].mxu0
      %v1276 = vpop.f32.mrb[0].mxu0
      %v1277 = vadd.f32 0.0, %v1276
      %v1278 = vpop.f32.mrb[0].mxu0
      %1279 = vdwg.mxu0
      %v1280 = vld [vmem:[%s2] sm:$0x1]
      %v1282 = vlaneseq
      %v1283 = vshrl.u32 %v1282, 7
      %v1284 = vsub.s32 0, %v1283
      %v1285 = vrot.slane %v1280, %v1284
      %v1287 = vmul.f32 %v1218, %v1285
      %v1288 = vmul.f32 %v1221, %v1285
      %v1289 = vmul.f32 %v1226, %v1285
      %v1290 = vmul.f32 %v1229, %v1285
      %v1291 = vmul.f32 %v1234, %v1285
      %v1292 = vmul.f32 %v1237, %v1285
      %v1293 = vmul.f32 %v1242, %v1285
      %v1294 = vmul.f32 %v1245, %v1285
      %v1295 = vmul.f32 %v1250, %v1285
      %v1296 = vmul.f32 %v1253, %v1285
      %v1297 = vmul.f32 %v1258, %v1285
      %v1298 = vmul.f32 %v1261, %v1285
      %v1299 = vmul.f32 %v1266, %v1285
      %v1300 = vmul.f32 %v1269, %v1285
      %v1301 = vmul.f32 %v1274, %v1285
      %v1302 = vmul.f32 %v1277, %v1285
      %v1303 = vld [vmem:[%s3] sm:$0x1]
      %v1305 = vlaneseq
      %v1306 = vshrl.u32 %v1305, 7
      %v1307 = vsub.s32 0, %v1306
      %v1308 = vrot.slane %v1303, %v1307
      %v1310 = vadd.f32 %v1287, %v1308
      %v1311 = vadd.f32 %v1288, %v1308
      %v1312 = vadd.f32 %v1289, %v1308
      %v1313 = vadd.f32 %v1290, %v1308
      %v1314 = vadd.f32 %v1291, %v1308
      %v1315 = vadd.f32 %v1292, %v1308
      %v1316 = vadd.f32 %v1293, %v1308
      %v1317 = vadd.f32 %v1294, %v1308
      %v1318 = vadd.f32 %v1295, %v1308
      %v1319 = vadd.f32 %v1296, %v1308
      %v1320 = vadd.f32 %v1297, %v1308
      %v1321 = vadd.f32 %v1298, %v1308
      %v1322 = vadd.f32 %v1299, %v1308
      %v1323 = vadd.f32 %v1300, %v1308
      %v1324 = vadd.f32 %v1301, %v1308
      %v1325 = vadd.f32 %v1302, %v1308
      %v1326 = vmax.f32 %v1310, 0.0
      %v1327 = vmax.f32 %v1311, 0.0
      %v1328 = vmax.f32 %v1312, 0.0
      %v1329 = vmax.f32 %v1313, 0.0
      %v1330 = vmax.f32 %v1314, 0.0
      %v1331 = vmax.f32 %v1315, 0.0
      %v1332 = vmax.f32 %v1316, 0.0
      %v1333 = vmax.f32 %v1317, 0.0
      %v1334 = vmax.f32 %v1318, 0.0
      %v1335 = vmax.f32 %v1319, 0.0
      %v1336 = vmax.f32 %v1320, 0.0
      %v1337 = vmax.f32 %v1321, 0.0
      %v1338 = vmax.f32 %v1322, 0.0
      %v1339 = vmax.f32 %v1323, 0.0
      %v1340 = vmax.f32 %v1324, 0.0
      %v1341 = vmax.f32 %v1325, 0.0
      %v1342 = vpack.c.bf16 %v1327, %v1326
      %v1343 = vpack.c.bf16 %v1329, %v1328
      %v1344 = vpack.c.bf16 %v1331, %v1330
      %v1345 = vpack.c.bf16 %v1333, %v1332
      %v1346 = vpack.c.bf16 %v1335, %v1334
      %v1347 = vpack.c.bf16 %v1337, %v1336
      %v1348 = vpack.c.bf16 %v1339, %v1338
      %v1349 = vpack.c.bf16 %v1341, %v1340
      %v1350 = vld [vmem:[%s4] sm:$0xf]
      %v1351 = vld [vmem:[%s4 + $0x4] sm:$0xf]
      %v1352 = vld [vmem:[%s4 + $0x8] sm:$0xf]
      %v1353 = vld [vmem:[%s4 + $0xc] sm:$0xf]
      %v1354 = vld [vmem:[%s4 + $0x10] sm:$0xf]
      %v1355 = vld [vmem:[%s4 + $0x14] sm:$0xf]
      %s1356 = scalar_lea.vmem %s4, 24
      %v1357 = vld [vmem:[%s1356] sm:$0xf]
      %v1358 = vld [vmem:[%s1356 + $0x4] sm:$0xf]
      %v1359 = vld [vmem:[%s1356 + $0x8] sm:$0xf]
      %v1360 = vld [vmem:[%s1356 + $0xc] sm:$0xf]
      %v1361 = vld [vmem:[%s1356 + $0x10] sm:$0xf]
      %v1362 = vld [vmem:[%s1356 + $0x14] sm:$0xf]
      %v1369 = vunpack.c.l.b16 %v1357
      %v1370 = vunpack.c.l.b16 %v1358
      %v1371 = vunpack.c.l.b16 %v1359
      %v1372 = vunpack.c.l.b16 %v1360
      %v1373 = vunpack.c.l.b16 %v1361
      %v1374 = vunpack.c.l.b16 %v1362
      %v1375 = vpack.c.b16 %v1370, %v1369
      %v1376 = vpack.c.b16 %v1372, %v1371
      %v1377 = vpack.c.b16 %v1374, %v1373
      %v1382 = vsel %vm994, %v1342, 0
      %v1385 = vsel %vm994, %v1343, 0
      %v1388 = vsel %vm994, %v1344, 0
      %v1391 = vsel %vm994, %v1345, 0
      %v1394 = vsel %vm994, %v1346, 0
      %v1397 = vsel %vm994, %v1347, 0
      %v1400 = vsel %vm994, %v1348, 0
      %v1403 = vsel %vm994, %v1349, 0
      %1405 = vmatprep.subr.bf16.mxu0 0
      %1406 = vmatpush1.bf16.msra.mxu0 %v1375
      %1407 = vmatprep.subr.bf16.mxu0 0
      %1408 = vmatpush1.bf16.msra.mxu0 %v1376
      %1409 = vmatprep.subr.bf16.mxu0 0
      %1410 = vmatpush1.bf16.msra.mxu0 %v1377
      %1411 = vmatprep.subr.bf16.mxu0 0
      %1412 = vmatpush1.bf16.msra.mxu0 0
      %1413 = vmatprep.subr.bf16.mxu0 0
      %1414 = vmatpush1.bf16.msra.mxu0 0
      %1415 = vmatprep.subr.bf16.mxu0 0
      %1416 = vmatpush1.bf16.msra.mxu0 0
      %1417 = vmatprep.subr.bf16.mxu0 0
      %1418 = vmatpush1.bf16.msra.mxu0 0
      %1419 = vmatprep.subr.bf16.mxu0 0
      %1420 = vmatpush1.bf16.msra.mxu0 0
      %1421 = vmatprep.subr.bf16.mxu0 0
      %1422 = vmatpush1.bf16.msra.mxu0 0
      %1423 = vmatprep.subr.bf16.mxu0 0
      %1424 = vmatpush1.bf16.msra.mxu0 0
      %1425 = vmatprep.subr.bf16.mxu0 0
      %1426 = vmatpush1.bf16.msra.mxu0 0
      %1427 = vmatprep.subr.bf16.mxu0 0
      %1428 = vmatpush1.bf16.msra.mxu0 0
      %1429 = vmatprep.subr.bf16.mxu0 0
      %1430 = vmatpush1.bf16.msra.mxu0 0
      %1431 = vmatprep.subr.bf16.mxu0 0
      %1432 = vmatpush1.bf16.msra.mxu0 0
      %1433 = vmatprep.subr.bf16.mxu0 0
      %1434 = vmatpush1.bf16.msra.mxu0 0
      %1435 = vmatprep.subr.bf16.mxu0 0
      %1436 = vmatpush1.bf16.msra.mxu0 0
      %1437 = vmatprep.mubr.bf16.mxu0 0
      %1438 = vmatmul.mubr.bf16.gmra.mrb[0].mxu0 %v1382
      %v1439 = vpop.f32.mrb[0].mxu0
      %v1440 = vadd.f32 0.0, %v1439
      %v1441 = vpop.f32.mrb[0].mxu0
      %v1442 = vpop.f32.mrb[0].mxu0
      %v1443 = vadd.f32 0.0, %v1442
      %v1444 = vpop.f32.mrb[0].mxu0
      %1445 = vmatprep.mubr.bf16.mxu0 0
      %1446 = vmatmul.mubr.bf16.gmra.mrb[0].mxu0 %v1385
      %v1447 = vpop.f32.mrb[0].mxu0
      %v1448 = vadd.f32 0.0, %v1447
      %v1449 = vpop.f32.mrb[0].mxu0
      %v1450 = vpop.f32.mrb[0].mxu0
      %v1451 = vadd.f32 0.0, %v1450
      %v1452 = vpop.f32.mrb[0].mxu0
      %1453 = vmatprep.mubr.bf16.mxu0 0
      %1454 = vmatmul.mubr.bf16.gmra.mrb[0].mxu0 %v1388
      %v1455 = vpop.f32.mrb[0].mxu0
      %v1456 = vadd.f32 0.0, %v1455
      %v1457 = vpop.f32.mrb[0].mxu0
      %v1458 = vpop.f32.mrb[0].mxu0
      %v1459 = vadd.f32 0.0, %v1458
      %v1460 = vpop.f32.mrb[0].mxu0
      %1461 = vmatprep.mubr.bf16.mxu0 0
      %1462 = vmatmul.mubr.bf16.gmra.mrb[0].mxu0 %v1391
      %v1463 = vpop.f32.mrb[0].mxu0
      %v1464 = vadd.f32 0.0, %v1463
      %v1465 = vpop.f32.mrb[0].mxu0
      %v1466 = vpop.f32.mrb[0].mxu0
      %v1467 = vadd.f32 0.0, %v1466
      %v1468 = vpop.f32.mrb[0].mxu0
      %1469 = vmatprep.mubr.bf16.mxu0 0
      %1470 = vmatmul.mubr.bf16.gmra.mrb[0].mxu0 %v1394
      %v1471 = vpop.f32.mrb[0].mxu0
      %v1472 = vadd.f32 0.0, %v1471
      %v1473 = vpop.f32.mrb[0].mxu0
      %v1474 = vpop.f32.mrb[0].mxu0
      %v1475 = vadd.f32 0.0, %v1474
      %v1476 = vpop.f32.mrb[0].mxu0
      %1477 = vmatprep.mubr.bf16.mxu0 0
      %1478 = vmatmul.mubr.bf16.gmra.mrb[0].mxu0 %v1397
      %v1479 = vpop.f32.mrb[0].mxu0
      %v1480 = vadd.f32 0.0, %v1479
      %v1481 = vpop.f32.mrb[0].mxu0
      %v1482 = vpop.f32.mrb[0].mxu0
      %v1483 = vadd.f32 0.0, %v1482
      %v1484 = vpop.f32.mrb[0].mxu0
      %1485 = vmatprep.mubr.bf16.mxu0 0
      %1486 = vmatmul.mubr.bf16.gmra.mrb[0].mxu0 %v1400
      %v1487 = vpop.f32.mrb[0].mxu0
      %v1488 = vadd.f32 0.0, %v1487
      %v1489 = vpop.f32.mrb[0].mxu0
      %v1490 = vpop.f32.mrb[0].mxu0
      %v1491 = vadd.f32 0.0, %v1490
      %v1492 = vpop.f32.mrb[0].mxu0
      %1493 = vmatprep.mubr.bf16.mxu0 0
      %1494 = vmatmul.mubr.bf16.gmra.mrb[0].mxu0 %v1403
      %v1495 = vpop.f32.mrb[0].mxu0
      %v1496 = vadd.f32 0.0, %v1495
      %v1497 = vpop.f32.mrb[0].mxu0
      %v1498 = vpop.f32.mrb[0].mxu0
      %v1499 = vadd.f32 0.0, %v1498
      %v1500 = vpop.f32.mrb[0].mxu0
      %1501 = vdwg.mxu0
      %v1508 = vunpack.c.l.b16 %v1350
      %v1509 = vunpack.c.l.b16 %v1351
      %v1510 = vunpack.c.l.b16 %v1352
      %v1511 = vunpack.c.l.b16 %v1353
      %v1512 = vunpack.c.l.b16 %v1354
      %v1513 = vunpack.c.l.b16 %v1355
      %v1514 = vpack.c.b16 %v1509, %v1508
      %v1515 = vpack.c.b16 %v1511, %v1510
      %v1516 = vpack.c.b16 %v1513, %v1512
      %v1521 = vsel %vm994, 0, 0
      %1523 = vmatprep.subr.bf16.mxu0 0
      %1524 = vmatpush1.bf16.msra.mxu0 %v1514
      %1525 = vmatprep.subr.bf16.mxu0 0
      %1526 = vmatpush1.bf16.msra.mxu0 %v1515
      %1527 = vmatprep.subr.bf16.mxu0 0
      %1528 = vmatpush1.bf16.msra.mxu0 %v1516
      %1529 = vmatprep.subr.bf16.mxu0 0
      %1530 = vmatpush1.bf16.msra.mxu0 0
      %1531 = vmatprep.subr.bf16.mxu0 0
      %1532 = vmatpush1.bf16.msra.mxu0 0
      %1533 = vmatprep.subr.bf16.mxu0 0
      %1534 = vmatpush1.bf16.msra.mxu0 0
      %1535 = vmatprep.subr.bf16.mxu0 0
      %1536 = vmatpush1.bf16.msra.mxu0 0
      %1537 = vmatprep.subr.bf16.mxu0 0
      %1538 = vmatpush1.bf16.msra.mxu0 0
      %1539 = vmatprep.subr.bf16.mxu0 0
      %1540 = vmatpush1.bf16.msra.mxu0 0
      %1541 = vmatprep.subr.bf16.mxu0 0
      %1542 = vmatpush1.bf16.msra.mxu0 0
      %1543 = vmatprep.subr.bf16.mxu0 0
      %1544 = vmatpush1.bf16.msra.mxu0 0
      %1545 = vmatprep.subr.bf16.mxu0 0
      %1546 = vmatpush1.bf16.msra.mxu0 0
      %1547 = vmatprep.subr.bf16.mxu0 0
      %1548 = vmatpush1.bf16.msra.mxu0 0
      %1549 = vmatprep.subr.bf16.mxu0 0
      %1550 = vmatpush1.bf16.msra.mxu0 0
      %1551 = vmatprep.subr.bf16.mxu0 0
      %1552 = vmatpush1.bf16.msra.mxu0 0
      %1553 = vmatprep.subr.bf16.mxu0 0
      %1554 = vmatpush1.bf16.msra.mxu0 0
      %1555 = vmatprep.mubr.bf16.mxu0 0
      %1556 = vmatmul.mubr.bf16.gmra.mrb[0].mxu0 %v1521
      %v1557 = vpop.f32.mrb[0].mxu0
      %v1558 = vadd.f32 %v1440, %v1557
      %v1559 = vpop.f32.mrb[0].mxu0
      %v1560 = vpop.f32.mrb[0].mxu0
      %v1561 = vadd.f32 %v1443, %v1560
      %v1562 = vpop.f32.mrb[0].mxu0
      %1563 = vmatprep.mubr.bf16.mxu0 0
      %1564 = vmatmul.mubr.bf16.gmra.mrb[0].mxu0 %v1521
      %v1565 = vpop.f32.mrb[0].mxu0
      %v1566 = vadd.f32 %v1448, %v1565
      %v1567 = vpop.f32.mrb[0].mxu0
      %v1568 = vpop.f32.mrb[0].mxu0
      %v1569 = vadd.f32 %v1451, %v1568
      %v1570 = vpop.f32.mrb[0].mxu0
      %1571 = vmatprep.mubr.bf16.mxu0 0
      %1572 = vmatmul.mubr.bf16.gmra.mrb[0].mxu0 %v1521
      %v1573 = vpop.f32.mrb[0].mxu0
      %v1574 = vadd.f32 %v1456, %v1573
      %v1575 = vpop.f32.mrb[0].mxu0
      %v1576 = vpop.f32.mrb[0].mxu0
      %v1577 = vadd.f32 %v1459, %v1576
      %v1578 = vpop.f32.mrb[0].mxu0
      %1579 = vmatprep.mubr.bf16.mxu0 0
      %1580 = vmatmul.mubr.bf16.gmra.mrb[0].mxu0 %v1521
      %v1581 = vpop.f32.mrb[0].mxu0
      %v1582 = vadd.f32 %v1464, %v1581
      %v1583 = vpop.f32.mrb[0].mxu0
      %v1584 = vpop.f32.mrb[0].mxu0
      %v1585 = vadd.f32 %v1467, %v1584
      %v1586 = vpop.f32.mrb[0].mxu0
      %1587 = vmatprep.mubr.bf16.mxu0 0
      %1588 = vmatmul.mubr.bf16.gmra.mrb[0].mxu0 %v1382
      %v1589 = vpop.f32.mrb[0].mxu0
      %v1590 = vadd.f32 %v1472, %v1589
      %v1591 = vpop.f32.mrb[0].mxu0
      %v1592 = vpop.f32.mrb[0].mxu0
      %v1593 = vadd.f32 %v1475, %v1592
      %v1594 = vpop.f32.mrb[0].mxu0
      %1595 = vmatprep.mubr.bf16.mxu0 0
      %1596 = vmatmul.mubr.bf16.gmra.mrb[0].mxu0 %v1385
      %v1597 = vpop.f32.mrb[0].mxu0
      %v1598 = vadd.f32 %v1480, %v1597
      %v1599 = vpop.f32.mrb[0].mxu0
      %v1600 = vpop.f32.mrb[0].mxu0
      %v1601 = vadd.f32 %v1483, %v1600
      %v1602 = vpop.f32.mrb[0].mxu0
      %1603 = vmatprep.mubr.bf16.mxu0 0
      %1604 = vmatmul.mubr.bf16.gmra.mrb[0].mxu0 %v1388
      %v1605 = vpop.f32.mrb[0].mxu0
      %v1606 = vadd.f32 %v1488, %v1605
      %v1607 = vpop.f32.mrb[0].mxu0
      %v1608 = vpop.f32.mrb[0].mxu0
      %v1609 = vadd.f32 %v1491, %v1608
      %v1610 = vpop.f32.mrb[0].mxu0
      %1611 = vmatprep.mubr.bf16.mxu0 0
      %1612 = vmatmul.mubr.bf16.gmra.mrb[0].mxu0 %v1391
      %v1613 = vpop.f32.mrb[0].mxu0
      %v1614 = vadd.f32 %v1496, %v1613
      %v1615 = vpop.f32.mrb[0].mxu0
      %v1616 = vpop.f32.mrb[0].mxu0
      %v1617 = vadd.f32 %v1499, %v1616
      %v1618 = vpop.f32.mrb[0].mxu0
      %1619 = vdwg.mxu0
      %s1620 = scalar_lea.vmem %s4, 48
      %v1621 = vld [vmem:[%s1620] sm:$0xf]
      %v1622 = vld [vmem:[%s1620 + $0x4] sm:$0xf]
      %v1623 = vld [vmem:[%s1620 + $0x8] sm:$0xf]
      %v1624 = vld [vmem:[%s1620 + $0xc] sm:$0xf]
      %v1625 = vld [vmem:[%s1620 + $0x10] sm:$0xf]
      %v1626 = vld [vmem:[%s1620 + $0x14] sm:$0xf]
      %v1633 = vunpack.c.l.b16 %v1621
      %v1634 = vunpack.c.l.b16 %v1622
      %v1635 = vunpack.c.l.b16 %v1623
      %v1636 = vunpack.c.l.b16 %v1624
      %v1637 = vunpack.c.l.b16 %v1625
      %v1638 = vunpack.c.l.b16 %v1626
      %v1639 = vpack.c.b16 %v1634, %v1633
      %v1640 = vpack.c.b16 %v1636, %v1635
      %v1641 = vpack.c.b16 %v1638, %v1637
      %1645 = vmatprep.subr.bf16.mxu0 0
      %1646 = vmatpush1.bf16.msra.mxu0 %v1639
      %1647 = vmatprep.subr.bf16.mxu0 0
      %1648 = vmatpush1.bf16.msra.mxu0 %v1640
      %1649 = vmatprep.subr.bf16.mxu0 0
      %1650 = vmatpush1.bf16.msra.mxu0 %v1641
      %1651 = vmatprep.subr.bf16.mxu0 0
      %1652 = vmatpush1.bf16.msra.mxu0 0
      %1653 = vmatprep.subr.bf16.mxu0 0
      %1654 = vmatpush1.bf16.msra.mxu0 0
      %1655 = vmatprep.subr.bf16.mxu0 0
      %1656 = vmatpush1.bf16.msra.mxu0 0
      %1657 = vmatprep.subr.bf16.mxu0 0
      %1658 = vmatpush1.bf16.msra.mxu0 0
      %1659 = vmatprep.subr.bf16.mxu0 0
      %1660 = vmatpush1.bf16.msra.mxu0 0
      %1661 = vmatprep.subr.bf16.mxu0 0
      %1662 = vmatpush1.bf16.msra.mxu0 0
      %1663 = vmatprep.subr.bf16.mxu0 0
      %1664 = vmatpush1.bf16.msra.mxu0 0
      %1665 = vmatprep.subr.bf16.mxu0 0
      %1666 = vmatpush1.bf16.msra.mxu0 0
      %1667 = vmatprep.subr.bf16.mxu0 0
      %1668 = vmatpush1.bf16.msra.mxu0 0
      %1669 = vmatprep.subr.bf16.mxu0 0
      %1670 = vmatpush1.bf16.msra.mxu0 0
      %1671 = vmatprep.subr.bf16.mxu0 0
      %1672 = vmatpush1.bf16.msra.mxu0 0
      %1673 = vmatprep.subr.bf16.mxu0 0
      %1674 = vmatpush1.bf16.msra.mxu0 0
      %1675 = vmatprep.subr.bf16.mxu0 0
      %1676 = vmatpush1.bf16.msra.mxu0 0
      %1677 = vmatprep.mubr.bf16.mxu0 0
      %1678 = vmatmul.mubr.bf16.gmra.mrb[0].mxu0 %v1394
      %v1679 = vpop.f32.mrb[0].mxu0
      %v1680 = vadd.f32 0.0, %v1679
      %v1681 = vpop.f32.mrb[0].mxu0
      %v1682 = vpop.f32.mrb[0].mxu0
      %v1683 = vadd.f32 0.0, %v1682
      %v1684 = vpop.f32.mrb[0].mxu0
      %1685 = vmatprep.mubr.bf16.mxu0 0
      %1686 = vmatmul.mubr.bf16.gmra.mrb[0].mxu0 %v1397
      %v1687 = vpop.f32.mrb[0].mxu0
      %v1688 = vadd.f32 0.0, %v1687
      %v1689 = vpop.f32.mrb[0].mxu0
      %v1690 = vpop.f32.mrb[0].mxu0
      %v1691 = vadd.f32 0.0, %v1690
      %v1692 = vpop.f32.mrb[0].mxu0
      %1693 = vmatprep.mubr.bf16.mxu0 0
      %1694 = vmatmul.mubr.bf16.gmra.mrb[0].mxu0 %v1400
      %v1695 = vpop.f32.mrb[0].mxu0
      %v1696 = vadd.f32 0.0, %v1695
      %v1697 = vpop.f32.mrb[0].mxu0
      %v1698 = vpop.f32.mrb[0].mxu0
      %v1699 = vadd.f32 0.0, %v1698
      %v1700 = vpop.f32.mrb[0].mxu0
      %1701 = vmatprep.mubr.bf16.mxu0 0
      %1702 = vmatmul.mubr.bf16.gmra.mrb[0].mxu0 %v1403
      %v1703 = vpop.f32.mrb[0].mxu0
      %v1704 = vadd.f32 0.0, %v1703
      %v1705 = vpop.f32.mrb[0].mxu0
      %v1706 = vpop.f32.mrb[0].mxu0
      %v1707 = vadd.f32 0.0, %v1706
      %v1708 = vpop.f32.mrb[0].mxu0
      %1709 = vmatprep.mubr.bf16.mxu0 0
      %1710 = vmatmul.mubr.bf16.gmra.mrb[0].mxu0 %v1521
      %v1711 = vpop.f32.mrb[0].mxu0
      %v1712 = vadd.f32 0.0, %v1711
      %v1713 = vpop.f32.mrb[0].mxu0
      %v1714 = vpop.f32.mrb[0].mxu0
      %v1715 = vadd.f32 0.0, %v1714
      %v1716 = vpop.f32.mrb[0].mxu0
      %1717 = vmatprep.mubr.bf16.mxu0 0
      %1718 = vmatmul.mubr.bf16.gmra.mrb[0].mxu0 %v1521
      %v1719 = vpop.f32.mrb[0].mxu0
      %v1720 = vadd.f32 0.0, %v1719
      %v1721 = vpop.f32.mrb[0].mxu0
      %v1722 = vpop.f32.mrb[0].mxu0
      %v1723 = vadd.f32 0.0, %v1722
      %v1724 = vpop.f32.mrb[0].mxu0
      %1725 = vmatprep.mubr.bf16.mxu0 0
      %1726 = vmatmul.mubr.bf16.gmra.mrb[0].mxu0 %v1521
      %v1727 = vpop.f32.mrb[0].mxu0
      %v1728 = vadd.f32 0.0, %v1727
      %v1729 = vpop.f32.mrb[0].mxu0
      %v1730 = vpop.f32.mrb[0].mxu0
      %v1731 = vadd.f32 0.0, %v1730
      %v1732 = vpop.f32.mrb[0].mxu0
      %1733 = vmatprep.mubr.bf16.mxu0 0
      %1734 = vmatmul.mubr.bf16.gmra.mrb[0].mxu0 %v1521
      %v1735 = vpop.f32.mrb[0].mxu0
      %v1736 = vadd.f32 0.0, %v1735
      %v1737 = vpop.f32.mrb[0].mxu0
      %v1738 = vpop.f32.mrb[0].mxu0
      %v1739 = vadd.f32 0.0, %v1738
      %v1740 = vpop.f32.mrb[0].mxu0
      %1741 = vdwg.mxu0
      %v1742 = vadd.f32 %v1558, %v1680
      %v1743 = vadd.f32 %v1561, %v1683
      %v1744 = vadd.f32 %v1566, %v1688
      %v1745 = vadd.f32 %v1569, %v1691
      %v1746 = vadd.f32 %v1574, %v1696
      %v1747 = vadd.f32 %v1577, %v1699
      %v1748 = vadd.f32 %v1582, %v1704
      %v1749 = vadd.f32 %v1585, %v1707
      %v1750 = vadd.f32 %v1590, %v1712
      %v1751 = vadd.f32 %v1593, %v1715
      %v1752 = vadd.f32 %v1598, %v1720
      %v1753 = vadd.f32 %v1601, %v1723
      %v1754 = vadd.f32 %v1606, %v1728
      %v1755 = vadd.f32 %v1609, %v1731
      %v1756 = vadd.f32 %v1614, %v1736
      %v1757 = vadd.f32 %v1617, %v1739
      %v1758 = vld [vmem:[%s5] sm:$0x1]
      %v1760 = vlaneseq
      %v1761 = vshrl.u32 %v1760, 7
      %v1762 = vsub.s32 0, %v1761
      %v1763 = vrot.slane %v1758, %v1762
      %v1765 = vmul.f32 %v1742, %v1763
      %v1766 = vmul.f32 %v1743, %v1763
      %v1767 = vmul.f32 %v1744, %v1763
      %v1768 = vmul.f32 %v1745, %v1763
      %v1769 = vmul.f32 %v1746, %v1763
      %v1770 = vmul.f32 %v1747, %v1763
      %v1771 = vmul.f32 %v1748, %v1763
      %v1772 = vmul.f32 %v1749, %v1763
      %v1773 = vmul.f32 %v1750, %v1763
      %v1774 = vmul.f32 %v1751, %v1763
      %v1775 = vmul.f32 %v1752, %v1763
      %v1776 = vmul.f32 %v1753, %v1763
      %v1777 = vmul.f32 %v1754, %v1763
      %v1778 = vmul.f32 %v1755, %v1763
      %v1779 = vmul.f32 %v1756, %v1763
      %v1780 = vmul.f32 %v1757, %v1763
      %v1781 = vld [vmem:[%s6] sm:$0x1]
      %v1783 = vlaneseq
      %v1784 = vshrl.u32 %v1783, 7
      %v1785 = vsub.s32 0, %v1784
      %v1786 = vrot.slane %v1781, %v1785
      %v1788 = vadd.f32 %v1765, %v1786
      %v1789 = vadd.f32 %v1766, %v1786
      %v1790 = vadd.f32 %v1767, %v1786
      %v1791 = vadd.f32 %v1768, %v1786
      %v1792 = vadd.f32 %v1769, %v1786
      %v1793 = vadd.f32 %v1770, %v1786
      %v1794 = vadd.f32 %v1771, %v1786
      %v1795 = vadd.f32 %v1772, %v1786
      %v1796 = vadd.f32 %v1773, %v1786
      %v1797 = vadd.f32 %v1774, %v1786
      %v1798 = vadd.f32 %v1775, %v1786
      %v1799 = vadd.f32 %v1776, %v1786
      %v1800 = vadd.f32 %v1777, %v1786
      %v1801 = vadd.f32 %v1778, %v1786
      %v1802 = vadd.f32 %v1779, %v1786
      %v1803 = vadd.f32 %v1780, %v1786
      %v1804 = vmax.f32 %v1788, 0.0
      %v1805 = vmax.f32 %v1789, 0.0
      %v1806 = vmax.f32 %v1790, 0.0
      %v1807 = vmax.f32 %v1791, 0.0
      %v1808 = vmax.f32 %v1792, 0.0
      %v1809 = vmax.f32 %v1793, 0.0
      %v1810 = vmax.f32 %v1794, 0.0
      %v1811 = vmax.f32 %v1795, 0.0
      %v1812 = vmax.f32 %v1796, 0.0
      %v1813 = vmax.f32 %v1797, 0.0
      %v1814 = vmax.f32 %v1798, 0.0
      %v1815 = vmax.f32 %v1799, 0.0
      %v1816 = vmax.f32 %v1800, 0.0
      %v1817 = vmax.f32 %v1801, 0.0
      %v1818 = vmax.f32 %v1802, 0.0
      %v1819 = vmax.f32 %v1803, 0.0
      %v1820 = vpack.c.bf16 %v1804, %v1804
      %v1821 = vpack.c.bf16 %v1805, %v1805
      %v1822 = vpack.c.bf16 %v1806, %v1806
      %v1823 = vpack.c.bf16 %v1807, %v1807
      %v1824 = vpack.c.bf16 %v1808, %v1808
      %v1825 = vpack.c.bf16 %v1809, %v1809
      %v1826 = vpack.c.bf16 %v1810, %v1810
      %v1827 = vpack.c.bf16 %v1811, %v1811
      %v1828 = vpack.c.bf16 %v1812, %v1812
      %v1829 = vpack.c.bf16 %v1813, %v1813
      %v1830 = vpack.c.bf16 %v1814, %v1814
      %v1831 = vpack.c.bf16 %v1815, %v1815
      %v1832 = vpack.c.bf16 %v1816, %v1816
      %v1833 = vpack.c.bf16 %v1817, %v1817
      %v1834 = vpack.c.bf16 %v1818, %v1818
      %v1835 = vpack.c.bf16 %v1819, %v1819
      %vm1836 = vcmask 388096
      %1837 = vst.msk [vmem:[%s278] sm:$0xf] %vm1836, %v1820
      %1838 = vst.msk [vmem:[%s278 + $0x4] sm:$0xf] %vm1836, %v1821
      %1839 = vst.msk [vmem:[%s278 + $0x8] sm:$0xf] %vm1836, %v1822
      %1840 = vst.msk [vmem:[%s278 + $0xc] sm:$0xf] %vm1836, %v1823
      %1841 = vst.msk [vmem:[%s278 + $0x10] sm:$0xf] %vm1836, %v1824
      %1842 = vst.msk [vmem:[%s278 + $0x14] sm:$0xf] %vm1836, %v1825
      %1843 = vst.msk [vmem:[%s278 + $0x18] sm:$0xf] %vm1836, %v1826
      %1844 = vst.msk [vmem:[%s278 + $0x1c] sm:$0xf] %vm1836, %v1827
      %1845 = vst.msk [vmem:[%s278 + $0x20] sm:$0xf] %vm1836, %v1828
      %1846 = vst.msk [vmem:[%s278 + $0x24] sm:$0xf] %vm1836, %v1829
      %1847 = vst.msk [vmem:[%s278 + $0x28] sm:$0xf] %vm1836, %v1830
      %1848 = vst.msk [vmem:[%s278 + $0x2c] sm:$0xf] %vm1836, %v1831
      %1849 = vst.msk [vmem:[%s278 + $0x30] sm:$0xf] %vm1836, %v1832
      %1850 = vst.msk [vmem:[%s278 + $0x34] sm:$0xf] %vm1836, %v1833
      %1851 = vst.msk [vmem:[%s278 + $0x38] sm:$0xf] %vm1836, %v1834
      %1852 = vst.msk [vmem:[%s278 + $0x3c] sm:$0xf] %vm1836, %v1835
      %p1853 = scmp.lt.s32.totalorder %s18, 1
      %s1854 = scalar_select %p1853, %s18, 1
      %s1855 = smul.addr %s1854, 16
      %s1856 = smul.addr %s1855, 4
      %s1857 = scalar_lea.vmem %s7, %s1856
      // Predicated region
      $region49: #{mixed_4b_forward.8} parent=47 // pred_check
        %p1858 = pneg %p188
      $region50: #{mixed_4b_forward.8} parent=47 // pred_check_branch
        %1860 = sbr.rel (%p1858) target = $region52
      $region51: #{mixed_4b_forward.8} parent=47 // pred_region
        _
      $region52: #{mixed_4b_forward.8} parent=47 // pred_fallthru
        _
    $region48: #{mixed_4b_forward.8} parent=5 // pred_fallthru
      _
    %p1861 = scmp.le.s32.totalorder 2, %s13
    // Predicated region
    $region53: #{mixed_4b_forward.8} parent=5 // pred_check
      %p1862 = pneg %p1861
    $region54: #{mixed_4b_forward.8} parent=5 // pred_check_branch
      %1864 = sbr.rel (%p1862) target = $region56
    $region55: #{mixed_4b_forward.8} parent=5 // pred_region
      %s1865 = ssub.s32 %s13, 2
      // Predicated region
      $region57: #{mixed_4b_forward.8} parent=55 // pred_check
        %p1866 = pneg %p194
      $region58: #{mixed_4b_forward.8} parent=55 // pred_check_branch
        %1868 = sbr.rel (%p1866) target = $region60
      $region59: #{mixed_4b_forward.8} parent=55 // pred_region
        %p1869 = scmp.lt.s32.totalorder %s19, 1
        %s1870 = scalar_select %p1869, %s19, 1
        %s1871 = smul.addr %s1870, 16
        %s1872 = smul.addr %s1871, 4
        %s1873 = scalar_lea.vmem %s7, %s1872
      $region60: #{mixed_4b_forward.8} parent=55 // pred_fallthru
        _
    $region56: #{mixed_4b_forward.8} parent=5 // pred_fallthru
      _
  $region6: #{mixed_4b_forward.8} parent=0 // loop_footer
    %s17 = sadd.s32 1, %s13
  $region7: #{mixed_4b_forward.8} parent=0 // loop_footer_branch
    %12 = sbr.rel target = $region3
  $region8: #{mixed_4b_forward.8} parent=0 // loop_exit
    _

// kernel: mixed_4b_forward.7
$region0: #{mixed_4b_forward.7}
  #allocation0 [shape = 'u32[]', space=smem, size = 0x4, offset = 0x4, fixed_abs, tag = 'smem constant byte address 0x4 - core index']
  #allocation1 [shape = 'u32[144,128]{1,0:T(1,128)}', space=vmem, size = 0x12000, scoped, tag = 'internal scratch']
  %s0 = inlined_call_operand.vmem [shape: bf16[2,4,64,208], index: 0, kind: input, shape index: {}]
  %s1 = inlined_call_operand.vmem [shape: bf16[3,208,208], index: 1, kind: input, shape index: {}]
  %s2 = inlined_call_operand.vmem [shape: f32[1,208], index: 2, kind: input, shape index: {}]
  %s3 = inlined_call_operand.vmem [shape: f32[1,208], index: 3, kind: input, shape index: {}]
  %s4 = inlined_call_operand.vmem [shape: bf16[2,2,64,208], index: 4, kind: output, shape index: {}]
  %s5 = sld [smem:[#allocation0]]
  $region121: #{mixed_4b_forward.7} parent=0
    _
  %s7 = ssub.s32 1, %s5
  %s8 = scalar_select 0, %s7, %s5
  $region1: #{mixed_4b_forward.7} parent=0
    #allocation2 [shape = 'u8[131072]{0}', space=vmem, size = 0x20000, scoped, tag = 'input window, operand 0']
    #allocation3 [shape = 'u8[65536]{0}', space=vmem, size = 0x10000, scoped, tag = 'output window, operand 0']
    loop: start=0, step=1, limit=6
    $region2: #{mixed_4b_forward.7} parent=1 // loop_pre_header
      _
    $region3: #{mixed_4b_forward.7} parent=1 // loop_header
      %s10 = sphi 0, %s14
      %p11 = scmp.ge.s32.totalorder %s10, 6
      %s17 = sphi 0, %s29
      %s18 = sphi 0, %s25
      %s19 = sphi 0, %s17
      %s20 = sphi 0, %s18
      %s21 = sphi 0, %s19
      %s22 = sphi 0, %s20
      %s34 = sphi 0, %s36
      %s37 = sphi 0, %s34
      %s38 = sphi 0, %s37
      %s54 = sphi 0, %s38
      %s58 = sphi 0, %s58
      %s60 = sphi 0, %s58
      %s61 = sphi 0, %s60
      %s75 = sphi 0, %s61
      %s79 = sphi 0, %s79
      %s81 = sphi 0, %s79
      %s82 = sphi 0, %s81
      %s96 = sphi 0, %s82
      %s100 = sphi 0, %s100
      %s102 = sphi 0, %s100
      %s103 = sphi 0, %s102
      %s117 = sphi 0, %s103
      %s125 = sphi 0, %s127
      %s128 = sphi 0, %s125
      %s129 = sphi 0, %s128
      %s145 = sphi 0, %s129
    $region4: #{mixed_4b_forward.7} parent=1 // loop_header_branch
      %13 = sbr.rel (%p11) target = $region8
    $region5: #{mixed_4b_forward.7} parent=1 // loop_body
      %s15 = ssub.s32 %s10, 1
      %s16 = ssub.s32 %s10, 2
      %s23 = sadd.s32 1, %s18
      %p24 = scmp.ge.s32.totalorder %s23, 2
      %s25 = scalar_select %p24, 0, %s23
      %s26 = sadd.s32 1, %s17
      %s27 = scalar_select %p24, %s26, %s17
      %p28 = scmp.ge.s32.totalorder %s27, 2
      %s29 = scalar_select %p28, 0, %s27
      %s30 = ssub.s32 %s17, %s29
      %s31 = ssub.s32 %s18, %s25
      %s32 = sor.u32 %s30, %s31
      %p33 = scmp.eq.s32.totalorder %s32, 0
      %s35 = sadd.s32 %s34, 1
      %s36 = scalar_select %p33, %s34, %s35
      %p39 = pneg %p33
      %p40 = scmp.eq.s32.totalorder %s10, 3
      %p41 = por %p39, %p40
      %p42 = scmp.ne.s32.totalorder %s34, %s37
      %p43 = scmp.eq.s32.totalorder %s10, 0
      %p44 = por %p42, %p43
      %p45 = scmp.ne.s32.totalorder %s34, %s37
      %p46 = scmp.eq.s32.totalorder %s15, 3
      %p47 = por %p45, %p46
      %p48 = scmp.ne.s32.totalorder %s37, %s38
      %p49 = scmp.eq.s32.totalorder %s15, 0
      %p50 = por %p48, %p49
      %p51 = scmp.ne.s32.totalorder %s37, %s38
      %p52 = scmp.eq.s32.totalorder %s16, 3
      %p53 = por %p51, %p52
      %p55 = scmp.ne.s32.totalorder %s38, %s54
      %p56 = scmp.eq.s32.totalorder %s16, 0
      %p57 = por %p55, %p56
      %s59 = sadd.s32 %s58, 1
      %p62 = scmp.eq.s32.totalorder %s10, 3
      %p63 = scmp.ne.s32.totalorder %s58, %s60
      %p64 = scmp.eq.s32.totalorder %s10, 0
      %p65 = por %p63, %p64
      %p66 = scmp.ne.s32.totalorder %s58, %s60
      %p67 = scmp.eq.s32.totalorder %s15, 3
      %p68 = por %p66, %p67
      %p69 = scmp.ne.s32.totalorder %s60, %s61
      %p70 = scmp.eq.s32.totalorder %s15, 0
      %p71 = por %p69, %p70
      %p72 = scmp.ne.s32.totalorder %s60, %s61
      %p73 = scmp.eq.s32.totalorder %s16, 3
      %p74 = por %p72, %p73
      %p76 = scmp.ne.s32.totalorder %s61, %s75
      %p77 = scmp.eq.s32.totalorder %s16, 0
      %p78 = por %p76, %p77
      %s80 = sadd.s32 %s79, 1
      %p83 = scmp.eq.s32.totalorder %s10, 3
      %p84 = scmp.ne.s32.totalorder %s79, %s81
      %p85 = scmp.eq.s32.totalorder %s10, 0
      %p86 = por %p84, %p85
      %p87 = scmp.ne.s32.totalorder %s79, %s81
      %p88 = scmp.eq.s32.totalorder %s15, 3
      %p89 = por %p87, %p88
      %p90 = scmp.ne.s32.totalorder %s81, %s82
      %p91 = scmp.eq.s32.totalorder %s15, 0
      %p92 = por %p90, %p91
      %p93 = scmp.ne.s32.totalorder %s81, %s82
      %p94 = scmp.eq.s32.totalorder %s16, 3
      %p95 = por %p93, %p94
      %p97 = scmp.ne.s32.totalorder %s82, %s96
      %p98 = scmp.eq.s32.totalorder %s16, 0
      %p99 = por %p97, %p98
      %s101 = sadd.s32 %s100, 1
      %p104 = scmp.eq.s32.totalorder %s10, 3
      %p105 = scmp.ne.s32.totalorder %s100, %s102
      %p106 = scmp.eq.s32.totalorder %s10, 0
      %p107 = por %p105, %p106
      %p108 = scmp.ne.s32.totalorder %s100, %s102
      %p109 = scmp.eq.s32.totalorder %s15, 3
      %p110 = por %p108, %p109
      %p111 = scmp.ne.s32.totalorder %s102, %s103
      %p112 = scmp.eq.s32.totalorder %s15, 0
      %p113 = por %p111, %p112
      %p114 = scmp.ne.s32.totalorder %s102, %s103
      %p115 = scmp.eq.s32.totalorder %s16, 3
      %p116 = por %p114, %p115
      %p118 = scmp.ne.s32.totalorder %s103, %s117
      %p119 = scmp.eq.s32.totalorder %s16, 0
      %p120 = por %p118, %p119
      %s121 = ssub.s32 %s17, %s29
      %s122 = ssub.s32 %s18, %s25
      %s123 = sor.u32 %s121, %s122
      %p124 = scmp.eq.s32.totalorder %s123, 0
      %s126 = sadd.s32 %s125, 1
      %s127 = scalar_select %p124, %s125, %s126
      %p130 = pneg %p124
      %p131 = scmp.eq.s32.totalorder %s10, 3
      %p132 = por %p130, %p131
      %p133 = scmp.ne.s32.totalorder %s125, %s128
      %p134 = scmp.eq.s32.totalorder %s10, 0
      %p135 = por %p133, %p134
      %p136 = scmp.ne.s32.totalorder %s125, %s128
      %p137 = scmp.eq.s32.totalorder %s15, 3
      %p138 = por %p136, %p137
      %p139 = scmp.ne.s32.totalorder %s128, %s129
      %p140 = scmp.eq.s32.totalorder %s15, 0
      %p141 = por %p139, %p140
      %p142 = scmp.ne.s32.totalorder %s128, %s129
      %p143 = scmp.eq.s32.totalorder %s16, 3
      %p144 = por %p142, %p143
      %p146 = scmp.ne.s32.totalorder %s129, %s145
      %p147 = scmp.eq.s32.totalorder %s16, 0
      %p148 = por %p146, %p147
      %p149 = scmp.le.s32.totalorder 1, %s10
      %p150 = scmp.lt.s32.totalorder %s10, 5
      %p151 = pnand %p149, %p150
      %p152 = pneg %p151
      // Predicated region
      $region9: #{mixed_4b_forward.7} parent=5 // pred_check
        _
      $region10: #{mixed_4b_forward.7} parent=5 // pred_check_branch
        %154 = sbr.rel (%p151) target = $region12
      $region11: #{mixed_4b_forward.7} parent=5 // pred_region
        %s155 = ssub.s32 %s10, 1
        // Predicated region
        $region13: #{mixed_4b_forward.7} parent=11 // pred_check
          %p156 = pneg %p71
        $region14: #{mixed_4b_forward.7} parent=11 // pred_check_branch
          %158 = sbr.rel (%p156) target = $region16
        $region15: #{mixed_4b_forward.7} parent=11 // pred_region
          _
        $region16: #{mixed_4b_forward.7} parent=11 // pred_fallthru
          _
        // Predicated region
        $region17: #{mixed_4b_forward.7} parent=11 // pred_check
          %p159 = pneg %p92
        $region18: #{mixed_4b_forward.7} parent=11 // pred_check_branch
          %161 = sbr.rel (%p159) target = $region20
        $region19: #{mixed_4b_forward.7} parent=11 // pred_region
          _
        $region20: #{mixed_4b_forward.7} parent=11 // pred_fallthru
          _
        // Predicated region
        $region21: #{mixed_4b_forward.7} parent=11 // pred_check
          %p162 = pneg %p113
        $region22: #{mixed_4b_forward.7} parent=11 // pred_check_branch
          %164 = sbr.rel (%p162) target = $region24
        $region23: #{mixed_4b_forward.7} parent=11 // pred_region
          _
        $region24: #{mixed_4b_forward.7} parent=11 // pred_fallthru
          _
      $region12: #{mixed_4b_forward.7} parent=5 // pred_fallthru
        _
      %p165 = scmp.lt.s32.totalorder %s10, 4
      // Predicated region
      $region25: #{mixed_4b_forward.7} parent=5 // pred_check
        %p166 = pneg %p165
      $region26: #{mixed_4b_forward.7} parent=5 // pred_check_branch
        %168 = sbr.rel (%p166) target = $region28
      $region27: #{mixed_4b_forward.7} parent=5 // pred_region
        // Predicated region
        $region29: #{mixed_4b_forward.7} parent=27 // pred_check
          %p169 = pneg %p44
        $region30: #{mixed_4b_forward.7} parent=27 // pred_check_branch
          %171 = sbr.rel (%p169) target = $region32
        $region31: #{mixed_4b_forward.7} parent=27 // pred_region
          %s172 = sand.u32 %s34, 1
          %s173 = sand.u32 %s34, 1
          %s174 = smul.addr %s173, 128
          %s175 = scalar_lea.vmem [#allocation2], %s174
          %s176 = smul.u32 4, %s18
          %s177 = smul.addr %s176, 2
          %s178 = smul.addr %s17, 64
          %s179 = sadd.s32 %s177, %s178
          %s180 = smul.addr %s179, 4
          %s181 = scalar_lea.vmem %s0, %s180
          // Predicated region
          $region33: #{mixed_4b_forward.7} parent=31 // pred_check
            _
          $region34: #{mixed_4b_forward.7} parent=31 // pred_check_branch
            %183 = sbr.rel (0) target = $region36
          $region35: #{mixed_4b_forward.7} parent=31 // pred_region
            // Predicated region
            $region37: #{mixed_4b_forward.7} parent=35 // pred_check
              _
            $region38: #{mixed_4b_forward.7} parent=35 // pred_check_branch
              %185 = sbr.rel (0) target = $region40
            $region39: #{mixed_4b_forward.7} parent=35 // pred_region
              // Predicated region
              $region52: #{mixed_4b_forward.7} parent=39 // pred_check
                _
              $region53: #{mixed_4b_forward.7} parent=39 // pred_check_branch
                %230 = sbr.rel (0) target = $region55
              $region54: #{mixed_4b_forward.7} parent=39 // pred_region
                loop: start=0, step=1, limit=1
                $region56: #{mixed_4b_forward.7} parent=54 // loop_pre_header
                  _
                $region57: #{mixed_4b_forward.7} parent=54 // loop_header
                  %s232 = sphi 0, %s236
                  %p233 = scmp.ge.s32.totalorder %s232, 1
                  %s237 = sphi %s181, %s181
                  %s238 = sphi %s175, %s175
                $region58: #{mixed_4b_forward.7} parent=54 // loop_header_branch
                  %235 = sbr.rel (%p233) target = $region62
                $region59: #{mixed_4b_forward.7} parent=54 // loop_body
                  %v239 = vld [vmem:[%s237] sm:$0xff]
                  %240 = vst [vmem:[%s238] sm:$0xff] %v239
                  %v241 = vld [vmem:[%s237 + $0x8] sm:$0xff]
                  %242 = vst [vmem:[%s238 + $0x8] sm:$0xff] %v241
                  %v243 = vld [vmem:[%s237 + $0x10] sm:$0xff]
                  %244 = vst [vmem:[%s238 + $0x10] sm:$0xff] %v243
                  %v245 = vld [vmem:[%s237 + $0x18] sm:$0xff]
                  %246 = vst [vmem:[%s238 + $0x18] sm:$0xff] %v245
                  %v247 = vld [vmem:[%s237 + $0x40] sm:$0xff]
                  %248 = vst [vmem:[%s238 + $0x20] sm:$0xff] %v247
                  %v249 = vld [vmem:[%s237 + $0x48] sm:$0xff]
                  %250 = vst [vmem:[%s238 + $0x28] sm:$0xff] %v249
                  %v251 = vld [vmem:[%s237 + $0x50] sm:$0xff]
                  %252 = vst [vmem:[%s238 + $0x30] sm:$0xff] %v251
                  %v253 = vld [vmem:[%s237 + $0x58] sm:$0xff]
                  %254 = vst [vmem:[%s238 + $0x38] sm:$0xff] %v253
                  %v255 = vld [vmem:[%s237 + $0x80] sm:$0xff]
                  %256 = vst [vmem:[%s238 + $0x40] sm:$0xff] %v255
                  %v257 = vld [vmem:[%s237 + $0x88] sm:$0xff]
                  %258 = vst [vmem:[%s238 + $0x48] sm:$0xff] %v257
                  %v259 = vld [vmem:[%s237 + $0x90] sm:$0xff]
                  %260 = vst [vmem:[%s238 + $0x50] sm:$0xff] %v259
                  %v261 = vld [vmem:[%s237 + $0x98] sm:$0xff]
                  %262 = vst [vmem:[%s238 + $0x58] sm:$0xff] %v261
                  %v263 = vld [vmem:[%s237 + $0xc0] sm:$0xff]
                  %264 = vst [vmem:[%s238 + $0x60] sm:$0xff] %v263
                  %v265 = vld [vmem:[%s237 + $0xc8] sm:$0xff]
                  %266 = vst [vmem:[%s238 + $0x68] sm:$0xff] %v265
                  %v267 = vld [vmem:[%s237 + $0xd0] sm:$0xff]
                  %268 = vst [vmem:[%s238 + $0x70] sm:$0xff] %v267
                  %v269 = vld [vmem:[%s237 + $0xd8] sm:$0xff]
                  %270 = vst [vmem:[%s238 + $0x78] sm:$0xff] %v269
                $region60: #{mixed_4b_forward.7} parent=54 // loop_footer
                  %s236 = sadd.s32 1, %s232
                $region61: #{mixed_4b_forward.7} parent=54 // loop_footer_branch
                  %231 = sbr.rel target = $region57
                $region62: #{mixed_4b_forward.7} parent=54 // loop_exit
                  _
              $region55: #{mixed_4b_forward.7} parent=39 // pred_fallthru
                _
              // Predicated region
              $region63: #{mixed_4b_forward.7} parent=39 // pred_check
                _
              $region64: #{mixed_4b_forward.7} parent=39 // pred_check_branch
                %272 = sbr.rel target = $region66
              $region65: #{mixed_4b_forward.7} parent=39 // pred_region
                _
              $region66: #{mixed_4b_forward.7} parent=39 // pred_fallthru
                _
            $region40: #{mixed_4b_forward.7} parent=35 // pred_fallthru
              _
            // Predicated region
            $region41: #{mixed_4b_forward.7} parent=35 // pred_check
              _
            $region42: #{mixed_4b_forward.7} parent=35 // pred_check_branch
              %187 = sbr.rel target = $region44
            $region43: #{mixed_4b_forward.7} parent=35 // pred_region
              loop: start=0, step=1, limit=1
              $region45: #{mixed_4b_forward.7} parent=43 // loop_pre_header
                _
              $region46: #{mixed_4b_forward.7} parent=43 // loop_header
                %s190 = sphi 0, %s194
                %p191 = scmp.ge.s32.totalorder %s190, 1
                %s195 = sphi %s181, %s181
                %s196 = sphi %s175, %s175
              $region47: #{mixed_4b_forward.7} parent=43 // loop_header_branch
                %193 = sbr.rel (%p191) target = $region51
              $region48: #{mixed_4b_forward.7} parent=43 // loop_body
                %v197 = vld [vmem:[%s195] sm:$0xff]
                %198 = vst [vmem:[%s196] sm:$0xff] %v197
                %v199 = vld [vmem:[%s195 + $0x8] sm:$0xff]
                %200 = vst [vmem:[%s196 + $0x8] sm:$0xff] %v199
                %v201 = vld [vmem:[%s195 + $0x10] sm:$0xff]
                %202 = vst [vmem:[%s196 + $0x10] sm:$0xff] %v201
                %v203 = vld [vmem:[%s195 + $0x18] sm:$0xff]
                %204 = vst [vmem:[%s196 + $0x18] sm:$0xff] %v203
                %v205 = vld [vmem:[%s195 + $0x40] sm:$0xff]
                %206 = vst [vmem:[%s196 + $0x20] sm:$0xff] %v205
                %v207 = vld [vmem:[%s195 + $0x48] sm:$0xff]
                %208 = vst [vmem:[%s196 + $0x28] sm:$0xff] %v207
                %v209 = vld [vmem:[%s195 + $0x50] sm:$0xff]
                %210 = vst [vmem:[%s196 + $0x30] sm:$0xff] %v209
                %v211 = vld [vmem:[%s195 + $0x58] sm:$0xff]
                %212 = vst [vmem:[%s196 + $0x38] sm:$0xff] %v211
                %v213 = vld [vmem:[%s195 + $0x80] sm:$0xff]
                %214 = vst [vmem:[%s196 + $0x40] sm:$0xff] %v213
                %v215 = vld [vmem:[%s195 + $0x88] sm:$0xff]
                %216 = vst [vmem:[%s196 + $0x48] sm:$0xff] %v215
                %v217 = vld [vmem:[%s195 + $0x90] sm:$0xff]
                %218 = vst [vmem:[%s196 + $0x50] sm:$0xff] %v217
                %v219 = vld [vmem:[%s195 + $0x98] sm:$0xff]
                %220 = vst [vmem:[%s196 + $0x58] sm:$0xff] %v219
                %v221 = vld [vmem:[%s195 + $0xc0] sm:$0xff]
                %222 = vst [vmem:[%s196 + $0x60] sm:$0xff] %v221
                %v223 = vld [vmem:[%s195 + $0xc8] sm:$0xff]
                %224 = vst [vmem:[%s196 + $0x68] sm:$0xff] %v223
                %v225 = vld [vmem:[%s195 + $0xd0] sm:$0xff]
                %226 = vst [vmem:[%s196 + $0x70] sm:$0xff] %v225
                %v227 = vld [vmem:[%s195 + $0xd8] sm:$0xff]
                %228 = vst [vmem:[%s196 + $0x78] sm:$0xff] %v227
              $region49: #{mixed_4b_forward.7} parent=43 // loop_footer
                %s194 = sadd.s32 1, %s190
              $region50: #{mixed_4b_forward.7} parent=43 // loop_footer_branch
                %189 = sbr.rel target = $region46
              $region51: #{mixed_4b_forward.7} parent=43 // loop_exit
                _
            $region44: #{mixed_4b_forward.7} parent=35 // pred_fallthru
              _
          $region36: #{mixed_4b_forward.7} parent=31 // pred_fallthru
            _
          %273 = vnop
        $region32: #{mixed_4b_forward.7} parent=27 // pred_fallthru
          _
      $region28: #{mixed_4b_forward.7} parent=5 // pred_fallthru
        _
      %p274 = scmp.le.s32.totalorder 1, %s10
      %p275 = scmp.lt.s32.totalorder %s10, 5
      %p276 = pnand %p274, %p275
      %p277 = pneg %p276
      // Predicated region
      $region67: #{mixed_4b_forward.7} parent=5 // pred_check
        _
      $region68: #{mixed_4b_forward.7} parent=5 // pred_check_branch
        %279 = sbr.rel (%p276) target = $region70
      $region69: #{mixed_4b_forward.7} parent=5 // pred_region
        %s280 = ssub.s32 %s10, 1
        %s281 = sand.u32 %s37, 1
        %s282 = sand.u32 %s37, 1
        %s283 = smul.addr %s282, 128
        %s284 = scalar_lea.vmem [#allocation2], %s283
        // Predicated region
        $region71: #{mixed_4b_forward.7} parent=69 // pred_check
          %p285 = pneg %p50
        $region72: #{mixed_4b_forward.7} parent=69 // pred_check_branch
          %287 = sbr.rel (%p285) target = $region74
        $region73: #{mixed_4b_forward.7} parent=69 // pred_region
          _
        $region74: #{mixed_4b_forward.7} parent=69 // pred_fallthru
          _
        %s288 = sand.u32 %s37, 1
        %s289 = sand.u32 %s37, 1
        %s290 = smul.addr %s289, 128
        %s291 = scalar_lea.vmem [#allocation2], %s290
        %p292 = pneg %p50
        %p293 = pneg %p47
        %p294 = pneg %p71
        %p295 = pneg %p68
        %p296 = pneg %p92
        %p297 = pneg %p89
        %p298 = pneg %p113
        %p299 = pneg %p110
        %p300 = pneg %p141
        %p301 = pneg %p138
        %s302 = sand.u32 %s128, 1
        %s303 = sand.u32 %s128, 1
        %s304 = smul.addr %s303, 64
        %s305 = scalar_lea.vmem [#allocation3], %s304
        %s306 = smul.u32 4, %s20
        %s307 = smul.u32 4, %s20
        %v309 = vld [vmem:[%s284] sm:$0xff]
        %v310 = vld [vmem:[%s284 + $0x8] sm:$0xff]
        %v311 = vld [vmem:[%s284 + $0x10] sm:$0xff]
        %v312 = vld [vmem:[%s284 + $0x18] sm:$0xff]
        %v313 = vld [vmem:[%s284 + $0x20] sm:$0xff]
        %v314 = vld [vmem:[%s284 + $0x28] sm:$0xff]
        %v315 = vld [vmem:[%s284 + $0x30] sm:$0xff]
        %v316 = vld [vmem:[%s284 + $0x38] sm:$0xff]
        %v317 = vld [vmem:[%s284 + $0x40] sm:$0xff]
        %v318 = vld [vmem:[%s284 + $0x48] sm:$0xff]
        %v319 = vld [vmem:[%s284 + $0x50] sm:$0xff]
        %v320 = vld [vmem:[%s284 + $0x58] sm:$0xff]
        %v321 = vld [vmem:[%s284 + $0x60] sm:$0xff]
        %v322 = vld [vmem:[%s284 + $0x68] sm:$0xff]
        %v323 = vld [vmem:[%s284 + $0x70] sm:$0xff]
        %v324 = vld [vmem:[%s284 + $0x78] sm:$0xff]
        %v325 = vld [vmem:[%s1] sm:$0xff]
        %v326 = vld [vmem:[%s1 + $0x8] sm:$0xff]
        %v327 = vld [vmem:[%s1 + $0x10] sm:$0xff]
        %v328 = vld [vmem:[%s1 + $0x18] sm:$0xff]
        %v329 = vld [vmem:[%s1 + $0x20] sm:$0xff]
        %v330 = vld [vmem:[%s1 + $0x28] sm:$0xff]
        %v331 = vld [vmem:[%s1 + $0x30] sm:$0xff]
        %v332 = vld [vmem:[%s1 + $0x38] sm:$0xff]
        %v333 = vld [vmem:[%s1 + $0x40] sm:$0xff]
        %v334 = vld [vmem:[%s1 + $0x48] sm:$0xff]
        %v335 = vld [vmem:[%s1 + $0x50] sm:$0xff]
        %v336 = vld [vmem:[%s1 + $0x58] sm:$0xff]
        %v337 = vld [vmem:[%s1 + $0x60] sm:$0xff]
        %v338 = vld [vmem:[%s1 + $0x68] sm:$0xff]
        %v339 = vld [vmem:[%s1 + $0x70] sm:$0xff]
        %v340 = vld [vmem:[%s1 + $0x78] sm:$0xff]
        %v341 = vld [vmem:[%s1 + $0x80] sm:$0xff]
        %v342 = vld [vmem:[%s1 + $0x88] sm:$0xff]
        %v343 = vld [vmem:[%s1 + $0x90] sm:$0xff]
        %v344 = vld [vmem:[%s1 + $0x98] sm:$0xff]
        %v345 = vld [vmem:[%s1 + $0xa0] sm:$0xff]
        %v346 = vld [vmem:[%s1 + $0xa8] sm:$0xff]
        %v347 = vld [vmem:[%s1 + $0xb0] sm:$0xff]
        %v348 = vld [vmem:[%s1 + $0xb8] sm:$0xff]
        %v349 = vld [vmem:[%s1 + $0xc0] sm:$0xff]
        %v350 = vld [vmem:[%s1 + $0xc8] sm:$0xff]
        %s351 = scalar_lea.vmem %s1, 208
        %v352 = vld [vmem:[%s351] sm:$0xff]
        %v353 = vld [vmem:[%s351 + $0x8] sm:$0xff]
        %v354 = vld [vmem:[%s351 + $0x10] sm:$0xff]
        %v355 = vld [vmem:[%s351 + $0x18] sm:$0xff]
        %v356 = vld [vmem:[%s351 + $0x20] sm:$0xff]
        %v357 = vld [vmem:[%s351 + $0x28] sm:$0xff]
        %v358 = vld [vmem:[%s351 + $0x30] sm:$0xff]
        %v359 = vld [vmem:[%s351 + $0x38] sm:$0xff]
        %v360 = vld [vmem:[%s351 + $0x40] sm:$0xff]
        %v361 = vld [vmem:[%s351 + $0x48] sm:$0xff]
        %v362 = vld [vmem:[%s351 + $0x50] sm:$0xff]
        %v363 = vld [vmem:[%s351 + $0x58] sm:$0xff]
        %v364 = vld [vmem:[%s351 + $0x60] sm:$0xff]
        %v365 = vld [vmem:[%s351 + $0x68] sm:$0xff]
        %v366 = vld [vmem:[%s351 + $0x70] sm:$0xff]
        %v367 = vld [vmem:[%s351 + $0x78] sm:$0xff]
        %v368 = vld [vmem:[%s351 + $0x80] sm:$0xff]
        %v369 = vld [vmem:[%s351 + $0x88] sm:$0xff]
        %v370 = vld [vmem:[%s351 + $0x90] sm:$0xff]
        %v371 = vld [vmem:[%s351 + $0x98] sm:$0xff]
        %v372 = vld [vmem:[%s351 + $0xa0] sm:$0xff]
        %v373 = vld [vmem:[%s351 + $0xa8] sm:$0xff]
        %v374 = vld [vmem:[%s351 + $0xb0] sm:$0xff]
        %v375 = vld [vmem:[%s351 + $0xb8] sm:$0xff]
        %v376 = vld [vmem:[%s351 + $0xc0] sm:$0xff]
        %v377 = vld [vmem:[%s351 + $0xc8] sm:$0xff]
        %v386 = vunpack.c.l.b16 %v313
        %v387 = vunpack.c.h.b16 %v313
        %v388 = vunpack.c.l.b16 %v314
        %v389 = vunpack.c.h.b16 %v314
        %v390 = vunpack.c.l.b16 %v315
        %v391 = vunpack.c.h.b16 %v315
        %v392 = vunpack.c.l.b16 %v316
        %v393 = vunpack.c.h.b16 %v316
        %v394 = vunpack.c.l.b16 %v317
        %v395 = vunpack.c.h.b16 %v317
        %v396 = vunpack.c.l.b16 %v318
        %v397 = vunpack.c.h.b16 %v318
        %v398 = vunpack.c.l.b16 %v319
        %v399 = vunpack.c.h.b16 %v319
        %v400 = vunpack.c.l.b16 %v320
        %v401 = vunpack.c.h.b16 %v320
        %v402 = vpack.c.b16 %v388, %v386
        %v403 = vpack.c.b16 %v389, %v387
        %v404 = vpack.c.b16 %v392, %v390
        %v405 = vpack.c.b16 %v393, %v391
        %v406 = vpack.c.b16 %v396, %v394
        %v407 = vpack.c.b16 %v397, %v395
        %v408 = vpack.c.b16 %v400, %v398
        %v409 = vpack.c.b16 %v401, %v399
        %v440 = vunpack.c.l.b16 %v352
        %v441 = vunpack.c.h.b16 %v352
        %v442 = vunpack.c.l.b16 %v353
        %v443 = vunpack.c.h.b16 %v353
        %v444 = vunpack.c.l.b16 %v354
        %v445 = vunpack.c.h.b16 %v354
        %v446 = vunpack.c.l.b16 %v355
        %v447 = vunpack.c.h.b16 %v355
        %v448 = vunpack.c.l.b16 %v356
        %v449 = vunpack.c.h.b16 %v356
        %v450 = vunpack.c.l.b16 %v357
        %v451 = vunpack.c.h.b16 %v357
        %v452 = vunpack.c.l.b16 %v358
        %v453 = vunpack.c.h.b16 %v358
        %v454 = vunpack.c.l.b16 %v359
        %v455 = vunpack.c.h.b16 %v359
        %v456 = vunpack.c.l.b16 %v360
        %v457 = vunpack.c.h.b16 %v360
        %v458 = vunpack.c.l.b16 %v361
        %v459 = vunpack.c.h.b16 %v361
        %v460 = vunpack.c.l.b16 %v362
        %v461 = vunpack.c.h.b16 %v362
        %v462 = vunpack.c.l.b16 %v363
        %v463 = vunpack.c.h.b16 %v363
        %v464 = vunpack.c.l.b16 %v364
        %v465 = vunpack.c.h.b16 %v364
        %v466 = vunpack.c.l.b16 %v365
        %v467 = vunpack.c.h.b16 %v365
        %v468 = vunpack.c.l.b16 %v366
        %v469 = vunpack.c.h.b16 %v366
        %v470 = vunpack.c.l.b16 %v367
        %v471 = vunpack.c.h.b16 %v367
        %v472 = vunpack.c.l.b16 %v368
        %v473 = vunpack.c.h.b16 %v368
        %v474 = vunpack.c.l.b16 %v369
        %v475 = vunpack.c.h.b16 %v369
        %v476 = vunpack.c.l.b16 %v370
        %v477 = vunpack.c.h.b16 %v370
        %v478 = vunpack.c.l.b16 %v371
        %v479 = vunpack.c.h.b16 %v371
        %v480 = vunpack.c.l.b16 %v372
        %v481 = vunpack.c.h.b16 %v372
        %v482 = vunpack.c.l.b16 %v373
        %v483 = vunpack.c.h.b16 %v373
        %v484 = vunpack.c.l.b16 %v374
        %v485 = vunpack.c.h.b16 %v374
        %v486 = vunpack.c.l.b16 %v375
        %v487 = vunpack.c.h.b16 %v375
        %v488 = vunpack.c.l.b16 %v376
        %v489 = vunpack.c.h.b16 %v376
        %v490 = vunpack.c.l.b16 %v377
        %v491 = vunpack.c.h.b16 %v377
        %v492 = vpack.c.b16 %v442, %v440
        %v493 = vpack.c.b16 %v443, %v441
        %v494 = vpack.c.b16 %v446, %v444
        %v495 = vpack.c.b16 %v447, %v445
        %v496 = vpack.c.b16 %v450, %v448
        %v497 = vpack.c.b16 %v451, %v449
        %v498 = vpack.c.b16 %v454, %v452
        %v499 = vpack.c.b16 %v455, %v453
        %v500 = vpack.c.b16 %v458, %v456
        %v501 = vpack.c.b16 %v459, %v457
        %v502 = vpack.c.b16 %v462, %v460
        %v503 = vpack.c.b16 %v463, %v461
        %v504 = vpack.c.b16 %v466, %v464
        %v505 = vpack.c.b16 %v467, %v465
        %v506 = vpack.c.b16 %v470, %v468
        %v507 = vpack.c.b16 %v471, %v469
        %v508 = vpack.c.b16 %v474, %v472
        %v509 = vpack.c.b16 %v475, %v473
        %v510 = vpack.c.b16 %v478, %v476
        %v511 = vpack.c.b16 %v479, %v477
        %v512 = vpack.c.b16 %v482, %v480
        %v513 = vpack.c.b16 %v483, %v481
        %v514 = vpack.c.b16 %v486, %v484
        %v515 = vpack.c.b16 %v487, %v485
        %v516 = vpack.c.b16 %v490, %v488
        %v517 = vpack.c.b16 %v491, %v489
        %vm544 = vcmask 654336
        %v546 = vsel %vm544, %v403, 0
        %v549 = vsel %vm544, %v405, 0
        %v552 = vsel %vm544, %v407, 0
        %v555 = vsel %vm544, %v409, 0
        %557 = vmatprep.subr.bf16.mxu0 %v493
        %558 = vmatpush1.bf16.msra.mxu0 %v492
        %559 = vmatprep.subr.bf16.mxu0 %v495
        %560 = vmatpush1.bf16.msra.mxu0 %v494
        %561 = vmatprep.subr.bf16.mxu0 %v497
        %562 = vmatpush1.bf16.msra.mxu0 %v496
        %563 = vmatprep.subr.bf16.mxu0 %v499
        %564 = vmatpush1.bf16.msra.mxu0 %v498
        %565 = vmatprep.subr.bf16.mxu0 %v501
        %566 = vmatpush1.bf16.msra.mxu0 %v500
        %567 = vmatprep.subr.bf16.mxu0 %v503
        %568 = vmatpush1.bf16.msra.mxu0 %v502
        %569 = vmatprep.subr.bf16.mxu0 %v505
        %570 = vmatpush1.bf16.msra.mxu0 %v504
        %571 = vmatprep.subr.bf16.mxu0 %v507
        %572 = vmatpush1.bf16.msra.mxu0 %v506
        %573 = vmatprep.subr.bf16.mxu0 %v509
        %574 = vmatpush1.bf16.msra.mxu0 %v508
        %575 = vmatprep.subr.bf16.mxu0 %v511
        %576 = vmatpush1.bf16.msra.mxu0 %v510
        %577 = vmatprep.subr.bf16.mxu0 %v513
        %578 = vmatpush1.bf16.msra.mxu0 %v512
        %579 = vmatprep.subr.bf16.mxu0 %v515
        %580 = vmatpush1.bf16.msra.mxu0 %v514
        %581 = vmatprep.subr.bf16.mxu0 %v517
        %582 = vmatpush1.bf16.msra.mxu0 %v516
        %583 = vmatprep.subr.bf16.mxu0 0
        %584 = vmatpush1.bf16.msra.mxu0 0
        %585 = vmatprep.subr.bf16.mxu0 0
        %586 = vmatpush1.bf16.msra.mxu0 0
        %587 = vmatprep.subr.bf16.mxu0 0
        %588 = vmatpush1.bf16.msra.mxu0 0
        %589 = vmatprep.mubr.bf16.mxu0 %v546
        %590 = vmatmul.mubr.bf16.gmra.mrb[0].mxu0 %v402
        %v591 = vpop.f32.mrb[0].mxu0
        %v592 = vadd.f32 0.0, %v591
        %v593 = vpop.f32.mrb[0].mxu0
        %v594 = vadd.f32 0.0, %v593
        %v595 = vpop.f32.mrb[0].mxu0
        %v596 = vadd.f32 0.0, %v595
        %v597 = vpop.f32.mrb[0].mxu0
        %v598 = vadd.f32 0.0, %v597
        %599 = vmatprep.mubr.bf16.mxu0 %v549
        %600 = vmatmul.mubr.bf16.gmra.mrb[0].mxu0 %v404
        %v601 = vpop.f32.mrb[0].mxu0
        %v602 = vadd.f32 0.0, %v601
        %v603 = vpop.f32.mrb[0].mxu0
        %v604 = vadd.f32 0.0, %v603
        %v605 = vpop.f32.mrb[0].mxu0
        %v606 = vadd.f32 0.0, %v605
        %v607 = vpop.f32.mrb[0].mxu0
        %v608 = vadd.f32 0.0, %v607
        %609 = vmatprep.mubr.bf16.mxu0 %v552
        %610 = vmatmul.mubr.bf16.gmra.mrb[0].mxu0 %v406
        %v611 = vpop.f32.mrb[0].mxu0
        %v612 = vadd.f32 0.0, %v611
        %v613 = vpop.f32.mrb[0].mxu0
        %v614 = vadd.f32 0.0, %v613
        %v615 = vpop.f32.mrb[0].mxu0
        %v616 = vadd.f32 0.0, %v615
        %v617 = vpop.f32.mrb[0].mxu0
        %v618 = vadd.f32 0.0, %v617
        %619 = vmatprep.mubr.bf16.mxu0 %v555
        %620 = vmatmul.mubr.bf16.gmra.mrb[0].mxu0 %v408
        %v621 = vpop.f32.mrb[0].mxu0
        %v622 = vadd.f32 0.0, %v621
        %v623 = vpop.f32.mrb[0].mxu0
        %v624 = vadd.f32 0.0, %v623
        %v625 = vpop.f32.mrb[0].mxu0
        %v626 = vadd.f32 0.0, %v625
        %v627 = vpop.f32.mrb[0].mxu0
        %v628 = vadd.f32 0.0, %v627
        %629 = vdwg.mxu0
        %v634 = vunpack.c.l.b16 %v309
        %v635 = vunpack.c.h.b16 %v309
        %v636 = vunpack.c.l.b16 %v310
        %v637 = vunpack.c.h.b16 %v310
        %v638 = vunpack.c.l.b16 %v311
        %v639 = vunpack.c.h.b16 %v311
        %v640 = vunpack.c.l.b16 %v312
        %v641 = vunpack.c.h.b16 %v312
        %v642 = vpack.c.b16 %v636, %v634
        %v643 = vpack.c.b16 %v637, %v635
        %v644 = vpack.c.b16 %v640, %v638
        %v645 = vpack.c.b16 %v641, %v639
        %v674 = vunpack.c.l.b16 %v325
        %v675 = vunpack.c.h.b16 %v325
        %v676 = vunpack.c.l.b16 %v326
        %v677 = vunpack.c.h.b16 %v326
        %v678 = vunpack.c.l.b16 %v327
        %v679 = vunpack.c.h.b16 %v327
        %v680 = vunpack.c.l.b16 %v328
        %v681 = vunpack.c.h.b16 %v328
        %v682 = vunpack.c.l.b16 %v329
        %v683 = vunpack.c.h.b16 %v329
        %v684 = vunpack.c.l.b16 %v330
        %v685 = vunpack.c.h.b16 %v330
        %v686 = vunpack.c.l.b16 %v331
        %v687 = vunpack.c.h.b16 %v331
        %v688 = vunpack.c.l.b16 %v332
        %v689 = vunpack.c.h.b16 %v332
        %v690 = vunpack.c.l.b16 %v333
        %v691 = vunpack.c.h.b16 %v333
        %v692 = vunpack.c.l.b16 %v334
        %v693 = vunpack.c.h.b16 %v334
        %v694 = vunpack.c.l.b16 %v335
        %v695 = vunpack.c.h.b16 %v335
        %v696 = vunpack.c.l.b16 %v336
        %v697 = vunpack.c.h.b16 %v336
        %v698 = vunpack.c.l.b16 %v337
        %v699 = vunpack.c.h.b16 %v337
        %v700 = vunpack.c.l.b16 %v338
        %v701 = vunpack.c.h.b16 %v338
        %v702 = vunpack.c.l.b16 %v339
        %v703 = vunpack.c.h.b16 %v339
        %v704 = vunpack.c.l.b16 %v340
        %v705 = vunpack.c.h.b16 %v340
        %v706 = vunpack.c.l.b16 %v341
        %v707 = vunpack.c.h.b16 %v341
        %v708 = vunpack.c.l.b16 %v342
        %v709 = vunpack.c.h.b16 %v342
        %v710 = vunpack.c.l.b16 %v343
        %v711 = vunpack.c.h.b16 %v343
        %v712 = vunpack.c.l.b16 %v344
        %v713 = vunpack.c.h.b16 %v344
        %v714 = vunpack.c.l.b16 %v345
        %v715 = vunpack.c.h.b16 %v345
        %v716 = vunpack.c.l.b16 %v346
        %v717 = vunpack.c.h.b16 %v346
        %v718 = vunpack.c.l.b16 %v347
        %v719 = vunpack.c.h.b16 %v347
        %v720 = vunpack.c.l.b16 %v348
        %v721 = vunpack.c.h.b16 %v348
        %v722 = vunpack.c.l.b16 %v349
        %v723 = vunpack.c.h.b16 %v349
        %v724 = vunpack.c.l.b16 %v350
        %v725 = vunpack.c.h.b16 %v350
        %v726 = vpack.c.b16 %v676, %v674
        %v727 = vpack.c.b16 %v677, %v675
        %v728 = vpack.c.b16 %v680, %v678
        %v729 = vpack.c.b16 %v681, %v679
        %v730 = vpack.c.b16 %v684, %v682
        %v731 = vpack.c.b16 %v685, %v683
        %v732 = vpack.c.b16 %v688, %v686
        %v733 = vpack.c.b16 %v689, %v687
        %v734 = vpack.c.b16 %v692, %v690
        %v735 = vpack.c.b16 %v693, %v691
        %v736 = vpack.c.b16 %v696, %v694
        %v737 = vpack.c.b16 %v697, %v695
        %v738 = vpack.c.b16 %v700, %v698
        %v739 = vpack.c.b16 %v701, %v699
        %v740 = vpack.c.b16 %v704, %v702
        %v741 = vpack.c.b16 %v705, %v703
        %v742 = vpack.c.b16 %v708, %v706
        %v743 = vpack.c.b16 %v709, %v707
        %v744 = vpack.c.b16 %v712, %v710
        %v745 = vpack.c.b16 %v713, %v711
        %v746 = vpack.c.b16 %v716, %v714
        %v747 = vpack.c.b16 %v717, %v715
        %v748 = vpack.c.b16 %v720, %v718
        %v749 = vpack.c.b16 %v721, %v719
        %v750 = vpack.c.b16 %v724, %v722
        %v751 = vpack.c.b16 %v725, %v723
        %v779 = vsel %vm544, %v643, 0
        %v782 = vsel %vm544, %v645, 0
        %784 = vmatprep.subr.bf16.mxu0 %v727
        %785 = vmatpush1.bf16.msra.mxu0 %v726
        %786 = vmatprep.subr.bf16.mxu0 %v729
        %787 = vmatpush1.bf16.msra.mxu0 %v728
        %788 = vmatprep.subr.bf16.mxu0 %v731
        %789 = vmatpush1.bf16.msra.mxu0 %v730
        %790 = vmatprep.subr.bf16.mxu0 %v733
        %791 = vmatpush1.bf16.msra.mxu0 %v732
        %792 = vmatprep.subr.bf16.mxu0 %v735
        %793 = vmatpush1.bf16.msra.mxu0 %v734
        %794 = vmatprep.subr.bf16.mxu0 %v737
        %795 = vmatpush1.bf16.msra.mxu0 %v736
        %796 = vmatprep.subr.bf16.mxu0 %v739
        %797 = vmatpush1.bf16.msra.mxu0 %v738
        %798 = vmatprep.subr.bf16.mxu0 %v741
        %799 = vmatpush1.bf16.msra.mxu0 %v740
        %800 = vmatprep.subr.bf16.mxu0 %v743
        %801 = vmatpush1.bf16.msra.mxu0 %v742
        %802 = vmatprep.subr.bf16.mxu0 %v745
        %803 = vmatpush1.bf16.msra.mxu0 %v744
        %804 = vmatprep.subr.bf16.mxu0 %v747
        %805 = vmatpush1.bf16.msra.mxu0 %v746
        %806 = vmatprep.subr.bf16.mxu0 %v749
        %807 = vmatpush1.bf16.msra.mxu0 %v748
        %808 = vmatprep.subr.bf16.mxu0 %v751
        %809 = vmatpush1.bf16.msra.mxu0 %v750
        %810 = vmatprep.subr.bf16.mxu0 0
        %811 = vmatpush1.bf16.msra.mxu0 0
        %812 = vmatprep.subr.bf16.mxu0 0
        %813 = vmatpush1.bf16.msra.mxu0 0
        %814 = vmatprep.subr.bf16.mxu0 0
        %815 = vmatpush1.bf16.msra.mxu0 0
        %816 = vmatprep.mubr.bf16.mxu0 %v779
        %817 = vmatmul.mubr.bf16.gmra.mrb[0].mxu0 %v642
        %v818 = vpop.f32.mrb[0].mxu0
        %v819 = vadd.f32 %v592, %v818
        %v820 = vpop.f32.mrb[0].mxu0
        %v821 = vadd.f32 %v594, %v820
        %v822 = vpop.f32.mrb[0].mxu0
        %v823 = vadd.f32 %v596, %v822
        %v824 = vpop.f32.mrb[0].mxu0
        %v825 = vadd.f32 %v598, %v824
        %826 = vmatprep.mubr.bf16.mxu0 %v782
        %827 = vmatmul.mubr.bf16.gmra.mrb[0].mxu0 %v644
        %v828 = vpop.f32.mrb[0].mxu0
        %v829 = vadd.f32 %v602, %v828
        %v830 = vpop.f32.mrb[0].mxu0
        %v831 = vadd.f32 %v604, %v830
        %v832 = vpop.f32.mrb[0].mxu0
        %v833 = vadd.f32 %v606, %v832
        %v834 = vpop.f32.mrb[0].mxu0
        %v835 = vadd.f32 %v608, %v834
        %836 = vmatprep.mubr.bf16.mxu0 %v546
        %837 = vmatmul.mubr.bf16.gmra.mrb[0].mxu0 %v402
        %v838 = vpop.f32.mrb[0].mxu0
        %v839 = vadd.f32 %v612, %v838
        %v840 = vpop.f32.mrb[0].mxu0
        %v841 = vadd.f32 %v614, %v840
        %v842 = vpop.f32.mrb[0].mxu0
        %v843 = vadd.f32 %v616, %v842
        %v844 = vpop.f32.mrb[0].mxu0
        %v845 = vadd.f32 %v618, %v844
        %846 = vmatprep.mubr.bf16.mxu0 %v549
        %847 = vmatmul.mubr.bf16.gmra.mrb[0].mxu0 %v404
        %v848 = vpop.f32.mrb[0].mxu0
        %v849 = vadd.f32 %v622, %v848
        %v850 = vpop.f32.mrb[0].mxu0
        %v851 = vadd.f32 %v624, %v850
        %v852 = vpop.f32.mrb[0].mxu0
        %v853 = vadd.f32 %v626, %v852
        %v854 = vpop.f32.mrb[0].mxu0
        %v855 = vadd.f32 %v628, %v854
        %856 = vdwg.mxu0
        %s857 = scalar_lea.vmem %s1, 416
        %v858 = vld [vmem:[%s857] sm:$0xff]
        %v859 = vld [vmem:[%s857 + $0x8] sm:$0xff]
        %v860 = vld [vmem:[%s857 + $0x10] sm:$0xff]
        %v861 = vld [vmem:[%s857 + $0x18] sm:$0xff]
        %v862 = vld [vmem:[%s857 + $0x20] sm:$0xff]
        %v863 = vld [vmem:[%s857 + $0x28] sm:$0xff]
        %v864 = vld [vmem:[%s857 + $0x30] sm:$0xff]
        %v865 = vld [vmem:[%s857 + $0x38] sm:$0xff]
        %v866 = vld [vmem:[%s857 + $0x40] sm:$0xff]
        %v867 = vld [vmem:[%s857 + $0x48] sm:$0xff]
        %v868 = vld [vmem:[%s857 + $0x50] sm:$0xff]
        %v869 = vld [vmem:[%s857 + $0x58] sm:$0xff]
        %v870 = vld [vmem:[%s857 + $0x60] sm:$0xff]
        %v871 = vld [vmem:[%s857 + $0x68] sm:$0xff]
        %v872 = vld [vmem:[%s857 + $0x70] sm:$0xff]
        %v873 = vld [vmem:[%s857 + $0x78] sm:$0xff]
        %v874 = vld [vmem:[%s857 + $0x80] sm:$0xff]
        %v875 = vld [vmem:[%s857 + $0x88] sm:$0xff]
        %v876 = vld [vmem:[%s857 + $0x90] sm:$0xff]
        %v877 = vld [vmem:[%s857 + $0x98] sm:$0xff]
        %v878 = vld [vmem:[%s857 + $0xa0] sm:$0xff]
        %v879 = vld [vmem:[%s857 + $0xa8] sm:$0xff]
        %v880 = vld [vmem:[%s857 + $0xb0] sm:$0xff]
        %v881 = vld [vmem:[%s857 + $0xb8] sm:$0xff]
        %v882 = vld [vmem:[%s857 + $0xc0] sm:$0xff]
        %v883 = vld [vmem:[%s857 + $0xc8] sm:$0xff]
        %v888 = vunpack.c.l.b16 %v321
        %v889 = vunpack.c.h.b16 %v321
        %v890 = vunpack.c.l.b16 %v322
        %v891 = vunpack.c.h.b16 %v322
        %v892 = vunpack.c.l.b16 %v323
        %v893 = vunpack.c.h.b16 %v323
        %v894 = vunpack.c.l.b16 %v324
        %v895 = vunpack.c.h.b16 %v324
        %v896 = vpack.c.b16 %v890, %v888
        %v897 = vpack.c.b16 %v891, %v889
        %v898 = vpack.c.b16 %v894, %v892
        %v899 = vpack.c.b16 %v895, %v893
        %v928 = vunpack.c.l.b16 %v858
        %v929 = vunpack.c.h.b16 %v858
        %v930 = vunpack.c.l.b16 %v859
        %v931 = vunpack.c.h.b16 %v859
        %v932 = vunpack.c.l.b16 %v860
        %v933 = vunpack.c.h.b16 %v860
        %v934 = vunpack.c.l.b16 %v861
        %v935 = vunpack.c.h.b16 %v861
        %v936 = vunpack.c.l.b16 %v862
        %v937 = vunpack.c.h.b16 %v862
        %v938 = vunpack.c.l.b16 %v863
        %v939 = vunpack.c.h.b16 %v863
        %v940 = vunpack.c.l.b16 %v864
        %v941 = vunpack.c.h.b16 %v864
        %v942 = vunpack.c.l.b16 %v865
        %v943 = vunpack.c.h.b16 %v865
        %v944 = vunpack.c.l.b16 %v866
        %v945 = vunpack.c.h.b16 %v866
        %v946 = vunpack.c.l.b16 %v867
        %v947 = vunpack.c.h.b16 %v867
        %v948 = vunpack.c.l.b16 %v868
        %v949 = vunpack.c.h.b16 %v868
        %v950 = vunpack.c.l.b16 %v869
        %v951 = vunpack.c.h.b16 %v869
        %v952 = vunpack.c.l.b16 %v870
        %v953 = vunpack.c.h.b16 %v870
        %v954 = vunpack.c.l.b16 %v871
        %v955 = vunpack.c.h.b16 %v871
        %v956 = vunpack.c.l.b16 %v872
        %v957 = vunpack.c.h.b16 %v872
        %v958 = vunpack.c.l.b16 %v873
        %v959 = vunpack.c.h.b16 %v873
        %v960 = vunpack.c.l.b16 %v874
        %v961 = vunpack.c.h.b16 %v874
        %v962 = vunpack.c.l.b16 %v875
        %v963 = vunpack.c.h.b16 %v875
        %v964 = vunpack.c.l.b16 %v876
        %v965 = vunpack.c.h.b16 %v876
        %v966 = vunpack.c.l.b16 %v877
        %v967 = vunpack.c.h.b16 %v877
        %v968 = vunpack.c.l.b16 %v878
        %v969 = vunpack.c.h.b16 %v878
        %v970 = vunpack.c.l.b16 %v879
        %v971 = vunpack.c.h.b16 %v879
        %v972 = vunpack.c.l.b16 %v880
        %v973 = vunpack.c.h.b16 %v880
        %v974 = vunpack.c.l.b16 %v881
        %v975 = vunpack.c.h.b16 %v881
        %v976 = vunpack.c.l.b16 %v882
        %v977 = vunpack.c.h.b16 %v882
        %v978 = vunpack.c.l.b16 %v883
        %v979 = vunpack.c.h.b16 %v883
        %v980 = vpack.c.b16 %v930, %v928
        %v981 = vpack.c.b16 %v931, %v929
        %v982 = vpack.c.b16 %v934, %v932
        %v983 = vpack.c.b16 %v935, %v933
        %v984 = vpack.c.b16 %v938, %v936
        %v985 = vpack.c.b16 %v939, %v937
        %v986 = vpack.c.b16 %v942, %v940
        %v987 = vpack.c.b16 %v943, %v941
        %v988 = vpack.c.b16 %v946, %v944
        %v989 = vpack.c.b16 %v947, %v945
        %v990 = vpack.c.b16 %v950, %v948
        %v991 = vpack.c.b16 %v951, %v949
        %v992 = vpack.c.b16 %v954, %v952
        %v993 = vpack.c.b16 %v955, %v953
        %v994 = vpack.c.b16 %v958, %v956
        %v995 = vpack.c.b16 %v959, %v957
        %v996 = vpack.c.b16 %v962, %v960
        %v997 = vpack.c.b16 %v963, %v961
        %v998 = vpack.c.b16 %v966, %v964
        %v999 = vpack.c.b16 %v967, %v965
        %v1000 = vpack.c.b16 %v970, %v968
        %v1001 = vpack.c.b16 %v971, %v969
        %v1002 = vpack.c.b16 %v974, %v972
        %v1003 = vpack.c.b16 %v975, %v973
        %v1004 = vpack.c.b16 %v978, %v976
        %v1005 = vpack.c.b16 %v979, %v977
        %v1033 = vsel %vm544, %v897, 0
        %v1036 = vsel %vm544, %v899, 0
        %1038 = vmatprep.subr.bf16.mxu0 %v981
        %1039 = vmatpush1.bf16.msra.mxu0 %v980
        %1040 = vmatprep.subr.bf16.mxu0 %v983
        %1041 = vmatpush1.bf16.msra.mxu0 %v982
        %1042 = vmatprep.subr.bf16.mxu0 %v985
        %1043 = vmatpush1.bf16.msra.mxu0 %v984
        %1044 = vmatprep.subr.bf16.mxu0 %v987
        %1045 = vmatpush1.bf16.msra.mxu0 %v986
        %1046 = vmatprep.subr.bf16.mxu0 %v989
        %1047 = vmatpush1.bf16.msra.mxu0 %v988
        %1048 = vmatprep.subr.bf16.mxu0 %v991
        %1049 = vmatpush1.bf16.msra.mxu0 %v990
        %1050 = vmatprep.subr.bf16.mxu0 %v993
        %1051 = vmatpush1.bf16.msra.mxu0 %v992
        %1052 = vmatprep.subr.bf16.mxu0 %v995
        %1053 = vmatpush1.bf16.msra.mxu0 %v994
        %1054 = vmatprep.subr.bf16.mxu0 %v997
        %1055 = vmatpush1.bf16.msra.mxu0 %v996
        %1056 = vmatprep.subr.bf16.mxu0 %v999
        %1057 = vmatpush1.bf16.msra.mxu0 %v998
        %1058 = vmatprep.subr.bf16.mxu0 %v1001
        %1059 = vmatpush1.bf16.msra.mxu0 %v1000
        %1060 = vmatprep.subr.bf16.mxu0 %v1003
        %1061 = vmatpush1.bf16.msra.mxu0 %v1002
        %1062 = vmatprep.subr.bf16.mxu0 %v1005
        %1063 = vmatpush1.bf16.msra.mxu0 %v1004
        %1064 = vmatprep.subr.bf16.mxu0 0
        %1065 = vmatpush1.bf16.msra.mxu0 0
        %1066 = vmatprep.subr.bf16.mxu0 0
        %1067 = vmatpush1.bf16.msra.mxu0 0
        %1068 = vmatprep.subr.bf16.mxu0 0
        %1069 = vmatpush1.bf16.msra.mxu0 0
        %1070 = vmatprep.mubr.bf16.mxu0 %v552
        %1071 = vmatmul.mubr.bf16.gmra.mrb[0].mxu0 %v406
        %v1072 = vpop.f32.mrb[0].mxu0
        %v1073 = vadd.f32 0.0, %v1072
        %v1074 = vpop.f32.mrb[0].mxu0
        %v1075 = vadd.f32 0.0, %v1074
        %v1076 = vpop.f32.mrb[0].mxu0
        %v1077 = vadd.f32 0.0, %v1076
        %v1078 = vpop.f32.mrb[0].mxu0
        %v1079 = vadd.f32 0.0, %v1078
        %1080 = vmatprep.mubr.bf16.mxu0 %v555
        %1081 = vmatmul.mubr.bf16.gmra.mrb[0].mxu0 %v408
        %v1082 = vpop.f32.mrb[0].mxu0
        %v1083 = vadd.f32 0.0, %v1082
        %v1084 = vpop.f32.mrb[0].mxu0
        %v1085 = vadd.f32 0.0, %v1084
        %v1086 = vpop.f32.mrb[0].mxu0
        %v1087 = vadd.f32 0.0, %v1086
        %v1088 = vpop.f32.mrb[0].mxu0
        %v1089 = vadd.f32 0.0, %v1088
        %1090 = vmatprep.mubr.bf16.mxu0 %v1033
        %1091 = vmatmul.mubr.bf16.gmra.mrb[0].mxu0 %v896
        %v1092 = vpop.f32.mrb[0].mxu0
        %v1093 = vadd.f32 0.0, %v1092
        %v1094 = vpop.f32.mrb[0].mxu0
        %v1095 = vadd.f32 0.0, %v1094
        %v1096 = vpop.f32.mrb[0].mxu0
        %v1097 = vadd.f32 0.0, %v1096
        %v1098 = vpop.f32.mrb[0].mxu0
        %v1099 = vadd.f32 0.0, %v1098
        %1100 = vmatprep.mubr.bf16.mxu0 %v1036
        %1101 = vmatmul.mubr.bf16.gmra.mrb[0].mxu0 %v898
        %v1102 = vpop.f32.mrb[0].mxu0
        %v1103 = vadd.f32 0.0, %v1102
        %v1104 = vpop.f32.mrb[0].mxu0
        %v1105 = vadd.f32 0.0, %v1104
        %v1106 = vpop.f32.mrb[0].mxu0
        %v1107 = vadd.f32 0.0, %v1106
        %v1108 = vpop.f32.mrb[0].mxu0
        %v1109 = vadd.f32 0.0, %v1108
        %1110 = vdwg.mxu0
        %v1111 = vadd.f32 %v819, %v1073
        %v1112 = vadd.f32 %v821, %v1075
        %v1113 = vadd.f32 %v823, %v1077
        %v1114 = vadd.f32 %v825, %v1079
        %v1115 = vadd.f32 %v829, %v1083
        %v1116 = vadd.f32 %v831, %v1085
        %v1117 = vadd.f32 %v833, %v1087
        %v1118 = vadd.f32 %v835, %v1089
        %v1119 = vadd.f32 %v839, %v1093
        %v1120 = vadd.f32 %v841, %v1095
        %v1121 = vadd.f32 %v843, %v1097
        %v1122 = vadd.f32 %v845, %v1099
        %v1123 = vadd.f32 %v849, %v1103
        %v1124 = vadd.f32 %v851, %v1105
        %v1125 = vadd.f32 %v853, %v1107
        %v1126 = vadd.f32 %v855, %v1109
        %v1127 = vld [vmem:[%s2] sm:$0x3]
        %v1129 = vlaneseq
        %v1130 = vshrl.u32 %v1129, 7
        %v1131 = vsub.s32 0, %v1130
        %v1132 = vrot.slane %v1127, %v1131
        %v1133 = vlaneseq
        %v1134 = vshrl.u32 %v1133, 7
        %v1135 = vsub.s32 1, %v1134
        %v1136 = vrot.slane %v1127, %v1135
        %v1139 = vmul.f32 %v1111, %v1132
        %v1140 = vmul.f32 %v1112, %v1136
        %v1141 = vmul.f32 %v1113, %v1132
        %v1142 = vmul.f32 %v1114, %v1136
        %v1143 = vmul.f32 %v1115, %v1132
        %v1144 = vmul.f32 %v1116, %v1136
        %v1145 = vmul.f32 %v1117, %v1132
        %v1146 = vmul.f32 %v1118, %v1136
        %v1147 = vmul.f32 %v1119, %v1132
        %v1148 = vmul.f32 %v1120, %v1136
        %v1149 = vmul.f32 %v1121, %v1132
        %v1150 = vmul.f32 %v1122, %v1136
        %v1151 = vmul.f32 %v1123, %v1132
        %v1152 = vmul.f32 %v1124, %v1136
        %v1153 = vmul.f32 %v1125, %v1132
        %v1154 = vmul.f32 %v1126, %v1136
        %v1155 = vld [vmem:[%s3] sm:$0x3]
        %v1157 = vlaneseq
        %v1158 = vshrl.u32 %v1157, 7
        %v1159 = vsub.s32 0, %v1158
        %v1160 = vrot.slane %v1155, %v1159
        %v1161 = vlaneseq
        %v1162 = vshrl.u32 %v1161, 7
        %v1163 = vsub.s32 1, %v1162
        %v1164 = vrot.slane %v1155, %v1163
        %v1167 = vadd.f32 %v1139, %v1160
        %v1168 = vadd.f32 %v1140, %v1164
        %v1169 = vadd.f32 %v1141, %v1160
        %v1170 = vadd.f32 %v1142, %v1164
        %v1171 = vadd.f32 %v1143, %v1160
        %v1172 = vadd.f32 %v1144, %v1164
        %v1173 = vadd.f32 %v1145, %v1160
        %v1174 = vadd.f32 %v1146, %v1164
        %v1175 = vadd.f32 %v1147, %v1160
        %v1176 = vadd.f32 %v1148, %v1164
        %v1177 = vadd.f32 %v1149, %v1160
        %v1178 = vadd.f32 %v1150, %v1164
        %v1179 = vadd.f32 %v1151, %v1160
        %v1180 = vadd.f32 %v1152, %v1164
        %v1181 = vadd.f32 %v1153, %v1160
        %v1182 = vadd.f32 %v1154, %v1164
        %v1183 = vmax.f32 %v1167, 0.0
        %v1184 = vmax.f32 %v1168, 0.0
        %v1185 = vmax.f32 %v1169, 0.0
        %v1186 = vmax.f32 %v1170, 0.0
        %v1187 = vmax.f32 %v1171, 0.0
        %v1188 = vmax.f32 %v1172, 0.0
        %v1189 = vmax.f32 %v1173, 0.0
        %v1190 = vmax.f32 %v1174, 0.0
        %v1191 = vmax.f32 %v1175, 0.0
        %v1192 = vmax.f32 %v1176, 0.0
        %v1193 = vmax.f32 %v1177, 0.0
        %v1194 = vmax.f32 %v1178, 0.0
        %v1195 = vmax.f32 %v1179, 0.0
        %v1196 = vmax.f32 %v1180, 0.0
        %v1197 = vmax.f32 %v1181, 0.0
        %v1198 = vmax.f32 %v1182, 0.0
        %v1199 = vpack.c.bf16 %v1185, %v1183
        %v1200 = vpack.c.bf16 %v1186, %v1184
        %v1201 = vpack.c.bf16 %v1189, %v1187
        %v1202 = vpack.c.bf16 %v1190, %v1188
        %v1203 = vpack.c.bf16 %v1193, %v1191
        %v1204 = vpack.c.bf16 %v1194, %v1192
        %v1205 = vpack.c.bf16 %v1197, %v1195
        %v1206 = vpack.c.bf16 %v1198, %v1196
        %v1215 = vunpack.c.l.b16 %v1199
        %v1216 = vunpack.c.l.b16 %v1200
        %v1217 = vunpack.c.h.b16 %v1199
        %v1218 = vunpack.c.h.b16 %v1200
        %v1219 = vunpack.c.l.b16 %v1201
        %v1220 = vunpack.c.l.b16 %v1202
        %v1221 = vunpack.c.h.b16 %v1201
        %v1222 = vunpack.c.h.b16 %v1202
        %v1223 = vunpack.c.l.b16 %v1203
        %v1224 = vunpack.c.l.b16 %v1204
        %v1225 = vunpack.c.h.b16 %v1203
        %v1226 = vunpack.c.h.b16 %v1204
        %v1227 = vunpack.c.l.b16 %v1205
        %v1228 = vunpack.c.l.b16 %v1206
        %v1229 = vunpack.c.h.b16 %v1205
        %v1230 = vunpack.c.h.b16 %v1206
        %v1231 = vpack.c.b16 %v1216, %v1215
        %v1232 = vpack.c.b16 %v1218, %v1217
        %v1233 = vpack.c.b16 %v1220, %v1219
        %v1234 = vpack.c.b16 %v1222, %v1221
        %v1235 = vpack.c.b16 %v1224, %v1223
        %v1236 = vpack.c.b16 %v1226, %v1225
        %v1237 = vpack.c.b16 %v1228, %v1227
        %v1238 = vpack.c.b16 %v1230, %v1229
        %vm1247 = vcmask 1043456
        %vm1248 = vcmask 654340
        %vm1249 = vmor %vm1248, %vm1247
        %1250 = vst.msk [vmem:[%s305] sm:$0xff] %vm1249, %v1231
        %1251 = vst.msk [vmem:[%s305 + $0x8] sm:$0xff] %vm1249, %v1232
        %1252 = vst.msk [vmem:[%s305 + $0x10] sm:$0xff] %vm1249, %v1233
        %1253 = vst.msk [vmem:[%s305 + $0x18] sm:$0xff] %vm1249, %v1234
        %1254 = vst.msk [vmem:[%s305 + $0x20] sm:$0xff] %vm1249, %v1235
        %1255 = vst.msk [vmem:[%s305 + $0x28] sm:$0xff] %vm1249, %v1236
        %1256 = vst.msk [vmem:[%s305 + $0x30] sm:$0xff] %vm1249, %v1237
        %1257 = vst.msk [vmem:[%s305 + $0x38] sm:$0xff] %vm1249, %v1238
        %s1258 = sand.u32 %s128, 1
        %s1259 = sand.u32 %s128, 1
        %s1260 = smul.addr %s1259, 64
        %s1261 = scalar_lea.vmem [#allocation3], %s1260
        // Predicated region
        $region75: #{mixed_4b_forward.7} parent=69 // pred_check
          %p1262 = pneg %p138
        $region76: #{mixed_4b_forward.7} parent=69 // pred_check_branch
          %1264 = sbr.rel (%p1262) target = $region78
        $region77: #{mixed_4b_forward.7} parent=69 // pred_region
          %s1265 = smul.u32 4, %s20
          %s1266 = smul.addr %s1265, 2
          %s1267 = smul.addr %s19, 32
          %s1268 = sadd.s32 %s1266, %s1267
          %s1269 = smul.addr %s1268, 4
          %s1270 = scalar_lea.vmem %s4, %s1269
          // Predicated region
          $region79: #{mixed_4b_forward.7} parent=77 // pred_check
            _
          $region80: #{mixed_4b_forward.7} parent=77 // pred_check_branch
            %1272 = sbr.rel (0) target = $region82
          $region81: #{mixed_4b_forward.7} parent=77 // pred_region
            // Predicated region
            $region83: #{mixed_4b_forward.7} parent=81 // pred_check
              _
            $region84: #{mixed_4b_forward.7} parent=81 // pred_check_branch
              %1274 = sbr.rel (0) target = $region86
            $region85: #{mixed_4b_forward.7} parent=81 // pred_region
              // Predicated region
              $region98: #{mixed_4b_forward.7} parent=85 // pred_check
                _
              $region99: #{mixed_4b_forward.7} parent=85 // pred_check_branch
                %1303 = sbr.rel (0) target = $region101
              $region100: #{mixed_4b_forward.7} parent=85 // pred_region
                loop: start=0, step=1, limit=1
                $region102: #{mixed_4b_forward.7} parent=100 // loop_pre_header
                  _
                $region103: #{mixed_4b_forward.7} parent=100 // loop_header
                  %s1305 = sphi 0, %s1309
                  %p1306 = scmp.ge.s32.totalorder %s1305, 1
                  %s1310 = sphi %s1261, %s1261
                  %s1311 = sphi %s1270, %s1270
                $region104: #{mixed_4b_forward.7} parent=100 // loop_header_branch
                  %1308 = sbr.rel (%p1306) target = $region108
                $region105: #{mixed_4b_forward.7} parent=100 // loop_body
                  %v1312 = vld [vmem:[%s1310] sm:$0xff]
                  %1313 = vst [vmem:[%s1311] sm:$0xff] %v1312
                  %v1314 = vld [vmem:[%s1310 + $0x8] sm:$0xff]
                  %1315 = vst [vmem:[%s1311 + $0x8] sm:$0xff] %v1314
                  %v1316 = vld [vmem:[%s1310 + $0x10] sm:$0xff]
                  %1317 = vst [vmem:[%s1311 + $0x10] sm:$0xff] %v1316
                  %v1318 = vld [vmem:[%s1310 + $0x18] sm:$0xff]
                  %1319 = vst [vmem:[%s1311 + $0x18] sm:$0xff] %v1318
                  %v1320 = vld [vmem:[%s1310 + $0x20] sm:$0xff]
                  %1321 = vst [vmem:[%s1311 + $0x40] sm:$0xff] %v1320
                  %v1322 = vld [vmem:[%s1310 + $0x28] sm:$0xff]
                  %1323 = vst [vmem:[%s1311 + $0x48] sm:$0xff] %v1322
                  %v1324 = vld [vmem:[%s1310 + $0x30] sm:$0xff]
                  %1325 = vst [vmem:[%s1311 + $0x50] sm:$0xff] %v1324
                  %v1326 = vld [vmem:[%s1310 + $0x38] sm:$0xff]
                  %1327 = vst [vmem:[%s1311 + $0x58] sm:$0xff] %v1326
                $region106: #{mixed_4b_forward.7} parent=100 // loop_footer
                  %s1309 = sadd.s32 1, %s1305
                $region107: #{mixed_4b_forward.7} parent=100 // loop_footer_branch
                  %1304 = sbr.rel target = $region103
                $region108: #{mixed_4b_forward.7} parent=100 // loop_exit
                  _
              $region101: #{mixed_4b_forward.7} parent=85 // pred_fallthru
                _
              // Predicated region
              $region109: #{mixed_4b_forward.7} parent=85 // pred_check
                _
              $region110: #{mixed_4b_forward.7} parent=85 // pred_check_branch
                %1329 = sbr.rel target = $region112
              $region111: #{mixed_4b_forward.7} parent=85 // pred_region
                _
              $region112: #{mixed_4b_forward.7} parent=85 // pred_fallthru
                _
            $region86: #{mixed_4b_forward.7} parent=81 // pred_fallthru
              _
            // Predicated region
            $region87: #{mixed_4b_forward.7} parent=81 // pred_check
              _
            $region88: #{mixed_4b_forward.7} parent=81 // pred_check_branch
              %1276 = sbr.rel target = $region90
            $region89: #{mixed_4b_forward.7} parent=81 // pred_region
              loop: start=0, step=1, limit=1
              $region91: #{mixed_4b_forward.7} parent=89 // loop_pre_header
                _
              $region92: #{mixed_4b_forward.7} parent=89 // loop_header
                %s1279 = sphi 0, %s1283
                %p1280 = scmp.ge.s32.totalorder %s1279, 1
                %s1284 = sphi %s1261, %s1261
                %s1285 = sphi %s1270, %s1270
              $region93: #{mixed_4b_forward.7} parent=89 // loop_header_branch
                %1282 = sbr.rel (%p1280) target = $region97
              $region94: #{mixed_4b_forward.7} parent=89 // loop_body
                %v1286 = vld [vmem:[%s1284] sm:$0xff]
                %1287 = vst [vmem:[%s1285] sm:$0xff] %v1286
                %v1288 = vld [vmem:[%s1284 + $0x8] sm:$0xff]
                %1289 = vst [vmem:[%s1285 + $0x8] sm:$0xff] %v1288
                %v1290 = vld [vmem:[%s1284 + $0x10] sm:$0xff]
                %1291 = vst [vmem:[%s1285 + $0x10] sm:$0xff] %v1290
                %v1292 = vld [vmem:[%s1284 + $0x18] sm:$0xff]
                %1293 = vst [vmem:[%s1285 + $0x18] sm:$0xff] %v1292
                %v1294 = vld [vmem:[%s1284 + $0x20] sm:$0xff]
                %1295 = vst [vmem:[%s1285 + $0x40] sm:$0xff] %v1294
                %v1296 = vld [vmem:[%s1284 + $0x28] sm:$0xff]
                %1297 = vst [vmem:[%s1285 + $0x48] sm:$0xff] %v1296
                %v1298 = vld [vmem:[%s1284 + $0x30] sm:$0xff]
                %1299 = vst [vmem:[%s1285 + $0x50] sm:$0xff] %v1298
                %v1300 = vld [vmem:[%s1284 + $0x38] sm:$0xff]
                %1301 = vst [vmem:[%s1285 + $0x58] sm:$0xff] %v1300
              $region95: #{mixed_4b_forward.7} parent=89 // loop_footer
                %s1283 = sadd.s32 1, %s1279
              $region96: #{mixed_4b_forward.7} parent=89 // loop_footer_branch
                %1278 = sbr.rel target = $region92
              $region97: #{mixed_4b_forward.7} parent=89 // loop_exit
                _
            $region90: #{mixed_4b_forward.7} parent=81 // pred_fallthru
              _
          $region82: #{mixed_4b_forward.7} parent=77 // pred_fallthru
            _
          %1330 = vnop
        $region78: #{mixed_4b_forward.7} parent=69 // pred_fallthru
          _
      $region70: #{mixed_4b_forward.7} parent=5 // pred_fallthru
        _
      %p1331 = scmp.le.s32.totalorder 2, %s10
      // Predicated region
      $region113: #{mixed_4b_forward.7} parent=5 // pred_check
        %p1332 = pneg %p1331
      $region114: #{mixed_4b_forward.7} parent=5 // pred_check_branch
        %1334 = sbr.rel (%p1332) target = $region116
      $region115: #{mixed_4b_forward.7} parent=5 // pred_region
        %s1335 = ssub.s32 %s10, 2
        // Predicated region
        $region117: #{mixed_4b_forward.7} parent=115 // pred_check
          %p1336 = pneg %p144
        $region118: #{mixed_4b_forward.7} parent=115 // pred_check_branch
          %1338 = sbr.rel (%p1336) target = $region120
        $region119: #{mixed_4b_forward.7} parent=115 // pred_region
          %s1339 = sand.u32 %s129, 1
          %s1340 = sand.u32 %s129, 1
          %s1341 = smul.addr %s1340, 64
          %s1342 = scalar_lea.vmem [#allocation3], %s1341
        $region120: #{mixed_4b_forward.7} parent=115 // pred_fallthru
          _
      $region116: #{mixed_4b_forward.7} parent=5 // pred_fallthru
        _
    $region6: #{mixed_4b_forward.7} parent=1 // loop_footer
      %s14 = sadd.s32 1, %s10
    $region7: #{mixed_4b_forward.7} parent=1 // loop_footer_branch
      %9 = sbr.rel target = $region3
    $region8: #{mixed_4b_forward.7} parent=1 // loop_exit
      _

// kernel: mixed_4b_forward.6
$region0: #{mixed_4b_forward.6}
  #allocation0 [shape = 'u32[]', space=smem, size = 0x4, offset = 0x4, fixed_abs, tag = 'smem constant byte address 0x4 - core index']
  #allocation1 [shape = 'u32[144,128]{1,0:T(1,128)}', space=vmem, size = 0x12000, scoped, tag = 'internal scratch']
  %s0 = inlined_call_operand.vmem [shape: bf16[4,10,10,96], index: 0, kind: input, shape index: {}]
  %s1 = inlined_call_operand.vmem [shape: bf16[9,96,208], index: 1, kind: input, shape index: {}]
  %s2 = inlined_call_operand.vmem [shape: f32[1,208], index: 2, kind: input, shape index: {}]
  %s3 = inlined_call_operand.vmem [shape: f32[1,208], index: 3, kind: input, shape index: {}]
  %s4 = inlined_call_operand.vmem [shape: bf16[4,8,8,208], index: 4, kind: output, shape index: {}]
  %s5 = sld [smem:[#allocation0]]
  $region49: #{mixed_4b_forward.6} parent=0
    _
  %s7 = ssub.s32 1, %s5
  %s8 = scalar_select 0, %s7, %s5
  loop: start=0, step=1, limit=6
  $region2: #{mixed_4b_forward.6} parent=0 // loop_pre_header
    _
  $region3: #{mixed_4b_forward.6} parent=0 // loop_header
    %s10 = sphi 0, %s14
    %p11 = scmp.ge.s32.totalorder %s10, 6
    %s20 = sphi 0, %s22
    %s23 = sphi 0, %s20
    %s24 = sphi 0, %s23
    %s40 = sphi 0, %s24
    %s44 = sphi 0, %s44
    %s46 = sphi 0, %s44
    %s47 = sphi 0, %s46
    %s61 = sphi 0, %s47
    %s65 = sphi 0, %s65
    %s67 = sphi 0, %s65
    %s68 = sphi 0, %s67
    %s82 = sphi 0, %s68
    %s86 = sphi 0, %s86
    %s88 = sphi 0, %s86
    %s89 = sphi 0, %s88
    %s103 = sphi 0, %s89
    %s109 = sphi 0, %s111
    %s112 = sphi 0, %s109
    %s113 = sphi 0, %s112
    %s129 = sphi 0, %s113
  $region4: #{mixed_4b_forward.6} parent=0 // loop_header_branch
    %13 = sbr.rel (%p11) target = $region8
  $region5: #{mixed_4b_forward.6} parent=0 // loop_body
    %s15 = ssub.s32 %s10, 1
    %s16 = ssub.s32 %s10, 2
    %s17 = sadd.s32 %s10, 1
    %s18 = ssub.s32 %s10, %s17
    %p19 = scmp.eq.s32.totalorder %s18, 0
    %s21 = sadd.s32 %s20, 1
    %s22 = scalar_select %p19, %s20, %s21
    %p25 = pneg %p19
    %p26 = scmp.eq.s32.totalorder %s10, 3
    %p27 = por %p25, %p26
    %p28 = scmp.ne.s32.totalorder %s20, %s23
    %p29 = scmp.eq.s32.totalorder %s10, 0
    %p30 = por %p28, %p29
    %p31 = scmp.ne.s32.totalorder %s20, %s23
    %p32 = scmp.eq.s32.totalorder %s15, 3
    %p33 = por %p31, %p32
    %p34 = scmp.ne.s32.totalorder %s23, %s24
    %p35 = scmp.eq.s32.totalorder %s15, 0
    %p36 = por %p34, %p35
    %p37 = scmp.ne.s32.totalorder %s23, %s24
    %p38 = scmp.eq.s32.totalorder %s16, 3
    %p39 = por %p37, %p38
    %p41 = scmp.ne.s32.totalorder %s24, %s40
    %p42 = scmp.eq.s32.totalorder %s16, 0
    %p43 = por %p41, %p42
    %s45 = sadd.s32 %s44, 1
    %p48 = scmp.eq.s32.totalorder %s10, 3
    %p49 = scmp.ne.s32.totalorder %s44, %s46
    %p50 = scmp.eq.s32.totalorder %s10, 0
    %p51 = por %p49, %p50
    %p52 = scmp.ne.s32.totalorder %s44, %s46
    %p53 = scmp.eq.s32.totalorder %s15, 3
    %p54 = por %p52, %p53
    %p55 = scmp.ne.s32.totalorder %s46, %s47
    %p56 = scmp.eq.s32.totalorder %s15, 0
    %p57 = por %p55, %p56
    %p58 = scmp.ne.s32.totalorder %s46, %s47
    %p59 = scmp.eq.s32.totalorder %s16, 3
    %p60 = por %p58, %p59
    %p62 = scmp.ne.s32.totalorder %s47, %s61
    %p63 = scmp.eq.s32.totalorder %s16, 0
    %p64 = por %p62, %p63
    %s66 = sadd.s32 %s65, 1
    %p69 = scmp.eq.s32.totalorder %s10, 3
    %p70 = scmp.ne.s32.totalorder %s65, %s67
    %p71 = scmp.eq.s32.totalorder %s10, 0
    %p72 = por %p70, %p71
    %p73 = scmp.ne.s32.totalorder %s65, %s67
    %p74 = scmp.eq.s32.totalorder %s15, 3
    %p75 = por %p73, %p74
    %p76 = scmp.ne.s32.totalorder %s67, %s68
    %p77 = scmp.eq.s32.totalorder %s15, 0
    %p78 = por %p76, %p77
    %p79 = scmp.ne.s32.totalorder %s67, %s68
    %p80 = scmp.eq.s32.totalorder %s16, 3
    %p81 = por %p79, %p80
    %p83 = scmp.ne.s32.totalorder %s68, %s82
    %p84 = scmp.eq.s32.totalorder %s16, 0
    %p85 = por %p83, %p84
    %s87 = sadd.s32 %s86, 1
    %p90 = scmp.eq.s32.totalorder %s10, 3
    %p91 = scmp.ne.s32.totalorder %s86, %s88
    %p92 = scmp.eq.s32.totalorder %s10, 0
    %p93 = por %p91, %p92
    %p94 = scmp.ne.s32.totalorder %s86, %s88
    %p95 = scmp.eq.s32.totalorder %s15, 3
    %p96 = por %p94, %p95
    %p97 = scmp.ne.s32.totalorder %s88, %s89
    %p98 = scmp.eq.s32.totalorder %s15, 0
    %p99 = por %p97, %p98
    %p100 = scmp.ne.s32.totalorder %s88, %s89
    %p101 = scmp.eq.s32.totalorder %s16, 3
    %p102 = por %p100, %p101
    %p104 = scmp.ne.s32.totalorder %s89, %s103
    %p105 = scmp.eq.s32.totalorder %s16, 0
    %p106 = por %p104, %p105
    %s107 = ssub.s32 %s10, %s17
    %p108 = scmp.eq.s32.totalorder %s107, 0
    %s110 = sadd.s32 %s109, 1
    %s111 = scalar_select %p108, %s109, %s110
    %p114 = pneg %p108
    %p115 = scmp.eq.s32.totalorder %s10, 3
    %p116 = por %p114, %p115
    %p117 = scmp.ne.s32.totalorder %s109, %s112
    %p118 = scmp.eq.s32.totalorder %s10, 0
    %p119 = por %p117, %p118
    %p120 = scmp.ne.s32.totalorder %s109, %s112
    %p121 = scmp.eq.s32.totalorder %s15, 3
    %p122 = por %p120, %p121
    %p123 = scmp.ne.s32.totalorder %s112, %s113
    %p124 = scmp.eq.s32.totalorder %s15, 0
    %p125 = por %p123, %p124
    %p126 = scmp.ne.s32.totalorder %s112, %s113
    %p127 = scmp.eq.s32.totalorder %s16, 3
    %p128 = por %p126, %p127
    %p130 = scmp.ne.s32.totalorder %s113, %s129
    %p131 = scmp.eq.s32.totalorder %s16, 0
    %p132 = por %p130, %p131
    %p133 = scmp.le.s32.totalorder 1, %s10
    %p134 = scmp.lt.s32.totalorder %s10, 5
    %p135 = pnand %p133, %p134
    %p136 = pneg %p135
    // Predicated region
    $region9: #{mixed_4b_forward.6} parent=5 // pred_check
      _
    $region10: #{mixed_4b_forward.6} parent=5 // pred_check_branch
      %138 = sbr.rel (%p135) target = $region12
    $region11: #{mixed_4b_forward.6} parent=5 // pred_region
      %s139 = ssub.s32 %s10, 1
      // Predicated region
      $region13: #{mixed_4b_forward.6} parent=11 // pred_check
        %p140 = pneg %p57
      $region14: #{mixed_4b_forward.6} parent=11 // pred_check_branch
        %142 = sbr.rel (%p140) target = $region16
      $region15: #{mixed_4b_forward.6} parent=11 // pred_region
        _
      $region16: #{mixed_4b_forward.6} parent=11 // pred_fallthru
        _
      // Predicated region
      $region17: #{mixed_4b_forward.6} parent=11 // pred_check
        %p143 = pneg %p78
      $region18: #{mixed_4b_forward.6} parent=11 // pred_check_branch
        %145 = sbr.rel (%p143) target = $region20
      $region19: #{mixed_4b_forward.6} parent=11 // pred_region
        _
      $region20: #{mixed_4b_forward.6} parent=11 // pred_fallthru
        _
      // Predicated region
      $region21: #{mixed_4b_forward.6} parent=11 // pred_check
        %p146 = pneg %p99
      $region22: #{mixed_4b_forward.6} parent=11 // pred_check_branch
        %148 = sbr.rel (%p146) target = $region24
      $region23: #{mixed_4b_forward.6} parent=11 // pred_region
        _
      $region24: #{mixed_4b_forward.6} parent=11 // pred_fallthru
        _
    $region12: #{mixed_4b_forward.6} parent=5 // pred_fallthru
      _
    %p149 = scmp.lt.s32.totalorder %s10, 4
    // Predicated region
    $region25: #{mixed_4b_forward.6} parent=5 // pred_check
      %p150 = pneg %p149
    $region26: #{mixed_4b_forward.6} parent=5 // pred_check_branch
      %152 = sbr.rel (%p150) target = $region28
    $region27: #{mixed_4b_forward.6} parent=5 // pred_region
      // Predicated region
      $region29: #{mixed_4b_forward.6} parent=27 // pred_check
        %p153 = pneg %p30
      $region30: #{mixed_4b_forward.6} parent=27 // pred_check_branch
        %155 = sbr.rel (%p153) target = $region32
      $region31: #{mixed_4b_forward.6} parent=27 // pred_region
        %p156 = scmp.lt.s32.totalorder %s10, 3
        %s157 = scalar_select %p156, %s10, 3
        %s158 = smul.addr %s157, 20
        %s159 = smul.addr %s158, 4
        %s160 = scalar_lea.vmem %s0, %s159
      $region32: #{mixed_4b_forward.6} parent=27 // pred_fallthru
        _
    $region28: #{mixed_4b_forward.6} parent=5 // pred_fallthru
      _
    %p161 = scmp.le.s32.totalorder 1, %s10
    %p162 = scmp.lt.s32.totalorder %s10, 5
    %p163 = pnand %p161, %p162
    %p164 = pneg %p163
    // Predicated region
    $region33: #{mixed_4b_forward.6} parent=5 // pred_check
      _
    $region34: #{mixed_4b_forward.6} parent=5 // pred_check_branch
      %166 = sbr.rel (%p163) target = $region36
    $region35: #{mixed_4b_forward.6} parent=5 // pred_region
      %s167 = ssub.s32 %s10, 1
      %p168 = scmp.lt.s32.totalorder %s15, 3
      %s169 = scalar_select %p168, %s15, 3
      %s170 = smul.addr %s169, 20
      %s171 = smul.addr %s170, 4
      %s172 = scalar_lea.vmem %s0, %s171
      %p173 = pneg %p36
      %p174 = pneg %p33
      %p175 = pneg %p57
      %p176 = pneg %p54
      %p177 = pneg %p78
      %p178 = pneg %p75
      %p179 = pneg %p99
      %p180 = pneg %p96
      %p181 = pneg %p125
      %p182 = pneg %p122
      %p183 = scmp.lt.s32.totalorder %s15, 3
      %s184 = scalar_select %p183, %s15, 3
      %s185 = smul.addr %s184, 16
      %s186 = smul.addr %s185, 4
      %s187 = scalar_lea.vmem %s4, %s186
      %p188 = scmp.lt.s32.totalorder %s15, 3
      %s189 = scalar_select %p188, %s15, 3
      %s190 = smul.addr %s189, 20
      %s191 = smul.addr %s190, 4
      %s192 = scalar_lea.vmem %s0, %s191
      %p193 = scmp.lt.s32.totalorder %s15, 3
      %s194 = scalar_select %p193, %s15, 3
      %s195 = smul.addr %s194, 16
      %s196 = smul.addr %s195, 4
      %s197 = scalar_lea.vmem %s4, %s196
      %v199 = vld [vmem:[%s192] sm:$0xf]
      %v200 = vld [vmem:[%s192 + $0x4] sm:$0x1]
      %v201 = vld [vmem:[%s192 + $0x8] sm:$0xf]
      %v202 = vld [vmem:[%s192 + $0xc] sm:$0x1]
      %v203 = vld [vmem:[%s192 + $0x10] sm:$0xf]
      %v204 = vld [vmem:[%s192 + $0x14] sm:$0x1]
      %v205 = vld [vmem:[%s192 + $0x18] sm:$0xf]
      %v206 = vld [vmem:[%s192 + $0x1c] sm:$0x1]
      %v207 = vld [vmem:[%s192 + $0x20] sm:$0xf]
      %v208 = vld [vmem:[%s192 + $0x24] sm:$0x1]
      %v209 = vld [vmem:[%s192 + $0x28] sm:$0xf]
      %v210 = vld [vmem:[%s192 + $0x2c] sm:$0x1]
      %v211 = vld [vmem:[%s192 + $0x30] sm:$0xf]
      %v212 = vld [vmem:[%s192 + $0x34] sm:$0x1]
      %v213 = vld [vmem:[%s192 + $0x38] sm:$0xf]
      %v214 = vld [vmem:[%s192 + $0x3c] sm:$0x1]
      %v215 = vld [vmem:[%s192 + $0x40] sm:$0xf]
      %v216 = vld [vmem:[%s192 + $0x44] sm:$0x1]
      %v217 = vld [vmem:[%s192 + $0x48] sm:$0xf]
      %v218 = vld [vmem:[%s192 + $0x4c] sm:$0x1]
      %v219 = vld [vmem:[%s1] sm:$0xff]
      %v220 = vld [vmem:[%s1 + $0x8] sm:$0xff]
      %v221 = vld [vmem:[%s1 + $0x10] sm:$0xff]
      %v222 = vld [vmem:[%s1 + $0x18] sm:$0xff]
      %v223 = vld [vmem:[%s1 + $0x20] sm:$0xff]
      %v224 = vld [vmem:[%s1 + $0x28] sm:$0xff]
      %v225 = vld [vmem:[%s1 + $0x30] sm:$0xff]
      %v226 = vld [vmem:[%s1 + $0x38] sm:$0xff]
      %v227 = vld [vmem:[%s1 + $0x40] sm:$0xff]
      %v228 = vld [vmem:[%s1 + $0x48] sm:$0xff]
      %v229 = vld [vmem:[%s1 + $0x50] sm:$0xff]
      %v230 = vld [vmem:[%s1 + $0x58] sm:$0xff]
      %vm231 = vsmask.f32 3328
      %vm232 = vsmask.f32 7440
      %vm233 = vmor %vm231, %vm232
      %v235 = vshrl.u32 %v199, 16
      %v237 = vrot.slane %v235, 4
      %v238 = vshll.u32 %v199, 16
      %v240 = vrot.slane %v238, 5
      %v241 = vor.u32 %v237, %v240
      %v242 = vrot.slane %v241, 4
      %v244 = vshll.u32 %v200, 16
      %v246 = vrot.slane %v244, 5
      %v247 = vsel %vm233, %v242, %v246
      %v249 = vshrl.u32 %v201, 16
      %v251 = vrot.slane %v249, 4
      %v252 = vshll.u32 %v201, 16
      %v254 = vrot.slane %v252, 5
      %v255 = vor.u32 %v251, %v254
      %v256 = vrot.slane %v255, 4
      %v258 = vshll.u32 %v202, 16
      %v260 = vrot.slane %v258, 5
      %v261 = vsel %vm233, %v256, %v260
      %v263 = vshrl.u32 %v203, 16
      %v265 = vrot.slane %v263, 4
      %v266 = vshll.u32 %v203, 16
      %v268 = vrot.slane %v266, 5
      %v269 = vor.u32 %v265, %v268
      %v270 = vrot.slane %v269, 4
      %v272 = vshll.u32 %v204, 16
      %v274 = vrot.slane %v272, 5
      %v275 = vsel %vm233, %v270, %v274
      %v277 = vshrl.u32 %v205, 16
      %v279 = vrot.slane %v277, 4
      %v280 = vshll.u32 %v205, 16
      %v282 = vrot.slane %v280, 5
      %v283 = vor.u32 %v279, %v282
      %v284 = vrot.slane %v283, 4
      %v286 = vshll.u32 %v206, 16
      %v288 = vrot.slane %v286, 5
      %v289 = vsel %vm233, %v284, %v288
      %v291 = vshrl.u32 %v207, 16
      %v293 = vrot.slane %v291, 4
      %v294 = vshll.u32 %v207, 16
      %v296 = vrot.slane %v294, 5
      %v297 = vor.u32 %v293, %v296
      %v298 = vrot.slane %v297, 4
      %v300 = vshll.u32 %v208, 16
      %v302 = vrot.slane %v300, 5
      %v303 = vsel %vm233, %v298, %v302
      %v305 = vshrl.u32 %v209, 16
      %v307 = vrot.slane %v305, 4
      %v308 = vshll.u32 %v209, 16
      %v310 = vrot.slane %v308, 5
      %v311 = vor.u32 %v307, %v310
      %v312 = vrot.slane %v311, 4
      %v314 = vshll.u32 %v210, 16
      %v316 = vrot.slane %v314, 5
      %v317 = vsel %vm233, %v312, %v316
      %v319 = vshrl.u32 %v211, 16
      %v321 = vrot.slane %v319, 4
      %v322 = vshll.u32 %v211, 16
      %v324 = vrot.slane %v322, 5
      %v325 = vor.u32 %v321, %v324
      %v326 = vrot.slane %v325, 4
      %v328 = vshll.u32 %v212, 16
      %v330 = vrot.slane %v328, 5
      %v331 = vsel %vm233, %v326, %v330
      %v333 = vshrl.u32 %v213, 16
      %v335 = vrot.slane %v333, 4
      %v336 = vshll.u32 %v213, 16
      %v338 = vrot.slane %v336, 5
      %v339 = vor.u32 %v335, %v338
      %v340 = vrot.slane %v339, 4
      %v342 = vshll.u32 %v214, 16
      %v344 = vrot.slane %v342, 5
      %v345 = vsel %vm233, %v340, %v344
      %s346 = scalar_lea.vmem %s1, 96
      %v347 = vld [vmem:[%s346] sm:$0xff]
      %v348 = vld [vmem:[%s346 + $0x8] sm:$0xff]
      %v349 = vld [vmem:[%s346 + $0x10] sm:$0xff]
      %v350 = vld [vmem:[%s346 + $0x18] sm:$0xff]
      %v351 = vld [vmem:[%s346 + $0x20] sm:$0xff]
      %v352 = vld [vmem:[%s346 + $0x28] sm:$0xff]
      %v353 = vld [vmem:[%s346 + $0x30] sm:$0xff]
      %v354 = vld [vmem:[%s346 + $0x38] sm:$0xff]
      %v355 = vld [vmem:[%s346 + $0x40] sm:$0xff]
      %v356 = vld [vmem:[%s346 + $0x48] sm:$0xff]
      %v357 = vld [vmem:[%s346 + $0x50] sm:$0xff]
      %v358 = vld [vmem:[%s346 + $0x58] sm:$0xff]
      %v359 = vunpack.c.l.b16 %v247
      %v360 = vunpack.c.l.b16 %v261
      %v361 = vunpack.c.l.b16 %v275
      %v362 = vunpack.c.l.b16 %v289
      %v363 = vunpack.c.l.b16 %v303
      %v364 = vunpack.c.l.b16 %v317
      %v365 = vunpack.c.l.b16 %v331
      %v366 = vunpack.c.l.b16 %v345
      %v367 = vpack.c.b16 %v360, %v359
      %v368 = vpack.c.b16 %v362, %v361
      %v369 = vpack.c.b16 %v364, %v363
      %v370 = vpack.c.b16 %v366, %v365
      %v383 = vunpack.c.l.b16 %v347
      %v384 = vunpack.c.h.b16 %v347
      %v385 = vunpack.c.l.b16 %v348
      %v386 = vunpack.c.h.b16 %v348
      %v387 = vunpack.c.l.b16 %v349
      %v388 = vunpack.c.h.b16 %v349
      %v389 = vunpack.c.l.b16 %v350
      %v390 = vunpack.c.h.b16 %v350
      %v391 = vunpack.c.l.b16 %v351
      %v392 = vunpack.c.h.b16 %v351
      %v393 = vunpack.c.l.b16 %v352
      %v394 = vunpack.c.h.b16 %v352
      %v395 = vunpack.c.l.b16 %v353
      %v396 = vunpack.c.h.b16 %v353
      %v397 = vunpack.c.l.b16 %v354
      %v398 = vunpack.c.h.b16 %v354
      %v399 = vunpack.c.l.b16 %v355
      %v400 = vunpack.c.h.b16 %v355
      %v401 = vunpack.c.l.b16 %v356
      %v402 = vunpack.c.h.b16 %v356
      %v403 = vunpack.c.l.b16 %v357
      %v404 = vunpack.c.h.b16 %v357
      %v405 = vunpack.c.l.b16 %v358
      %v406 = vunpack.c.h.b16 %v358
      %v407 = vpack.c.b16 %v385, %v383
      %v408 = vpack.c.b16 %v386, %v384
      %v409 = vpack.c.b16 %v389, %v387
      %v410 = vpack.c.b16 %v390, %v388
      %v411 = vpack.c.b16 %v393, %v391
      %v412 = vpack.c.b16 %v394, %v392
      %v413 = vpack.c.b16 %v397, %v395
      %v414 = vpack.c.b16 %v398, %v396
      %v415 = vpack.c.b16 %v401, %v399
      %v416 = vpack.c.b16 %v402, %v400
      %v417 = vpack.c.b16 %v405, %v403
      %v418 = vpack.c.b16 %v406, %v404
      %vm431 = vcmask 785408
      %v433 = vsel %vm431, %v367, 0
      %v436 = vsel %vm431, %v368, 0
      %v439 = vsel %vm431, %v369, 0
      %v442 = vsel %vm431, %v370, 0
      %444 = vmatprep.subr.bf16.mxu0 %v408
      %445 = vmatpush1.bf16.msra.mxu0 %v407
      %446 = vmatprep.subr.bf16.mxu0 %v410
      %447 = vmatpush1.bf16.msra.mxu0 %v409
      %448 = vmatprep.subr.bf16.mxu0 %v412
      %449 = vmatpush1.bf16.msra.mxu0 %v411
      %450 = vmatprep.subr.bf16.mxu0 %v414
      %451 = vmatpush1.bf16.msra.mxu0 %v413
      %452 = vmatprep.subr.bf16.mxu0 %v416
      %453 = vmatpush1.bf16.msra.mxu0 %v415
      %454 = vmatprep.subr.bf16.mxu0 %v418
      %455 = vmatpush1.bf16.msra.mxu0 %v417
      %456 = vmatprep.subr.bf16.mxu0 0
      %457 = vmatpush1.bf16.msra.mxu0 0
      %458 = vmatprep.subr.bf16.mxu0 0
      %459 = vmatpush1.bf16.msra.mxu0 0
      %460 = vmatprep.subr.bf16.mxu0 0
      %461 = vmatpush1.bf16.msra.mxu0 0
      %462 = vmatprep.subr.bf16.mxu0 0
      %463 = vmatpush1.bf16.msra.mxu0 0
      %464 = vmatprep.subr.bf16.mxu0 0
      %465 = vmatpush1.bf16.msra.mxu0 0
      %466 = vmatprep.subr.bf16.mxu0 0
      %467 = vmatpush1.bf16.msra.mxu0 0
      %468 = vmatprep.subr.bf16.mxu0 0
      %469 = vmatpush1.bf16.msra.mxu0 0
      %470 = vmatprep.subr.bf16.mxu0 0
      %471 = vmatpush1.bf16.msra.mxu0 0
      %472 = vmatprep.subr.bf16.mxu0 0
      %473 = vmatpush1.bf16.msra.mxu0 0
      %474 = vmatprep.subr.bf16.mxu0 0
      %475 = vmatpush1.bf16.msra.mxu0 0
      %476 = vmatprep.mubr.bf16.mxu0 0
      %477 = vmatmul.mubr.bf16.gmra.mrb[0].mxu0 %v433
      %v478 = vpop.f32.mrb[0].mxu0
      %v479 = vadd.f32 0.0, %v478
      %v480 = vpop.f32.mrb[0].mxu0
      %v481 = vadd.f32 0.0, %v480
      %v482 = vpop.f32.mrb[0].mxu0
      %v483 = vadd.f32 0.0, %v482
      %v484 = vpop.f32.mrb[0].mxu0
      %v485 = vadd.f32 0.0, %v484
      %486 = vmatprep.mubr.bf16.mxu0 0
      %487 = vmatmul.mubr.bf16.gmra.mrb[0].mxu0 %v436
      %v488 = vpop.f32.mrb[0].mxu0
      %v489 = vadd.f32 0.0, %v488
      %v490 = vpop.f32.mrb[0].mxu0
      %v491 = vadd.f32 0.0, %v490
      %v492 = vpop.f32.mrb[0].mxu0
      %v493 = vadd.f32 0.0, %v492
      %v494 = vpop.f32.mrb[0].mxu0
      %v495 = vadd.f32 0.0, %v494
      %496 = vmatprep.mubr.bf16.mxu0 0
      %497 = vmatmul.mubr.bf16.gmra.mrb[0].mxu0 %v439
      %v498 = vpop.f32.mrb[0].mxu0
      %v499 = vadd.f32 0.0, %v498
      %v500 = vpop.f32.mrb[0].mxu0
      %v501 = vadd.f32 0.0, %v500
      %v502 = vpop.f32.mrb[0].mxu0
      %v503 = vadd.f32 0.0, %v502
      %v504 = vpop.f32.mrb[0].mxu0
      %v505 = vadd.f32 0.0, %v504
      %506 = vmatprep.mubr.bf16.mxu0 0
      %507 = vmatmul.mubr.bf16.gmra.mrb[0].mxu0 %v442
      %v508 = vpop.f32.mrb[0].mxu0
      %v509 = vadd.f32 0.0, %v508
      %v510 = vpop.f32.mrb[0].mxu0
      %v511 = vadd.f32 0.0, %v510
      %v512 = vpop.f32.mrb[0].mxu0
      %v513 = vadd.f32 0.0, %v512
      %v514 = vpop.f32.mrb[0].mxu0
      %v515 = vadd.f32 0.0, %v514
      %516 = vdwg.mxu0
      %v525 = vunpack.c.l.b16 %v199
      %v526 = vunpack.c.l.b16 %v201
      %v527 = vunpack.c.l.b16 %v203
      %v528 = vunpack.c.l.b16 %v205
      %v529 = vunpack.c.l.b16 %v207
      %v530 = vunpack.c.l.b16 %v209
      %v531 = vunpack.c.l.b16 %v211
      %v532 = vunpack.c.l.b16 %v213
      %v533 = vpack.c.b16 %v526, %v525
      %v534 = vpack.c.b16 %v528, %v527
      %v535 = vpack.c.b16 %v530, %v529
      %v536 = vpack.c.b16 %v532, %v531
      %v549 = vunpack.c.l.b16 %v219
      %v550 = vunpack.c.h.b16 %v219
      %v551 = vunpack.c.l.b16 %v220
      %v552 = vunpack.c.h.b16 %v220
      %v553 = vunpack.c.l.b16 %v221
      %v554 = vunpack.c.h.b16 %v221
      %v555 = vunpack.c.l.b16 %v222
      %v556 = vunpack.c.h.b16 %v222
      %v557 = vunpack.c.l.b16 %v223
      %v558 = vunpack.c.h.b16 %v223
      %v559 = vunpack.c.l.b16 %v224
      %v560 = vunpack.c.h.b16 %v224
      %v561 = vunpack.c.l.b16 %v225
      %v562 = vunpack.c.h.b16 %v225
      %v563 = vunpack.c.l.b16 %v226
      %v564 = vunpack.c.h.b16 %v226
      %v565 = vunpack.c.l.b16 %v227
      %v566 = vunpack.c.h.b16 %v227
      %v567 = vunpack.c.l.b16 %v228
      %v568 = vunpack.c.h.b16 %v228
      %v569 = vunpack.c.l.b16 %v229
      %v570 = vunpack.c.h.b16 %v229
      %v571 = vunpack.c.l.b16 %v230
      %v572 = vunpack.c.h.b16 %v230
      %v573 = vpack.c.b16 %v551, %v549
      %v574 = vpack.c.b16 %v552, %v550
      %v575 = vpack.c.b16 %v555, %v553
      %v576 = vpack.c.b16 %v556, %v554
      %v577 = vpack.c.b16 %v559, %v557
      %v578 = vpack.c.b16 %v560, %v558
      %v579 = vpack.c.b16 %v563, %v561
      %v580 = vpack.c.b16 %v564, %v562
      %v581 = vpack.c.b16 %v567, %v565
      %v582 = vpack.c.b16 %v568, %v566
      %v583 = vpack.c.b16 %v571, %v569
      %v584 = vpack.c.b16 %v572, %v570
      %v598 = vsel %vm431, %v533, 0
      %v601 = vsel %vm431, %v534, 0
      %v604 = vsel %vm431, %v535, 0
      %v607 = vsel %vm431, %v536, 0
      %609 = vmatprep.subr.bf16.mxu0 %v574
      %610 = vmatpush1.bf16.msra.mxu0 %v573
      %611 = vmatprep.subr.bf16.mxu0 %v576
      %612 = vmatpush1.bf16.msra.mxu0 %v575
      %613 = vmatprep.subr.bf16.mxu0 %v578
      %614 = vmatpush1.bf16.msra.mxu0 %v577
      %615 = vmatprep.subr.bf16.mxu0 %v580
      %616 = vmatpush1.bf16.msra.mxu0 %v579
      %617 = vmatprep.subr.bf16.mxu0 %v582
      %618 = vmatpush1.bf16.msra.mxu0 %v581
      %619 = vmatprep.subr.bf16.mxu0 %v584
      %620 = vmatpush1.bf16.msra.mxu0 %v583
      %621 = vmatprep.subr.bf16.mxu0 0
      %622 = vmatpush1.bf16.msra.mxu0 0
      %623 = vmatprep.subr.bf16.mxu0 0
      %624 = vmatpush1.bf16.msra.mxu0 0
      %625 = vmatprep.subr.bf16.mxu0 0
      %626 = vmatpush1.bf16.msra.mxu0 0
      %627 = vmatprep.subr.bf16.mxu0 0
      %628 = vmatpush1.bf16.msra.mxu0 0
      %629 = vmatprep.subr.bf16.mxu0 0
      %630 = vmatpush1.bf16.msra.mxu0 0
      %631 = vmatprep.subr.bf16.mxu0 0
      %632 = vmatpush1.bf16.msra.mxu0 0
      %633 = vmatprep.subr.bf16.mxu0 0
      %634 = vmatpush1.bf16.msra.mxu0 0
      %635 = vmatprep.subr.bf16.mxu0 0
      %636 = vmatpush1.bf16.msra.mxu0 0
      %637 = vmatprep.subr.bf16.mxu0 0
      %638 = vmatpush1.bf16.msra.mxu0 0
      %639 = vmatprep.subr.bf16.mxu0 0
      %640 = vmatpush1.bf16.msra.mxu0 0
      %641 = vmatprep.mubr.bf16.mxu0 0
      %642 = vmatmul.mubr.bf16.gmra.mrb[0].mxu0 %v598
      %v643 = vpop.f32.mrb[0].mxu0
      %v644 = vadd.f32 %v479, %v643
      %v645 = vpop.f32.mrb[0].mxu0
      %v646 = vadd.f32 %v481, %v645
      %v647 = vpop.f32.mrb[0].mxu0
      %v648 = vadd.f32 %v483, %v647
      %v649 = vpop.f32.mrb[0].mxu0
      %v650 = vadd.f32 %v485, %v649
      %651 = vmatprep.mubr.bf16.mxu0 0
      %652 = vmatmul.mubr.bf16.gmra.mrb[0].mxu0 %v601
      %v653 = vpop.f32.mrb[0].mxu0
      %v654 = vadd.f32 %v489, %v653
      %v655 = vpop.f32.mrb[0].mxu0
      %v656 = vadd.f32 %v491, %v655
      %v657 = vpop.f32.mrb[0].mxu0
      %v658 = vadd.f32 %v493, %v657
      %v659 = vpop.f32.mrb[0].mxu0
      %v660 = vadd.f32 %v495, %v659
      %661 = vmatprep.mubr.bf16.mxu0 0
      %662 = vmatmul.mubr.bf16.gmra.mrb[0].mxu0 %v604
      %v663 = vpop.f32.mrb[0].mxu0
      %v664 = vadd.f32 %v499, %v663
      %v665 = vpop.f32.mrb[0].mxu0
      %v666 = vadd.f32 %v501, %v665
      %v667 = vpop.f32.mrb[0].mxu0
      %v668 = vadd.f32 %v503, %v667
      %v669 = vpop.f32.mrb[0].mxu0
      %v670 = vadd.f32 %v505, %v669
      %671 = vmatprep.mubr.bf16.mxu0 0
      %672 = vmatmul.mubr.bf16.gmra.mrb[0].mxu0 %v607
      %v673 = vpop.f32.mrb[0].mxu0
      %v674 = vadd.f32 %v509, %v673
      %v675 = vpop.f32.mrb[0].mxu0
      %v676 = vadd.f32 %v511, %v675
      %v677 = vpop.f32.mrb[0].mxu0
      %v678 = vadd.f32 %v513, %v677
      %v679 = vpop.f32.mrb[0].mxu0
      %v680 = vadd.f32 %v515, %v679
      %681 = vdwg.mxu0
      %vm690 = vcmask 1042432
      %vm691 = vcmask 1046532
      %vm692 = vmor %vm690, %vm691
      %v693 = vrot.slane %v199, 5
      %v694 = vrot.slane %v693, 4
      %v695 = vrot.slane %v200, 5
      %v696 = vsel %vm692, %v694, %v695
      %v697 = vrot.slane %v201, 5
      %v698 = vrot.slane %v697, 4
      %v699 = vrot.slane %v202, 5
      %v700 = vsel %vm692, %v698, %v699
      %v701 = vrot.slane %v203, 5
      %v702 = vrot.slane %v701, 4
      %v703 = vrot.slane %v204, 5
      %v704 = vsel %vm692, %v702, %v703
      %v705 = vrot.slane %v205, 5
      %v706 = vrot.slane %v705, 4
      %v707 = vrot.slane %v206, 5
      %v708 = vsel %vm692, %v706, %v707
      %v709 = vrot.slane %v207, 5
      %v710 = vrot.slane %v709, 4
      %v711 = vrot.slane %v208, 5
      %v712 = vsel %vm692, %v710, %v711
      %v713 = vrot.slane %v209, 5
      %v714 = vrot.slane %v713, 4
      %v715 = vrot.slane %v210, 5
      %v716 = vsel %vm692, %v714, %v715
      %v717 = vrot.slane %v211, 5
      %v718 = vrot.slane %v717, 4
      %v719 = vrot.slane %v212, 5
      %v720 = vsel %vm692, %v718, %v719
      %v721 = vrot.slane %v213, 5
      %v722 = vrot.slane %v721, 4
      %v723 = vrot.slane %v214, 5
      %v724 = vsel %vm692, %v722, %v723
      %s725 = scalar_lea.vmem %s1, 192
      %v726 = vld [vmem:[%s725] sm:$0xff]
      %v727 = vld [vmem:[%s725 + $0x8] sm:$0xff]
      %v728 = vld [vmem:[%s725 + $0x10] sm:$0xff]
      %v729 = vld [vmem:[%s725 + $0x18] sm:$0xff]
      %v730 = vld [vmem:[%s725 + $0x20] sm:$0xff]
      %v731 = vld [vmem:[%s725 + $0x28] sm:$0xff]
      %v732 = vld [vmem:[%s725 + $0x30] sm:$0xff]
      %v733 = vld [vmem:[%s725 + $0x38] sm:$0xff]
      %v734 = vld [vmem:[%s725 + $0x40] sm:$0xff]
      %v735 = vld [vmem:[%s725 + $0x48] sm:$0xff]
      %v736 = vld [vmem:[%s725 + $0x50] sm:$0xff]
      %v737 = vld [vmem:[%s725 + $0x58] sm:$0xff]
      %v738 = vunpack.c.l.b16 %v696
      %v739 = vunpack.c.l.b16 %v700
      %v740 = vunpack.c.l.b16 %v704
      %v741 = vunpack.c.l.b16 %v708
      %v742 = vunpack.c.l.b16 %v712
      %v743 = vunpack.c.l.b16 %v716
      %v744 = vunpack.c.l.b16 %v720
      %v745 = vunpack.c.l.b16 %v724
      %v746 = vpack.c.b16 %v739, %v738
      %v747 = vpack.c.b16 %v741, %v740
      %v748 = vpack.c.b16 %v743, %v742
      %v749 = vpack.c.b16 %v745, %v744
      %v762 = vunpack.c.l.b16 %v726
      %v763 = vunpack.c.h.b16 %v726
      %v764 = vunpack.c.l.b16 %v727
      %v765 = vunpack.c.h.b16 %v727
      %v766 = vunpack.c.l.b16 %v728
      %v767 = vunpack.c.h.b16 %v728
      %v768 = vunpack.c.l.b16 %v729
      %v769 = vunpack.c.h.b16 %v729
      %v770 = vunpack.c.l.b16 %v730
      %v771 = vunpack.c.h.b16 %v730
      %v772 = vunpack.c.l.b16 %v731
      %v773 = vunpack.c.h.b16 %v731
      %v774 = vunpack.c.l.b16 %v732
      %v775 = vunpack.c.h.b16 %v732
      %v776 = vunpack.c.l.b16 %v733
      %v777 = vunpack.c.h.b16 %v733
      %v778 = vunpack.c.l.b16 %v734
      %v779 = vunpack.c.h.b16 %v734
      %v780 = vunpack.c.l.b16 %v735
      %v781 = vunpack.c.h.b16 %v735
      %v782 = vunpack.c.l.b16 %v736
      %v783 = vunpack.c.h.b16 %v736
      %v784 = vunpack.c.l.b16 %v737
      %v785 = vunpack.c.h.b16 %v737
      %v786 = vpack.c.b16 %v764, %v762
      %v787 = vpack.c.b16 %v765, %v763
      %v788 = vpack.c.b16 %v768, %v766
      %v789 = vpack.c.b16 %v769, %v767
      %v790 = vpack.c.b16 %v772, %v770
      %v791 = vpack.c.b16 %v773, %v771
      %v792 = vpack.c.b16 %v776, %v774
      %v793 = vpack.c.b16 %v777, %v775
      %v794 = vpack.c.b16 %v780, %v778
      %v795 = vpack.c.b16 %v781, %v779
      %v796 = vpack.c.b16 %v784, %v782
      %v797 = vpack.c.b16 %v785, %v783
      %v811 = vsel %vm431, %v746, 0
      %v814 = vsel %vm431, %v747, 0
      %v817 = vsel %vm431, %v748, 0
      %v820 = vsel %vm431, %v749, 0
      %822 = vmatprep.subr.bf16.mxu0 %v787
      %823 = vmatpush1.bf16.msra.mxu0 %v786
      %824 = vmatprep.subr.bf16.mxu0 %v789
      %825 = vmatpush1.bf16.msra.mxu0 %v788
      %826 = vmatprep.subr.bf16.mxu0 %v791
      %827 = vmatpush1.bf16.msra.mxu0 %v790
      %828 = vmatprep.subr.bf16.mxu0 %v793
      %829 = vmatpush1.bf16.msra.mxu0 %v792
      %830 = vmatprep.subr.bf16.mxu0 %v795
      %831 = vmatpush1.bf16.msra.mxu0 %v794
      %832 = vmatprep.subr.bf16.mxu0 %v797
      %833 = vmatpush1.bf16.msra.mxu0 %v796
      %834 = vmatprep.subr.bf16.mxu0 0
      %835 = vmatpush1.bf16.msra.mxu0 0
      %836 = vmatprep.subr.bf16.mxu0 0
      %837 = vmatpush1.bf16.msra.mxu0 0
      %838 = vmatprep.subr.bf16.mxu0 0
      %839 = vmatpush1.bf16.msra.mxu0 0
      %840 = vmatprep.subr.bf16.mxu0 0
      %841 = vmatpush1.bf16.msra.mxu0 0
      %842 = vmatprep.subr.bf16.mxu0 0
      %843 = vmatpush1.bf16.msra.mxu0 0
      %844 = vmatprep.subr.bf16.mxu0 0
      %845 = vmatpush1.bf16.msra.mxu0 0
      %846 = vmatprep.subr.bf16.mxu0 0
      %847 = vmatpush1.bf16.msra.mxu0 0
      %848 = vmatprep.subr.bf16.mxu0 0
      %849 = vmatpush1.bf16.msra.mxu0 0
      %850 = vmatprep.subr.bf16.mxu0 0
      %851 = vmatpush1.bf16.msra.mxu0 0
      %852 = vmatprep.subr.bf16.mxu0 0
      %853 = vmatpush1.bf16.msra.mxu0 0
      %854 = vmatprep.mubr.bf16.mxu0 0
      %855 = vmatmul.mubr.bf16.gmra.mrb[0].mxu0 %v811
      %v856 = vpop.f32.mrb[0].mxu0
      %v857 = vadd.f32 0.0, %v856
      %v858 = vpop.f32.mrb[0].mxu0
      %v859 = vadd.f32 0.0, %v858
      %v860 = vpop.f32.mrb[0].mxu0
      %v861 = vadd.f32 0.0, %v860
      %v862 = vpop.f32.mrb[0].mxu0
      %v863 = vadd.f32 0.0, %v862
      %864 = vmatprep.mubr.bf16.mxu0 0
      %865 = vmatmul.mubr.bf16.gmra.mrb[0].mxu0 %v814
      %v866 = vpop.f32.mrb[0].mxu0
      %v867 = vadd.f32 0.0, %v866
      %v868 = vpop.f32.mrb[0].mxu0
      %v869 = vadd.f32 0.0, %v868
      %v870 = vpop.f32.mrb[0].mxu0
      %v871 = vadd.f32 0.0, %v870
      %v872 = vpop.f32.mrb[0].mxu0
      %v873 = vadd.f32 0.0, %v872
      %874 = vmatprep.mubr.bf16.mxu0 0
      %875 = vmatmul.mubr.bf16.gmra.mrb[0].mxu0 %v817
      %v876 = vpop.f32.mrb[0].mxu0
      %v877 = vadd.f32 0.0, %v876
      %v878 = vpop.f32.mrb[0].mxu0
      %v879 = vadd.f32 0.0, %v878
      %v880 = vpop.f32.mrb[0].mxu0
      %v881 = vadd.f32 0.0, %v880
      %v882 = vpop.f32.mrb[0].mxu0
      %v883 = vadd.f32 0.0, %v882
      %884 = vmatprep.mubr.bf16.mxu0 0
      %885 = vmatmul.mubr.bf16.gmra.mrb[0].mxu0 %v820
      %v886 = vpop.f32.mrb[0].mxu0
      %v887 = vadd.f32 0.0, %v886
      %v888 = vpop.f32.mrb[0].mxu0
      %v889 = vadd.f32 0.0, %v888
      %v890 = vpop.f32.mrb[0].mxu0
      %v891 = vadd.f32 0.0, %v890
      %v892 = vpop.f32.mrb[0].mxu0
      %v893 = vadd.f32 0.0, %v892
      %894 = vdwg.mxu0
      %v895 = vadd.f32 %v644, %v857
      %v896 = vadd.f32 %v646, %v859
      %v897 = vadd.f32 %v648, %v861
      %v898 = vadd.f32 %v650, %v863
      %v899 = vadd.f32 %v654, %v867
      %v900 = vadd.f32 %v656, %v869
      %v901 = vadd.f32 %v658, %v871
      %v902 = vadd.f32 %v660, %v873
      %v903 = vadd.f32 %v664, %v877
      %v904 = vadd.f32 %v666, %v879
      %v905 = vadd.f32 %v668, %v881
      %v906 = vadd.f32 %v670, %v883
      %v907 = vadd.f32 %v674, %v887
      %v908 = vadd.f32 %v676, %v889
      %v909 = vadd.f32 %v678, %v891
      %v910 = vadd.f32 %v680, %v893
      %s911 = scalar_lea.vmem %s1, 288
      %v912 = vld [vmem:[%s911] sm:$0xff]
      %v913 = vld [vmem:[%s911 + $0x8] sm:$0xff]
      %v914 = vld [vmem:[%s911 + $0x10] sm:$0xff]
      %v915 = vld [vmem:[%s911 + $0x18] sm:$0xff]
      %v916 = vld [vmem:[%s911 + $0x20] sm:$0xff]
      %v917 = vld [vmem:[%s911 + $0x28] sm:$0xff]
      %v918 = vld [vmem:[%s911 + $0x30] sm:$0xff]
      %v919 = vld [vmem:[%s911 + $0x38] sm:$0xff]
      %v920 = vld [vmem:[%s911 + $0x40] sm:$0xff]
      %v921 = vld [vmem:[%s911 + $0x48] sm:$0xff]
      %v922 = vld [vmem:[%s911 + $0x50] sm:$0xff]
      %v923 = vld [vmem:[%s911 + $0x58] sm:$0xff]
      %v925 = vunpack.c.l.b16 %v215
      %v926 = vpack.c.b16 %v527, %v526
      %v927 = vpack.c.b16 %v529, %v528
      %v928 = vpack.c.b16 %v531, %v530
      %v929 = vpack.c.b16 %v925, %v532
      %v942 = vunpack.c.l.b16 %v912
      %v943 = vunpack.c.h.b16 %v912
      %v944 = vunpack.c.l.b16 %v913
      %v945 = vunpack.c.h.b16 %v913
      %v946 = vunpack.c.l.b16 %v914
      %v947 = vunpack.c.h.b16 %v914
      %v948 = vunpack.c.l.b16 %v915
      %v949 = vunpack.c.h.b16 %v915
      %v950 = vunpack.c.l.b16 %v916
      %v951 = vunpack.c.h.b16 %v916
      %v952 = vunpack.c.l.b16 %v917
      %v953 = vunpack.c.h.b16 %v917
      %v954 = vunpack.c.l.b16 %v918
      %v955 = vunpack.c.h.b16 %v918
      %v956 = vunpack.c.l.b16 %v919
      %v957 = vunpack.c.h.b16 %v919
      %v958 = vunpack.c.l.b16 %v920
      %v959 = vunpack.c.h.b16 %v920
      %v960 = vunpack.c.l.b16 %v921
      %v961 = vunpack.c.h.b16 %v921
      %v962 = vunpack.c.l.b16 %v922
      %v963 = vunpack.c.h.b16 %v922
      %v964 = vunpack.c.l.b16 %v923
      %v965 = vunpack.c.h.b16 %v923
      %v966 = vpack.c.b16 %v944, %v942
      %v967 = vpack.c.b16 %v945, %v943
      %v968 = vpack.c.b16 %v948, %v946
      %v969 = vpack.c.b16 %v949, %v947
      %v970 = vpack.c.b16 %v952, %v950
      %v971 = vpack.c.b16 %v953, %v951
      %v972 = vpack.c.b16 %v956, %v954
      %v973 = vpack.c.b16 %v957, %v955
      %v974 = vpack.c.b16 %v960, %v958
      %v975 = vpack.c.b16 %v961, %v959
      %v976 = vpack.c.b16 %v964, %v962
      %v977 = vpack.c.b16 %v965, %v963
      %v991 = vsel %vm431, %v926, 0
      %v994 = vsel %vm431, %v927, 0
      %v997 = vsel %vm431, %v928, 0
      %v1000 = vsel %vm431, %v929, 0
      %1002 = vmatprep.subr.bf16.mxu0 %v967
      %1003 = vmatpush1.bf16.msra.mxu0 %v966
      %1004 = vmatprep.subr.bf16.mxu0 %v969
      %1005 = vmatpush1.bf16.msra.mxu0 %v968
      %1006 = vmatprep.subr.bf16.mxu0 %v971
      %1007 = vmatpush1.bf16.msra.mxu0 %v970
      %1008 = vmatprep.subr.bf16.mxu0 %v973
      %1009 = vmatpush1.bf16.msra.mxu0 %v972
      %1010 = vmatprep.subr.bf16.mxu0 %v975
      %1011 = vmatpush1.bf16.msra.mxu0 %v974
      %1012 = vmatprep.subr.bf16.mxu0 %v977
      %1013 = vmatpush1.bf16.msra.mxu0 %v976
      %1014 = vmatprep.subr.bf16.mxu0 0
      %1015 = vmatpush1.bf16.msra.mxu0 0
      %1016 = vmatprep.subr.bf16.mxu0 0
      %1017 = vmatpush1.bf16.msra.mxu0 0
      %1018 = vmatprep.subr.bf16.mxu0 0
      %1019 = vmatpush1.bf16.msra.mxu0 0
      %1020 = vmatprep.subr.bf16.mxu0 0
      %1021 = vmatpush1.bf16.msra.mxu0 0
      %1022 = vmatprep.subr.bf16.mxu0 0
      %1023 = vmatpush1.bf16.msra.mxu0 0
      %1024 = vmatprep.subr.bf16.mxu0 0
      %1025 = vmatpush1.bf16.msra.mxu0 0
      %1026 = vmatprep.subr.bf16.mxu0 0
      %1027 = vmatpush1.bf16.msra.mxu0 0
      %1028 = vmatprep.subr.bf16.mxu0 0
      %1029 = vmatpush1.bf16.msra.mxu0 0
      %1030 = vmatprep.subr.bf16.mxu0 0
      %1031 = vmatpush1.bf16.msra.mxu0 0
      %1032 = vmatprep.subr.bf16.mxu0 0
      %1033 = vmatpush1.bf16.msra.mxu0 0
      %1034 = vmatprep.mubr.bf16.mxu0 0
      %1035 = vmatmul.mubr.bf16.gmra.mrb[0].mxu0 %v991
      %v1036 = vpop.f32.mrb[0].mxu0
      %v1037 = vadd.f32 0.0, %v1036
      %v1038 = vpop.f32.mrb[0].mxu0
      %v1039 = vadd.f32 0.0, %v1038
      %v1040 = vpop.f32.mrb[0].mxu0
      %v1041 = vadd.f32 0.0, %v1040
      %v1042 = vpop.f32.mrb[0].mxu0
      %v1043 = vadd.f32 0.0, %v1042
      %1044 = vmatprep.mubr.bf16.mxu0 0
      %1045 = vmatmul.mubr.bf16.gmra.mrb[0].mxu0 %v994
      %v1046 = vpop.f32.mrb[0].mxu0
      %v1047 = vadd.f32 0.0, %v1046
      %v1048 = vpop.f32.mrb[0].mxu0
      %v1049 = vadd.f32 0.0, %v1048
      %v1050 = vpop.f32.mrb[0].mxu0
      %v1051 = vadd.f32 0.0, %v1050
      %v1052 = vpop.f32.mrb[0].mxu0
      %v1053 = vadd.f32 0.0, %v1052
      %1054 = vmatprep.mubr.bf16.mxu0 0
      %1055 = vmatmul.mubr.bf16.gmra.mrb[0].mxu0 %v997
      %v1056 = vpop.f32.mrb[0].mxu0
      %v1057 = vadd.f32 0.0, %v1056
      %v1058 = vpop.f32.mrb[0].mxu0
      %v1059 = vadd.f32 0.0, %v1058
      %v1060 = vpop.f32.mrb[0].mxu0
      %v1061 = vadd.f32 0.0, %v1060
      %v1062 = vpop.f32.mrb[0].mxu0
      %v1063 = vadd.f32 0.0, %v1062
      %1064 = vmatprep.mubr.bf16.mxu0 0
      %1065 = vmatmul.mubr.bf16.gmra.mrb[0].mxu0 %v1000
      %v1066 = vpop.f32.mrb[0].mxu0
      %v1067 = vadd.f32 0.0, %v1066
      %v1068 = vpop.f32.mrb[0].mxu0
      %v1069 = vadd.f32 0.0, %v1068
      %v1070 = vpop.f32.mrb[0].mxu0
      %v1071 = vadd.f32 0.0, %v1070
      %v1072 = vpop.f32.mrb[0].mxu0
      %v1073 = vadd.f32 0.0, %v1072
      %1074 = vdwg.mxu0
      %v1075 = vadd.f32 %v895, %v1037
      %v1076 = vadd.f32 %v896, %v1039
      %v1077 = vadd.f32 %v897, %v1041
      %v1078 = vadd.f32 %v898, %v1043
      %v1079 = vadd.f32 %v899, %v1047
      %v1080 = vadd.f32 %v900, %v1049
      %v1081 = vadd.f32 %v901, %v1051
      %v1082 = vadd.f32 %v902, %v1053
      %v1083 = vadd.f32 %v903, %v1057
      %v1084 = vadd.f32 %v904, %v1059
      %v1085 = vadd.f32 %v905, %v1061
      %v1086 = vadd.f32 %v906, %v1063
      %v1087 = vadd.f32 %v907, %v1067
      %v1088 = vadd.f32 %v908, %v1069
      %v1089 = vadd.f32 %v909, %v1071
      %v1090 = vadd.f32 %v910, %v1073
      %v1092 = vshrl.u32 %v215, 16
      %v1094 = vrot.slane %v1092, 4
      %v1095 = vshll.u32 %v215, 16
      %v1097 = vrot.slane %v1095, 5
      %v1098 = vor.u32 %v1094, %v1097
      %v1099 = vrot.slane %v1098, 4
      %v1101 = vshll.u32 %v216, 16
      %v1103 = vrot.slane %v1101, 5
      %v1104 = vsel %vm233, %v1099, %v1103
      %s1105 = scalar_lea.vmem %s1, 384
      %v1106 = vld [vmem:[%s1105] sm:$0xff]
      %v1107 = vld [vmem:[%s1105 + $0x8] sm:$0xff]
      %v1108 = vld [vmem:[%s1105 + $0x10] sm:$0xff]
      %v1109 = vld [vmem:[%s1105 + $0x18] sm:$0xff]
      %v1110 = vld [vmem:[%s1105 + $0x20] sm:$0xff]
      %v1111 = vld [vmem:[%s1105 + $0x28] sm:$0xff]
      %v1112 = vld [vmem:[%s1105 + $0x30] sm:$0xff]
      %v1113 = vld [vmem:[%s1105 + $0x38] sm:$0xff]
      %v1114 = vld [vmem:[%s1105 + $0x40] sm:$0xff]
      %v1115 = vld [vmem:[%s1105 + $0x48] sm:$0xff]
      %v1116 = vld [vmem:[%s1105 + $0x50] sm:$0xff]
      %v1117 = vld [vmem:[%s1105 + $0x58] sm:$0xff]
      %v1118 = vunpack.c.l.b16 %v1104
      %v1119 = vpack.c.b16 %v361, %v360
      %v1120 = vpack.c.b16 %v363, %v362
      %v1121 = vpack.c.b16 %v365, %v364
      %v1122 = vpack.c.b16 %v1118, %v366
      %v1135 = vunpack.c.l.b16 %v1106
      %v1136 = vunpack.c.h.b16 %v1106
      %v1137 = vunpack.c.l.b16 %v1107
      %v1138 = vunpack.c.h.b16 %v1107
      %v1139 = vunpack.c.l.b16 %v1108
      %v1140 = vunpack.c.h.b16 %v1108
      %v1141 = vunpack.c.l.b16 %v1109
      %v1142 = vunpack.c.h.b16 %v1109
      %v1143 = vunpack.c.l.b16 %v1110
      %v1144 = vunpack.c.h.b16 %v1110
      %v1145 = vunpack.c.l.b16 %v1111
      %v1146 = vunpack.c.h.b16 %v1111
      %v1147 = vunpack.c.l.b16 %v1112
      %v1148 = vunpack.c.h.b16 %v1112
      %v1149 = vunpack.c.l.b16 %v1113
      %v1150 = vunpack.c.h.b16 %v1113
      %v1151 = vunpack.c.l.b16 %v1114
      %v1152 = vunpack.c.h.b16 %v1114
      %v1153 = vunpack.c.l.b16 %v1115
      %v1154 = vunpack.c.h.b16 %v1115
      %v1155 = vunpack.c.l.b16 %v1116
      %v1156 = vunpack.c.h.b16 %v1116
      %v1157 = vunpack.c.l.b16 %v1117
      %v1158 = vunpack.c.h.b16 %v1117
      %v1159 = vpack.c.b16 %v1137, %v1135
      %v1160 = vpack.c.b16 %v1138, %v1136
      %v1161 = vpack.c.b16 %v1141, %v1139
      %v1162 = vpack.c.b16 %v1142, %v1140
      %v1163 = vpack.c.b16 %v1145, %v1143
      %v1164 = vpack.c.b16 %v1146, %v1144
      %v1165 = vpack.c.b16 %v1149, %v1147
      %v1166 = vpack.c.b16 %v1150, %v1148
      %v1167 = vpack.c.b16 %v1153, %v1151
      %v1168 = vpack.c.b16 %v1154, %v1152
      %v1169 = vpack.c.b16 %v1157, %v1155
      %v1170 = vpack.c.b16 %v1158, %v1156
      %v1184 = vsel %vm431, %v1119, 0
      %v1187 = vsel %vm431, %v1120, 0
      %v1190 = vsel %vm431, %v1121, 0
      %v1193 = vsel %vm431, %v1122, 0
      %1195 = vmatprep.subr.bf16.mxu0 %v1160
      %1196 = vmatpush1.bf16.msra.mxu0 %v1159
      %1197 = vmatprep.subr.bf16.mxu0 %v1162
      %1198 = vmatpush1.bf16.msra.mxu0 %v1161
      %1199 = vmatprep.subr.bf16.mxu0 %v1164
      %1200 = vmatpush1.bf16.msra.mxu0 %v1163
      %1201 = vmatprep.subr.bf16.mxu0 %v1166
      %1202 = vmatpush1.bf16.msra.mxu0 %v1165
      %1203 = vmatprep.subr.bf16.mxu0 %v1168
      %1204 = vmatpush1.bf16.msra.mxu0 %v1167
      %1205 = vmatprep.subr.bf16.mxu0 %v1170
      %1206 = vmatpush1.bf16.msra.mxu0 %v1169
      %1207 = vmatprep.subr.bf16.mxu0 0
      %1208 = vmatpush1.bf16.msra.mxu0 0
      %1209 = vmatprep.subr.bf16.mxu0 0
      %1210 = vmatpush1.bf16.msra.mxu0 0
      %1211 = vmatprep.subr.bf16.mxu0 0
      %1212 = vmatpush1.bf16.msra.mxu0 0
      %1213 = vmatprep.subr.bf16.mxu0 0
      %1214 = vmatpush1.bf16.msra.mxu0 0
      %1215 = vmatprep.subr.bf16.mxu0 0
      %1216 = vmatpush1.bf16.msra.mxu0 0
      %1217 = vmatprep.subr.bf16.mxu0 0
      %1218 = vmatpush1.bf16.msra.mxu0 0
      %1219 = vmatprep.subr.bf16.mxu0 0
      %1220 = vmatpush1.bf16.msra.mxu0 0
      %1221 = vmatprep.subr.bf16.mxu0 0
      %1222 = vmatpush1.bf16.msra.mxu0 0
      %1223 = vmatprep.subr.bf16.mxu0 0
      %1224 = vmatpush1.bf16.msra.mxu0 0
      %1225 = vmatprep.subr.bf16.mxu0 0
      %1226 = vmatpush1.bf16.msra.mxu0 0
      %1227 = vmatprep.mubr.bf16.mxu0 0
      %1228 = vmatmul.mubr.bf16.gmra.mrb[0].mxu0 %v1184
      %v1229 = vpop.f32.mrb[0].mxu0
      %v1230 = vadd.f32 0.0, %v1229
      %v1231 = vpop.f32.mrb[0].mxu0
      %v1232 = vadd.f32 0.0, %v1231
      %v1233 = vpop.f32.mrb[0].mxu0
      %v1234 = vadd.f32 0.0, %v1233
      %v1235 = vpop.f32.mrb[0].mxu0
      %v1236 = vadd.f32 0.0, %v1235
      %1237 = vmatprep.mubr.bf16.mxu0 0
      %1238 = vmatmul.mubr.bf16.gmra.mrb[0].mxu0 %v1187
      %v1239 = vpop.f32.mrb[0].mxu0
      %v1240 = vadd.f32 0.0, %v1239
      %v1241 = vpop.f32.mrb[0].mxu0
      %v1242 = vadd.f32 0.0, %v1241
      %v1243 = vpop.f32.mrb[0].mxu0
      %v1244 = vadd.f32 0.0, %v1243
      %v1245 = vpop.f32.mrb[0].mxu0
      %v1246 = vadd.f32 0.0, %v1245
      %1247 = vmatprep.mubr.bf16.mxu0 0
      %1248 = vmatmul.mubr.bf16.gmra.mrb[0].mxu0 %v1190
      %v1249 = vpop.f32.mrb[0].mxu0
      %v1250 = vadd.f32 0.0, %v1249
      %v1251 = vpop.f32.mrb[0].mxu0
      %v1252 = vadd.f32 0.0, %v1251
      %v1253 = vpop.f32.mrb[0].mxu0
      %v1254 = vadd.f32 0.0, %v1253
      %v1255 = vpop.f32.mrb[0].mxu0
      %v1256 = vadd.f32 0.0, %v1255
      %1257 = vmatprep.mubr.bf16.mxu0 0
      %1258 = vmatmul.mubr.bf16.gmra.mrb[0].mxu0 %v1193
      %v1259 = vpop.f32.mrb[0].mxu0
      %v1260 = vadd.f32 0.0, %v1259
      %v1261 = vpop.f32.mrb[0].mxu0
      %v1262 = vadd.f32 0.0, %v1261
      %v1263 = vpop.f32.mrb[0].mxu0
      %v1264 = vadd.f32 0.0, %v1263
      %v1265 = vpop.f32.mrb[0].mxu0
      %v1266 = vadd.f32 0.0, %v1265
      %1267 = vdwg.mxu0
      %v1268 = vadd.f32 %v1075, %v1230
      %v1269 = vadd.f32 %v1076, %v1232
      %v1270 = vadd.f32 %v1077, %v1234
      %v1271 = vadd.f32 %v1078, %v1236
      %v1272 = vadd.f32 %v1079, %v1240
      %v1273 = vadd.f32 %v1080, %v1242
      %v1274 = vadd.f32 %v1081, %v1244
      %v1275 = vadd.f32 %v1082, %v1246
      %v1276 = vadd.f32 %v1083, %v1250
      %v1277 = vadd.f32 %v1084, %v1252
      %v1278 = vadd.f32 %v1085, %v1254
      %v1279 = vadd.f32 %v1086, %v1256
      %v1280 = vadd.f32 %v1087, %v1260
      %v1281 = vadd.f32 %v1088, %v1262
      %v1282 = vadd.f32 %v1089, %v1264
      %v1283 = vadd.f32 %v1090, %v1266
      %v1285 = vrot.slane %v215, 5
      %v1286 = vrot.slane %v1285, 4
      %v1287 = vrot.slane %v216, 5
      %v1288 = vsel %vm692, %v1286, %v1287
      %s1289 = scalar_lea.vmem %s1, 480
      %v1290 = vld [vmem:[%s1289] sm:$0xff]
      %v1291 = vld [vmem:[%s1289 + $0x8] sm:$0xff]
      %v1292 = vld [vmem:[%s1289 + $0x10] sm:$0xff]
      %v1293 = vld [vmem:[%s1289 + $0x18] sm:$0xff]
      %v1294 = vld [vmem:[%s1289 + $0x20] sm:$0xff]
      %v1295 = vld [vmem:[%s1289 + $0x28] sm:$0xff]
      %v1296 = vld [vmem:[%s1289 + $0x30] sm:$0xff]
      %v1297 = vld [vmem:[%s1289 + $0x38] sm:$0xff]
      %v1298 = vld [vmem:[%s1289 + $0x40] sm:$0xff]
      %v1299 = vld [vmem:[%s1289 + $0x48] sm:$0xff]
      %v1300 = vld [vmem:[%s1289 + $0x50] sm:$0xff]
      %v1301 = vld [vmem:[%s1289 + $0x58] sm:$0xff]
      %v1302 = vunpack.c.l.b16 %v1288
      %v1303 = vpack.c.b16 %v740, %v739
      %v1304 = vpack.c.b16 %v742, %v741
      %v1305 = vpack.c.b16 %v744, %v743
      %v1306 = vpack.c.b16 %v1302, %v745
      %v1319 = vunpack.c.l.b16 %v1290
      %v1320 = vunpack.c.h.b16 %v1290
      %v1321 = vunpack.c.l.b16 %v1291
      %v1322 = vunpack.c.h.b16 %v1291
      %v1323 = vunpack.c.l.b16 %v1292
      %v1324 = vunpack.c.h.b16 %v1292
      %v1325 = vunpack.c.l.b16 %v1293
      %v1326 = vunpack.c.h.b16 %v1293
      %v1327 = vunpack.c.l.b16 %v1294
      %v1328 = vunpack.c.h.b16 %v1294
      %v1329 = vunpack.c.l.b16 %v1295
      %v1330 = vunpack.c.h.b16 %v1295
      %v1331 = vunpack.c.l.b16 %v1296
      %v1332 = vunpack.c.h.b16 %v1296
      %v1333 = vunpack.c.l.b16 %v1297
      %v1334 = vunpack.c.h.b16 %v1297
      %v1335 = vunpack.c.l.b16 %v1298
      %v1336 = vunpack.c.h.b16 %v1298
      %v1337 = vunpack.c.l.b16 %v1299
      %v1338 = vunpack.c.h.b16 %v1299
      %v1339 = vunpack.c.l.b16 %v1300
      %v1340 = vunpack.c.h.b16 %v1300
      %v1341 = vunpack.c.l.b16 %v1301
      %v1342 = vunpack.c.h.b16 %v1301
      %v1343 = vpack.c.b16 %v1321, %v1319
      %v1344 = vpack.c.b16 %v1322, %v1320
      %v1345 = vpack.c.b16 %v1325, %v1323
      %v1346 = vpack.c.b16 %v1326, %v1324
      %v1347 = vpack.c.b16 %v1329, %v1327
      %v1348 = vpack.c.b16 %v1330, %v1328
      %v1349 = vpack.c.b16 %v1333, %v1331
      %v1350 = vpack.c.b16 %v1334, %v1332
      %v1351 = vpack.c.b16 %v1337, %v1335
      %v1352 = vpack.c.b16 %v1338, %v1336
      %v1353 = vpack.c.b16 %v1341, %v1339
      %v1354 = vpack.c.b16 %v1342, %v1340
      %v1368 = vsel %vm431, %v1303, 0
      %v1371 = vsel %vm431, %v1304, 0
      %v1374 = vsel %vm431, %v1305, 0
      %v1377 = vsel %vm431, %v1306, 0
      %1379 = vmatprep.subr.bf16.mxu0 %v1344
      %1380 = vmatpush1.bf16.msra.mxu0 %v1343
      %1381 = vmatprep.subr.bf16.mxu0 %v1346
      %1382 = vmatpush1.bf16.msra.mxu0 %v1345
      %1383 = vmatprep.subr.bf16.mxu0 %v1348
      %1384 = vmatpush1.bf16.msra.mxu0 %v1347
      %1385 = vmatprep.subr.bf16.mxu0 %v1350
      %1386 = vmatpush1.bf16.msra.mxu0 %v1349
      %1387 = vmatprep.subr.bf16.mxu0 %v1352
      %1388 = vmatpush1.bf16.msra.mxu0 %v1351
      %1389 = vmatprep.subr.bf16.mxu0 %v1354
      %1390 = vmatpush1.bf16.msra.mxu0 %v1353
      %1391 = vmatprep.subr.bf16.mxu0 0
      %1392 = vmatpush1.bf16.msra.mxu0 0
      %1393 = vmatprep.subr.bf16.mxu0 0
      %1394 = vmatpush1.bf16.msra.mxu0 0
      %1395 = vmatprep.subr.bf16.mxu0 0
      %1396 = vmatpush1.bf16.msra.mxu0 0
      %1397 = vmatprep.subr.bf16.mxu0 0
      %1398 = vmatpush1.bf16.msra.mxu0 0
      %1399 = vmatprep.subr.bf16.mxu0 0
      %1400 = vmatpush1.bf16.msra.mxu0 0
      %1401 = vmatprep.subr.bf16.mxu0 0
      %1402 = vmatpush1.bf16.msra.mxu0 0
      %1403 = vmatprep.subr.bf16.mxu0 0
      %1404 = vmatpush1.bf16.msra.mxu0 0
      %1405 = vmatprep.subr.bf16.mxu0 0
      %1406 = vmatpush1.bf16.msra.mxu0 0
      %1407 = vmatprep.subr.bf16.mxu0 0
      %1408 = vmatpush1.bf16.msra.mxu0 0
      %1409 = vmatprep.subr.bf16.mxu0 0
      %1410 = vmatpush1.bf16.msra.mxu0 0
      %1411 = vmatprep.mubr.bf16.mxu0 0
      %1412 = vmatmul.mubr.bf16.gmra.mrb[0].mxu0 %v1368
      %v1413 = vpop.f32.mrb[0].mxu0
      %v1414 = vadd.f32 0.0, %v1413
      %v1415 = vpop.f32.mrb[0].mxu0
      %v1416 = vadd.f32 0.0, %v1415
      %v1417 = vpop.f32.mrb[0].mxu0
      %v1418 = vadd.f32 0.0, %v1417
      %v1419 = vpop.f32.mrb[0].mxu0
      %v1420 = vadd.f32 0.0, %v1419
      %1421 = vmatprep.mubr.bf16.mxu0 0
      %1422 = vmatmul.mubr.bf16.gmra.mrb[0].mxu0 %v1371
      %v1423 = vpop.f32.mrb[0].mxu0
      %v1424 = vadd.f32 0.0, %v1423
      %v1425 = vpop.f32.mrb[0].mxu0
      %v1426 = vadd.f32 0.0, %v1425
      %v1427 = vpop.f32.mrb[0].mxu0
      %v1428 = vadd.f32 0.0, %v1427
      %v1429 = vpop.f32.mrb[0].mxu0
      %v1430 = vadd.f32 0.0, %v1429
      %1431 = vmatprep.mubr.bf16.mxu0 0
      %1432 = vmatmul.mubr.bf16.gmra.mrb[0].mxu0 %v1374
      %v1433 = vpop.f32.mrb[0].mxu0
      %v1434 = vadd.f32 0.0, %v1433
      %v1435 = vpop.f32.mrb[0].mxu0
      %v1436 = vadd.f32 0.0, %v1435
      %v1437 = vpop.f32.mrb[0].mxu0
      %v1438 = vadd.f32 0.0, %v1437
      %v1439 = vpop.f32.mrb[0].mxu0
      %v1440 = vadd.f32 0.0, %v1439
      %1441 = vmatprep.mubr.bf16.mxu0 0
      %1442 = vmatmul.mubr.bf16.gmra.mrb[0].mxu0 %v1377
      %v1443 = vpop.f32.mrb[0].mxu0
      %v1444 = vadd.f32 0.0, %v1443
      %v1445 = vpop.f32.mrb[0].mxu0
      %v1446 = vadd.f32 0.0, %v1445
      %v1447 = vpop.f32.mrb[0].mxu0
      %v1448 = vadd.f32 0.0, %v1447
      %v1449 = vpop.f32.mrb[0].mxu0
      %v1450 = vadd.f32 0.0, %v1449
      %1451 = vdwg.mxu0
      %v1452 = vadd.f32 %v1268, %v1414
      %v1453 = vadd.f32 %v1269, %v1416
      %v1454 = vadd.f32 %v1270, %v1418
      %v1455 = vadd.f32 %v1271, %v1420
      %v1456 = vadd.f32 %v1272, %v1424
      %v1457 = vadd.f32 %v1273, %v1426
      %v1458 = vadd.f32 %v1274, %v1428
      %v1459 = vadd.f32 %v1275, %v1430
      %v1460 = vadd.f32 %v1276, %v1434
      %v1461 = vadd.f32 %v1277, %v1436
      %v1462 = vadd.f32 %v1278, %v1438
      %v1463 = vadd.f32 %v1279, %v1440
      %v1464 = vadd.f32 %v1280, %v1444
      %v1465 = vadd.f32 %v1281, %v1446
      %v1466 = vadd.f32 %v1282, %v1448
      %v1467 = vadd.f32 %v1283, %v1450
      %s1468 = scalar_lea.vmem %s1, 576
      %v1469 = vld [vmem:[%s1468] sm:$0xff]
      %v1470 = vld [vmem:[%s1468 + $0x8] sm:$0xff]
      %v1471 = vld [vmem:[%s1468 + $0x10] sm:$0xff]
      %v1472 = vld [vmem:[%s1468 + $0x18] sm:$0xff]
      %v1473 = vld [vmem:[%s1468 + $0x20] sm:$0xff]
      %v1474 = vld [vmem:[%s1468 + $0x28] sm:$0xff]
      %v1475 = vld [vmem:[%s1468 + $0x30] sm:$0xff]
      %v1476 = vld [vmem:[%s1468 + $0x38] sm:$0xff]
      %v1477 = vld [vmem:[%s1468 + $0x40] sm:$0xff]
      %v1478 = vld [vmem:[%s1468 + $0x48] sm:$0xff]
      %v1479 = vld [vmem:[%s1468 + $0x50] sm:$0xff]
      %v1480 = vld [vmem:[%s1468 + $0x58] sm:$0xff]
      %v1482 = vunpack.c.l.b16 %v217
      %v1483 = vpack.c.b16 %v1482, %v925
      %v1496 = vunpack.c.l.b16 %v1469
      %v1497 = vunpack.c.h.b16 %v1469
      %v1498 = vunpack.c.l.b16 %v1470
      %v1499 = vunpack.c.h.b16 %v1470
      %v1500 = vunpack.c.l.b16 %v1471
      %v1501 = vunpack.c.h.b16 %v1471
      %v1502 = vunpack.c.l.b16 %v1472
      %v1503 = vunpack.c.h.b16 %v1472
      %v1504 = vunpack.c.l.b16 %v1473
      %v1505 = vunpack.c.h.b16 %v1473
      %v1506 = vunpack.c.l.b16 %v1474
      %v1507 = vunpack.c.h.b16 %v1474
      %v1508 = vunpack.c.l.b16 %v1475
      %v1509 = vunpack.c.h.b16 %v1475
      %v1510 = vunpack.c.l.b16 %v1476
      %v1511 = vunpack.c.h.b16 %v1476
      %v1512 = vunpack.c.l.b16 %v1477
      %v1513 = vunpack.c.h.b16 %v1477
      %v1514 = vunpack.c.l.b16 %v1478
      %v1515 = vunpack.c.h.b16 %v1478
      %v1516 = vunpack.c.l.b16 %v1479
      %v1517 = vunpack.c.h.b16 %v1479
      %v1518 = vunpack.c.l.b16 %v1480
      %v1519 = vunpack.c.h.b16 %v1480
      %v1520 = vpack.c.b16 %v1498, %v1496
      %v1521 = vpack.c.b16 %v1499, %v1497
      %v1522 = vpack.c.b16 %v1502, %v1500
      %v1523 = vpack.c.b16 %v1503, %v1501
      %v1524 = vpack.c.b16 %v1506, %v1504
      %v1525 = vpack.c.b16 %v1507, %v1505
      %v1526 = vpack.c.b16 %v1510, %v1508
      %v1527 = vpack.c.b16 %v1511, %v1509
      %v1528 = vpack.c.b16 %v1514, %v1512
      %v1529 = vpack.c.b16 %v1515, %v1513
      %v1530 = vpack.c.b16 %v1518, %v1516
      %v1531 = vpack.c.b16 %v1519, %v1517
      %v1545 = vsel %vm431, %v1483, 0
      %1547 = vmatprep.subr.bf16.mxu0 %v1521
      %1548 = vmatpush1.bf16.msra.mxu0 %v1520
      %1549 = vmatprep.subr.bf16.mxu0 %v1523
      %1550 = vmatpush1.bf16.msra.mxu0 %v1522
      %1551 = vmatprep.subr.bf16.mxu0 %v1525
      %1552 = vmatpush1.bf16.msra.mxu0 %v1524
      %1553 = vmatprep.subr.bf16.mxu0 %v1527
      %1554 = vmatpush1.bf16.msra.mxu0 %v1526
      %1555 = vmatprep.subr.bf16.mxu0 %v1529
      %1556 = vmatpush1.bf16.msra.mxu0 %v1528
      %1557 = vmatprep.subr.bf16.mxu0 %v1531
      %1558 = vmatpush1.bf16.msra.mxu0 %v1530
      %1559 = vmatprep.subr.bf16.mxu0 0
      %1560 = vmatpush1.bf16.msra.mxu0 0
      %1561 = vmatprep.subr.bf16.mxu0 0
      %1562 = vmatpush1.bf16.msra.mxu0 0
      %1563 = vmatprep.subr.bf16.mxu0 0
      %1564 = vmatpush1.bf16.msra.mxu0 0
      %1565 = vmatprep.subr.bf16.mxu0 0
      %1566 = vmatpush1.bf16.msra.mxu0 0
      %1567 = vmatprep.subr.bf16.mxu0 0
      %1568 = vmatpush1.bf16.msra.mxu0 0
      %1569 = vmatprep.subr.bf16.mxu0 0
      %1570 = vmatpush1.bf16.msra.mxu0 0
      %1571 = vmatprep.subr.bf16.mxu0 0
      %1572 = vmatpush1.bf16.msra.mxu0 0
      %1573 = vmatprep.subr.bf16.mxu0 0
      %1574 = vmatpush1.bf16.msra.mxu0 0
      %1575 = vmatprep.subr.bf16.mxu0 0
      %1576 = vmatpush1.bf16.msra.mxu0 0
      %1577 = vmatprep.subr.bf16.mxu0 0
      %1578 = vmatpush1.bf16.msra.mxu0 0
      %1579 = vmatprep.mubr.bf16.mxu0 0
      %1580 = vmatmul.mubr.bf16.gmra.mrb[0].mxu0 %v601
      %v1581 = vpop.f32.mrb[0].mxu0
      %v1582 = vadd.f32 0.0, %v1581
      %v1583 = vpop.f32.mrb[0].mxu0
      %v1584 = vadd.f32 0.0, %v1583
      %v1585 = vpop.f32.mrb[0].mxu0
      %v1586 = vadd.f32 0.0, %v1585
      %v1587 = vpop.f32.mrb[0].mxu0
      %v1588 = vadd.f32 0.0, %v1587
      %1589 = vmatprep.mubr.bf16.mxu0 0
      %1590 = vmatmul.mubr.bf16.gmra.mrb[0].mxu0 %v604
      %v1591 = vpop.f32.mrb[0].mxu0
      %v1592 = vadd.f32 0.0, %v1591
      %v1593 = vpop.f32.mrb[0].mxu0
      %v1594 = vadd.f32 0.0, %v1593
      %v1595 = vpop.f32.mrb[0].mxu0
      %v1596 = vadd.f32 0.0, %v1595
      %v1597 = vpop.f32.mrb[0].mxu0
      %v1598 = vadd.f32 0.0, %v1597
      %1599 = vmatprep.mubr.bf16.mxu0 0
      %1600 = vmatmul.mubr.bf16.gmra.mrb[0].mxu0 %v607
      %v1601 = vpop.f32.mrb[0].mxu0
      %v1602 = vadd.f32 0.0, %v1601
      %v1603 = vpop.f32.mrb[0].mxu0
      %v1604 = vadd.f32 0.0, %v1603
      %v1605 = vpop.f32.mrb[0].mxu0
      %v1606 = vadd.f32 0.0, %v1605
      %v1607 = vpop.f32.mrb[0].mxu0
      %v1608 = vadd.f32 0.0, %v1607
      %1609 = vmatprep.mubr.bf16.mxu0 0
      %1610 = vmatmul.mubr.bf16.gmra.mrb[0].mxu0 %v1545
      %v1611 = vpop.f32.mrb[0].mxu0
      %v1612 = vadd.f32 0.0, %v1611
      %v1613 = vpop.f32.mrb[0].mxu0
      %v1614 = vadd.f32 0.0, %v1613
      %v1615 = vpop.f32.mrb[0].mxu0
      %v1616 = vadd.f32 0.0, %v1615
      %v1617 = vpop.f32.mrb[0].mxu0
      %v1618 = vadd.f32 0.0, %v1617
      %1619 = vdwg.mxu0
      %v1620 = vadd.f32 %v1452, %v1582
      %v1621 = vadd.f32 %v1453, %v1584
      %v1622 = vadd.f32 %v1454, %v1586
      %v1623 = vadd.f32 %v1455, %v1588
      %v1624 = vadd.f32 %v1456, %v1592
      %v1625 = vadd.f32 %v1457, %v1594
      %v1626 = vadd.f32 %v1458, %v1596
      %v1627 = vadd.f32 %v1459, %v1598
      %v1628 = vadd.f32 %v1460, %v1602
      %v1629 = vadd.f32 %v1461, %v1604
      %v1630 = vadd.f32 %v1462, %v1606
      %v1631 = vadd.f32 %v1463, %v1608
      %v1632 = vadd.f32 %v1464, %v1612
      %v1633 = vadd.f32 %v1465, %v1614
      %v1634 = vadd.f32 %v1466, %v1616
      %v1635 = vadd.f32 %v1467, %v1618
      %v1637 = vshrl.u32 %v217, 16
      %v1639 = vrot.slane %v1637, 4
      %v1640 = vshll.u32 %v217, 16
      %v1642 = vrot.slane %v1640, 5
      %v1643 = vor.u32 %v1639, %v1642
      %v1644 = vrot.slane %v1643, 4
      %v1646 = vshll.u32 %v218, 16
      %v1648 = vrot.slane %v1646, 5
      %v1649 = vsel %vm233, %v1644, %v1648
      %s1650 = scalar_lea.vmem %s1, 672
      %v1651 = vld [vmem:[%s1650] sm:$0xff]
      %v1652 = vld [vmem:[%s1650 + $0x8] sm:$0xff]
      %v1653 = vld [vmem:[%s1650 + $0x10] sm:$0xff]
      %v1654 = vld [vmem:[%s1650 + $0x18] sm:$0xff]
      %v1655 = vld [vmem:[%s1650 + $0x20] sm:$0xff]
      %v1656 = vld [vmem:[%s1650 + $0x28] sm:$0xff]
      %v1657 = vld [vmem:[%s1650 + $0x30] sm:$0xff]
      %v1658 = vld [vmem:[%s1650 + $0x38] sm:$0xff]
      %v1659 = vld [vmem:[%s1650 + $0x40] sm:$0xff]
      %v1660 = vld [vmem:[%s1650 + $0x48] sm:$0xff]
      %v1661 = vld [vmem:[%s1650 + $0x50] sm:$0xff]
      %v1662 = vld [vmem:[%s1650 + $0x58] sm:$0xff]
      %v1663 = vunpack.c.l.b16 %v1649
      %v1664 = vpack.c.b16 %v1663, %v1118
      %v1677 = vunpack.c.l.b16 %v1651
      %v1678 = vunpack.c.h.b16 %v1651
      %v1679 = vunpack.c.l.b16 %v1652
      %v1680 = vunpack.c.h.b16 %v1652
      %v1681 = vunpack.c.l.b16 %v1653
      %v1682 = vunpack.c.h.b16 %v1653
      %v1683 = vunpack.c.l.b16 %v1654
      %v1684 = vunpack.c.h.b16 %v1654
      %v1685 = vunpack.c.l.b16 %v1655
      %v1686 = vunpack.c.h.b16 %v1655
      %v1687 = vunpack.c.l.b16 %v1656
      %v1688 = vunpack.c.h.b16 %v1656
      %v1689 = vunpack.c.l.b16 %v1657
      %v1690 = vunpack.c.h.b16 %v1657
      %v1691 = vunpack.c.l.b16 %v1658
      %v1692 = vunpack.c.h.b16 %v1658
      %v1693 = vunpack.c.l.b16 %v1659
      %v1694 = vunpack.c.h.b16 %v1659
      %v1695 = vunpack.c.l.b16 %v1660
      %v1696 = vunpack.c.h.b16 %v1660
      %v1697 = vunpack.c.l.b16 %v1661
      %v1698 = vunpack.c.h.b16 %v1661
      %v1699 = vunpack.c.l.b16 %v1662
      %v1700 = vunpack.c.h.b16 %v1662
      %v1701 = vpack.c.b16 %v1679, %v1677
      %v1702 = vpack.c.b16 %v1680, %v1678
      %v1703 = vpack.c.b16 %v1683, %v1681
      %v1704 = vpack.c.b16 %v1684, %v1682
      %v1705 = vpack.c.b16 %v1687, %v1685
      %v1706 = vpack.c.b16 %v1688, %v1686
      %v1707 = vpack.c.b16 %v1691, %v1689
      %v1708 = vpack.c.b16 %v1692, %v1690
      %v1709 = vpack.c.b16 %v1695, %v1693
      %v1710 = vpack.c.b16 %v1696, %v1694
      %v1711 = vpack.c.b16 %v1699, %v1697
      %v1712 = vpack.c.b16 %v1700, %v1698
      %v1726 = vsel %vm431, %v1664, 0
      %1728 = vmatprep.subr.bf16.mxu0 %v1702
      %1729 = vmatpush1.bf16.msra.mxu0 %v1701
      %1730 = vmatprep.subr.bf16.mxu0 %v1704
      %1731 = vmatpush1.bf16.msra.mxu0 %v1703
      %1732 = vmatprep.subr.bf16.mxu0 %v1706
      %1733 = vmatpush1.bf16.msra.mxu0 %v1705
      %1734 = vmatprep.subr.bf16.mxu0 %v1708
      %1735 = vmatpush1.bf16.msra.mxu0 %v1707
      %1736 = vmatprep.subr.bf16.mxu0 %v1710
      %1737 = vmatpush1.bf16.msra.mxu0 %v1709
      %1738 = vmatprep.subr.bf16.mxu0 %v1712
      %1739 = vmatpush1.bf16.msra.mxu0 %v1711
      %1740 = vmatprep.subr.bf16.mxu0 0
      %1741 = vmatpush1.bf16.msra.mxu0 0
      %1742 = vmatprep.subr.bf16.mxu0 0
      %1743 = vmatpush1.bf16.msra.mxu0 0
      %1744 = vmatprep.subr.bf16.mxu0 0
      %1745 = vmatpush1.bf16.msra.mxu0 0
      %1746 = vmatprep.subr.bf16.mxu0 0
      %1747 = vmatpush1.bf16.msra.mxu0 0
      %1748 = vmatprep.subr.bf16.mxu0 0
      %1749 = vmatpush1.bf16.msra.mxu0 0
      %1750 = vmatprep.subr.bf16.mxu0 0
      %1751 = vmatpush1.bf16.msra.mxu0 0
      %1752 = vmatprep.subr.bf16.mxu0 0
      %1753 = vmatpush1.bf16.msra.mxu0 0
      %1754 = vmatprep.subr.bf16.mxu0 0
      %1755 = vmatpush1.bf16.msra.mxu0 0
      %1756 = vmatprep.subr.bf16.mxu0 0
      %1757 = vmatpush1.bf16.msra.mxu0 0
      %1758 = vmatprep.subr.bf16.mxu0 0
      %1759 = vmatpush1.bf16.msra.mxu0 0
      %1760 = vmatprep.mubr.bf16.mxu0 0
      %1761 = vmatmul.mubr.bf16.gmra.mrb[0].mxu0 %v436
      %v1762 = vpop.f32.mrb[0].mxu0
      %v1763 = vadd.f32 0.0, %v1762
      %v1764 = vpop.f32.mrb[0].mxu0
      %v1765 = vadd.f32 0.0, %v1764
      %v1766 = vpop.f32.mrb[0].mxu0
      %v1767 = vadd.f32 0.0, %v1766
      %v1768 = vpop.f32.mrb[0].mxu0
      %v1769 = vadd.f32 0.0, %v1768
      %1770 = vmatprep.mubr.bf16.mxu0 0
      %1771 = vmatmul.mubr.bf16.gmra.mrb[0].mxu0 %v439
      %v1772 = vpop.f32.mrb[0].mxu0
      %v1773 = vadd.f32 0.0, %v1772
      %v1774 = vpop.f32.mrb[0].mxu0
      %v1775 = vadd.f32 0.0, %v1774
      %v1776 = vpop.f32.mrb[0].mxu0
      %v1777 = vadd.f32 0.0, %v1776
      %v1778 = vpop.f32.mrb[0].mxu0
      %v1779 = vadd.f32 0.0, %v1778
      %1780 = vmatprep.mubr.bf16.mxu0 0
      %1781 = vmatmul.mubr.bf16.gmra.mrb[0].mxu0 %v442
      %v1782 = vpop.f32.mrb[0].mxu0
      %v1783 = vadd.f32 0.0, %v1782
      %v1784 = vpop.f32.mrb[0].mxu0
      %v1785 = vadd.f32 0.0, %v1784
      %v1786 = vpop.f32.mrb[0].mxu0
      %v1787 = vadd.f32 0.0, %v1786
      %v1788 = vpop.f32.mrb[0].mxu0
      %v1789 = vadd.f32 0.0, %v1788
      %1790 = vmatprep.mubr.bf16.mxu0 0
      %1791 = vmatmul.mubr.bf16.gmra.mrb[0].mxu0 %v1726
      %v1792 = vpop.f32.mrb[0].mxu0
      %v1793 = vadd.f32 0.0, %v1792
      %v1794 = vpop.f32.mrb[0].mxu0
      %v1795 = vadd.f32 0.0, %v1794
      %v1796 = vpop.f32.mrb[0].mxu0
      %v1797 = vadd.f32 0.0, %v1796
      %v1798 = vpop.f32.mrb[0].mxu0
      %v1799 = vadd.f32 0.0, %v1798
      %1800 = vdwg.mxu0
      %v1801 = vadd.f32 %v1620, %v1763
      %v1802 = vadd.f32 %v1621, %v1765
      %v1803 = vadd.f32 %v1622, %v1767
      %v1804 = vadd.f32 %v1623, %v1769
      %v1805 = vadd.f32 %v1624, %v1773
      %v1806 = vadd.f32 %v1625, %v1775
      %v1807 = vadd.f32 %v1626, %v1777
      %v1808 = vadd.f32 %v1627, %v1779
      %v1809 = vadd.f32 %v1628, %v1783
      %v1810 = vadd.f32 %v1629, %v1785
      %v1811 = vadd.f32 %v1630, %v1787
      %v1812 = vadd.f32 %v1631, %v1789
      %v1813 = vadd.f32 %v1632, %v1793
      %v1814 = vadd.f32 %v1633, %v1795
      %v1815 = vadd.f32 %v1634, %v1797
      %v1816 = vadd.f32 %v1635, %v1799
      %v1818 = vrot.slane %v217, 5
      %v1819 = vrot.slane %v1818, 4
      %v1820 = vrot.slane %v218, 5
      %v1821 = vsel %vm692, %v1819, %v1820
      %s1822 = scalar_lea.vmem %s1, 768
      %v1823 = vld [vmem:[%s1822] sm:$0xff]
      %v1824 = vld [vmem:[%s1822 + $0x8] sm:$0xff]
      %v1825 = vld [vmem:[%s1822 + $0x10] sm:$0xff]
      %v1826 = vld [vmem:[%s1822 + $0x18] sm:$0xff]
      %v1827 = vld [vmem:[%s1822 + $0x20] sm:$0xff]
      %v1828 = vld [vmem:[%s1822 + $0x28] sm:$0xff]
      %v1829 = vld [vmem:[%s1822 + $0x30] sm:$0xff]
      %v1830 = vld [vmem:[%s1822 + $0x38] sm:$0xff]
      %v1831 = vld [vmem:[%s1822 + $0x40] sm:$0xff]
      %v1832 = vld [vmem:[%s1822 + $0x48] sm:$0xff]
      %v1833 = vld [vmem:[%s1822 + $0x50] sm:$0xff]
      %v1834 = vld [vmem:[%s1822 + $0x58] sm:$0xff]
      %v1835 = vunpack.c.l.b16 %v1821
      %v1836 = vpack.c.b16 %v1835, %v1302
      %v1849 = vunpack.c.l.b16 %v1823
      %v1850 = vunpack.c.h.b16 %v1823
      %v1851 = vunpack.c.l.b16 %v1824
      %v1852 = vunpack.c.h.b16 %v1824
      %v1853 = vunpack.c.l.b16 %v1825
      %v1854 = vunpack.c.h.b16 %v1825
      %v1855 = vunpack.c.l.b16 %v1826
      %v1856 = vunpack.c.h.b16 %v1826
      %v1857 = vunpack.c.l.b16 %v1827
      %v1858 = vunpack.c.h.b16 %v1827
      %v1859 = vunpack.c.l.b16 %v1828
      %v1860 = vunpack.c.h.b16 %v1828
      %v1861 = vunpack.c.l.b16 %v1829
      %v1862 = vunpack.c.h.b16 %v1829
      %v1863 = vunpack.c.l.b16 %v1830
      %v1864 = vunpack.c.h.b16 %v1830
      %v1865 = vunpack.c.l.b16 %v1831
      %v1866 = vunpack.c.h.b16 %v1831
      %v1867 = vunpack.c.l.b16 %v1832
      %v1868 = vunpack.c.h.b16 %v1832
      %v1869 = vunpack.c.l.b16 %v1833
      %v1870 = vunpack.c.h.b16 %v1833
      %v1871 = vunpack.c.l.b16 %v1834
      %v1872 = vunpack.c.h.b16 %v1834
      %v1873 = vpack.c.b16 %v1851, %v1849
      %v1874 = vpack.c.b16 %v1852, %v1850
      %v1875 = vpack.c.b16 %v1855, %v1853
      %v1876 = vpack.c.b16 %v1856, %v1854
      %v1877 = vpack.c.b16 %v1859, %v1857
      %v1878 = vpack.c.b16 %v1860, %v1858
      %v1879 = vpack.c.b16 %v1863, %v1861
      %v1880 = vpack.c.b16 %v1864, %v1862
      %v1881 = vpack.c.b16 %v1867, %v1865
      %v1882 = vpack.c.b16 %v1868, %v1866
      %v1883 = vpack.c.b16 %v1871, %v1869
      %v1884 = vpack.c.b16 %v1872, %v1870
      %v1898 = vsel %vm431, %v1836, 0
      %1900 = vmatprep.subr.bf16.mxu0 %v1874
      %1901 = vmatpush1.bf16.msra.mxu0 %v1873
      %1902 = vmatprep.subr.bf16.mxu0 %v1876
      %1903 = vmatpush1.bf16.msra.mxu0 %v1875
      %1904 = vmatprep.subr.bf16.mxu0 %v1878
      %1905 = vmatpush1.bf16.msra.mxu0 %v1877
      %1906 = vmatprep.subr.bf16.mxu0 %v1880
      %1907 = vmatpush1.bf16.msra.mxu0 %v1879
      %1908 = vmatprep.subr.bf16.mxu0 %v1882
      %1909 = vmatpush1.bf16.msra.mxu0 %v1881
      %1910 = vmatprep.subr.bf16.mxu0 %v1884
      %1911 = vmatpush1.bf16.msra.mxu0 %v1883
      %1912 = vmatprep.subr.bf16.mxu0 0
      %1913 = vmatpush1.bf16.msra.mxu0 0
      %1914 = vmatprep.subr.bf16.mxu0 0
      %1915 = vmatpush1.bf16.msra.mxu0 0
      %1916 = vmatprep.subr.bf16.mxu0 0
      %1917 = vmatpush1.bf16.msra.mxu0 0
      %1918 = vmatprep.subr.bf16.mxu0 0
      %1919 = vmatpush1.bf16.msra.mxu0 0
      %1920 = vmatprep.subr.bf16.mxu0 0
      %1921 = vmatpush1.bf16.msra.mxu0 0
      %1922 = vmatprep.subr.bf16.mxu0 0
      %1923 = vmatpush1.bf16.msra.mxu0 0
      %1924 = vmatprep.subr.bf16.mxu0 0
      %1925 = vmatpush1.bf16.msra.mxu0 0
      %1926 = vmatprep.subr.bf16.mxu0 0
      %1927 = vmatpush1.bf16.msra.mxu0 0
      %1928 = vmatprep.subr.bf16.mxu0 0
      %1929 = vmatpush1.bf16.msra.mxu0 0
      %1930 = vmatprep.subr.bf16.mxu0 0
      %1931 = vmatpush1.bf16.msra.mxu0 0
      %1932 = vmatprep.mubr.bf16.mxu0 0
      %1933 = vmatmul.mubr.bf16.gmra.mrb[0].mxu0 %v814
      %v1934 = vpop.f32.mrb[0].mxu0
      %v1935 = vadd.f32 0.0, %v1934
      %v1936 = vpop.f32.mrb[0].mxu0
      %v1937 = vadd.f32 0.0, %v1936
      %v1938 = vpop.f32.mrb[0].mxu0
      %v1939 = vadd.f32 0.0, %v1938
      %v1940 = vpop.f32.mrb[0].mxu0
      %v1941 = vadd.f32 0.0, %v1940
      %1942 = vmatprep.mubr.bf16.mxu0 0
      %1943 = vmatmul.mubr.bf16.gmra.mrb[0].mxu0 %v817
      %v1944 = vpop.f32.mrb[0].mxu0
      %v1945 = vadd.f32 0.0, %v1944
      %v1946 = vpop.f32.mrb[0].mxu0
      %v1947 = vadd.f32 0.0, %v1946
      %v1948 = vpop.f32.mrb[0].mxu0
      %v1949 = vadd.f32 0.0, %v1948
      %v1950 = vpop.f32.mrb[0].mxu0
      %v1951 = vadd.f32 0.0, %v1950
      %1952 = vmatprep.mubr.bf16.mxu0 0
      %1953 = vmatmul.mubr.bf16.gmra.mrb[0].mxu0 %v820
      %v1954 = vpop.f32.mrb[0].mxu0
      %v1955 = vadd.f32 0.0, %v1954
      %v1956 = vpop.f32.mrb[0].mxu0
      %v1957 = vadd.f32 0.0, %v1956
      %v1958 = vpop.f32.mrb[0].mxu0
      %v1959 = vadd.f32 0.0, %v1958
      %v1960 = vpop.f32.mrb[0].mxu0
      %v1961 = vadd.f32 0.0, %v1960
      %1962 = vmatprep.mubr.bf16.mxu0 0
      %1963 = vmatmul.mubr.bf16.gmra.mrb[0].mxu0 %v1898
      %v1964 = vpop.f32.mrb[0].mxu0
      %v1965 = vadd.f32 0.0, %v1964
      %v1966 = vpop.f32.mrb[0].mxu0
      %v1967 = vadd.f32 0.0, %v1966
      %v1968 = vpop.f32.mrb[0].mxu0
      %v1969 = vadd.f32 0.0, %v1968
      %v1970 = vpop.f32.mrb[0].mxu0
      %v1971 = vadd.f32 0.0, %v1970
      %1972 = vdwg.mxu0
      %v1973 = vadd.f32 %v1801, %v1935
      %v1974 = vadd.f32 %v1802, %v1937
      %v1975 = vadd.f32 %v1803, %v1939
      %v1976 = vadd.f32 %v1804, %v1941
      %v1977 = vadd.f32 %v1805, %v1945
      %v1978 = vadd.f32 %v1806, %v1947
      %v1979 = vadd.f32 %v1807, %v1949
      %v1980 = vadd.f32 %v1808, %v1951
      %v1981 = vadd.f32 %v1809, %v1955
      %v1982 = vadd.f32 %v1810, %v1957
      %v1983 = vadd.f32 %v1811, %v1959
      %v1984 = vadd.f32 %v1812, %v1961
      %v1985 = vadd.f32 %v1813, %v1965
      %v1986 = vadd.f32 %v1814, %v1967
      %v1987 = vadd.f32 %v1815, %v1969
      %v1988 = vadd.f32 %v1816, %v1971
      %v1989 = vld [vmem:[%s2] sm:$0x3]
      %v1991 = vlaneseq
      %v1992 = vshrl.u32 %v1991, 7
      %v1993 = vsub.s32 0, %v1992
      %v1994 = vrot.slane %v1989, %v1993
      %v1995 = vlaneseq
      %v1996 = vshrl.u32 %v1995, 7
      %v1997 = vsub.s32 1, %v1996
      %v1998 = vrot.slane %v1989, %v1997
      %v2001 = vmul.f32 %v1973, %v1994
      %v2002 = vmul.f32 %v1974, %v1998
      %v2003 = vmul.f32 %v1975, %v1994
      %v2004 = vmul.f32 %v1976, %v1998
      %v2005 = vmul.f32 %v1977, %v1994
      %v2006 = vmul.f32 %v1978, %v1998
      %v2007 = vmul.f32 %v1979, %v1994
      %v2008 = vmul.f32 %v1980, %v1998
      %v2009 = vmul.f32 %v1981, %v1994
      %v2010 = vmul.f32 %v1982, %v1998
      %v2011 = vmul.f32 %v1983, %v1994
      %v2012 = vmul.f32 %v1984, %v1998
      %v2013 = vmul.f32 %v1985, %v1994
      %v2014 = vmul.f32 %v1986, %v1998
      %v2015 = vmul.f32 %v1987, %v1994
      %v2016 = vmul.f32 %v1988, %v1998
      %v2017 = vld [vmem:[%s3] sm:$0x3]
      %v2019 = vlaneseq
      %v2020 = vshrl.u32 %v2019, 7
      %v2021 = vsub.s32 0, %v2020
      %v2022 = vrot.slane %v2017, %v2021
      %v2023 = vlaneseq
      %v2024 = vshrl.u32 %v2023, 7
      %v2025 = vsub.s32 1, %v2024
      %v2026 = vrot.slane %v2017, %v2025
      %v2029 = vadd.f32 %v2001, %v2022
      %v2030 = vadd.f32 %v2002, %v2026
      %v2031 = vadd.f32 %v2003, %v2022
      %v2032 = vadd.f32 %v2004, %v2026
      %v2033 = vadd.f32 %v2005, %v2022
      %v2034 = vadd.f32 %v2006, %v2026
      %v2035 = vadd.f32 %v2007, %v2022
      %v2036 = vadd.f32 %v2008, %v2026
      %v2037 = vadd.f32 %v2009, %v2022
      %v2038 = vadd.f32 %v2010, %v2026
      %v2039 = vadd.f32 %v2011, %v2022
      %v2040 = vadd.f32 %v2012, %v2026
      %v2041 = vadd.f32 %v2013, %v2022
      %v2042 = vadd.f32 %v2014, %v2026
      %v2043 = vadd.f32 %v2015, %v2022
      %v2044 = vadd.f32 %v2016, %v2026
      %v2045 = vmax.f32 %v2029, 0.0
      %v2046 = vmax.f32 %v2030, 0.0
      %v2047 = vmax.f32 %v2031, 0.0
      %v2048 = vmax.f32 %v2032, 0.0
      %v2049 = vmax.f32 %v2033, 0.0
      %v2050 = vmax.f32 %v2034, 0.0
      %v2051 = vmax.f32 %v2035, 0.0
      %v2052 = vmax.f32 %v2036, 0.0
      %v2053 = vmax.f32 %v2037, 0.0
      %v2054 = vmax.f32 %v2038, 0.0
      %v2055 = vmax.f32 %v2039, 0.0
      %v2056 = vmax.f32 %v2040, 0.0
      %v2057 = vmax.f32 %v2041, 0.0
      %v2058 = vmax.f32 %v2042, 0.0
      %v2059 = vmax.f32 %v2043, 0.0
      %v2060 = vmax.f32 %v2044, 0.0
      %v2061 = vpack.c.bf16 %v2045, %v2045
      %v2062 = vpack.c.bf16 %v2046, %v2046
      %v2063 = vpack.c.bf16 %v2047, %v2047
      %v2064 = vpack.c.bf16 %v2048, %v2048
      %v2065 = vpack.c.bf16 %v2049, %v2049
      %v2066 = vpack.c.bf16 %v2050, %v2050
      %v2067 = vpack.c.bf16 %v2051, %v2051
      %v2068 = vpack.c.bf16 %v2052, %v2052
      %v2069 = vpack.c.bf16 %v2053, %v2053
      %v2070 = vpack.c.bf16 %v2054, %v2054
      %v2071 = vpack.c.bf16 %v2055, %v2055
      %v2072 = vpack.c.bf16 %v2056, %v2056
      %v2073 = vpack.c.bf16 %v2057, %v2057
      %v2074 = vpack.c.bf16 %v2058, %v2058
      %v2075 = vpack.c.bf16 %v2059, %v2059
      %v2076 = vpack.c.bf16 %v2060, %v2060
      %v2093 = vunpack.c.l.b16 %v2061
      %v2094 = vunpack.c.l.b16 %v2062
      %v2095 = vunpack.c.l.b16 %v2063
      %v2096 = vunpack.c.l.b16 %v2064
      %v2097 = vunpack.c.l.b16 %v2065
      %v2098 = vunpack.c.l.b16 %v2066
      %v2099 = vunpack.c.l.b16 %v2067
      %v2100 = vunpack.c.l.b16 %v2068
      %v2101 = vunpack.c.l.b16 %v2069
      %v2102 = vunpack.c.l.b16 %v2070
      %v2103 = vunpack.c.l.b16 %v2071
      %v2104 = vunpack.c.l.b16 %v2072
      %v2105 = vunpack.c.l.b16 %v2073
      %v2106 = vunpack.c.l.b16 %v2074
      %v2107 = vunpack.c.l.b16 %v2075
      %v2108 = vunpack.c.l.b16 %v2076
      %v2109 = vpack.c.b16 %v2094, %v2093
      %v2110 = vpack.c.b16 %v2096, %v2095
      %v2111 = vpack.c.b16 %v2098, %v2097
      %v2112 = vpack.c.b16 %v2100, %v2099
      %v2113 = vpack.c.b16 %v2102, %v2101
      %v2114 = vpack.c.b16 %v2104, %v2103
      %v2115 = vpack.c.b16 %v2106, %v2105
      %v2116 = vpack.c.b16 %v2108, %v2107
      %vm2125 = vcmask 1043456
      %vm2126 = vcmask 654340
      %vm2127 = vmor %vm2126, %vm2125
      %2128 = vst.msk [vmem:[%s197] sm:$0xff] %vm2127, %v2109
      %2129 = vst.msk [vmem:[%s197 + $0x8] sm:$0xff] %vm2127, %v2110
      %2130 = vst.msk [vmem:[%s197 + $0x10] sm:$0xff] %vm2127, %v2111
      %2131 = vst.msk [vmem:[%s197 + $0x18] sm:$0xff] %vm2127, %v2112
      %2132 = vst.msk [vmem:[%s197 + $0x20] sm:$0xff] %vm2127, %v2113
      %2133 = vst.msk [vmem:[%s197 + $0x28] sm:$0xff] %vm2127, %v2114
      %2134 = vst.msk [vmem:[%s197 + $0x30] sm:$0xff] %vm2127, %v2115
      %2135 = vst.msk [vmem:[%s197 + $0x38] sm:$0xff] %vm2127, %v2116
      %p2136 = scmp.lt.s32.totalorder %s15, 3
      %s2137 = scalar_select %p2136, %s15, 3
      %s2138 = smul.addr %s2137, 16
      %s2139 = smul.addr %s2138, 4
      %s2140 = scalar_lea.vmem %s4, %s2139
      // Predicated region
      $region37: #{mixed_4b_forward.6} parent=35 // pred_check
        %p2141 = pneg %p122
      $region38: #{mixed_4b_forward.6} parent=35 // pred_check_branch
        %2143 = sbr.rel (%p2141) target = $region40
      $region39: #{mixed_4b_forward.6} parent=35 // pred_region
        _
      $region40: #{mixed_4b_forward.6} parent=35 // pred_fallthru
        _
    $region36: #{mixed_4b_forward.6} parent=5 // pred_fallthru
      _
    %p2144 = scmp.le.s32.totalorder 2, %s10
    // Predicated region
    $region41: #{mixed_4b_forward.6} parent=5 // pred_check
      %p2145 = pneg %p2144
    $region42: #{mixed_4b_forward.6} parent=5 // pred_check_branch
      %2147 = sbr.rel (%p2145) target = $region44
    $region43: #{mixed_4b_forward.6} parent=5 // pred_region
      %s2148 = ssub.s32 %s10, 2
      // Predicated region
      $region45: #{mixed_4b_forward.6} parent=43 // pred_check
        %p2149 = pneg %p128
      $region46: #{mixed_4b_forward.6} parent=43 // pred_check_branch
        %2151 = sbr.rel (%p2149) target = $region48
      $region47: #{mixed_4b_forward.6} parent=43 // pred_region
        %p2152 = scmp.lt.s32.totalorder %s16, 3
        %s2153 = scalar_select %p2152, %s16, 3
        %s2154 = smul.addr %s2153, 16
        %s2155 = smul.addr %s2154, 4
        %s2156 = scalar_lea.vmem %s4, %s2155
      $region48: #{mixed_4b_forward.6} parent=43 // pred_fallthru
        _
    $region44: #{mixed_4b_forward.6} parent=5 // pred_fallthru
      _
  $region6: #{mixed_4b_forward.6} parent=0 // loop_footer
    %s14 = sadd.s32 1, %s10
  $region7: #{mixed_4b_forward.6} parent=0 // loop_footer_branch
    %9 = sbr.rel target = $region3
  $region8: #{mixed_4b_forward.6} parent=0 // loop_exit
    _

</llo_original>
